<compile_context>
chip_gen: v7x
topology: tpu7x:2x2x1
jax: 0.10.0
libtpu: 0.0.40
codegen_flags: <defaults>
</compile_context>

<pallas_src>
import functools

import jax
import jax.numpy as jnp
from jax.experimental import pallas as pl
from jax.experimental.pallas import tpu as pltpu

EPS = 1e-5  # BatchNorm2d default eps


def _vmem_budget_bytes():
    cap = None
    try:
        info = pltpu.get_tpu_info()
        cap = getattr(info, "vmem_capacity_bytes", None)
    except Exception:
        cap = None
    if not cap:
        cap = 64 * 1024 * 1024          # assume v7x (smallest VMEM) if unknown
    # ~3/4 of physical, clamped to [32 MiB, 100 MiB]
    return int(min(max((cap * 3) // 4, 32 * 1024 * 1024), 100 * 1024 * 1024))


VMEM_BUDGET = _vmem_budget_bytes()


def _largest_divisor(n, limit, align=8):
    """Largest divisor of n that is <= limit, preferring multiples of `align`."""
    limit = int(max(1, min(n, limit)))
    best, best_aligned = 1, None
    for d in range(1, limit + 1):
        if n % d == 0:
            best = d
            if d % align == 0:
                best_aligned = d
    return best_aligned if best_aligned is not None else best


# ----------------------------------------------------------------------------
# Kernel 1: ConvTranspose2d(kernel=2, stride=2).
#   y[n, co, 2h+kh, 2w+kw] = sum_ci x[n, ci, h, w] * W[ci, co, kh, kw] + b[co]
#   Output array is (N*H, 2, W, 2*Chalf): a row-major reshape in the wrapper gives
#   (N, 2H, 2W, Chalf) directly (no HBM scatter / transpose pass).
# ----------------------------------------------------------------------------
def _upsample_kernel(x_ref, w_ref, b_ref, o_ref, *, TM, W, Cin, Ck, mxu_dtype):
    xm = x_ref[...].reshape(TM * W, Cin).astype(mxu_dtype)
    # One MXU matmul with N = 2*Ck = 4*Chalf (both kh slabs at once); bias hoisted.
    y = jnp.dot(xm, w_ref[...], preferred_element_type=jnp.float32) + b_ref[...]
    y = y.astype(o_ref.dtype)
    o_ref[:, 0:1, :, :] = y[:, :Ck].reshape(TM, 1, W, Ck)
    o_ref[:, 1:2, :, :] = y[:, Ck:].reshape(TM, 1, W, Ck)


def conv_transpose_2x2(x_nhwc, w_torch, b, *, mxu_dtype, out_dtype):
    """x_nhwc: (N,H,W,Cin); w_torch: (Cin, Chalf, 2, 2) PyTorch layout; b: (Chalf,)."""
    N, H, W, Cin = x_nhwc.shape
    Chalf = w_torch.shape[1]
    Ck = 2 * Chalf
    R = N * H

    row_cost = (2 * W * Cin * x_nhwc.dtype.itemsize
                + 2 * 2 * W * Ck * jnp.dtype(out_dtype).itemsize)
    target = max(8, (VMEM_BUDGET // 2) // max(row_cost, 1))
    TM = _largest_divisor(R, min(target, 512))

    # (Cin, Chalf, kh, kw) -> (Cin, kh, kw, Chalf) -> (Cin, 4*Chalf); col = kh*Ck + kw*Chalf + co
    w2 = jnp.transpose(w_torch, (0, 2, 3, 1)).reshape(Cin, 2 * Ck).astype(mxu_dtype)
    b2 = jnp.tile(b, 4).reshape(1, 2 * Ck).astype(jnp.float32)
    x3 = x_nhwc.reshape(R, W, Cin)

    kernel = functools.partial(_upsample_kernel, TM=TM, W=W, Cin=Cin, Ck=Ck,
                               mxu_dtype=mxu_dtype)
    y = pl.pallas_call(
        kernel,
        grid=(R // TM,),
        out_shape=jax.ShapeDtypeStruct((R, 2, W, Ck), out_dtype),
        in_specs=[
            pl.BlockSpec((TM, W, Cin), lambda i: (i, 0, 0)),
            pl.BlockSpec((Cin, 2 * Ck), lambda i: (0, 0)),
            pl.BlockSpec((1, 2 * Ck), lambda i: (0, 0)),
        ],
        out_specs=pl.BlockSpec((TM, 2, W, Ck), lambda i: (i, 0, 0, 0)),
        compiler_params=pltpu.CompilerParams(
            dimension_semantics=("parallel",),
            vmem_limit_bytes=VMEM_BUDGET),
    )(x3, w2, b2)

    return y.reshape(N, 2 * H, 2 * W, Chalf)


# ----------------------------------------------------------------------------
# Kernel 2 (phase 1): Conv2d 3x3 pad=1 + per-tile BN statistics.
#   * Multiple inputs = fused channel concat (weight K-slab per input).
#   * Optional fused "previous BN": relu(x*scale + shift) applied on load.
#   * Halo rows via two 1-row clamped BlockSpecs, gated to zero at image borders.
#   * im2col scratch carries (kh, kw, ci) -> ONE matmul with K = 9*sum(Ci).
#   * Conv bias omitted (exactly cancelled by training-mode BatchNorm).
# ----------------------------------------------------------------------------
def _conv_stats_kernel(*refs, cins, TR, Wc, Cout, Hn, fuse_in_bn, mxu_dtype):
    nin = len(cins)
    pos = 0
    in_refs = refs[pos:pos + 3 * nin]; pos += 3 * nin
    bn_refs = None
    if fuse_in_bn:
        bn_refs = refs[pos:pos + 2 * nin]; pos += 2 * nin
    w_ref = refs[pos]; pos += 1
    z_ref, mean_ref, m2_ref, xcol_ref = refs[pos:pos + 4]

    j = pl.program_id(1)
    top_gate = (j > 0).astype(mxu_dtype)        # zero-pad above the image top
    bot_gate = (j < Hn - 1).astype(mxu_dtype)   # zero-pad below the image bottom

    koff = 0
    for i in range(nin):
        Ci = cins[i]
        top_r, body_r, bot_r = in_refs[3 * i: 3 * i + 3]
        if fuse_in_bn:
            sc = bn_refs[2 * i][...]            # (1, Ci) f32
            sh = bn_refs[2 * i + 1][...]

        def _act(v):
            if fuse_in_bn:
                v = jnp.maximum(v.astype(jnp.float32) * sc + sh, 0.0)
            return v.astype(mxu_dtype)

        body = _act(body_r[0])                       # (TR, Wc, Ci)
        top = _act(top_r[0]) * top_gate              # (1, Wc, Ci), post-activation pad
        bot = _act(bot_r[0]) * bot_gate
        zcol = jnp.zeros((TR, 1, Ci), mxu_dtype)

        for kh in range(3):
            if kh == 0:
                S = top if TR == 1 else jnp.concatenate([top, body[:TR - 1]], axis=0)
            elif kh == 1:
                S = body
            else:
                S = bot if TR == 1 else jnp.concatenate([body[1:], bot], axis=0)
            base = koff + kh * 3 * Ci
            if Wc == 1:
                left, right = zcol, zcol
            else:
                left = jnp.concatenate([zcol, S[:, :Wc - 1, :]], axis=1)   # in[.., w-1, ..]
                right = jnp.concatenate([S[:, 1:, :], zcol], axis=1)       # in[.., w+1, ..]
            xcol_ref[:, :, base:base + Ci] = left
            xcol_ref[:, :, base + Ci:base + 2 * Ci] = S
            xcol_ref[:, :, base + 2 * Ci:base + 3 * Ci] = right
        koff += 9 * Ci

    # Single MXU matmul: all taps and all fused inputs accumulate on the K axis.
    X = xcol_ref[...].reshape(TR * Wc, koff)
    z = jnp.dot(X, w_ref[...], preferred_element_type=jnp.float32)   # (TR*Wc, Cout) f32

    z_ref[...] = z.astype(z_ref.dtype).reshape(1, TR * Wc, Cout)

    # Per-tile centered statistics (stable; merged Chan-style in the wrapper).
    inv_n = 1.0 / float(TR * Wc)
    mean_t = jnp.sum(z, axis=0, keepdims=True) * inv_n
    m2_t = jnp.sum(jnp.square(z - mean_t), axis=0, keepdims=True)
    mean_ref[...] = mean_t.reshape(1, 1, Cout)
    m2_ref[...] = m2_t.reshape(1, 1, Cout)


# ----------------------------------------------------------------------------
# Kernel 3: standalone lane-dense BN scale/shift + ReLU (last conv only).
# ----------------------------------------------------------------------------
def _bn_relu_kernel(z_ref, scale_ref, shift_ref, o_ref):
    z = z_ref[...].astype(jnp.float32)
    o_ref[...] = jnp.maximum(z * scale_ref[...] + shift_ref[...], 0.0)


def conv_block(inputs, w_torch, gamma, beta, *, in_bn, finalize, mxu_dtype, act_dtype):
    """One ConvBatchNorm stage.
    inputs: list of NHWC arrays (fused channel-concat order).
    in_bn : None, or list of (scale, shift) per input -> relu(x*scale+shift) fused on load.
    Returns (out, scale, shift).  If finalize: out = post-BN/ReLU activation (f32);
    else: out = pre-BN conv response z (act_dtype), scale/shift to fuse into next conv."""
    N, Hc, Wc, _ = inputs[0].shape
    Cout = w_torch.shape[0]
    cins = [int(a.shape[-1]) for a in inputs]
    Ctot = sum(cins)
    assert w_torch.shape[1] == Ctot

    mxu_bytes = jnp.dtype(mxu_dtype).itemsize
    act_bytes = jnp.dtype(act_dtype).itemsize
    row_cost = (2 * sum(Wc * c * a.dtype.itemsize for c, a in zip(cins, inputs))
                + Wc * 9 * Ctot * mxu_bytes
                + 2 * Wc * Cout * act_bytes)
    target = max(8, (VMEM_BUDGET // 2) // max(row_cost, 1))
    TR = _largest_divisor(Hc, min(target, 256))
    Hn = Hc // TR
    NB = N * Hn
    M = N * Hc * Wc

    # Weight K layout per input: (kh, kw, ci); concatenated over inputs -> (9*Ctot, Cout).
    ws, off = [], 0
    for c in cins:
        wt = w_torch[:, off:off + c, :, :]                        # (Cout, c, 3, 3)
        ws.append(jnp.transpose(wt, (2, 3, 1, 0)).reshape(9 * c, Cout))
        off += c
    w_all = jnp.concatenate(ws, axis=0).astype(mxu_dtype)

    fuse_in_bn = in_bn is not None

    in_specs, flat_inputs = [], []
    for a, c in zip(inputs, cins):
        in_specs += [
            # halo row above, body tile, halo row below (clamped element-row index maps)
            pl.BlockSpec((1, 1, Wc, c),
                         lambda n, j: (n, jnp.maximum(j * TR - 1, 0), 0, 0)),
            pl.BlockSpec((1, TR, Wc, c), lambda n, j: (n, j, 0, 0)),
            pl.BlockSpec((1, 1, Wc, c),
                         lambda n, j: (n, jnp.minimum(j * TR + TR, Hc - 1), 0, 0)),
        ]
        flat_inputs += [a, a, a]
    if fuse_in_bn:
        for (sc, sh), c in zip(in_bn, cins):
            in_specs += [pl.BlockSpec((1, c), lambda n, j: (0, 0)),
                         pl.BlockSpec((1, c), lambda n, j: (0, 0))]
            flat_inputs += [sc.reshape(1, c).astype(jnp.float32),
                            sh.reshape(1, c).astype(jnp.float32)]
    in_specs.append(pl.BlockSpec((9 * Ctot, Cout), lambda n, j: (0, 0)))
    flat_inputs.append(w_all)

    kernel = functools.partial(_conv_stats_kernel, cins=tuple(cins), TR=TR, Wc=Wc,
                               Cout=Cout, Hn=Hn, fuse_in_bn=fuse_in_bn,
                               mxu_dtype=mxu_dtype)
    z3, mean_t, m2_t = pl.pallas_call(
        kernel,
        grid=(N, Hn),
        out_shape=(jax.ShapeDtypeStruct((NB, TR * Wc, Cout), act_dtype),
                   jax.ShapeDtypeStruct((NB, 1, Cout), jnp.float32),
                   jax.ShapeDtypeStruct((NB, 1, Cout), jnp.float32)),
        in_specs=in_specs,
        out_specs=(pl.BlockSpec((1, TR * Wc, Cout), lambda n, j: (n * Hn + j, 0, 0)),
                   pl.BlockSpec((1, 1, Cout), lambda n, j: (n * Hn + j, 0, 0)),
                   pl.BlockSpec((1, 1, Cout), lambda n, j: (n * Hn + j, 0, 0))),
        scratch_shapes=[pltpu.VMEM((TR, Wc, 9 * Ctot), mxu_dtype)],
        compiler_params=pltpu.CompilerParams(
            dimension_semantics=("parallel", "parallel"),
            vmem_limit_bytes=VMEM_BUDGET),
    )(*flat_inputs)

    # Chan/Welford merge of per-tile (mean, M2) -> global training-mode BN stats (f32).
    n_t = TR * Wc
    mean_tiles = mean_t[:, 0, :]                            # (NB, Cout); equal tile counts
    mean = jnp.mean(mean_tiles, axis=0)
    m2 = jnp.sum(m2_t[:, 0, :], axis=0) + n_t * jnp.sum(jnp.square(mean_tiles - mean), axis=0)
    var = m2 / M                                            # biased variance (training mode)
    inv = jax.lax.rsqrt(var + EPS)
    scale = gamma * inv
    shift = beta - mean * scale

    if not finalize:
        # Pre-BN z returned; BN+ReLU is fused into the next conv's load path.
        return z3.reshape(N, Hc, Wc, Cout), scale, shift

    # Last conv in the chain: lane-dense (W folded into lanes) BN + ReLU.
    zl = z3.reshape(NB, TR, Wc * Cout)                      # free reshape
    scale_t = jnp.tile(scale, Wc).reshape(1, Wc * Cout).astype(jnp.float32)
    shift_t = jnp.tile(shift, Wc).reshape(1, Wc * Cout).astype(jnp.float32)
    h = pl.pallas_call(
        _bn_relu_kernel,
        grid=(NB,),
        out_shape=jax.ShapeDtypeStruct((NB, TR, Wc * Cout), jnp.float32),
        in_specs=[pl.BlockSpec((1, TR, Wc * Cout), lambda b: (b, 0, 0)),
                  pl.BlockSpec((1, Wc * Cout), lambda b: (0, 0)),
                  pl.BlockSpec((1, Wc * Cout), lambda b: (0, 0))],
        out_specs=pl.BlockSpec((1, TR, Wc * Cout), lambda b: (b, 0, 0)),
        compiler_params=pltpu.CompilerParams(
            dimension_semantics=("parallel",),
            vmem_limit_bytes=VMEM_BUDGET),
    )(zl, scale_t, shift_t)
    return h.reshape(N, Hc, Wc, Cout), scale, shift


# ----------------------------------------------------------------------------
# UpBlock forward (NCHW in / NCHW out, matching the PyTorch module)
# ----------------------------------------------------------------------------
def upblock_forward(params, x_nchw, skip_nchw, *, mxu_dtype=jnp.bfloat16):
    act_dtype = mxu_dtype                       # intermediate activation storage dtype
    x = jnp.transpose(x_nchw, (0, 2, 3, 1))     # NCHW -> NHWC (boundary only)
    skip = jnp.transpose(skip_nchw, (0, 2, 3, 1))

    up = conv_transpose_2x2(x, params["up_w"], params["up_b"],
                            mxu_dtype=mxu_dtype, out_dtype=act_dtype)

    # torch.cat([up, skip], dim=1) fused into the first conv via per-input K-slabs.
    inputs = [up, skip]
    in_bn = None
    nconv = len(params["convs"])
    h = None
    for idx, cp in enumerate(params["convs"]):
        # cp["b"] (conv bias) is deliberately unused: cancelled by training-mode BN.
        out, scale, shift = conv_block(
            inputs, cp["w"], cp["gamma"], cp["beta"],
            in_bn=in_bn, finalize=(idx == nconv - 1),
            mxu_dtype=mxu_dtype, act_dtype=act_dtype)
        if idx == nconv - 1:
            h = out
        else:
            inputs = [out]
            in_bn = [(scale, shift)]
    return jnp.transpose(h, (0, 3, 1, 2))       # NHWC -> NCHW


# ----------------------------------------------------------------------------
# Pure-JAX NCHW reference (mirrors PyTorch semantics) for validation.
# ----------------------------------------------------------------------------
def upblock_reference(params, x_nchw, skip_nchw):
    N, Cin, H, W = x_nchw.shape
    wu, bu = params["up_w"], params["up_b"]
    Ch = wu.shape[1]
    y = jnp.einsum("nchw,cokl->nohwkl", x_nchw, wu,
                   precision=jax.lax.Precision.HIGHEST)
    y = jnp.transpose(y, (0, 1, 2, 4, 3, 5)).reshape(N, Ch, 2 * H, 2 * W)
    y = y + bu[None, :, None, None]

    h = jnp.concatenate([y, skip_nchw], axis=1)
    for cp in params["convs"]:
        hp = jnp.pad(h, ((0, 0), (0, 0), (1, 1), (1, 1)))
        conv = jax.lax.conv_general_dilated(
            hp, cp["w"], (1, 1), "VALID",
            dimension_numbers=("NCHW", "OIHW", "NCHW"),
            precision=jax.lax.Precision.HIGHEST)
        conv = conv + cp["b"][None, :, None, None]
        mean = conv.mean(axis=(0, 2, 3), keepdims=True)
        var = ((conv - mean) ** 2).mean(axis=(0, 2, 3), keepdims=True)
        h = jnp.maximum(
            (conv - mean) * jax.lax.rsqrt(var + EPS)
            * cp["gamma"][None, :, None, None] + cp["beta"][None, :, None, None],
            0.0)
    return h


# ----------------------------------------------------------------------------
# Deterministic parameter init + driver
# ----------------------------------------------------------------------------
def make_params(key, in_channels, nb_conv):
    ch = in_channels // 2
    keys = jax.random.split(key, 4 + 4 * nb_conv)
    params = {
        "up_w": 0.2 * jax.random.normal(keys[0], (in_channels, ch, 2, 2), jnp.float32),
        "up_b": 0.1 * jax.random.normal(keys[1], (ch,), jnp.float32),
        "convs": [],
    }
    cin = in_channels
    for i in range(nb_conv):
        k = keys[4 + 4 * i: 8 + 4 * i]
        params["convs"].append({
            "w": 0.2 * jax.random.normal(k[0], (ch, cin, 3, 3), jnp.float32),
            "b": 0.1 * jax.random.normal(k[1], (ch,), jnp.float32),
            "gamma": 1.0 + 0.1 * jax.random.normal(k[2], (ch,), jnp.float32),
            "beta": 0.1 * jax.random.normal(k[3], (ch,), jnp.float32),
        })
        cin = ch
    return params


if __name__ == "__main__":
    in_channels, nb_conv = 8, 2
    N, H, W = 2, 8, 8                       # x: low-res feature map
    key = jax.random.PRNGKey(0)
    kx, ks, kp = jax.random.split(key, 3)

    x = jax.random.normal(kx, (N, in_channels, H, W), jnp.float32)          # NCHW
    skip_x = jax.random.normal(ks, (N, in_channels // 2, 2 * H, 2 * W),
                               jnp.float32)                                 # NCHW
    params = make_params(kp, in_channels, nb_conv)

    fwd_bf16 = jax.jit(functools.partial(upblock_forward, mxu_dtype=jnp.bfloat16))
    fwd_f32 = jax.jit(functools.partial(upblock_forward, mxu_dtype=jnp.float32))

    out = jax.block_until_ready(fwd_bf16(params, x, skip_x))     # bf16 MXU path
    out_f32 = jax.block_until_ready(fwd_f32(params, x, skip_x))  # f32 MXU path
    ref = upblock_reference(params, x, skip_x)

    assert out.shape == ref.shape == (N, in_channels // 2, 2 * H, 2 * W), out.shape
    if not jnp.allclose(out_f32, ref, atol=1e-2, rtol=1e-2):
        raise AssertionError("Pallas UpBlock (f32 MXU) mismatch vs JAX reference")
    if not jnp.allclose(out, ref, atol=5e-2, rtol=5e-2):
        raise AssertionError("Pallas UpBlock (bf16 MXU) mismatch vs JAX reference")

    print("KERNEL_OK")
</pallas_src>

<mosaic_0001>
module attributes {stable_mosaic.version = 11 : i64} {
  func.func @_upsample_kernel(%arg0: i32, %arg1: memref<16x8x8xf32, #tpu.memory_space<vmem>>, %arg2: memref<8x16xbf16, #tpu.memory_space<vmem>>, %arg3: memref<1x16xf32, #tpu.memory_space<vmem>>, %arg4: memref<16x2x8x8xbf16, #tpu.memory_space<vmem>>) attributes {dimension_semantics = [#tpu.dimension_semantics<parallel>], iteration_bounds = array<i64: 1>, scalar_prefetch = 0 : i64, scratch_operands = 0 : i64, tpu.core_type = #tpu.core_type<tc>, window_params = [{transform_indices = @transform_0, window_bounds = array<i64: 16, 8, 8>}, {pipeline_mode = #tpu.pipeline_mode<synchronous>, transform_indices = @transform_1, window_bounds = array<i64: 8, 16>}, {pipeline_mode = #tpu.pipeline_mode<synchronous>, transform_indices = @transform_2, window_bounds = array<i64: 1, 16>}, {transform_indices = @transform_3, window_bounds = array<i64: 16, 2, 8, 8>}]} {
    %c0 = arith.constant 0 : index
    %c0_0 = arith.constant 0 : index
    %c0_1 = arith.constant 0 : index
    %0 = vector.load %arg1[%c0, %c0_0, %c0_1] : memref<16x8x8xf32, #tpu.memory_space<vmem>>, vector<16x8x8xf32>
    %1 = vector.shape_cast %0 : vector<16x8x8xf32> to vector<128x8xf32>
    %2 = arith.truncf %1 : vector<128x8xf32> to vector<128x8xbf16>
    %c0_2 = arith.constant 0 : index
    %c0_3 = arith.constant 0 : index
    %3 = vector.load %arg2[%c0_2, %c0_3] : memref<8x16xbf16, #tpu.memory_space<vmem>>, vector<8x16xbf16>
    %cst = arith.constant dense<0.000000e+00> : vector<128x16xf32>
    %4 = tpu.matmul %2, %3, %cst {dimension_numbers = #tpu.dot_dimension_numbers<[1], [0], [0], [1], [0, 0, 1, 1], [], []>} : vector<128x8xbf16>, vector<8x16xbf16>, vector<128x16xf32> -> vector<128x16xf32>
    %c0_4 = arith.constant 0 : index
    %c0_5 = arith.constant 0 : index
    %5 = vector.load %arg3[%c0_4, %c0_5] : memref<1x16xf32, #tpu.memory_space<vmem>>, vector<1x16xf32>
    %6 = vector.broadcast %5 : vector<1x16xf32> to vector<128x16xf32>
    %7 = arith.addf %4, %6 : vector<128x16xf32>
    %8 = arith.truncf %7 : vector<128x16xf32> to vector<128x16xbf16>
    %9 = vector.extract_strided_slice %8 {offsets = [0, 0], sizes = [128, 8], strides = [1, 1]} : vector<128x16xbf16> to vector<128x8xbf16>
    %10 = vector.shape_cast %9 : vector<128x8xbf16> to vector<16x1x8x8xbf16>
    %c0_6 = arith.constant 0 : index
    %c0_7 = arith.constant 0 : index
    %c0_8 = arith.constant 0 : index
    %c0_9 = arith.constant 0 : index
    %11 = vector.load %arg4[%c0_6, %c0_7, %c0_8, %c0_9] : memref<16x2x8x8xbf16, #tpu.memory_space<vmem>>, vector<16x1x8x8xbf16>
    tpu.vector_store %arg4[%c0_6, %c0_7, %c0_8, %c0_9], %10 {strides = array<i32>} : memref<16x2x8x8xbf16, #tpu.memory_space<vmem>>, vector<16x1x8x8xbf16>,
    %12 = vector.extract_strided_slice %8 {offsets = [0, 8], sizes = [128, 8], strides = [1, 1]} : vector<128x16xbf16> to vector<128x8xbf16>
    %13 = vector.shape_cast %12 : vector<128x8xbf16> to vector<16x1x8x8xbf16>
    %c0_10 = arith.constant 0 : index
    %c1 = arith.constant 1 : index
    %c0_11 = arith.constant 0 : index
    %c0_12 = arith.constant 0 : index
    %14 = vector.load %arg4[%c0_10, %c1, %c0_11, %c0_12] : memref<16x2x8x8xbf16, #tpu.memory_space<vmem>>, vector<16x1x8x8xbf16>
    tpu.vector_store %arg4[%c0_10, %c1, %c0_11, %c0_12], %13 {strides = array<i32>} : memref<16x2x8x8xbf16, #tpu.memory_space<vmem>>, vector<16x1x8x8xbf16>,
    return
  }
  func.func @transform_0(%arg0: i32) -> (i32, i32, i32) {
    %c0_i32 = arith.constant 0 : i32
    %c0_i32_0 = arith.constant 0 : i32
    %c0_i32_1 = arith.constant 0 : i32
    return %arg0, %c0_i32, %c0_i32_0 : i32, i32, i32
  }
  func.func @transform_1(%arg0: i32) -> (i32, i32) {
    %c0_i32 = arith.constant 0 : i32
    %c0_i32_0 = arith.constant 0 : i32
    %c0_i32_1 = arith.constant 0 : i32
    return %c0_i32, %c0_i32_0 : i32, i32
  }
  func.func @transform_2(%arg0: i32) -> (i32, i32) {
    %c0_i32 = arith.constant 0 : i32
    %c0_i32_0 = arith.constant 0 : i32
    %c0_i32_1 = arith.constant 0 : i32
    return %c0_i32, %c0_i32_0 : i32, i32
  }
  func.func @transform_3(%arg0: i32) -> (i32, i32, i32, i32) {
    %c0_i32 = arith.constant 0 : i32
    %c0_i32_0 = arith.constant 0 : i32
    %c0_i32_1 = arith.constant 0 : i32
    %c0_i32_2 = arith.constant 0 : i32
    return %arg0, %c0_i32, %c0_i32_0, %c0_i32_1 : i32, i32, i32, i32
  }
}

module attributes {stable_mosaic.version = 11 : i64} {
  func.func @_conv_stats_kernel(%arg0: i32, %arg1: i32, %arg2: memref<1x1x16x4xbf16, #tpu.memory_space<vmem>>, %arg3: memref<1x16x16x4xbf16, #tpu.memory_space<vmem>>, %arg4: memref<1x1x16x4xbf16, #tpu.memory_space<vmem>>, %arg5: memref<1x1x16x4xf32, #tpu.memory_space<vmem>>, %arg6: memref<1x16x16x4xf32, #tpu.memory_space<vmem>>, %arg7: memref<1x1x16x4xf32, #tpu.memory_space<vmem>>, %arg8: memref<72x4xbf16, #tpu.memory_space<vmem>>, %arg9: memref<1x256x4xbf16, #tpu.memory_space<vmem>>, %arg10: memref<1x1x4xf32, #tpu.memory_space<vmem>>, %arg11: memref<1x1x4xf32, #tpu.memory_space<vmem>>, %arg12: memref<16x16x72xbf16, #tpu.memory_space<vmem>>) attributes {dimension_semantics = [#tpu.dimension_semantics<parallel>, #tpu.dimension_semantics<parallel>], iteration_bounds = array<i64: 2, 1>, scalar_prefetch = 0 : i64, scratch_operands = 1 : i64, tpu.core_type = #tpu.core_type<tc>, window_params = [{transform_indices = @transform_0, window_bounds = array<i64: 1, 1, 16, 4>}, {transform_indices = @transform_1, window_bounds = array<i64: 1, 16, 16, 4>}, {transform_indices = @transform_2, window_bounds = array<i64: 1, 1, 16, 4>}, {transform_indices = @transform_3, window_bounds = array<i64: 1, 1, 16, 4>}, {transform_indices = @transform_4, window_bounds = array<i64: 1, 16, 16, 4>}, {transform_indices = @transform_5, window_bounds = array<i64: 1, 1, 16, 4>}, {pipeline_mode = #tpu.pipeline_mode<synchronous>, transform_indices = @transform_6, window_bounds = array<i64: 72, 4>}, {transform_indices = @transform_7, window_bounds = array<i64: 1, 256, 4>}, {transform_indices = @transform_8, window_bounds = array<i64: 1, 1, 4>}, {transform_indices = @transform_9, window_bounds = array<i64: 1, 1, 4>}]} {
    %c0_i32 = arith.constant 0 : i32
    %0 = arith.cmpi sgt, %arg1, %c0_i32 : i32
    %1 = arith.extui %0 : i1 to i32
    %2 = arith.sitofp %1 : i32 to f32
    %3 = arith.truncf %2 : f32 to bf16
    %c0_i32_0 = arith.constant 0 : i32
    %4 = arith.cmpi slt, %arg1, %c0_i32_0 : i32
    %5 = arith.extui %4 : i1 to i32
    %6 = arith.sitofp %5 : i32 to f32
    %7 = arith.truncf %6 : f32 to bf16
    %c0 = arith.constant 0 : index
    %c0_1 = arith.constant 0 : index
    %c0_2 = arith.constant 0 : index
    %c0_3 = arith.constant 0 : index
    %8 = vector.load %arg3[%c0, %c0_1, %c0_2, %c0_3] : memref<1x16x16x4xbf16, #tpu.memory_space<vmem>>, vector<1x16x16x4xbf16>
    %9 = vector.shape_cast %8 : vector<1x16x16x4xbf16> to vector<16x16x4xbf16>
    %c0_4 = arith.constant 0 : index
    %c0_5 = arith.constant 0 : index
    %c0_6 = arith.constant 0 : index
    %c0_7 = arith.constant 0 : index
    %10 = vector.load %arg2[%c0_4, %c0_5, %c0_6, %c0_7] : memref<1x1x16x4xbf16, #tpu.memory_space<vmem>>, vector<1x1x16x4xbf16>
    %11 = vector.shape_cast %10 : vector<1x1x16x4xbf16> to vector<1x16x4xbf16>
    %12 = vector.broadcast %3 : bf16 to vector<1x16x4xbf16>
    %13 = arith.mulf %11, %12 : vector<1x16x4xbf16>
    %c0_8 = arith.constant 0 : index
    %c0_9 = arith.constant 0 : index
    %c0_10 = arith.constant 0 : index
    %c0_11 = arith.constant 0 : index
    %14 = vector.load %arg4[%c0_8, %c0_9, %c0_10, %c0_11] : memref<1x1x16x4xbf16, #tpu.memory_space<vmem>>, vector<1x1x16x4xbf16>
    %15 = vector.shape_cast %14 : vector<1x1x16x4xbf16> to vector<1x16x4xbf16>
    %16 = vector.broadcast %7 : bf16 to vector<1x16x4xbf16>
    %17 = arith.mulf %15, %16 : vector<1x16x4xbf16>
    %cst = arith.constant 0.000000e+00 : bf16
    %18 = vector.broadcast %cst : bf16 to vector<16x1x4xbf16>
    %19 = vector.extract_strided_slice %9 {offsets = [0, 0, 0], sizes = [15, 16, 4], strides = [1, 1, 1]} : vector<16x16x4xbf16> to vector<15x16x4xbf16>
    %20 = tpu.concatenate %13, %19 in 0 : vector<1x16x4xbf16>, vector<15x16x4xbf16> -> vector<16x16x4xbf16>
    %21 = vector.extract_strided_slice %20 {offsets = [0, 0, 0], sizes = [16, 15, 4], strides = [1, 1, 1]} : vector<16x16x4xbf16> to vector<16x15x4xbf16>
    %22 = tpu.concatenate %18, %21 in 1 : vector<16x1x4xbf16>, vector<16x15x4xbf16> -> vector<16x16x4xbf16>
    %23 = vector.extract_strided_slice %20 {offsets = [0, 1, 0], sizes = [16, 15, 4], strides = [1, 1, 1]} : vector<16x16x4xbf16> to vector<16x15x4xbf16>
    %24 = tpu.concatenate %23, %18 in 1 : vector<16x15x4xbf16>, vector<16x1x4xbf16> -> vector<16x16x4xbf16>
    %c0_12 = arith.constant 0 : index
    %c0_13 = arith.constant 0 : index
    %c0_14 = arith.constant 0 : index
    %25 = vector.load %arg12[%c0_12, %c0_13, %c0_14] : memref<16x16x72xbf16, #tpu.memory_space<vmem>>, vector<16x16x4xbf16>
    tpu.vector_store %arg12[%c0_12, %c0_13, %c0_14], %22 {strides = array<i32>} : memref<16x16x72xbf16, #tpu.memory_space<vmem>>, vector<16x16x4xbf16>,
    %c0_15 = arith.constant 0 : index
    %c0_16 = arith.constant 0 : index
    %c4 = arith.constant 4 : index
    %26 = vector.load %arg12[%c0_15, %c0_16, %c4] : memref<16x16x72xbf16, #tpu.memory_space<vmem>>, vector<16x16x4xbf16>
    tpu.vector_store %arg12[%c0_15, %c0_16, %c4], %20 {strides = array<i32>} : memref<16x16x72xbf16, #tpu.memory_space<vmem>>, vector<16x16x4xbf16>,
    %c0_17 = arith.constant 0 : index
    %c0_18 = arith.constant 0 : index
    %c8 = arith.constant 8 : index
    %27 = vector.load %arg12[%c0_17, %c0_18, %c8] : memref<16x16x72xbf16, #tpu.memory_space<vmem>>, vector<16x16x4xbf16>
    tpu.vector_store %arg12[%c0_17, %c0_18, %c8], %24 {strides = array<i32>} : memref<16x16x72xbf16, #tpu.memory_space<vmem>>, vector<16x16x4xbf16>,
    %28 = vector.extract_strided_slice %9 {offsets = [0, 0, 0], sizes = [16, 15, 4], strides = [1, 1, 1]} : vector<16x16x4xbf16> to vector<16x15x4xbf16>
    %29 = tpu.concatenate %18, %28 in 1 : vector<16x1x4xbf16>, vector<16x15x4xbf16> -> vector<16x16x4xbf16>
    %30 = vector.extract_strided_slice %9 {offsets = [0, 1, 0], sizes = [16, 15, 4], strides = [1, 1, 1]} : vector<16x16x4xbf16> to vector<16x15x4xbf16>
    %31 = tpu.concatenate %30, %18 in 1 : vector<16x15x4xbf16>, vector<16x1x4xbf16> -> vector<16x16x4xbf16>
    %c0_19 = arith.constant 0 : index
    %c0_20 = arith.constant 0 : index
    %c12 = arith.constant 12 : index
    %32 = vector.load %arg12[%c0_19, %c0_20, %c12] : memref<16x16x72xbf16, #tpu.memory_space<vmem>>, vector<16x16x4xbf16>
    tpu.vector_store %arg12[%c0_19, %c0_20, %c12], %29 {strides = array<i32>} : memref<16x16x72xbf16, #tpu.memory_space<vmem>>, vector<16x16x4xbf16>,
    %c0_21 = arith.constant 0 : index
    %c0_22 = arith.constant 0 : index
    %c16 = arith.constant 16 : index
    %33 = vector.load %arg12[%c0_21, %c0_22, %c16] : memref<16x16x72xbf16, #tpu.memory_space<vmem>>, vector<16x16x4xbf16>
    tpu.vector_store %arg12[%c0_21, %c0_22, %c16], %9 {strides = array<i32>} : memref<16x16x72xbf16, #tpu.memory_space<vmem>>, vector<16x16x4xbf16>,
    %c0_23 = arith.constant 0 : index
    %c0_24 = arith.constant 0 : index
    %c20 = arith.constant 20 : index
    %34 = vector.load %arg12[%c0_23, %c0_24, %c20] : memref<16x16x72xbf16, #tpu.memory_space<vmem>>, vector<16x16x4xbf16>
    tpu.vector_store %arg12[%c0_23, %c0_24, %c20], %31 {strides = array<i32>} : memref<16x16x72xbf16, #tpu.memory_space<vmem>>, vector<16x16x4xbf16>,
    %35 = vector.extract_strided_slice %9 {offsets = [1, 0, 0], sizes = [15, 16, 4], strides = [1, 1, 1]} : vector<16x16x4xbf16> to vector<15x16x4xbf16>
    %36 = tpu.concatenate %35, %17 in 0 : vector<15x16x4xbf16>, vector<1x16x4xbf16> -> vector<16x16x4xbf16>
    %37 = vector.extract_strided_slice %36 {offsets = [0, 0, 0], sizes = [16, 15, 4], strides = [1, 1, 1]} : vector<16x16x4xbf16> to vector<16x15x4xbf16>
    %38 = tpu.concatenate %18, %37 in 1 : vector<16x1x4xbf16>, vector<16x15x4xbf16> -> vector<16x16x4xbf16>
    %39 = vector.extract_strided_slice %36 {offsets = [0, 1, 0], sizes = [16, 15, 4], strides = [1, 1, 1]} : vector<16x16x4xbf16> to vector<16x15x4xbf16>
    %40 = tpu.concatenate %39, %18 in 1 : vector<16x15x4xbf16>, vector<16x1x4xbf16> -> vector<16x16x4xbf16>
    %c0_25 = arith.constant 0 : index
    %c0_26 = arith.constant 0 : index
    %c24 = arith.constant 24 : index
    %41 = vector.load %arg12[%c0_25, %c0_26, %c24] : memref<16x16x72xbf16, #tpu.memory_space<vmem>>, vector<16x16x4xbf16>
    tpu.vector_store %arg12[%c0_25, %c0_26, %c24], %38 {strides = array<i32>} : memref<16x16x72xbf16, #tpu.memory_space<vmem>>, vector<16x16x4xbf16>,
    %c0_27 = arith.constant 0 : index
    %c0_28 = arith.constant 0 : index
    %c28 = arith.constant 28 : index
    %42 = vector.load %arg12[%c0_27, %c0_28, %c28] : memref<16x16x72xbf16, #tpu.memory_space<vmem>>, vector<16x16x4xbf16>
    tpu.vector_store %arg12[%c0_27, %c0_28, %c28], %36 {strides = array<i32>} : memref<16x16x72xbf16, #tpu.memory_space<vmem>>, vector<16x16x4xbf16>,
    %c0_29 = arith.constant 0 : index
    %c0_30 = arith.constant 0 : index
    %c32 = arith.constant 32 : index
    %43 = vector.load %arg12[%c0_29, %c0_30, %c32] : memref<16x16x72xbf16, #tpu.memory_space<vmem>>, vector<16x16x4xbf16>
    tpu.vector_store %arg12[%c0_29, %c0_30, %c32], %40 {strides = array<i32>} : memref<16x16x72xbf16, #tpu.memory_space<vmem>>, vector<16x16x4xbf16>,
    %c0_31 = arith.constant 0 : index
    %c0_32 = arith.constant 0 : index
    %c0_33 = arith.constant 0 : index
    %c0_34 = arith.constant 0 : index
    %44 = vector.load %arg6[%c0_31, %c0_32, %c0_33, %c0_34] : memref<1x16x16x4xf32, #tpu.memory_space<vmem>>, vector<1x16x16x4xf32>
    %45 = vector.shape_cast %44 : vector<1x16x16x4xf32> to vector<16x16x4xf32>
    %46 = arith.truncf %45 : vector<16x16x4xf32> to vector<16x16x4xbf16>
    %c0_35 = arith.constant 0 : index
    %c0_36 = arith.constant 0 : index
    %c0_37 = arith.constant 0 : index
    %c0_38 = arith.constant 0 : index
    %47 = vector.load %arg5[%c0_35, %c0_36, %c0_37, %c0_38] : memref<1x1x16x4xf32, #tpu.memory_space<vmem>>, vector<1x1x16x4xf32>
    %48 = vector.shape_cast %47 : vector<1x1x16x4xf32> to vector<1x16x4xf32>
    %49 = arith.truncf %48 : vector<1x16x4xf32> to vector<1x16x4xbf16>
    %50 = vector.broadcast %3 : bf16 to vector<1x16x4xbf16>
    %51 = arith.mulf %49, %50 : vector<1x16x4xbf16>
    %c0_39 = arith.constant 0 : index
    %c0_40 = arith.constant 0 : index
    %c0_41 = arith.constant 0 : index
    %c0_42 = arith.constant 0 : index
    %52 = vector.load %arg7[%c0_39, %c0_40, %c0_41, %c0_42] : memref<1x1x16x4xf32, #tpu.memory_space<vmem>>, vector<1x1x16x4xf32>
    %53 = vector.shape_cast %52 : vector<1x1x16x4xf32> to vector<1x16x4xf32>
    %54 = arith.truncf %53 : vector<1x16x4xf32> to vector<1x16x4xbf16>
    %55 = vector.broadcast %7 : bf16 to vector<1x16x4xbf16>
    %56 = arith.mulf %54, %55 : vector<1x16x4xbf16>
    %cst_43 = arith.constant 0.000000e+00 : bf16
    %57 = vector.broadcast %cst_43 : bf16 to vector<16x1x4xbf16>
    %58 = vector.extract_strided_slice %46 {offsets = [0, 0, 0], sizes = [15, 16, 4], strides = [1, 1, 1]} : vector<16x16x4xbf16> to vector<15x16x4xbf16>
    %59 = tpu.concatenate %51, %58 in 0 : vector<1x16x4xbf16>, vector<15x16x4xbf16> -> vector<16x16x4xbf16>
    %60 = vector.extract_strided_slice %59 {offsets = [0, 0, 0], sizes = [16, 15, 4], strides = [1, 1, 1]} : vector<16x16x4xbf16> to vector<16x15x4xbf16>
    %61 = tpu.concatenate %57, %60 in 1 : vector<16x1x4xbf16>, vector<16x15x4xbf16> -> vector<16x16x4xbf16>
    %62 = vector.extract_strided_slice %59 {offsets = [0, 1, 0], sizes = [16, 15, 4], strides = [1, 1, 1]} : vector<16x16x4xbf16> to vector<16x15x4xbf16>
    %63 = tpu.concatenate %62, %57 in 1 : vector<16x15x4xbf16>, vector<16x1x4xbf16> -> vector<16x16x4xbf16>
    %c0_44 = arith.constant 0 : index
    %c0_45 = arith.constant 0 : index
    %c36 = arith.constant 36 : index
    %64 = vector.load %arg12[%c0_44, %c0_45, %c36] : memref<16x16x72xbf16, #tpu.memory_space<vmem>>, vector<16x16x4xbf16>
    tpu.vector_store %arg12[%c0_44, %c0_45, %c36], %61 {strides = array<i32>} : memref<16x16x72xbf16, #tpu.memory_space<vmem>>, vector<16x16x4xbf16>,
    %c0_46 = arith.constant 0 : index
    %c0_47 = arith.constant 0 : index
    %c40 = arith.constant 40 : index
    %65 = vector.load %arg12[%c0_46, %c0_47, %c40] : memref<16x16x72xbf16, #tpu.memory_space<vmem>>, vector<16x16x4xbf16>
    tpu.vector_store %arg12[%c0_46, %c0_47, %c40], %59 {strides = array<i32>} : memref<16x16x72xbf16, #tpu.memory_space<vmem>>, vector<16x16x4xbf16>,
    %c0_48 = arith.constant 0 : index
    %c0_49 = arith.constant 0 : index
    %c44 = arith.constant 44 : index
    %66 = vector.load %arg12[%c0_48, %c0_49, %c44] : memref<16x16x72xbf16, #tpu.memory_space<vmem>>, vector<16x16x4xbf16>
    tpu.vector_store %arg12[%c0_48, %c0_49, %c44], %63 {strides = array<i32>} : memref<16x16x72xbf16, #tpu.memory_space<vmem>>, vector<16x16x4xbf16>,
    %67 = vector.extract_strided_slice %46 {offsets = [0, 0, 0], sizes = [16, 15, 4], strides = [1, 1, 1]} : vector<16x16x4xbf16> to vector<16x15x4xbf16>
    %68 = tpu.concatenate %57, %67 in 1 : vector<16x1x4xbf16>, vector<16x15x4xbf16> -> vector<16x16x4xbf16>
    %69 = vector.extract_strided_slice %46 {offsets = [0, 1, 0], sizes = [16, 15, 4], strides = [1, 1, 1]} : vector<16x16x4xbf16> to vector<16x15x4xbf16>
    %70 = tpu.concatenate %69, %57 in 1 : vector<16x15x4xbf16>, vector<16x1x4xbf16> -> vector<16x16x4xbf16>
    %c0_50 = arith.constant 0 : index
    %c0_51 = arith.constant 0 : index
    %c48 = arith.constant 48 : index
    %71 = vector.load %arg12[%c0_50, %c0_51, %c48] : memref<16x16x72xbf16, #tpu.memory_space<vmem>>, vector<16x16x4xbf16>
    tpu.vector_store %arg12[%c0_50, %c0_51, %c48], %68 {strides = array<i32>} : memref<16x16x72xbf16, #tpu.memory_space<vmem>>, vector<16x16x4xbf16>,
    %c0_52 = arith.constant 0 : index
    %c0_53 = arith.constant 0 : index
    %c52 = arith.constant 52 : index
    %72 = vector.load %arg12[%c0_52, %c0_53, %c52] : memref<16x16x72xbf16, #tpu.memory_space<vmem>>, vector<16x16x4xbf16>
    tpu.vector_store %arg12[%c0_52, %c0_53, %c52], %46 {strides = array<i32>} : memref<16x16x72xbf16, #tpu.memory_space<vmem>>, vector<16x16x4xbf16>,
    %c0_54 = arith.constant 0 : index
    %c0_55 = arith.constant 0 : index
    %c56 = arith.constant 56 : index
    %73 = vector.load %arg12[%c0_54, %c0_55, %c56] : memref<16x16x72xbf16, #tpu.memory_space<vmem>>, vector<16x16x4xbf16>
    tpu.vector_store %arg12[%c0_54, %c0_55, %c56], %70 {strides = array<i32>} : memref<16x16x72xbf16, #tpu.memory_space<vmem>>, vector<16x16x4xbf16>,
    %74 = vector.extract_strided_slice %46 {offsets = [1, 0, 0], sizes = [15, 16, 4], strides = [1, 1, 1]} : vector<16x16x4xbf16> to vector<15x16x4xbf16>
    %75 = tpu.concatenate %74, %56 in 0 : vector<15x16x4xbf16>, vector<1x16x4xbf16> -> vector<16x16x4xbf16>
    %76 = vector.extract_strided_slice %75 {offsets = [0, 0, 0], sizes = [16, 15, 4], strides = [1, 1, 1]} : vector<16x16x4xbf16> to vector<16x15x4xbf16>
    %77 = tpu.concatenate %57, %76 in 1 : vector<16x1x4xbf16>, vector<16x15x4xbf16> -> vector<16x16x4xbf16>
    %78 = vector.extract_strided_slice %75 {offsets = [0, 1, 0], sizes = [16, 15, 4], strides = [1, 1, 1]} : vector<16x16x4xbf16> to vector<16x15x4xbf16>
    %79 = tpu.concatenate %78, %57 in 1 : vector<16x15x4xbf16>, vector<16x1x4xbf16> -> vector<16x16x4xbf16>
    %c0_56 = arith.constant 0 : index
    %c0_57 = arith.constant 0 : index
    %c60 = arith.constant 60 : index
    %80 = vector.load %arg12[%c0_56, %c0_57, %c60] : memref<16x16x72xbf16, #tpu.memory_space<vmem>>, vector<16x16x4xbf16>
    tpu.vector_store %arg12[%c0_56, %c0_57, %c60], %77 {strides = array<i32>} : memref<16x16x72xbf16, #tpu.memory_space<vmem>>, vector<16x16x4xbf16>,
    %c0_58 = arith.constant 0 : index
    %c0_59 = arith.constant 0 : index
    %c64 = arith.constant 64 : index
    %81 = vector.load %arg12[%c0_58, %c0_59, %c64] : memref<16x16x72xbf16, #tpu.memory_space<vmem>>, vector<16x16x4xbf16>
    tpu.vector_store %arg12[%c0_58, %c0_59, %c64], %75 {strides = array<i32>} : memref<16x16x72xbf16, #tpu.memory_space<vmem>>, vector<16x16x4xbf16>,
    %c0_60 = arith.constant 0 : index
    %c0_61 = arith.constant 0 : index
    %c68 = arith.constant 68 : index
    %82 = vector.load %arg12[%c0_60, %c0_61, %c68] : memref<16x16x72xbf16, #tpu.memory_space<vmem>>, vector<16x16x4xbf16>
    tpu.vector_store %arg12[%c0_60, %c0_61, %c68], %79 {strides = array<i32>} : memref<16x16x72xbf16, #tpu.memory_space<vmem>>, vector<16x16x4xbf16>,
    %c0_62 = arith.constant 0 : index
    %c0_63 = arith.constant 0 : index
    %c0_64 = arith.constant 0 : index
    %83 = vector.load %arg12[%c0_62, %c0_63, %c0_64] : memref<16x16x72xbf16, #tpu.memory_space<vmem>>, vector<16x16x72xbf16>
    %84 = vector.shape_cast %83 : vector<16x16x72xbf16> to vector<256x72xbf16>
    %c0_65 = arith.constant 0 : index
    %c0_66 = arith.constant 0 : index
    %85 = vector.load %arg8[%c0_65, %c0_66] : memref<72x4xbf16, #tpu.memory_space<vmem>>, vector<72x4xbf16>
    %cst_67 = arith.constant dense<0.000000e+00> : vector<256x4xf32>
    %86 = tpu.matmul %84, %85, %cst_67 {dimension_numbers = #tpu.dot_dimension_numbers<[1], [0], [0], [1], [0, 0, 1, 1], [], []>} : vector<256x72xbf16>, vector<72x4xbf16>, vector<256x4xf32> -> vector<256x4xf32>
    %87 = arith.truncf %86 : vector<256x4xf32> to vector<256x4xbf16>
    %88 = vector.shape_cast %87 : vector<256x4xbf16> to vector<1x256x4xbf16>
    %c0_68 = arith.constant 0 : index
    %c0_69 = arith.constant 0 : index
    %c0_70 = arith.constant 0 : index
    %89 = vector.load %arg9[%c0_68, %c0_69, %c0_70] : memref<1x256x4xbf16, #tpu.memory_space<vmem>>, vector<1x256x4xbf16>
    tpu.vector_store %arg9[%c0_68, %c0_69, %c0_70], %88 {strides = array<i32>} : memref<1x256x4xbf16, #tpu.memory_space<vmem>>, vector<1x256x4xbf16>,
    %cst_71 = arith.constant dense<0.000000e+00> : vector<4xf32>
    %90 = vector.multi_reduction <add>, %86, %cst_71 [0] : vector<256x4xf32> to vector<4xf32>
    %91 = vector.shape_cast %90 : vector<4xf32> to vector<1x4xf32>
    %cst_72 = arith.constant 3.906250e-03 : f32
    %92 = vector.broadcast %cst_72 : f32 to vector<1x4xf32>
    %93 = arith.mulf %91, %92 : vector<1x4xf32>
    %94 = vector.broadcast %93 : vector<1x4xf32> to vector<256x4xf32>
    %95 = arith.subf %86, %94 : vector<256x4xf32>
    %96 = arith.mulf %95, %95 : vector<256x4xf32>
    %cst_73 = arith.constant dense<0.000000e+00> : vector<4xf32>
    %97 = vector.multi_reduction <add>, %96, %cst_73 [0] : vector<256x4xf32> to vector<4xf32>
    %98 = vector.shape_cast %97 : vector<4xf32> to vector<1x4xf32>
    %99 = vector.shape_cast %93 : vector<1x4xf32> to vector<1x1x4xf32>
    %c0_74 = arith.constant 0 : index
    %c0_75 = arith.constant 0 : index
    %c0_76 = arith.constant 0 : index
    %100 = vector.load %arg10[%c0_74, %c0_75, %c0_76] : memref<1x1x4xf32, #tpu.memory_space<vmem>>, vector<1x1x4xf32>
    tpu.vector_store %arg10[%c0_74, %c0_75, %c0_76], %99 {strides = array<i32>} : memref<1x1x4xf32, #tpu.memory_space<vmem>>, vector<1x1x4xf32>,
    %101 = vector.shape_cast %98 : vector<1x4xf32> to vector<1x1x4xf32>
    %c0_77 = arith.constant 0 : index
    %c0_78 = arith.constant 0 : index
    %c0_79 = arith.constant 0 : index
    %102 = vector.load %arg11[%c0_77, %c0_78, %c0_79] : memref<1x1x4xf32, #tpu.memory_space<vmem>>, vector<1x1x4xf32>
    tpu.vector_store %arg11[%c0_77, %c0_78, %c0_79], %101 {strides = array<i32>} : memref<1x1x4xf32, #tpu.memory_space<vmem>>, vector<1x1x4xf32>,
    return
  }
  func.func @transform_0(%arg0: i32, %arg1: i32) -> (i32, i32, i32, i32) {
    %c16_i32 = arith.constant 16 : i32
    %0 = arith.muli %arg1, %c16_i32 : i32
    %c1_i32 = arith.constant 1 : i32
    %1 = arith.subi %0, %c1_i32 : i32
    %c0_i32 = arith.constant 0 : i32
    %2 = arith.maxsi %1, %c0_i32 : i32
    %c0_i32_0 = arith.constant 0 : i32
    %c0_i32_1 = arith.constant 0 : i32
    %c0_i32_2 = arith.constant 0 : i32
    return %arg0, %2, %c0_i32_0, %c0_i32_1 : i32, i32, i32, i32
  }
  func.func @transform_1(%arg0: i32, %arg1: i32) -> (i32, i32, i32, i32) {
    %c0_i32 = arith.constant 0 : i32
    %c0_i32_0 = arith.constant 0 : i32
    %c0_i32_1 = arith.constant 0 : i32
    return %arg0, %arg1, %c0_i32, %c0_i32_0 : i32, i32, i32, i32
  }
  func.func @transform_2(%arg0: i32, %arg1: i32) -> (i32, i32, i32, i32) {
    %c16_i32 = arith.constant 16 : i32
    %0 = arith.muli %arg1, %c16_i32 : i32
    %c16_i32_0 = arith.constant 16 : i32
    %1 = arith.addi %0, %c16_i32_0 : i32
    %c15_i32 = arith.constant 15 : i32
    %2 = arith.minsi %1, %c15_i32 : i32
    %c0_i32 = arith.constant 0 : i32
    %c0_i32_1 = arith.constant 0 : i32
    %c0_i32_2 = arith.constant 0 : i32
    return %arg0, %2, %c0_i32, %c0_i32_1 : i32, i32, i32, i32
  }
  func.func @transform_3(%arg0: i32, %arg1: i32) -> (i32, i32, i32, i32) {
    %c16_i32 = arith.constant 16 : i32
    %0 = arith.muli %arg1, %c16_i32 : i32
    %c1_i32 = arith.constant 1 : i32
    %1 = arith.subi %0, %c1_i32 : i32
    %c0_i32 = arith.constant 0 : i32
    %2 = arith.maxsi %1, %c0_i32 : i32
    %c0_i32_0 = arith.constant 0 : i32
    %c0_i32_1 = arith.constant 0 : i32
    %c0_i32_2 = arith.constant 0 : i32
    return %arg0, %2, %c0_i32_0, %c0_i32_1 : i32, i32, i32, i32
  }
  func.func @transform_4(%arg0: i32, %arg1: i32) -> (i32, i32, i32, i32) {
    %c0_i32 = arith.constant 0 : i32
    %c0_i32_0 = arith.constant 0 : i32
    %c0_i32_1 = arith.constant 0 : i32
    return %arg0, %arg1, %c0_i32, %c0_i32_0 : i32, i32, i32, i32
  }
  func.func @transform_5(%arg0: i32, %arg1: i32) -> (i32, i32, i32, i32) {
    %c16_i32 = arith.constant 16 : i32
    %0 = arith.muli %arg1, %c16_i32 : i32
    %c16_i32_0 = arith.constant 16 : i32
    %1 = arith.addi %0, %c16_i32_0 : i32
    %c15_i32 = arith.constant 15 : i32
    %2 = arith.minsi %1, %c15_i32 : i32
    %c0_i32 = arith.constant 0 : i32
    %c0_i32_1 = arith.constant 0 : i32
    %c0_i32_2 = arith.constant 0 : i32
    return %arg0, %2, %c0_i32, %c0_i32_1 : i32, i32, i32, i32
  }
  func.func @transform_6(%arg0: i32, %arg1: i32) -> (i32, i32) {
    %c0_i32 = arith.constant 0 : i32
    %c0_i32_0 = arith.constant 0 : i32
    %c0_i32_1 = arith.constant 0 : i32
    return %c0_i32, %c0_i32_0 : i32, i32
  }
  func.func @transform_7(%arg0: i32, %arg1: i32) -> (i32, i32, i32) {
    %c1_i32 = arith.constant 1 : i32
    %0 = arith.muli %arg0, %c1_i32 : i32
    %1 = arith.addi %0, %arg1 : i32
    %c0_i32 = arith.constant 0 : i32
    %c0_i32_0 = arith.constant 0 : i32
    %c0_i32_1 = arith.constant 0 : i32
    return %1, %c0_i32, %c0_i32_0 : i32, i32, i32
  }
  func.func @transform_8(%arg0: i32, %arg1: i32) -> (i32, i32, i32) {
    %c1_i32 = arith.constant 1 : i32
    %0 = arith.muli %arg0, %c1_i32 : i32
    %1 = arith.addi %0, %arg1 : i32
    %c0_i32 = arith.constant 0 : i32
    %c0_i32_0 = arith.constant 0 : i32
    %c0_i32_1 = arith.constant 0 : i32
    return %1, %c0_i32, %c0_i32_0 : i32, i32, i32
  }
  func.func @transform_9(%arg0: i32, %arg1: i32) -> (i32, i32, i32) {
    %c1_i32 = arith.constant 1 : i32
    %0 = arith.muli %arg0, %c1_i32 : i32
    %1 = arith.addi %0, %arg1 : i32
    %c0_i32 = arith.constant 0 : i32
    %c0_i32_0 = arith.constant 0 : i32
    %c0_i32_1 = arith.constant 0 : i32
    return %1, %c0_i32, %c0_i32_0 : i32, i32, i32
  }
}

module attributes {stable_mosaic.version = 11 : i64} {
  func.func @_conv_stats_kernel(%arg0: i32, %arg1: i32, %arg2: memref<1x1x16x4xbf16, #tpu.memory_space<vmem>>, %arg3: memref<1x16x16x4xbf16, #tpu.memory_space<vmem>>, %arg4: memref<1x1x16x4xbf16, #tpu.memory_space<vmem>>, %arg5: memref<1x4xf32, #tpu.memory_space<vmem>>, %arg6: memref<1x4xf32, #tpu.memory_space<vmem>>, %arg7: memref<36x4xbf16, #tpu.memory_space<vmem>>, %arg8: memref<1x256x4xbf16, #tpu.memory_space<vmem>>, %arg9: memref<1x1x4xf32, #tpu.memory_space<vmem>>, %arg10: memref<1x1x4xf32, #tpu.memory_space<vmem>>, %arg11: memref<16x16x36xbf16, #tpu.memory_space<vmem>>) attributes {dimension_semantics = [#tpu.dimension_semantics<parallel>, #tpu.dimension_semantics<parallel>], iteration_bounds = array<i64: 2, 1>, scalar_prefetch = 0 : i64, scratch_operands = 1 : i64, tpu.core_type = #tpu.core_type<tc>, window_params = [{transform_indices = @transform_0, window_bounds = array<i64: 1, 1, 16, 4>}, {transform_indices = @transform_1, window_bounds = array<i64: 1, 16, 16, 4>}, {transform_indices = @transform_2, window_bounds = array<i64: 1, 1, 16, 4>}, {pipeline_mode = #tpu.pipeline_mode<synchronous>, transform_indices = @transform_3, window_bounds = array<i64: 1, 4>}, {pipeline_mode = #tpu.pipeline_mode<synchronous>, transform_indices = @transform_4, window_bounds = array<i64: 1, 4>}, {pipeline_mode = #tpu.pipeline_mode<synchronous>, transform_indices = @transform_5, window_bounds = array<i64: 36, 4>}, {transform_indices = @transform_6, window_bounds = array<i64: 1, 256, 4>}, {transform_indices = @transform_7, window_bounds = array<i64: 1, 1, 4>}, {transform_indices = @transform_8, window_bounds = array<i64: 1, 1, 4>}]} {
    %c0_i32 = arith.constant 0 : i32
    %0 = arith.cmpi sgt, %arg1, %c0_i32 : i32
    %1 = arith.extui %0 : i1 to i32
    %2 = arith.sitofp %1 : i32 to f32
    %3 = arith.truncf %2 : f32 to bf16
    %c0_i32_0 = arith.constant 0 : i32
    %4 = arith.cmpi slt, %arg1, %c0_i32_0 : i32
    %5 = arith.extui %4 : i1 to i32
    %6 = arith.sitofp %5 : i32 to f32
    %7 = arith.truncf %6 : f32 to bf16
    %c0 = arith.constant 0 : index
    %c0_1 = arith.constant 0 : index
    %8 = vector.load %arg5[%c0, %c0_1] : memref<1x4xf32, #tpu.memory_space<vmem>>, vector<1x4xf32>
    %c0_2 = arith.constant 0 : index
    %c0_3 = arith.constant 0 : index
    %9 = vector.load %arg6[%c0_2, %c0_3] : memref<1x4xf32, #tpu.memory_space<vmem>>, vector<1x4xf32>
    %c0_4 = arith.constant 0 : index
    %c0_5 = arith.constant 0 : index
    %c0_6 = arith.constant 0 : index
    %c0_7 = arith.constant 0 : index
    %10 = vector.load %arg3[%c0_4, %c0_5, %c0_6, %c0_7] : memref<1x16x16x4xbf16, #tpu.memory_space<vmem>>, vector<1x16x16x4xbf16>
    %11 = vector.shape_cast %10 : vector<1x16x16x4xbf16> to vector<16x16x4xbf16>
    %12 = arith.extf %11 : vector<16x16x4xbf16> to vector<16x16x4xf32>
    %13 = vector.shape_cast %8 : vector<1x4xf32> to vector<1x1x4xf32>
    %14 = vector.broadcast %13 : vector<1x1x4xf32> to vector<16x16x4xf32>
    %15 = arith.mulf %12, %14 : vector<16x16x4xf32>
    %16 = vector.shape_cast %9 : vector<1x4xf32> to vector<1x1x4xf32>
    %17 = vector.broadcast %16 : vector<1x1x4xf32> to vector<16x16x4xf32>
    %18 = arith.addf %15, %17 : vector<16x16x4xf32>
    %cst = arith.constant 0.000000e+00 : f32
    %19 = vector.broadcast %cst : f32 to vector<16x16x4xf32>
    %20 = arith.maximumf %18, %19 : vector<16x16x4xf32>
    %21 = arith.truncf %20 : vector<16x16x4xf32> to vector<16x16x4xbf16>
    %c0_8 = arith.constant 0 : index
    %c0_9 = arith.constant 0 : index
    %c0_10 = arith.constant 0 : index
    %c0_11 = arith.constant 0 : index
    %22 = vector.load %arg2[%c0_8, %c0_9, %c0_10, %c0_11] : memref<1x1x16x4xbf16, #tpu.memory_space<vmem>>, vector<1x1x16x4xbf16>
    %23 = vector.shape_cast %22 : vector<1x1x16x4xbf16> to vector<1x16x4xbf16>
    %24 = arith.extf %23 : vector<1x16x4xbf16> to vector<1x16x4xf32>
    %25 = vector.shape_cast %8 : vector<1x4xf32> to vector<1x1x4xf32>
    %26 = vector.broadcast %25 : vector<1x1x4xf32> to vector<1x16x4xf32>
    %27 = arith.mulf %24, %26 : vector<1x16x4xf32>
    %28 = vector.shape_cast %9 : vector<1x4xf32> to vector<1x1x4xf32>
    %29 = vector.broadcast %28 : vector<1x1x4xf32> to vector<1x16x4xf32>
    %30 = arith.addf %27, %29 : vector<1x16x4xf32>
    %cst_12 = arith.constant 0.000000e+00 : f32
    %31 = vector.broadcast %cst_12 : f32 to vector<1x16x4xf32>
    %32 = arith.maximumf %30, %31 : vector<1x16x4xf32>
    %33 = arith.truncf %32 : vector<1x16x4xf32> to vector<1x16x4xbf16>
    %34 = vector.broadcast %3 : bf16 to vector<1x16x4xbf16>
    %35 = arith.mulf %33, %34 : vector<1x16x4xbf16>
    %c0_13 = arith.constant 0 : index
    %c0_14 = arith.constant 0 : index
    %c0_15 = arith.constant 0 : index
    %c0_16 = arith.constant 0 : index
    %36 = vector.load %arg4[%c0_13, %c0_14, %c0_15, %c0_16] : memref<1x1x16x4xbf16, #tpu.memory_space<vmem>>, vector<1x1x16x4xbf16>
    %37 = vector.shape_cast %36 : vector<1x1x16x4xbf16> to vector<1x16x4xbf16>
    %38 = arith.extf %37 : vector<1x16x4xbf16> to vector<1x16x4xf32>
    %39 = vector.shape_cast %8 : vector<1x4xf32> to vector<1x1x4xf32>
    %40 = vector.broadcast %39 : vector<1x1x4xf32> to vector<1x16x4xf32>
    %41 = arith.mulf %38, %40 : vector<1x16x4xf32>
    %42 = vector.shape_cast %9 : vector<1x4xf32> to vector<1x1x4xf32>
    %43 = vector.broadcast %42 : vector<1x1x4xf32> to vector<1x16x4xf32>
    %44 = arith.addf %41, %43 : vector<1x16x4xf32>
    %cst_17 = arith.constant 0.000000e+00 : f32
    %45 = vector.broadcast %cst_17 : f32 to vector<1x16x4xf32>
    %46 = arith.maximumf %44, %45 : vector<1x16x4xf32>
    %47 = arith.truncf %46 : vector<1x16x4xf32> to vector<1x16x4xbf16>
    %48 = vector.broadcast %7 : bf16 to vector<1x16x4xbf16>
    %49 = arith.mulf %47, %48 : vector<1x16x4xbf16>
    %cst_18 = arith.constant 0.000000e+00 : bf16
    %50 = vector.broadcast %cst_18 : bf16 to vector<16x1x4xbf16>
    %51 = vector.extract_strided_slice %21 {offsets = [0, 0, 0], sizes = [15, 16, 4], strides = [1, 1, 1]} : vector<16x16x4xbf16> to vector<15x16x4xbf16>
    %52 = tpu.concatenate %35, %51 in 0 : vector<1x16x4xbf16>, vector<15x16x4xbf16> -> vector<16x16x4xbf16>
    %53 = vector.extract_strided_slice %52 {offsets = [0, 0, 0], sizes = [16, 15, 4], strides = [1, 1, 1]} : vector<16x16x4xbf16> to vector<16x15x4xbf16>
    %54 = tpu.concatenate %50, %53 in 1 : vector<16x1x4xbf16>, vector<16x15x4xbf16> -> vector<16x16x4xbf16>
    %55 = vector.extract_strided_slice %52 {offsets = [0, 1, 0], sizes = [16, 15, 4], strides = [1, 1, 1]} : vector<16x16x4xbf16> to vector<16x15x4xbf16>
    %56 = tpu.concatenate %55, %50 in 1 : vector<16x15x4xbf16>, vector<16x1x4xbf16> -> vector<16x16x4xbf16>
    %c0_19 = arith.constant 0 : index
    %c0_20 = arith.constant 0 : index
    %c0_21 = arith.constant 0 : index
    %57 = vector.load %arg11[%c0_19, %c0_20, %c0_21] : memref<16x16x36xbf16, #tpu.memory_space<vmem>>, vector<16x16x4xbf16>
    tpu.vector_store %arg11[%c0_19, %c0_20, %c0_21], %54 {strides = array<i32>} : memref<16x16x36xbf16, #tpu.memory_space<vmem>>, vector<16x16x4xbf16>,
    %c0_22 = arith.constant 0 : index
    %c0_23 = arith.constant 0 : index
    %c4 = arith.constant 4 : index
    %58 = vector.load %arg11[%c0_22, %c0_23, %c4] : memref<16x16x36xbf16, #tpu.memory_space<vmem>>, vector<16x16x4xbf16>
    tpu.vector_store %arg11[%c0_22, %c0_23, %c4], %52 {strides = array<i32>} : memref<16x16x36xbf16, #tpu.memory_space<vmem>>, vector<16x16x4xbf16>,
    %c0_24 = arith.constant 0 : index
    %c0_25 = arith.constant 0 : index
    %c8 = arith.constant 8 : index
    %59 = vector.load %arg11[%c0_24, %c0_25, %c8] : memref<16x16x36xbf16, #tpu.memory_space<vmem>>, vector<16x16x4xbf16>
    tpu.vector_store %arg11[%c0_24, %c0_25, %c8], %56 {strides = array<i32>} : memref<16x16x36xbf16, #tpu.memory_space<vmem>>, vector<16x16x4xbf16>,
    %60 = vector.extract_strided_slice %21 {offsets = [0, 0, 0], sizes = [16, 15, 4], strides = [1, 1, 1]} : vector<16x16x4xbf16> to vector<16x15x4xbf16>
    %61 = tpu.concatenate %50, %60 in 1 : vector<16x1x4xbf16>, vector<16x15x4xbf16> -> vector<16x16x4xbf16>
    %62 = vector.extract_strided_slice %21 {offsets = [0, 1, 0], sizes = [16, 15, 4], strides = [1, 1, 1]} : vector<16x16x4xbf16> to vector<16x15x4xbf16>
    %63 = tpu.concatenate %62, %50 in 1 : vector<16x15x4xbf16>, vector<16x1x4xbf16> -> vector<16x16x4xbf16>
    %c0_26 = arith.constant 0 : index
    %c0_27 = arith.constant 0 : index
    %c12 = arith.constant 12 : index
    %64 = vector.load %arg11[%c0_26, %c0_27, %c12] : memref<16x16x36xbf16, #tpu.memory_space<vmem>>, vector<16x16x4xbf16>
    tpu.vector_store %arg11[%c0_26, %c0_27, %c12], %61 {strides = array<i32>} : memref<16x16x36xbf16, #tpu.memory_space<vmem>>, vector<16x16x4xbf16>,
    %c0_28 = arith.constant 0 : index
    %c0_29 = arith.constant 0 : index
    %c16 = arith.constant 16 : index
    %65 = vector.load %arg11[%c0_28, %c0_29, %c16] : memref<16x16x36xbf16, #tpu.memory_space<vmem>>, vector<16x16x4xbf16>
    tpu.vector_store %arg11[%c0_28, %c0_29, %c16], %21 {strides = array<i32>} : memref<16x16x36xbf16, #tpu.memory_space<vmem>>, vector<16x16x4xbf16>,
    %c0_30 = arith.constant 0 : index
    %c0_31 = arith.constant 0 : index
    %c20 = arith.constant 20 : index
    %66 = vector.load %arg11[%c0_30, %c0_31, %c20] : memref<16x16x36xbf16, #tpu.memory_space<vmem>>, vector<16x16x4xbf16>
    tpu.vector_store %arg11[%c0_30, %c0_31, %c20], %63 {strides = array<i32>} : memref<16x16x36xbf16, #tpu.memory_space<vmem>>, vector<16x16x4xbf16>,
    %67 = vector.extract_strided_slice %21 {offsets = [1, 0, 0], sizes = [15, 16, 4], strides = [1, 1, 1]} : vector<16x16x4xbf16> to vector<15x16x4xbf16>
    %68 = tpu.concatenate %67, %49 in 0 : vector<15x16x4xbf16>, vector<1x16x4xbf16> -> vector<16x16x4xbf16>
    %69 = vector.extract_strided_slice %68 {offsets = [0, 0, 0], sizes = [16, 15, 4], strides = [1, 1, 1]} : vector<16x16x4xbf16> to vector<16x15x4xbf16>
    %70 = tpu.concatenate %50, %69 in 1 : vector<16x1x4xbf16>, vector<16x15x4xbf16> -> vector<16x16x4xbf16>
    %71 = vector.extract_strided_slice %68 {offsets = [0, 1, 0], sizes = [16, 15, 4], strides = [1, 1, 1]} : vector<16x16x4xbf16> to vector<16x15x4xbf16>
    %72 = tpu.concatenate %71, %50 in 1 : vector<16x15x4xbf16>, vector<16x1x4xbf16> -> vector<16x16x4xbf16>
    %c0_32 = arith.constant 0 : index
    %c0_33 = arith.constant 0 : index
    %c24 = arith.constant 24 : index
    %73 = vector.load %arg11[%c0_32, %c0_33, %c24] : memref<16x16x36xbf16, #tpu.memory_space<vmem>>, vector<16x16x4xbf16>
    tpu.vector_store %arg11[%c0_32, %c0_33, %c24], %70 {strides = array<i32>} : memref<16x16x36xbf16, #tpu.memory_space<vmem>>, vector<16x16x4xbf16>,
    %c0_34 = arith.constant 0 : index
    %c0_35 = arith.constant 0 : index
    %c28 = arith.constant 28 : index
    %74 = vector.load %arg11[%c0_34, %c0_35, %c28] : memref<16x16x36xbf16, #tpu.memory_space<vmem>>, vector<16x16x4xbf16>
    tpu.vector_store %arg11[%c0_34, %c0_35, %c28], %68 {strides = array<i32>} : memref<16x16x36xbf16, #tpu.memory_space<vmem>>, vector<16x16x4xbf16>,
    %c0_36 = arith.constant 0 : index
    %c0_37 = arith.constant 0 : index
    %c32 = arith.constant 32 : index
    %75 = vector.load %arg11[%c0_36, %c0_37, %c32] : memref<16x16x36xbf16, #tpu.memory_space<vmem>>, vector<16x16x4xbf16>
    tpu.vector_store %arg11[%c0_36, %c0_37, %c32], %72 {strides = array<i32>} : memref<16x16x36xbf16, #tpu.memory_space<vmem>>, vector<16x16x4xbf16>,
    %c0_38 = arith.constant 0 : index
    %c0_39 = arith.constant 0 : index
    %c0_40 = arith.constant 0 : index
    %76 = vector.load %arg11[%c0_38, %c0_39, %c0_40] : memref<16x16x36xbf16, #tpu.memory_space<vmem>>, vector<16x16x36xbf16>
    %77 = vector.shape_cast %76 : vector<16x16x36xbf16> to vector<256x36xbf16>
    %c0_41 = arith.constant 0 : index
    %c0_42 = arith.constant 0 : index
    %78 = vector.load %arg7[%c0_41, %c0_42] : memref<36x4xbf16, #tpu.memory_space<vmem>>, vector<36x4xbf16>
    %cst_43 = arith.constant dense<0.000000e+00> : vector<256x4xf32>
    %79 = tpu.matmul %77, %78, %cst_43 {dimension_numbers = #tpu.dot_dimension_numbers<[1], [0], [0], [1], [0, 0, 1, 1], [], []>} : vector<256x36xbf16>, vector<36x4xbf16>, vector<256x4xf32> -> vector<256x4xf32>
    %80 = arith.truncf %79 : vector<256x4xf32> to vector<256x4xbf16>
    %81 = vector.shape_cast %80 : vector<256x4xbf16> to vector<1x256x4xbf16>
    %c0_44 = arith.constant 0 : index
    %c0_45 = arith.constant 0 : index
    %c0_46 = arith.constant 0 : index
    %82 = vector.load %arg8[%c0_44, %c0_45, %c0_46] : memref<1x256x4xbf16, #tpu.memory_space<vmem>>, vector<1x256x4xbf16>
    tpu.vector_store %arg8[%c0_44, %c0_45, %c0_46], %81 {strides = array<i32>} : memref<1x256x4xbf16, #tpu.memory_space<vmem>>, vector<1x256x4xbf16>,
    %cst_47 = arith.constant dense<0.000000e+00> : vector<4xf32>
    %83 = vector.multi_reduction <add>, %79, %cst_47 [0] : vector<256x4xf32> to vector<4xf32>
    %84 = vector.shape_cast %83 : vector<4xf32> to vector<1x4xf32>
    %cst_48 = arith.constant 3.906250e-03 : f32
    %85 = vector.broadcast %cst_48 : f32 to vector<1x4xf32>
    %86 = arith.mulf %84, %85 : vector<1x4xf32>
    %87 = vector.broadcast %86 : vector<1x4xf32> to vector<256x4xf32>
    %88 = arith.subf %79, %87 : vector<256x4xf32>
    %89 = arith.mulf %88, %88 : vector<256x4xf32>
    %cst_49 = arith.constant dense<0.000000e+00> : vector<4xf32>
    %90 = vector.multi_reduction <add>, %89, %cst_49 [0] : vector<256x4xf32> to vector<4xf32>
    %91 = vector.shape_cast %90 : vector<4xf32> to vector<1x4xf32>
    %92 = vector.shape_cast %86 : vector<1x4xf32> to vector<1x1x4xf32>
    %c0_50 = arith.constant 0 : index
    %c0_51 = arith.constant 0 : index
    %c0_52 = arith.constant 0 : index
    %93 = vector.load %arg9[%c0_50, %c0_51, %c0_52] : memref<1x1x4xf32, #tpu.memory_space<vmem>>, vector<1x1x4xf32>
    tpu.vector_store %arg9[%c0_50, %c0_51, %c0_52], %92 {strides = array<i32>} : memref<1x1x4xf32, #tpu.memory_space<vmem>>, vector<1x1x4xf32>,
    %94 = vector.shape_cast %91 : vector<1x4xf32> to vector<1x1x4xf32>
    %c0_53 = arith.constant 0 : index
    %c0_54 = arith.constant 0 : index
    %c0_55 = arith.constant 0 : index
    %95 = vector.load %arg10[%c0_53, %c0_54, %c0_55] : memref<1x1x4xf32, #tpu.memory_space<vmem>>, vector<1x1x4xf32>
    tpu.vector_store %arg10[%c0_53, %c0_54, %c0_55], %94 {strides = array<i32>} : memref<1x1x4xf32, #tpu.memory_space<vmem>>, vector<1x1x4xf32>,
    return
  }
  func.func @transform_0(%arg0: i32, %arg1: i32) -> (i32, i32, i32, i32) {
    %c16_i32 = arith.constant 16 : i32
    %0 = arith.muli %arg1, %c16_i32 : i32
    %c1_i32 = arith.constant 1 : i32
    %1 = arith.subi %0, %c1_i32 : i32
    %c0_i32 = arith.constant 0 : i32
    %2 = arith.maxsi %1, %c0_i32 : i32
    %c0_i32_0 = arith.constant 0 : i32
    %c0_i32_1 = arith.constant 0 : i32
    %c0_i32_2 = arith.constant 0 : i32
    return %arg0, %2, %c0_i32_0, %c0_i32_1 : i32, i32, i32, i32
  }
  func.func @transform_1(%arg0: i32, %arg1: i32) -> (i32, i32, i32, i32) {
    %c0_i32 = arith.constant 0 : i32
    %c0_i32_0 = arith.constant 0 : i32
    %c0_i32_1 = arith.constant 0 : i32
    return %arg0, %arg1, %c0_i32, %c0_i32_0 : i32, i32, i32, i32
  }
  func.func @transform_2(%arg0: i32, %arg1: i32) -> (i32, i32, i32, i32) {
    %c16_i32 = arith.constant 16 : i32
    %0 = arith.muli %arg1, %c16_i32 : i32
    %c16_i32_0 = arith.constant 16 : i32
    %1 = arith.addi %0, %c16_i32_0 : i32
    %c15_i32 = arith.constant 15 : i32
    %2 = arith.minsi %1, %c15_i32 : i32
    %c0_i32 = arith.constant 0 : i32
    %c0_i32_1 = arith.constant 0 : i32
    %c0_i32_2 = arith.constant 0 : i32
    return %arg0, %2, %c0_i32, %c0_i32_1 : i32, i32, i32, i32
  }
  func.func @transform_3(%arg0: i32, %arg1: i32) -> (i32, i32) {
    %c0_i32 = arith.constant 0 : i32
    %c0_i32_0 = arith.constant 0 : i32
    %c0_i32_1 = arith.constant 0 : i32
    return %c0_i32, %c0_i32_0 : i32, i32
  }
  func.func @transform_4(%arg0: i32, %arg1: i32) -> (i32, i32) {
    %c0_i32 = arith.constant 0 : i32
    %c0_i32_0 = arith.constant 0 : i32
    %c0_i32_1 = arith.constant 0 : i32
    return %c0_i32, %c0_i32_0 : i32, i32
  }
  func.func @transform_5(%arg0: i32, %arg1: i32) -> (i32, i32) {
    %c0_i32 = arith.constant 0 : i32
    %c0_i32_0 = arith.constant 0 : i32
    %c0_i32_1 = arith.constant 0 : i32
    return %c0_i32, %c0_i32_0 : i32, i32
  }
  func.func @transform_6(%arg0: i32, %arg1: i32) -> (i32, i32, i32) {
    %c1_i32 = arith.constant 1 : i32
    %0 = arith.muli %arg0, %c1_i32 : i32
    %1 = arith.addi %0, %arg1 : i32
    %c0_i32 = arith.constant 0 : i32
    %c0_i32_0 = arith.constant 0 : i32
    %c0_i32_1 = arith.constant 0 : i32
    return %1, %c0_i32, %c0_i32_0 : i32, i32, i32
  }
  func.func @transform_7(%arg0: i32, %arg1: i32) -> (i32, i32, i32) {
    %c1_i32 = arith.constant 1 : i32
    %0 = arith.muli %arg0, %c1_i32 : i32
    %1 = arith.addi %0, %arg1 : i32
    %c0_i32 = arith.constant 0 : i32
    %c0_i32_0 = arith.constant 0 : i32
    %c0_i32_1 = arith.constant 0 : i32
    return %1, %c0_i32, %c0_i32_0 : i32, i32, i32
  }
  func.func @transform_8(%arg0: i32, %arg1: i32) -> (i32, i32, i32) {
    %c1_i32 = arith.constant 1 : i32
    %0 = arith.muli %arg0, %c1_i32 : i32
    %1 = arith.addi %0, %arg1 : i32
    %c0_i32 = arith.constant 0 : i32
    %c0_i32_0 = arith.constant 0 : i32
    %c0_i32_1 = arith.constant 0 : i32
    return %1, %c0_i32, %c0_i32_0 : i32, i32, i32
  }
}

module attributes {stable_mosaic.version = 11 : i64} {
  func.func @_bn_relu_kernel(%arg0: i32, %arg1: memref<1x16x64xbf16, #tpu.memory_space<vmem>>, %arg2: memref<1x64xf32, #tpu.memory_space<vmem>>, %arg3: memref<1x64xf32, #tpu.memory_space<vmem>>, %arg4: memref<1x16x64xf32, #tpu.memory_space<vmem>>) attributes {dimension_semantics = [#tpu.dimension_semantics<parallel>], iteration_bounds = array<i64: 2>, scalar_prefetch = 0 : i64, scratch_operands = 0 : i64, tpu.core_type = #tpu.core_type<tc>, window_params = [{transform_indices = @transform_0, window_bounds = array<i64: 1, 16, 64>}, {pipeline_mode = #tpu.pipeline_mode<synchronous>, transform_indices = @transform_1, window_bounds = array<i64: 1, 64>}, {pipeline_mode = #tpu.pipeline_mode<synchronous>, transform_indices = @transform_2, window_bounds = array<i64: 1, 64>}, {transform_indices = @transform_3, window_bounds = array<i64: 1, 16, 64>}]} {
    %c0 = arith.constant 0 : index
    %c0_0 = arith.constant 0 : index
    %c0_1 = arith.constant 0 : index
    %0 = vector.load %arg1[%c0, %c0_0, %c0_1] : memref<1x16x64xbf16, #tpu.memory_space<vmem>>, vector<1x16x64xbf16>
    %1 = arith.extf %0 : vector<1x16x64xbf16> to vector<1x16x64xf32>
    %c0_2 = arith.constant 0 : index
    %c0_3 = arith.constant 0 : index
    %2 = vector.load %arg2[%c0_2, %c0_3] : memref<1x64xf32, #tpu.memory_space<vmem>>, vector<1x64xf32>
    %3 = vector.shape_cast %2 : vector<1x64xf32> to vector<1x1x64xf32>
    %4 = vector.broadcast %3 : vector<1x1x64xf32> to vector<1x16x64xf32>
    %5 = arith.mulf %1, %4 : vector<1x16x64xf32>
    %c0_4 = arith.constant 0 : index
    %c0_5 = arith.constant 0 : index
    %6 = vector.load %arg3[%c0_4, %c0_5] : memref<1x64xf32, #tpu.memory_space<vmem>>, vector<1x64xf32>
    %7 = vector.shape_cast %6 : vector<1x64xf32> to vector<1x1x64xf32>
    %8 = vector.broadcast %7 : vector<1x1x64xf32> to vector<1x16x64xf32>
    %9 = arith.addf %5, %8 : vector<1x16x64xf32>
    %cst = arith.constant 0.000000e+00 : f32
    %10 = vector.broadcast %cst : f32 to vector<1x16x64xf32>
    %11 = arith.maximumf %9, %10 : vector<1x16x64xf32>
    %c0_6 = arith.constant 0 : index
    %c0_7 = arith.constant 0 : index
    %c0_8 = arith.constant 0 : index
    %12 = vector.load %arg4[%c0_6, %c0_7, %c0_8] : memref<1x16x64xf32, #tpu.memory_space<vmem>>, vector<1x16x64xf32>
    tpu.vector_store %arg4[%c0_6, %c0_7, %c0_8], %11 {strides = array<i32>} : memref<1x16x64xf32, #tpu.memory_space<vmem>>, vector<1x16x64xf32>,
    return
  }
  func.func @transform_0(%arg0: i32) -> (i32, i32, i32) {
    %c0_i32 = arith.constant 0 : i32
    %c0_i32_0 = arith.constant 0 : i32
    %c0_i32_1 = arith.constant 0 : i32
    return %arg0, %c0_i32, %c0_i32_0 : i32, i32, i32
  }
  func.func @transform_1(%arg0: i32) -> (i32, i32) {
    %c0_i32 = arith.constant 0 : i32
    %c0_i32_0 = arith.constant 0 : i32
    %c0_i32_1 = arith.constant 0 : i32
    return %c0_i32, %c0_i32_0 : i32, i32
  }
  func.func @transform_2(%arg0: i32) -> (i32, i32) {
    %c0_i32 = arith.constant 0 : i32
    %c0_i32_0 = arith.constant 0 : i32
    %c0_i32_1 = arith.constant 0 : i32
    return %c0_i32, %c0_i32_0 : i32, i32
  }
  func.func @transform_3(%arg0: i32) -> (i32, i32, i32) {
    %c0_i32 = arith.constant 0 : i32
    %c0_i32_0 = arith.constant 0 : i32
    %c0_i32_1 = arith.constant 0 : i32
    return %arg0, %c0_i32, %c0_i32_0 : i32, i32, i32
  }
}

</mosaic_0001>

<llo_original>
// kernel: tile.18
$region0: #{tile.18}
  #allocation0 [shape = 's32[1]{0}', space=sflag, size = 0x4, scoped, tag = 'scoped memory for tile.18']
  %s0 = inlined_call_operand.vmem [shape: f32[4], index: 0, kind: input, shape index: {}]
  %s1 = inlined_call_operand.vmem [shape: f32[4,4], index: 1, kind: output, shape index: {}]
  // Predicated region
  $region2: #{tile.18} parent=0 // pred_check
    _
  $region3: #{tile.18} parent=0 // pred_check_branch
    %3 = sbr.rel (0) target = $region5
  $region4: #{tile.18} parent=0 // pred_region
    _
  $region5: #{tile.18} parent=0 // pred_fallthru
    _
  %v4 = vld [vmem:[%s0] ss:$0 sm:$0xff]
  %5 = vst [vmem:[%s1] sm:$0xf] %v4

// kernel: tile.19
$region0: #{tile.19}
  %s0 = inlined_call_operand.vmem [shape: f32[4,4], index: 0, kind: input, shape index: {}]
  %s1 = inlined_call_operand.vmem [shape: f32[1,16], index: 1, kind: output, shape index: {}]
  $region1: #{tile.19} parent=0
    #allocation0 [shape = 'u8[4096]{0}', space=vmem, size = 0x1000, scoped, tag = 'scoped mem for output reshape']
    #allocation1 [shape = 'u8[4096]{0}', space=vmem, size = 0x1000, scoped, tag = 'scoped mem for input reshape']
    %s3 = sshllo.u32 0, 4
    %v4 = vld [vmem:[%s0] sm:%s3]
    %5 = vst [vmem:[#allocation1] sm:%s3] %v4
    %v6 = vld [vmem:[#allocation1] sm:$0x1]
    %vm7 = vcmask 31744
    %8 = vst.msk [vmem:[#allocation0] sm:$0x1] %vm7, %v6
    %s9 = scalar_lea.vmem [#allocation1], 3
    %v10 = vld [vmem:[%s9] sm:$0x1]
    %11 = vrot.lane.b32.xlu0 %v10, 12
    %v12 = vpop.permute.xlu0 %11
    %vm13 = vcmask 130144
    %14 = vst.msk [vmem:[#allocation0] sm:$0x1] %vm13, %v12
    %s15 = scalar_lea.vmem [#allocation1], 2
    %v16 = vld [vmem:[%s15] sm:$0x1]
    %17 = vrot.lane.b32.xlu0 %v16, 8
    %v18 = vpop.permute.xlu0 %17
    %vm19 = vcmask 97344
    %20 = vst.msk [vmem:[#allocation0] sm:$0x1] %vm19, %v18
    %s21 = scalar_lea.vmem [#allocation1], 1
    %v22 = vld [vmem:[%s21] sm:$0x1]
    %23 = vrot.lane.b32.xlu0 %v22, 4
    %v24 = vpop.permute.xlu0 %23
    %vm25 = vcmask 64544
    %26 = vst.msk [vmem:[#allocation0] sm:$0x1] %vm25, %v24
    %s28 = sshllo.u32 0, 1
    %v30 = vld [vmem:[#allocation0] sm:%s28]
    %s31 = sshllo.u32 0, 1
    %32 = vst [vmem:[%s1] sm:%s31] %v30

// kernel: tile.23
$region0: #{tile.23}
  #allocation0 [shape = 's32[1]{0}', space=sflag, size = 0x4, scoped, tag = 'scoped memory for tile.23']
  %s0 = inlined_call_operand.vmem [shape: f32[4], index: 0, kind: input, shape index: {}]
  %s1 = inlined_call_operand.vmem [shape: f32[16,4], index: 1, kind: output, shape index: {}]
  // Predicated region
  $region2: #{tile.23} parent=0 // pred_check
    _
  $region3: #{tile.23} parent=0 // pred_check_branch
    %3 = sbr.rel (0) target = $region5
  $region4: #{tile.23} parent=0 // pred_region
    _
  $region5: #{tile.23} parent=0 // pred_fallthru
    _
  %v4 = vld [vmem:[%s0] ss:$0 sm:$0xff]
  %5 = vst [vmem:[%s1] sm:$0xff] %v4
  %s6 = scalar_lea.vmem %s1, 8
  %7 = vst [vmem:[%s6] sm:$0xff] %v4

// kernel: tile.24
$region0: #{tile.24}
  %s0 = inlined_call_operand.vmem [shape: f32[16,4], index: 0, kind: input, shape index: {}]
  %s1 = inlined_call_operand.vmem [shape: f32[1,64], index: 1, kind: output, shape index: {}]
  $region1: #{tile.24} parent=0
    #allocation0 [shape = 'u8[4096]{0}', space=vmem, size = 0x1000, scoped, tag = 'scoped mem for output reshape']
    %v2 = vld [vmem:[%s0] sm:$0x1]
    %vm3 = vcmask 31744
    %4 = vst.msk [vmem:[#allocation0] sm:$0x1] %vm3, %v2
    %s5 = scalar_lea.vmem %s0, 15
    %v6 = vld [vmem:[%s5] sm:$0x1]
    %7 = vrot.lane.b32.xlu0 %v6, 60
    %v8 = vpop.permute.xlu0 %7
    %vm9 = vcmask 523744
    %10 = vst.msk [vmem:[#allocation0] sm:$0x1] %vm9, %v8
    %s11 = scalar_lea.vmem %s0, 14
    %v12 = vld [vmem:[%s11] sm:$0x1]
    %13 = vrot.lane.b32.xlu0 %v12, 56
    %v14 = vpop.permute.xlu0 %13
    %vm15 = vcmask 490944
    %16 = vst.msk [vmem:[#allocation0] sm:$0x1] %vm15, %v14
    %s17 = scalar_lea.vmem %s0, 13
    %v18 = vld [vmem:[%s17] sm:$0x1]
    %19 = vrot.lane.b32.xlu0 %v18, 52
    %v20 = vpop.permute.xlu0 %19
    %vm21 = vcmask 458144
    %22 = vst.msk [vmem:[#allocation0] sm:$0x1] %vm21, %v20
    %s23 = scalar_lea.vmem %s0, 12
    %v24 = vld [vmem:[%s23] sm:$0x1]
    %25 = vrot.lane.b32.xlu0 %v24, 48
    %v26 = vpop.permute.xlu0 %25
    %vm27 = vcmask 425344
    %28 = vst.msk [vmem:[#allocation0] sm:$0x1] %vm27, %v26
    %s29 = scalar_lea.vmem %s0, 11
    %v30 = vld [vmem:[%s29] sm:$0x1]
    %31 = vrot.lane.b32.xlu0 %v30, 44
    %v32 = vpop.permute.xlu0 %31
    %vm33 = vcmask 392544
    %34 = vst.msk [vmem:[#allocation0] sm:$0x1] %vm33, %v32
    %s35 = scalar_lea.vmem %s0, 10
    %v36 = vld [vmem:[%s35] sm:$0x1]
    %37 = vrot.lane.b32.xlu0 %v36, 40
    %v38 = vpop.permute.xlu0 %37
    %vm39 = vcmask 359744
    %40 = vst.msk [vmem:[#allocation0] sm:$0x1] %vm39, %v38
    %s41 = scalar_lea.vmem %s0, 9
    %v42 = vld [vmem:[%s41] sm:$0x1]
    %43 = vrot.lane.b32.xlu0 %v42, 36
    %v44 = vpop.permute.xlu0 %43
    %vm45 = vcmask 326944
    %46 = vst.msk [vmem:[#allocation0] sm:$0x1] %vm45, %v44
    %s47 = scalar_lea.vmem %s0, 8
    %v48 = vld [vmem:[%s47] sm:$0x1]
    %49 = vrot.lane.b32.xlu0 %v48, 32
    %v50 = vpop.permute.xlu0 %49
    %vm51 = vcmask 294144
    %52 = vst.msk [vmem:[#allocation0] sm:$0x1] %vm51, %v50
    %s53 = scalar_lea.vmem %s0, 7
    %v54 = vld [vmem:[%s53] sm:$0x1]
    %55 = vrot.lane.b32.xlu0 %v54, 28
    %v56 = vpop.permute.xlu0 %55
    %vm57 = vcmask 261344
    %58 = vst.msk [vmem:[#allocation0] sm:$0x1] %vm57, %v56
    %s59 = scalar_lea.vmem %s0, 6
    %v60 = vld [vmem:[%s59] sm:$0x1]
    %61 = vrot.lane.b32.xlu0 %v60, 24
    %v62 = vpop.permute.xlu0 %61
    %vm63 = vcmask 228544
    %64 = vst.msk [vmem:[#allocation0] sm:$0x1] %vm63, %v62
    %s65 = scalar_lea.vmem %s0, 5
    %v66 = vld [vmem:[%s65] sm:$0x1]
    %67 = vrot.lane.b32.xlu0 %v66, 20
    %v68 = vpop.permute.xlu0 %67
    %vm69 = vcmask 195744
    %70 = vst.msk [vmem:[#allocation0] sm:$0x1] %vm69, %v68
    %s71 = scalar_lea.vmem %s0, 4
    %v72 = vld [vmem:[%s71] sm:$0x1]
    %73 = vrot.lane.b32.xlu0 %v72, 16
    %v74 = vpop.permute.xlu0 %73
    %vm75 = vcmask 162944
    %76 = vst.msk [vmem:[#allocation0] sm:$0x1] %vm75, %v74
    %s77 = scalar_lea.vmem %s0, 3
    %v78 = vld [vmem:[%s77] sm:$0x1]
    %79 = vrot.lane.b32.xlu0 %v78, 12
    %v80 = vpop.permute.xlu0 %79
    %vm81 = vcmask 130144
    %82 = vst.msk [vmem:[#allocation0] sm:$0x1] %vm81, %v80
    %s83 = scalar_lea.vmem %s0, 2
    %v84 = vld [vmem:[%s83] sm:$0x1]
    %85 = vrot.lane.b32.xlu0 %v84, 8
    %v86 = vpop.permute.xlu0 %85
    %vm87 = vcmask 97344
    %88 = vst.msk [vmem:[#allocation0] sm:$0x1] %vm87, %v86
    %s89 = scalar_lea.vmem %s0, 1
    %v90 = vld [vmem:[%s89] sm:$0x1]
    %91 = vrot.lane.b32.xlu0 %v90, 4
    %v92 = vpop.permute.xlu0 %91
    %vm93 = vcmask 64544
    %94 = vst.msk [vmem:[#allocation0] sm:$0x1] %vm93, %v92
    %s96 = sshllo.u32 0, 1
    %v98 = vld [vmem:[#allocation0] sm:%s96]
    %s99 = sshllo.u32 0, 1
    %100 = vst [vmem:[%s1] sm:%s99] %v98

// kernel: upblock_forward.4
$region0: #{upblock_forward.4}
  #allocation0 [shape = 'u32[]', space=smem, size = 0x4, offset = 0x4, fixed_abs, tag = 'smem constant byte address 0x4 - core index']
  #allocation1 [shape = 'u32[144,128]{1,0:T(1,128)}', space=vmem, size = 0x12000, scoped, tag = 'internal scratch']
  %s0 = inlined_call_operand.vmem [shape: f32[16,8,8], index: 0, kind: input, shape index: {}]
  %s1 = inlined_call_operand.vmem [shape: bf16[8,16], index: 1, kind: input, shape index: {}]
  %s2 = inlined_call_operand.vmem [shape: f32[1,16], index: 2, kind: input, shape index: {}]
  %s3 = inlined_call_operand.vmem [shape: bf16[16,2,8,8], index: 3, kind: output, shape index: {}]
  %s4 = sld [smem:[#allocation0]]
  $region22: #{upblock_forward.4} parent=0
    _
  %s6 = ssub.s32 1, %s4
  %s7 = scalar_select 0, %s6, %s4
  // Predicated region
  $region2: #{upblock_forward.4} parent=0 // pred_check
    _
  $region3: #{upblock_forward.4} parent=0 // pred_check_branch
    %9 = sbr.rel (0) target = $region5
  $region4: #{upblock_forward.4} parent=0 // pred_region
    _
  $region5: #{upblock_forward.4} parent=0 // pred_fallthru
    _
  // Predicated region
  $region6: #{upblock_forward.4} parent=0 // pred_check
    _
  $region7: #{upblock_forward.4} parent=0 // pred_check_branch
    %11 = sbr.rel (0) target = $region9
  $region8: #{upblock_forward.4} parent=0 // pred_region
    _
  $region9: #{upblock_forward.4} parent=0 // pred_fallthru
    _
  // Predicated region
  $region10: #{upblock_forward.4} parent=0 // pred_check
    _
  $region11: #{upblock_forward.4} parent=0 // pred_check_branch
    %13 = sbr.rel (0) target = $region13
  $region12: #{upblock_forward.4} parent=0 // pred_region
    _
  $region13: #{upblock_forward.4} parent=0 // pred_fallthru
    _
  %v15 = vld [vmem:[%s0] sm:$0xff]
  %v16 = vld [vmem:[%s0 + $0x8] sm:$0xff]
  %v17 = vld [vmem:[%s0 + $0x10] sm:$0xff]
  %v18 = vld [vmem:[%s0 + $0x18] sm:$0xff]
  %v19 = vld [vmem:[%s0 + $0x20] sm:$0xff]
  %v20 = vld [vmem:[%s0 + $0x28] sm:$0xff]
  %v21 = vld [vmem:[%s0 + $0x30] sm:$0xff]
  %v22 = vld [vmem:[%s0 + $0x38] sm:$0xff]
  %v23 = vld [vmem:[%s0 + $0x40] sm:$0xff]
  %v24 = vld [vmem:[%s0 + $0x48] sm:$0xff]
  %v25 = vld [vmem:[%s0 + $0x50] sm:$0xff]
  %v26 = vld [vmem:[%s0 + $0x58] sm:$0xff]
  %v27 = vld [vmem:[%s0 + $0x60] sm:$0xff]
  %v28 = vld [vmem:[%s0 + $0x68] sm:$0xff]
  %v29 = vld [vmem:[%s0 + $0x70] sm:$0xff]
  %v30 = vld [vmem:[%s0 + $0x78] sm:$0xff]
  %v31 = vpack.c.bf16 %v16, %v15
  %v32 = vpack.c.bf16 %v18, %v17
  %v33 = vpack.c.bf16 %v20, %v19
  %v34 = vpack.c.bf16 %v22, %v21
  %v35 = vpack.c.bf16 %v24, %v23
  %v36 = vpack.c.bf16 %v26, %v25
  %v37 = vpack.c.bf16 %v28, %v27
  %v38 = vpack.c.bf16 %v30, %v29
  %v39 = vld [vmem:[%s1] sm:$0xf]
  %v40 = vld [vmem:[%s2] sm:$0x1]
  %v42 = vlaneseq
  %v43 = vshrl.u32 %v42, 7
  %v44 = vsub.s32 0, %v43
  %v45 = vrot.slane %v40, %v44
  %vm47 = vcmask 64512
  %v49 = vsel %vm47, %v31, 0
  %v52 = vsel %vm47, %v32, 0
  %v55 = vsel %vm47, %v33, 0
  %v58 = vsel %vm47, %v34, 0
  %v61 = vsel %vm47, %v35, 0
  %v64 = vsel %vm47, %v36, 0
  %v67 = vsel %vm47, %v37, 0
  %v70 = vsel %vm47, %v38, 0
  %vm72 = vcmask 1043456
  %v74 = vsel %vm72, %v39, 0
  %76 = vmatprep.subr.bf16.mxu0 0
  %77 = vmatpush1.bf16.msra.mxu0 %v74
  %78 = vmatprep.subr.bf16.mxu0 0
  %79 = vmatpush1.bf16.msra.mxu0 0
  %80 = vmatprep.subr.bf16.mxu0 0
  %81 = vmatpush1.bf16.msra.mxu0 0
  %82 = vmatprep.subr.bf16.mxu0 0
  %83 = vmatpush1.bf16.msra.mxu0 0
  %84 = vmatprep.subr.bf16.mxu0 0
  %85 = vmatpush1.bf16.msra.mxu0 0
  %86 = vmatprep.subr.bf16.mxu0 0
  %87 = vmatpush1.bf16.msra.mxu0 0
  %88 = vmatprep.subr.bf16.mxu0 0
  %89 = vmatpush1.bf16.msra.mxu0 0
  %90 = vmatprep.subr.bf16.mxu0 0
  %91 = vmatpush1.bf16.msra.mxu0 0
  %92 = vmatprep.subr.bf16.mxu0 0
  %93 = vmatpush1.bf16.msra.mxu0 0
  %94 = vmatprep.subr.bf16.mxu0 0
  %95 = vmatpush1.bf16.msra.mxu0 0
  %96 = vmatprep.subr.bf16.mxu0 0
  %97 = vmatpush1.bf16.msra.mxu0 0
  %98 = vmatprep.subr.bf16.mxu0 0
  %99 = vmatpush1.bf16.msra.mxu0 0
  %100 = vmatprep.subr.bf16.mxu0 0
  %101 = vmatpush1.bf16.msra.mxu0 0
  %102 = vmatprep.subr.bf16.mxu0 0
  %103 = vmatpush1.bf16.msra.mxu0 0
  %104 = vmatprep.subr.bf16.mxu0 0
  %105 = vmatpush1.bf16.msra.mxu0 0
  %106 = vmatprep.subr.bf16.mxu0 0
  %107 = vmatpush1.bf16.msra.mxu0 0
  %108 = vmatprep.mubr.bf16.mxu0 0
  %109 = vmatmul.mubr.bf16.gmra.mrb[0].mxu0 %v49
  %v110 = vpop.f32.mrb[0].mxu0
  %v111 = vadd.f32 %v45, %v110
  %v112 = vpop.f32.mrb[0].mxu0
  %v113 = vpop.f32.mrb[0].mxu0
  %v114 = vadd.f32 %v45, %v113
  %v115 = vpop.f32.mrb[0].mxu0
  %116 = vmatprep.mubr.bf16.mxu0 0
  %117 = vmatmul.mubr.bf16.gmra.mrb[0].mxu0 %v52
  %v118 = vpop.f32.mrb[0].mxu0
  %v119 = vadd.f32 %v45, %v118
  %v120 = vpop.f32.mrb[0].mxu0
  %v121 = vpop.f32.mrb[0].mxu0
  %v122 = vadd.f32 %v45, %v121
  %v123 = vpop.f32.mrb[0].mxu0
  %124 = vmatprep.mubr.bf16.mxu0 0
  %125 = vmatmul.mubr.bf16.gmra.mrb[0].mxu0 %v55
  %v126 = vpop.f32.mrb[0].mxu0
  %v127 = vadd.f32 %v45, %v126
  %v128 = vpop.f32.mrb[0].mxu0
  %v129 = vpop.f32.mrb[0].mxu0
  %v130 = vadd.f32 %v45, %v129
  %v131 = vpop.f32.mrb[0].mxu0
  %132 = vmatprep.mubr.bf16.mxu0 0
  %133 = vmatmul.mubr.bf16.gmra.mrb[0].mxu0 %v58
  %v134 = vpop.f32.mrb[0].mxu0
  %v135 = vadd.f32 %v45, %v134
  %v136 = vpop.f32.mrb[0].mxu0
  %v137 = vpop.f32.mrb[0].mxu0
  %v138 = vadd.f32 %v45, %v137
  %v139 = vpop.f32.mrb[0].mxu0
  %140 = vmatprep.mubr.bf16.mxu0 0
  %141 = vmatmul.mubr.bf16.gmra.mrb[0].mxu0 %v61
  %v142 = vpop.f32.mrb[0].mxu0
  %v143 = vadd.f32 %v45, %v142
  %v144 = vpop.f32.mrb[0].mxu0
  %v145 = vpop.f32.mrb[0].mxu0
  %v146 = vadd.f32 %v45, %v145
  %v147 = vpop.f32.mrb[0].mxu0
  %148 = vmatprep.mubr.bf16.mxu0 0
  %149 = vmatmul.mubr.bf16.gmra.mrb[0].mxu0 %v64
  %v150 = vpop.f32.mrb[0].mxu0
  %v151 = vadd.f32 %v45, %v150
  %v152 = vpop.f32.mrb[0].mxu0
  %v153 = vpop.f32.mrb[0].mxu0
  %v154 = vadd.f32 %v45, %v153
  %v155 = vpop.f32.mrb[0].mxu0
  %156 = vmatprep.mubr.bf16.mxu0 0
  %157 = vmatmul.mubr.bf16.gmra.mrb[0].mxu0 %v67
  %v158 = vpop.f32.mrb[0].mxu0
  %v159 = vadd.f32 %v45, %v158
  %v160 = vpop.f32.mrb[0].mxu0
  %v161 = vpop.f32.mrb[0].mxu0
  %v162 = vadd.f32 %v45, %v161
  %v163 = vpop.f32.mrb[0].mxu0
  %164 = vmatprep.mubr.bf16.mxu0 0
  %165 = vmatmul.mubr.bf16.gmra.mrb[0].mxu0 %v70
  %v166 = vpop.f32.mrb[0].mxu0
  %v167 = vadd.f32 %v45, %v166
  %v168 = vpop.f32.mrb[0].mxu0
  %v169 = vpop.f32.mrb[0].mxu0
  %v170 = vadd.f32 %v45, %v169
  %v171 = vpop.f32.mrb[0].mxu0
  %172 = vdwg.mxu0
  %v173 = vpack.c.bf16 %v114, %v111
  %v174 = vpack.c.bf16 %v122, %v119
  %v175 = vpack.c.bf16 %v130, %v127
  %v176 = vpack.c.bf16 %v138, %v135
  %v177 = vpack.c.bf16 %v146, %v143
  %v178 = vpack.c.bf16 %v154, %v151
  %v179 = vpack.c.bf16 %v162, %v159
  %v180 = vpack.c.bf16 %v170, %v167
  %v189 = vunpack.c.l.b16 %v173
  %v190 = vunpack.c.h.b16 %v173
  %v191 = vunpack.c.l.b16 %v174
  %v192 = vunpack.c.h.b16 %v174
  %v193 = vunpack.c.l.b16 %v175
  %v194 = vunpack.c.h.b16 %v175
  %v195 = vunpack.c.l.b16 %v176
  %v196 = vunpack.c.h.b16 %v176
  %v197 = vunpack.c.l.b16 %v177
  %v198 = vunpack.c.h.b16 %v177
  %v199 = vunpack.c.l.b16 %v178
  %v200 = vunpack.c.h.b16 %v178
  %v201 = vunpack.c.l.b16 %v179
  %v202 = vunpack.c.h.b16 %v179
  %v203 = vunpack.c.l.b16 %v180
  %v204 = vunpack.c.h.b16 %v180
  %v205 = vpack.c.b16 %v189, %v189
  %v206 = vpack.c.b16 %v190, %v190
  %v207 = vpack.c.b16 %v191, %v191
  %v208 = vpack.c.b16 %v192, %v192
  %v209 = vpack.c.b16 %v193, %v193
  %v210 = vpack.c.b16 %v194, %v194
  %v211 = vpack.c.b16 %v195, %v195
  %v212 = vpack.c.b16 %v196, %v196
  %v213 = vpack.c.b16 %v197, %v197
  %v214 = vpack.c.b16 %v198, %v198
  %v215 = vpack.c.b16 %v199, %v199
  %v216 = vpack.c.b16 %v200, %v200
  %v217 = vpack.c.b16 %v201, %v201
  %v218 = vpack.c.b16 %v202, %v202
  %v219 = vpack.c.b16 %v203, %v203
  %v220 = vpack.c.b16 %v204, %v204
  %vm237 = vcmask 60416
  %238 = vst.msk [vmem:[%s3] sm:$0xf] %vm237, %v205
  %239 = vst.msk [vmem:[%s3 + $0x8] sm:$0xf] %vm237, %v206
  %240 = vst.msk [vmem:[%s3 + $0x10] sm:$0xf] %vm237, %v207
  %241 = vst.msk [vmem:[%s3 + $0x18] sm:$0xf] %vm237, %v208
  %242 = vst.msk [vmem:[%s3 + $0x20] sm:$0xf] %vm237, %v209
  %243 = vst.msk [vmem:[%s3 + $0x28] sm:$0xf] %vm237, %v210
  %244 = vst.msk [vmem:[%s3 + $0x30] sm:$0xf] %vm237, %v211
  %245 = vst.msk [vmem:[%s3 + $0x38] sm:$0xf] %vm237, %v212
  %246 = vst.msk [vmem:[%s3 + $0x40] sm:$0xf] %vm237, %v213
  %247 = vst.msk [vmem:[%s3 + $0x48] sm:$0xf] %vm237, %v214
  %248 = vst.msk [vmem:[%s3 + $0x50] sm:$0xf] %vm237, %v215
  %249 = vst.msk [vmem:[%s3 + $0x58] sm:$0xf] %vm237, %v216
  %250 = vst.msk [vmem:[%s3 + $0x60] sm:$0xf] %vm237, %v217
  %251 = vst.msk [vmem:[%s3 + $0x68] sm:$0xf] %vm237, %v218
  %252 = vst.msk [vmem:[%s3 + $0x70] sm:$0xf] %vm237, %v219
  %253 = vst.msk [vmem:[%s3 + $0x78] sm:$0xf] %vm237, %v220
  %254 = vrot.lane.b32.xlu0 %v205, 120
  %v255 = vpop.permute.xlu0 %254
  %256 = vrot.lane.b32.xlu0 %v206, 120
  %v257 = vpop.permute.xlu0 %256
  %258 = vrot.lane.b32.xlu0 %v207, 120
  %v259 = vpop.permute.xlu0 %258
  %260 = vrot.lane.b32.xlu0 %v208, 120
  %v261 = vpop.permute.xlu0 %260
  %262 = vrot.lane.b32.xlu0 %v209, 120
  %v263 = vpop.permute.xlu0 %262
  %264 = vrot.lane.b32.xlu0 %v210, 120
  %v265 = vpop.permute.xlu0 %264
  %266 = vrot.lane.b32.xlu0 %v211, 120
  %v267 = vpop.permute.xlu0 %266
  %268 = vrot.lane.b32.xlu0 %v212, 120
  %v269 = vpop.permute.xlu0 %268
  %270 = vrot.lane.b32.xlu0 %v213, 120
  %v271 = vpop.permute.xlu0 %270
  %272 = vrot.lane.b32.xlu0 %v214, 120
  %v273 = vpop.permute.xlu0 %272
  %274 = vrot.lane.b32.xlu0 %v215, 120
  %v275 = vpop.permute.xlu0 %274
  %276 = vrot.lane.b32.xlu0 %v216, 120
  %v277 = vpop.permute.xlu0 %276
  %278 = vrot.lane.b32.xlu0 %v217, 120
  %v279 = vpop.permute.xlu0 %278
  %280 = vrot.lane.b32.xlu0 %v218, 120
  %v281 = vpop.permute.xlu0 %280
  %282 = vrot.lane.b32.xlu0 %v219, 120
  %v283 = vpop.permute.xlu0 %282
  %284 = vrot.lane.b32.xlu0 %v220, 120
  %v285 = vpop.permute.xlu0 %284
  %s302 = scalar_lea.vmem %s3, 4
  %303 = vst.msk [vmem:[%s302] sm:$0xf] %vm237, %v255
  %304 = vst.msk [vmem:[%s302 + $0x8] sm:$0xf] %vm237, %v257
  %305 = vst.msk [vmem:[%s302 + $0x10] sm:$0xf] %vm237, %v259
  %306 = vst.msk [vmem:[%s302 + $0x18] sm:$0xf] %vm237, %v261
  %307 = vst.msk [vmem:[%s302 + $0x20] sm:$0xf] %vm237, %v263
  %308 = vst.msk [vmem:[%s302 + $0x28] sm:$0xf] %vm237, %v265
  %309 = vst.msk [vmem:[%s302 + $0x30] sm:$0xf] %vm237, %v267
  %310 = vst.msk [vmem:[%s302 + $0x38] sm:$0xf] %vm237, %v269
  %311 = vst.msk [vmem:[%s302 + $0x40] sm:$0xf] %vm237, %v271
  %312 = vst.msk [vmem:[%s302 + $0x48] sm:$0xf] %vm237, %v273
  %313 = vst.msk [vmem:[%s302 + $0x50] sm:$0xf] %vm237, %v275
  %314 = vst.msk [vmem:[%s302 + $0x58] sm:$0xf] %vm237, %v277
  %315 = vst.msk [vmem:[%s302 + $0x60] sm:$0xf] %vm237, %v279
  %316 = vst.msk [vmem:[%s302 + $0x68] sm:$0xf] %vm237, %v281
  %317 = vst.msk [vmem:[%s302 + $0x70] sm:$0xf] %vm237, %v283
  %318 = vst.msk [vmem:[%s302 + $0x78] sm:$0xf] %vm237, %v285
  // Predicated region
  $region14: #{upblock_forward.4} parent=0 // pred_check
    _
  $region15: #{upblock_forward.4} parent=0 // pred_check_branch
    %320 = sbr.rel (0) target = $region17
  $region16: #{upblock_forward.4} parent=0 // pred_region
    _
  $region17: #{upblock_forward.4} parent=0 // pred_fallthru
    _
  // Predicated region
  $region18: #{upblock_forward.4} parent=0 // pred_check
    _
  $region19: #{upblock_forward.4} parent=0 // pred_check_branch
    %322 = sbr.rel (0) target = $region21
  $region20: #{upblock_forward.4} parent=0 // pred_region
    _
  $region21: #{upblock_forward.4} parent=0 // pred_fallthru
    _

// kernel: upblock_forward.7
$region0: #{upblock_forward.7}
  #allocation0 [shape = 'u32[]', space=smem, size = 0x4, offset = 0x4, fixed_abs, tag = 'smem constant byte address 0x4 - core index']
  #allocation1 [shape = 'u32[144,128]{1,0:T(1,128)}', space=vmem, size = 0x12000, scoped, tag = 'internal scratch']
  %s0 = inlined_call_operand.vmem [shape: bf16[2,16,64], index: 0, kind: input, shape index: {}]
  %s1 = inlined_call_operand.vmem [shape: f32[1,64], index: 1, kind: input, shape index: {}]
  %s2 = inlined_call_operand.vmem [shape: f32[1,64], index: 2, kind: input, shape index: {}]
  %s3 = inlined_call_operand.vmem [shape: f32[2,16,64], index: 3, kind: output, shape index: {}]
  %s4 = sld [smem:[#allocation0]]
  $region45: #{upblock_forward.7} parent=0
    _
  %s6 = ssub.s32 1, %s4
  %s7 = scalar_select 0, %s6, %s4
  loop: start=0, step=1, limit=4
  $region2: #{upblock_forward.7} parent=0 // loop_pre_header
    _
  $region3: #{upblock_forward.7} parent=0 // loop_header
    %s9 = sphi 0, %s13
    %p10 = scmp.ge.s32.totalorder %s9, 4
    %s19 = sphi 0, %s21
    %s22 = sphi 0, %s19
    %s23 = sphi 0, %s22
    %s39 = sphi 0, %s23
    %s43 = sphi 0, %s43
    %s45 = sphi 0, %s43
    %s46 = sphi 0, %s45
    %s60 = sphi 0, %s46
    %s64 = sphi 0, %s64
    %s66 = sphi 0, %s64
    %s67 = sphi 0, %s66
    %s81 = sphi 0, %s67
    %s87 = sphi 0, %s89
    %s90 = sphi 0, %s87
    %s91 = sphi 0, %s90
    %s107 = sphi 0, %s91
  $region4: #{upblock_forward.7} parent=0 // loop_header_branch
    %12 = sbr.rel (%p10) target = $region8
  $region5: #{upblock_forward.7} parent=0 // loop_body
    %s14 = ssub.s32 %s9, 1
    %s15 = ssub.s32 %s9, 2
    %s16 = sadd.s32 %s9, 1
    %s17 = ssub.s32 %s9, %s16
    %p18 = scmp.eq.s32.totalorder %s17, 0
    %s20 = sadd.s32 %s19, 1
    %s21 = scalar_select %p18, %s19, %s20
    %p24 = pneg %p18
    %p25 = scmp.eq.s32.totalorder %s9, 1
    %p26 = por %p24, %p25
    %p27 = scmp.ne.s32.totalorder %s19, %s22
    %p28 = scmp.eq.s32.totalorder %s9, 0
    %p29 = por %p27, %p28
    %p30 = scmp.ne.s32.totalorder %s19, %s22
    %p31 = scmp.eq.s32.totalorder %s14, 1
    %p32 = por %p30, %p31
    %p33 = scmp.ne.s32.totalorder %s22, %s23
    %p34 = scmp.eq.s32.totalorder %s14, 0
    %p35 = por %p33, %p34
    %p36 = scmp.ne.s32.totalorder %s22, %s23
    %p37 = scmp.eq.s32.totalorder %s15, 1
    %p38 = por %p36, %p37
    %p40 = scmp.ne.s32.totalorder %s23, %s39
    %p41 = scmp.eq.s32.totalorder %s15, 0
    %p42 = por %p40, %p41
    %s44 = sadd.s32 %s43, 1
    %p47 = scmp.eq.s32.totalorder %s9, 1
    %p48 = scmp.ne.s32.totalorder %s43, %s45
    %p49 = scmp.eq.s32.totalorder %s9, 0
    %p50 = por %p48, %p49
    %p51 = scmp.ne.s32.totalorder %s43, %s45
    %p52 = scmp.eq.s32.totalorder %s14, 1
    %p53 = por %p51, %p52
    %p54 = scmp.ne.s32.totalorder %s45, %s46
    %p55 = scmp.eq.s32.totalorder %s14, 0
    %p56 = por %p54, %p55
    %p57 = scmp.ne.s32.totalorder %s45, %s46
    %p58 = scmp.eq.s32.totalorder %s15, 1
    %p59 = por %p57, %p58
    %p61 = scmp.ne.s32.totalorder %s46, %s60
    %p62 = scmp.eq.s32.totalorder %s15, 0
    %p63 = por %p61, %p62
    %s65 = sadd.s32 %s64, 1
    %p68 = scmp.eq.s32.totalorder %s9, 1
    %p69 = scmp.ne.s32.totalorder %s64, %s66
    %p70 = scmp.eq.s32.totalorder %s9, 0
    %p71 = por %p69, %p70
    %p72 = scmp.ne.s32.totalorder %s64, %s66
    %p73 = scmp.eq.s32.totalorder %s14, 1
    %p74 = por %p72, %p73
    %p75 = scmp.ne.s32.totalorder %s66, %s67
    %p76 = scmp.eq.s32.totalorder %s14, 0
    %p77 = por %p75, %p76
    %p78 = scmp.ne.s32.totalorder %s66, %s67
    %p79 = scmp.eq.s32.totalorder %s15, 1
    %p80 = por %p78, %p79
    %p82 = scmp.ne.s32.totalorder %s67, %s81
    %p83 = scmp.eq.s32.totalorder %s15, 0
    %p84 = por %p82, %p83
    %s85 = ssub.s32 %s9, %s16
    %p86 = scmp.eq.s32.totalorder %s85, 0
    %s88 = sadd.s32 %s87, 1
    %s89 = scalar_select %p86, %s87, %s88
    %p92 = pneg %p86
    %p93 = scmp.eq.s32.totalorder %s9, 1
    %p94 = por %p92, %p93
    %p95 = scmp.ne.s32.totalorder %s87, %s90
    %p96 = scmp.eq.s32.totalorder %s9, 0
    %p97 = por %p95, %p96
    %p98 = scmp.ne.s32.totalorder %s87, %s90
    %p99 = scmp.eq.s32.totalorder %s14, 1
    %p100 = por %p98, %p99
    %p101 = scmp.ne.s32.totalorder %s90, %s91
    %p102 = scmp.eq.s32.totalorder %s14, 0
    %p103 = por %p101, %p102
    %p104 = scmp.ne.s32.totalorder %s90, %s91
    %p105 = scmp.eq.s32.totalorder %s15, 1
    %p106 = por %p104, %p105
    %p108 = scmp.ne.s32.totalorder %s91, %s107
    %p109 = scmp.eq.s32.totalorder %s15, 0
    %p110 = por %p108, %p109
    %p111 = scmp.le.s32.totalorder 1, %s9
    %p112 = scmp.lt.s32.totalorder %s9, 3
    %p113 = pnand %p111, %p112
    %p114 = pneg %p113
    // Predicated region
    $region9: #{upblock_forward.7} parent=5 // pred_check
      _
    $region10: #{upblock_forward.7} parent=5 // pred_check_branch
      %116 = sbr.rel (%p113) target = $region12
    $region11: #{upblock_forward.7} parent=5 // pred_region
      %s117 = ssub.s32 %s9, 1
      // Predicated region
      $region13: #{upblock_forward.7} parent=11 // pred_check
        %p118 = pneg %p56
      $region14: #{upblock_forward.7} parent=11 // pred_check_branch
        %120 = sbr.rel (%p118) target = $region16
      $region15: #{upblock_forward.7} parent=11 // pred_region
        _
      $region16: #{upblock_forward.7} parent=11 // pred_fallthru
        _
      // Predicated region
      $region17: #{upblock_forward.7} parent=11 // pred_check
        %p121 = pneg %p77
      $region18: #{upblock_forward.7} parent=11 // pred_check_branch
        %123 = sbr.rel (%p121) target = $region20
      $region19: #{upblock_forward.7} parent=11 // pred_region
        _
      $region20: #{upblock_forward.7} parent=11 // pred_fallthru
        _
    $region12: #{upblock_forward.7} parent=5 // pred_fallthru
      _
    %p124 = scmp.lt.s32.totalorder %s9, 2
    // Predicated region
    $region21: #{upblock_forward.7} parent=5 // pred_check
      %p125 = pneg %p124
    $region22: #{upblock_forward.7} parent=5 // pred_check_branch
      %127 = sbr.rel (%p125) target = $region24
    $region23: #{upblock_forward.7} parent=5 // pred_region
      // Predicated region
      $region25: #{upblock_forward.7} parent=23 // pred_check
        %p128 = pneg %p29
      $region26: #{upblock_forward.7} parent=23 // pred_check_branch
        %130 = sbr.rel (%p128) target = $region28
      $region27: #{upblock_forward.7} parent=23 // pred_region
        %p131 = scmp.lt.s32.totalorder %s9, 1
        %s132 = scalar_select %p131, %s9, 1
        %s133 = smul.addr %s132, 2
        %s134 = smul.addr %s133, 4
        %s135 = scalar_lea.vmem %s0, %s134
      $region28: #{upblock_forward.7} parent=23 // pred_fallthru
        _
    $region24: #{upblock_forward.7} parent=5 // pred_fallthru
      _
    %p136 = scmp.le.s32.totalorder 1, %s9
    %p137 = scmp.lt.s32.totalorder %s9, 3
    %p138 = pnand %p136, %p137
    %p139 = pneg %p138
    // Predicated region
    $region29: #{upblock_forward.7} parent=5 // pred_check
      _
    $region30: #{upblock_forward.7} parent=5 // pred_check_branch
      %141 = sbr.rel (%p138) target = $region32
    $region31: #{upblock_forward.7} parent=5 // pred_region
      %s142 = ssub.s32 %s9, 1
      %p143 = scmp.lt.s32.totalorder %s14, 1
      %s144 = scalar_select %p143, %s14, 1
      %s145 = smul.addr %s144, 2
      %s146 = smul.addr %s145, 4
      %s147 = scalar_lea.vmem %s0, %s146
      %p148 = pneg %p35
      %p149 = pneg %p32
      %p150 = pneg %p56
      %p151 = pneg %p53
      %p152 = pneg %p77
      %p153 = pneg %p74
      %p154 = pneg %p103
      %p155 = pneg %p100
      %p156 = scmp.lt.s32.totalorder %s14, 1
      %s157 = scalar_select %p156, %s14, 1
      %s158 = smul.addr %s157, 2
      %s159 = smul.addr %s158, 8
      %s160 = scalar_lea.vmem %s3, %s159
      %p161 = scmp.lt.s32.totalorder %s14, 1
      %s162 = scalar_select %p161, %s14, 1
      %s163 = smul.addr %s162, 2
      %s164 = smul.addr %s163, 4
      %s165 = scalar_lea.vmem %s0, %s164
      %p166 = scmp.lt.s32.totalorder %s14, 1
      %s167 = scalar_select %p166, %s14, 1
      %s168 = smul.addr %s167, 2
      %s169 = smul.addr %s168, 8
      %s170 = scalar_lea.vmem %s3, %s169
      %v171 = vld [vmem:[%s165] sm:$0xf]
      %v172 = vld [vmem:[%s165 + $0x4] sm:$0xf]
      %v173 = vunpack.c.l.bf16 %v171
      %v174 = vunpack.c.l.bf16 %v172
      %v175 = vld [vmem:[%s1] sm:$0x1]
      %v177 = vlaneseq
      %v178 = vshrl.u32 %v177, 7
      %v179 = vsub.s32 0, %v178
      %v180 = vrot.slane %v175, %v179
      %v182 = vmul.f32 %v173, %v180
      %v183 = vmul.f32 %v174, %v180
      %v184 = vld [vmem:[%s2] sm:$0x1]
      %v186 = vlaneseq
      %v187 = vshrl.u32 %v186, 7
      %v188 = vsub.s32 0, %v187
      %v189 = vrot.slane %v184, %v188
      %v191 = vadd.f32 %v182, %v189
      %v192 = vadd.f32 %v183, %v189
      %v193 = vmax.f32 %v191, 0.0
      %v194 = vmax.f32 %v192, 0.0
      %vm195 = vcmask 523264
      %196 = vst.msk [vmem:[%s170] sm:$0xff] %vm195, %v193
      %197 = vst.msk [vmem:[%s170 + $0x8] sm:$0xff] %vm195, %v194
      %p198 = scmp.lt.s32.totalorder %s14, 1
      %s199 = scalar_select %p198, %s14, 1
      %s200 = smul.addr %s199, 2
      %s201 = smul.addr %s200, 8
      %s202 = scalar_lea.vmem %s3, %s201
      // Predicated region
      $region33: #{upblock_forward.7} parent=31 // pred_check
        %p203 = pneg %p100
      $region34: #{upblock_forward.7} parent=31 // pred_check_branch
        %205 = sbr.rel (%p203) target = $region36
      $region35: #{upblock_forward.7} parent=31 // pred_region
        _
      $region36: #{upblock_forward.7} parent=31 // pred_fallthru
        _
    $region32: #{upblock_forward.7} parent=5 // pred_fallthru
      _
    %p206 = scmp.le.s32.totalorder 2, %s9
    // Predicated region
    $region37: #{upblock_forward.7} parent=5 // pred_check
      %p207 = pneg %p206
    $region38: #{upblock_forward.7} parent=5 // pred_check_branch
      %209 = sbr.rel (%p207) target = $region40
    $region39: #{upblock_forward.7} parent=5 // pred_region
      %s210 = ssub.s32 %s9, 2
      // Predicated region
      $region41: #{upblock_forward.7} parent=39 // pred_check
        %p211 = pneg %p106
      $region42: #{upblock_forward.7} parent=39 // pred_check_branch
        %213 = sbr.rel (%p211) target = $region44
      $region43: #{upblock_forward.7} parent=39 // pred_region
        %p214 = scmp.lt.s32.totalorder %s15, 1
        %s215 = scalar_select %p214, %s15, 1
        %s216 = smul.addr %s215, 2
        %s217 = smul.addr %s216, 8
        %s218 = scalar_lea.vmem %s3, %s217
      $region44: #{upblock_forward.7} parent=39 // pred_fallthru
        _
    $region40: #{upblock_forward.7} parent=5 // pred_fallthru
      _
  $region6: #{upblock_forward.7} parent=0 // loop_footer
    %s13 = sadd.s32 1, %s9
  $region7: #{upblock_forward.7} parent=0 // loop_footer_branch
    %8 = sbr.rel target = $region3
  $region8: #{upblock_forward.7} parent=0 // loop_exit
    _

// kernel: upblock_forward.6
$region0: #{upblock_forward.6}
  #allocation0 [shape = 'u32[]', space=smem, size = 0x4, offset = 0x4, fixed_abs, tag = 'smem constant byte address 0x4 - core index']
  #allocation1 [shape = 'u32[144,128]{1,0:T(1,128)}', space=vmem, size = 0x12000, scoped, tag = 'internal scratch']
  #allocation2 [shape = 'bf16[16,16,36]{2,1,0:T(16,128)(2,1)}', space=vmem, size = 0x10000, scoped, tag = 'scratch operand']
  %s0 = inlined_call_operand.vmem [shape: bf16[2,16,16,4], index: 0, kind: input, shape index: {}, may-alias: {0,1,2}]
  %s1 = inlined_call_operand.vmem [shape: bf16[2,16,16,4], index: 1, kind: input, shape index: {}, may-alias: {0,1,2}]
  %s2 = inlined_call_operand.vmem [shape: bf16[2,16,16,4], index: 2, kind: input, shape index: {}, may-alias: {0,1,2}]
  %s3 = inlined_call_operand.vmem [shape: f32[1,4], index: 3, kind: input, shape index: {}]
  %s4 = inlined_call_operand.vmem [shape: f32[1,4], index: 4, kind: input, shape index: {}]
  %s5 = inlined_call_operand.vmem [shape: bf16[36,4], index: 5, kind: input, shape index: {}]
  %s6 = inlined_call_operand.vmem [shape: bf16[2,256,4], index: 6, kind: output, shape index: {0}]
  %s7 = inlined_call_operand.vmem [shape: f32[2,1,4], index: 7, kind: output, shape index: {1}]
  %s8 = inlined_call_operand.vmem [shape: f32[2,1,4], index: 8, kind: output, shape index: {2}]
  %9 = xla_tuple %s6, %s7, %s8
  %s10 = sld [smem:[#allocation0]]
  $region73: #{upblock_forward.6} parent=0
    _
  %s12 = ssub.s32 1, %s10
  %s13 = scalar_select 0, %s12, %s10
  loop: start=0, step=1, limit=4
  $region2: #{upblock_forward.6} parent=0 // loop_pre_header
    _
  $region3: #{upblock_forward.6} parent=0 // loop_header
    %s15 = sphi 0, %s19
    %p16 = scmp.ge.s32.totalorder %s15, 4
    %s22 = sphi 0, %s34
    %s23 = sphi 0, %s30
    %s24 = sphi 0, %s22
    %s25 = sphi 0, %s23
    %s26 = sphi 0, %s24
    %s27 = sphi 0, %s25
    %s47 = sphi 0, %s49
    %s50 = sphi 0, %s47
    %s51 = sphi 0, %s50
    %s67 = sphi 0, %s51
    %s75 = sphi 0, %s77
    %s78 = sphi 0, %s75
    %s79 = sphi 0, %s78
    %s95 = sphi 0, %s79
    %s111 = sphi 0, %s113
    %s114 = sphi 0, %s111
    %s115 = sphi 0, %s114
    %s131 = sphi 0, %s115
    %s135 = sphi 0, %s135
    %s137 = sphi 0, %s135
    %s138 = sphi 0, %s137
    %s152 = sphi 0, %s138
    %s156 = sphi 0, %s156
    %s158 = sphi 0, %s156
    %s159 = sphi 0, %s158
    %s173 = sphi 0, %s159
    %s177 = sphi 0, %s177
    %s179 = sphi 0, %s177
    %s180 = sphi 0, %s179
    %s194 = sphi 0, %s180
    %s202 = sphi 0, %s204
    %s205 = sphi 0, %s202
    %s206 = sphi 0, %s205
    %s222 = sphi 0, %s206
    %s230 = sphi 0, %s232
    %s233 = sphi 0, %s230
    %s234 = sphi 0, %s233
    %s250 = sphi 0, %s234
    %s258 = sphi 0, %s260
    %s261 = sphi 0, %s258
    %s262 = sphi 0, %s261
    %s278 = sphi 0, %s262
  $region4: #{upblock_forward.6} parent=0 // loop_header_branch
    %18 = sbr.rel (%p16) target = $region8
  $region5: #{upblock_forward.6} parent=0 // loop_body
    %s20 = ssub.s32 %s15, 1
    %s21 = ssub.s32 %s15, 2
    %s28 = sadd.s32 1, %s23
    %p29 = scmp.ge.s32.totalorder %s28, 1
    %s30 = scalar_select %p29, 0, %s28
    %s31 = sadd.s32 1, %s22
    %s32 = scalar_select %p29, %s31, %s22
    %p33 = scmp.ge.s32.totalorder %s32, 2
    %s34 = scalar_select %p33, 0, %s32
    %s35 = smul.u32 %s23, 16
    %s36 = ssub.s32 %s35, 1
    %p37 = scmp.gt.s32.totalorder %s36, 0
    %s38 = scalar_select %p37, %s36, 0
    %s39 = smul.u32 %s30, 16
    %s40 = ssub.s32 %s39, 1
    %p41 = scmp.gt.s32.totalorder %s40, 0
    %s42 = scalar_select %p41, %s40, 0
    %s43 = ssub.s32 %s22, %s34
    %s44 = ssub.s32 %s38, %s42
    %s45 = sor.u32 %s43, %s44
    %p46 = scmp.eq.s32.totalorder %s45, 0
    %s48 = sadd.s32 %s47, 1
    %s49 = scalar_select %p46, %s47, %s48
    %p52 = pneg %p46
    %p53 = scmp.eq.s32.totalorder %s15, 1
    %p54 = por %p52, %p53
    %p55 = scmp.ne.s32.totalorder %s47, %s50
    %p56 = scmp.eq.s32.totalorder %s15, 0
    %p57 = por %p55, %p56
    %p58 = scmp.ne.s32.totalorder %s47, %s50
    %p59 = scmp.eq.s32.totalorder %s20, 1
    %p60 = por %p58, %p59
    %p61 = scmp.ne.s32.totalorder %s50, %s51
    %p62 = scmp.eq.s32.totalorder %s20, 0
    %p63 = por %p61, %p62
    %p64 = scmp.ne.s32.totalorder %s50, %s51
    %p65 = scmp.eq.s32.totalorder %s21, 1
    %p66 = por %p64, %p65
    %p68 = scmp.ne.s32.totalorder %s51, %s67
    %p69 = scmp.eq.s32.totalorder %s21, 0
    %p70 = por %p68, %p69
    %s71 = ssub.s32 %s22, %s34
    %s72 = ssub.s32 %s23, %s30
    %s73 = sor.u32 %s71, %s72
    %p74 = scmp.eq.s32.totalorder %s73, 0
    %s76 = sadd.s32 %s75, 1
    %s77 = scalar_select %p74, %s75, %s76
    %p80 = pneg %p74
    %p81 = scmp.eq.s32.totalorder %s15, 1
    %p82 = por %p80, %p81
    %p83 = scmp.ne.s32.totalorder %s75, %s78
    %p84 = scmp.eq.s32.totalorder %s15, 0
    %p85 = por %p83, %p84
    %p86 = scmp.ne.s32.totalorder %s75, %s78
    %p87 = scmp.eq.s32.totalorder %s20, 1
    %p88 = por %p86, %p87
    %p89 = scmp.ne.s32.totalorder %s78, %s79
    %p90 = scmp.eq.s32.totalorder %s20, 0
    %p91 = por %p89, %p90
    %p92 = scmp.ne.s32.totalorder %s78, %s79
    %p93 = scmp.eq.s32.totalorder %s21, 1
    %p94 = por %p92, %p93
    %p96 = scmp.ne.s32.totalorder %s79, %s95
    %p97 = scmp.eq.s32.totalorder %s21, 0
    %p98 = por %p96, %p97
    %s99 = smul.u32 %s23, 16
    %s100 = sadd.s32 %s99, 16
    %p101 = scmp.lt.s32.totalorder %s100, 15
    %s102 = scalar_select %p101, %s100, 15
    %s103 = smul.u32 %s30, 16
    %s104 = sadd.s32 %s103, 16
    %p105 = scmp.lt.s32.totalorder %s104, 15
    %s106 = scalar_select %p105, %s104, 15
    %s107 = ssub.s32 %s22, %s34
    %s108 = ssub.s32 %s102, %s106
    %s109 = sor.u32 %s107, %s108
    %p110 = scmp.eq.s32.totalorder %s109, 0
    %s112 = sadd.s32 %s111, 1
    %s113 = scalar_select %p110, %s111, %s112
    %p116 = pneg %p110
    %p117 = scmp.eq.s32.totalorder %s15, 1
    %p118 = por %p116, %p117
    %p119 = scmp.ne.s32.totalorder %s111, %s114
    %p120 = scmp.eq.s32.totalorder %s15, 0
    %p121 = por %p119, %p120
    %p122 = scmp.ne.s32.totalorder %s111, %s114
    %p123 = scmp.eq.s32.totalorder %s20, 1
    %p124 = por %p122, %p123
    %p125 = scmp.ne.s32.totalorder %s114, %s115
    %p126 = scmp.eq.s32.totalorder %s20, 0
    %p127 = por %p125, %p126
    %p128 = scmp.ne.s32.totalorder %s114, %s115
    %p129 = scmp.eq.s32.totalorder %s21, 1
    %p130 = por %p128, %p129
    %p132 = scmp.ne.s32.totalorder %s115, %s131
    %p133 = scmp.eq.s32.totalorder %s21, 0
    %p134 = por %p132, %p133
    %s136 = sadd.s32 %s135, 1
    %p139 = scmp.eq.s32.totalorder %s15, 1
    %p140 = scmp.ne.s32.totalorder %s135, %s137
    %p141 = scmp.eq.s32.totalorder %s15, 0
    %p142 = por %p140, %p141
    %p143 = scmp.ne.s32.totalorder %s135, %s137
    %p144 = scmp.eq.s32.totalorder %s20, 1
    %p145 = por %p143, %p144
    %p146 = scmp.ne.s32.totalorder %s137, %s138
    %p147 = scmp.eq.s32.totalorder %s20, 0
    %p148 = por %p146, %p147
    %p149 = scmp.ne.s32.totalorder %s137, %s138
    %p150 = scmp.eq.s32.totalorder %s21, 1
    %p151 = por %p149, %p150
    %p153 = scmp.ne.s32.totalorder %s138, %s152
    %p154 = scmp.eq.s32.totalorder %s21, 0
    %p155 = por %p153, %p154
    %s157 = sadd.s32 %s156, 1
    %p160 = scmp.eq.s32.totalorder %s15, 1
    %p161 = scmp.ne.s32.totalorder %s156, %s158
    %p162 = scmp.eq.s32.totalorder %s15, 0
    %p163 = por %p161, %p162
    %p164 = scmp.ne.s32.totalorder %s156, %s158
    %p165 = scmp.eq.s32.totalorder %s20, 1
    %p166 = por %p164, %p165
    %p167 = scmp.ne.s32.totalorder %s158, %s159
    %p168 = scmp.eq.s32.totalorder %s20, 0
    %p169 = por %p167, %p168
    %p170 = scmp.ne.s32.totalorder %s158, %s159
    %p171 = scmp.eq.s32.totalorder %s21, 1
    %p172 = por %p170, %p171
    %p174 = scmp.ne.s32.totalorder %s159, %s173
    %p175 = scmp.eq.s32.totalorder %s21, 0
    %p176 = por %p174, %p175
    %s178 = sadd.s32 %s177, 1
    %p181 = scmp.eq.s32.totalorder %s15, 1
    %p182 = scmp.ne.s32.totalorder %s177, %s179
    %p183 = scmp.eq.s32.totalorder %s15, 0
    %p184 = por %p182, %p183
    %p185 = scmp.ne.s32.totalorder %s177, %s179
    %p186 = scmp.eq.s32.totalorder %s20, 1
    %p187 = por %p185, %p186
    %p188 = scmp.ne.s32.totalorder %s179, %s180
    %p189 = scmp.eq.s32.totalorder %s20, 0
    %p190 = por %p188, %p189
    %p191 = scmp.ne.s32.totalorder %s179, %s180
    %p192 = scmp.eq.s32.totalorder %s21, 1
    %p193 = por %p191, %p192
    %p195 = scmp.ne.s32.totalorder %s180, %s194
    %p196 = scmp.eq.s32.totalorder %s21, 0
    %p197 = por %p195, %p196
    %s198 = sadd.s32 %s22, %s23
    %s199 = sadd.s32 %s34, %s30
    %s200 = ssub.s32 %s198, %s199
    %p201 = scmp.eq.s32.totalorder %s200, 0
    %s203 = sadd.s32 %s202, 1
    %s204 = scalar_select %p201, %s202, %s203
    %p207 = pneg %p201
    %p208 = scmp.eq.s32.totalorder %s15, 1
    %p209 = por %p207, %p208
    %p210 = scmp.ne.s32.totalorder %s202, %s205
    %p211 = scmp.eq.s32.totalorder %s15, 0
    %p212 = por %p210, %p211
    %p213 = scmp.ne.s32.totalorder %s202, %s205
    %p214 = scmp.eq.s32.totalorder %s20, 1
    %p215 = por %p213, %p214
    %p216 = scmp.ne.s32.totalorder %s205, %s206
    %p217 = scmp.eq.s32.totalorder %s20, 0
    %p218 = por %p216, %p217
    %p219 = scmp.ne.s32.totalorder %s205, %s206
    %p220 = scmp.eq.s32.totalorder %s21, 1
    %p221 = por %p219, %p220
    %p223 = scmp.ne.s32.totalorder %s206, %s222
    %p224 = scmp.eq.s32.totalorder %s21, 0
    %p225 = por %p223, %p224
    %s226 = sadd.s32 %s22, %s23
    %s227 = sadd.s32 %s34, %s30
    %s228 = ssub.s32 %s226, %s227
    %p229 = scmp.eq.s32.totalorder %s228, 0
    %s231 = sadd.s32 %s230, 1
    %s232 = scalar_select %p229, %s230, %s231
    %p235 = pneg %p229
    %p236 = scmp.eq.s32.totalorder %s15, 1
    %p237 = por %p235, %p236
    %p238 = scmp.ne.s32.totalorder %s230, %s233
    %p239 = scmp.eq.s32.totalorder %s15, 0
    %p240 = por %p238, %p239
    %p241 = scmp.ne.s32.totalorder %s230, %s233
    %p242 = scmp.eq.s32.totalorder %s20, 1
    %p243 = por %p241, %p242
    %p244 = scmp.ne.s32.totalorder %s233, %s234
    %p245 = scmp.eq.s32.totalorder %s20, 0
    %p246 = por %p244, %p245
    %p247 = scmp.ne.s32.totalorder %s233, %s234
    %p248 = scmp.eq.s32.totalorder %s21, 1
    %p249 = por %p247, %p248
    %p251 = scmp.ne.s32.totalorder %s234, %s250
    %p252 = scmp.eq.s32.totalorder %s21, 0
    %p253 = por %p251, %p252
    %s254 = sadd.s32 %s22, %s23
    %s255 = sadd.s32 %s34, %s30
    %s256 = ssub.s32 %s254, %s255
    %p257 = scmp.eq.s32.totalorder %s256, 0
    %s259 = sadd.s32 %s258, 1
    %s260 = scalar_select %p257, %s258, %s259
    %p263 = pneg %p257
    %p264 = scmp.eq.s32.totalorder %s15, 1
    %p265 = por %p263, %p264
    %p266 = scmp.ne.s32.totalorder %s258, %s261
    %p267 = scmp.eq.s32.totalorder %s15, 0
    %p268 = por %p266, %p267
    %p269 = scmp.ne.s32.totalorder %s258, %s261
    %p270 = scmp.eq.s32.totalorder %s20, 1
    %p271 = por %p269, %p270
    %p272 = scmp.ne.s32.totalorder %s261, %s262
    %p273 = scmp.eq.s32.totalorder %s20, 0
    %p274 = por %p272, %p273
    %p275 = scmp.ne.s32.totalorder %s261, %s262
    %p276 = scmp.eq.s32.totalorder %s21, 1
    %p277 = por %p275, %p276
    %p279 = scmp.ne.s32.totalorder %s262, %s278
    %p280 = scmp.eq.s32.totalorder %s21, 0
    %p281 = por %p279, %p280
    %p282 = scmp.le.s32.totalorder 1, %s15
    %p283 = scmp.lt.s32.totalorder %s15, 3
    %p284 = pnand %p282, %p283
    %p285 = pneg %p284
    // Predicated region
    $region9: #{upblock_forward.6} parent=5 // pred_check
      _
    $region10: #{upblock_forward.6} parent=5 // pred_check_branch
      %287 = sbr.rel (%p284) target = $region12
    $region11: #{upblock_forward.6} parent=5 // pred_region
      %s288 = ssub.s32 %s15, 1
      // Predicated region
      $region13: #{upblock_forward.6} parent=11 // pred_check
        %p289 = pneg %p148
      $region14: #{upblock_forward.6} parent=11 // pred_check_branch
        %291 = sbr.rel (%p289) target = $region16
      $region15: #{upblock_forward.6} parent=11 // pred_region
        _
      $region16: #{upblock_forward.6} parent=11 // pred_fallthru
        _
      // Predicated region
      $region17: #{upblock_forward.6} parent=11 // pred_check
        %p292 = pneg %p169
      $region18: #{upblock_forward.6} parent=11 // pred_check_branch
        %294 = sbr.rel (%p292) target = $region20
      $region19: #{upblock_forward.6} parent=11 // pred_region
        _
      $region20: #{upblock_forward.6} parent=11 // pred_fallthru
        _
      // Predicated region
      $region21: #{upblock_forward.6} parent=11 // pred_check
        %p295 = pneg %p190
      $region22: #{upblock_forward.6} parent=11 // pred_check_branch
        %297 = sbr.rel (%p295) target = $region24
      $region23: #{upblock_forward.6} parent=11 // pred_region
        _
      $region24: #{upblock_forward.6} parent=11 // pred_fallthru
        _
    $region12: #{upblock_forward.6} parent=5 // pred_fallthru
      _
    %p298 = scmp.lt.s32.totalorder %s15, 2
    // Predicated region
    $region25: #{upblock_forward.6} parent=5 // pred_check
      %p299 = pneg %p298
    $region26: #{upblock_forward.6} parent=5 // pred_check_branch
      %301 = sbr.rel (%p299) target = $region28
    $region27: #{upblock_forward.6} parent=5 // pred_region
      // Predicated region
      $region29: #{upblock_forward.6} parent=27 // pred_check
        %p302 = pneg %p57
      $region30: #{upblock_forward.6} parent=27 // pred_check_branch
        %304 = sbr.rel (%p302) target = $region32
      $region31: #{upblock_forward.6} parent=27 // pred_region
        %s305 = smul.u32 %s23, 16
        %s306 = ssub.s32 %s305, 1
        %p307 = scmp.gt.s32.totalorder %s306, 0
        %s308 = scalar_select %p307, %s306, 0
        %p309 = scmp.lt.s32.totalorder %s22, 1
        %s310 = scalar_select %p309, %s22, 1
        %p311 = scmp.lt.s32.totalorder %s308, 15
        %s312 = scalar_select %p311, %s308, 15
        %s313 = smul.addr %s312, 2
        %s314 = smul.addr %s310, 32
        %s315 = sadd.s32 %s313, %s314
        %s316 = smul.addr %s315, 4
        %s317 = scalar_lea.vmem %s0, %s316
        %s318 = smul.u32 %s23, 16
        %s319 = ssub.s32 %s318, 1
        %p320 = scmp.gt.s32.totalorder %s319, 0
        %s321 = scalar_select %p320, %s319, 0
      $region32: #{upblock_forward.6} parent=27 // pred_fallthru
        _
      // Predicated region
      $region33: #{upblock_forward.6} parent=27 // pred_check
        %p322 = pneg %p85
      $region34: #{upblock_forward.6} parent=27 // pred_check_branch
        %324 = sbr.rel (%p322) target = $region36
      $region35: #{upblock_forward.6} parent=27 // pred_region
        %s325 = smul.u32 16, %s23
        %p326 = scmp.lt.s32.totalorder %s22, 1
        %s327 = scalar_select %p326, %s22, 1
        %p328 = scmp.lt.s32.totalorder %s325, 15
        %s329 = scalar_select %p328, %s325, 15
        %s330 = smul.addr %s329, 2
        %s331 = smul.addr %s327, 32
        %s332 = sadd.s32 %s330, %s331
        %s333 = smul.addr %s332, 4
        %s334 = scalar_lea.vmem %s1, %s333
        %s335 = smul.u32 16, %s23
      $region36: #{upblock_forward.6} parent=27 // pred_fallthru
        _
      // Predicated region
      $region37: #{upblock_forward.6} parent=27 // pred_check
        %p336 = pneg %p121
      $region38: #{upblock_forward.6} parent=27 // pred_check_branch
        %338 = sbr.rel (%p336) target = $region40
      $region39: #{upblock_forward.6} parent=27 // pred_region
        %s339 = smul.u32 %s23, 16
        %s340 = sadd.s32 %s339, 16
        %p341 = scmp.lt.s32.totalorder %s340, 15
        %s342 = scalar_select %p341, %s340, 15
        %p343 = scmp.lt.s32.totalorder %s22, 1
        %s344 = scalar_select %p343, %s22, 1
        %p345 = scmp.lt.s32.totalorder %s342, 15
        %s346 = scalar_select %p345, %s342, 15
        %s347 = smul.addr %s346, 2
        %s348 = smul.addr %s344, 32
        %s349 = sadd.s32 %s347, %s348
        %s350 = smul.addr %s349, 4
        %s351 = scalar_lea.vmem %s2, %s350
        %s352 = smul.u32 %s23, 16
        %s353 = sadd.s32 %s352, 16
        %p354 = scmp.lt.s32.totalorder %s353, 15
        %s355 = scalar_select %p354, %s353, 15
      $region40: #{upblock_forward.6} parent=27 // pred_fallthru
        _
    $region28: #{upblock_forward.6} parent=5 // pred_fallthru
      _
    %p356 = scmp.le.s32.totalorder 1, %s15
    %p357 = scmp.lt.s32.totalorder %s15, 3
    %p358 = pnand %p356, %p357
    %p359 = pneg %p358
    // Predicated region
    $region41: #{upblock_forward.6} parent=5 // pred_check
      _
    $region42: #{upblock_forward.6} parent=5 // pred_check_branch
      %361 = sbr.rel (%p358) target = $region44
    $region43: #{upblock_forward.6} parent=5 // pred_region
      %s362 = ssub.s32 %s15, 1
      %s363 = smul.u32 %s25, 16
      %s364 = ssub.s32 %s363, 1
      %p365 = scmp.gt.s32.totalorder %s364, 0
      %s366 = scalar_select %p365, %s364, 0
      %p367 = scmp.lt.s32.totalorder %s24, 1
      %s368 = scalar_select %p367, %s24, 1
      %p369 = scmp.lt.s32.totalorder %s366, 15
      %s370 = scalar_select %p369, %s366, 15
      %s371 = smul.addr %s370, 2
      %s372 = smul.addr %s368, 32
      %s373 = sadd.s32 %s371, %s372
      %s374 = smul.addr %s373, 4
      %s375 = scalar_lea.vmem %s0, %s374
      %p376 = pneg %p63
      %p377 = pneg %p60
      %s378 = smul.u32 16, %s25
      %p379 = scmp.lt.s32.totalorder %s24, 1
      %s380 = scalar_select %p379, %s24, 1
      %p381 = scmp.lt.s32.totalorder %s378, 15
      %s382 = scalar_select %p381, %s378, 15
      %s383 = smul.addr %s382, 2
      %s384 = smul.addr %s380, 32
      %s385 = sadd.s32 %s383, %s384
      %s386 = smul.addr %s385, 4
      %s387 = scalar_lea.vmem %s1, %s386
      %p388 = pneg %p91
      %p389 = pneg %p88
      %s390 = smul.u32 %s25, 16
      %s391 = sadd.s32 %s390, 16
      %p392 = scmp.lt.s32.totalorder %s391, 15
      %s393 = scalar_select %p392, %s391, 15
      %p394 = scmp.lt.s32.totalorder %s24, 1
      %s395 = scalar_select %p394, %s24, 1
      %p396 = scmp.lt.s32.totalorder %s393, 15
      %s397 = scalar_select %p396, %s393, 15
      %s398 = smul.addr %s397, 2
      %s399 = smul.addr %s395, 32
      %s400 = sadd.s32 %s398, %s399
      %s401 = smul.addr %s400, 4
      %s402 = scalar_lea.vmem %s2, %s401
      %p403 = pneg %p127
      %p404 = pneg %p124
      %p405 = pneg %p148
      %p406 = pneg %p145
      %p407 = pneg %p169
      %p408 = pneg %p166
      %p409 = pneg %p190
      %p410 = pneg %p187
      %p411 = pneg %p218
      %p412 = pneg %p215
      %s413 = sadd.s32 %s24, %s25
      %p414 = scmp.lt.s32.totalorder %s413, 1
      %s415 = scalar_select %p414, %s413, 1
      %s416 = smul.addr %s415, 32
      %s417 = smul.addr %s416, 4
      %s418 = scalar_lea.vmem %s6, %s417
      %p419 = pneg %p246
      %p420 = pneg %p243
      %s421 = sadd.s32 %s24, %s25
      %p422 = scmp.lt.s32.totalorder %s421, 1
      %s423 = scalar_select %p422, %s421, 1
      %s424 = scalar_lea.vmem %s7, %s423
      %p425 = pneg %p274
      %p426 = pneg %p271
      %s427 = sadd.s32 %s24, %s25
      %p428 = scmp.lt.s32.totalorder %s427, 1
      %s429 = scalar_select %p428, %s427, 1
      %s430 = scalar_lea.vmem %s8, %s429
      %s431 = smul.u32 %s25, 16
      %s432 = ssub.s32 %s431, 1
      %p433 = scmp.gt.s32.totalorder %s432, 0
      %s434 = scalar_select %p433, %s432, 0
      %p435 = scmp.lt.s32.totalorder %s24, 1
      %s436 = scalar_select %p435, %s24, 1
      %p437 = scmp.lt.s32.totalorder %s434, 15
      %s438 = scalar_select %p437, %s434, 15
      %s439 = smul.addr %s438, 2
      %s440 = smul.addr %s436, 32
      %s441 = sadd.s32 %s439, %s440
      %s442 = smul.addr %s441, 4
      %s443 = scalar_lea.vmem %s0, %s442
      %s444 = smul.u32 %s25, 16
      %s445 = ssub.s32 %s444, 1
      %p446 = scmp.gt.s32.totalorder %s445, 0
      %s447 = scalar_select %p446, %s445, 0
      %s448 = smul.u32 16, %s25
      %p449 = scmp.lt.s32.totalorder %s24, 1
      %s450 = scalar_select %p449, %s24, 1
      %p451 = scmp.lt.s32.totalorder %s448, 15
      %s452 = scalar_select %p451, %s448, 15
      %s453 = smul.addr %s452, 2
      %s454 = smul.addr %s450, 32
      %s455 = sadd.s32 %s453, %s454
      %s456 = smul.addr %s455, 4
      %s457 = scalar_lea.vmem %s1, %s456
      %s458 = smul.u32 16, %s25
      %s459 = smul.u32 %s25, 16
      %s460 = sadd.s32 %s459, 16
      %p461 = scmp.lt.s32.totalorder %s460, 15
      %s462 = scalar_select %p461, %s460, 15
      %p463 = scmp.lt.s32.totalorder %s24, 1
      %s464 = scalar_select %p463, %s24, 1
      %p465 = scmp.lt.s32.totalorder %s462, 15
      %s466 = scalar_select %p465, %s462, 15
      %s467 = smul.addr %s466, 2
      %s468 = smul.addr %s464, 32
      %s469 = sadd.s32 %s467, %s468
      %s470 = smul.addr %s469, 4
      %s471 = scalar_lea.vmem %s2, %s470
      %s472 = smul.u32 %s25, 16
      %s473 = sadd.s32 %s472, 16
      %p474 = scmp.lt.s32.totalorder %s473, 15
      %s475 = scalar_select %p474, %s473, 15
      %s476 = sadd.s32 %s24, %s25
      %p477 = scmp.lt.s32.totalorder %s476, 1
      %s478 = scalar_select %p477, %s476, 1
      %s479 = smul.addr %s478, 32
      %s480 = smul.addr %s479, 4
      %s481 = scalar_lea.vmem %s6, %s480
      %s482 = sadd.s32 %s24, %s25
      %s483 = sadd.s32 %s24, %s25
      %p484 = scmp.lt.s32.totalorder %s483, 1
      %s485 = scalar_select %p484, %s483, 1
      %s486 = scalar_lea.vmem %s7, %s485
      %s487 = sadd.s32 %s24, %s25
      %s488 = sadd.s32 %s24, %s25
      %p489 = scmp.lt.s32.totalorder %s488, 1
      %s490 = scalar_select %p489, %s488, 1
      %s491 = scalar_lea.vmem %s8, %s490
      %s492 = sadd.s32 %s24, %s25
      %p494 = scmp.gt.s32.totalorder %s25, 0
      %s495 = scalar_select %p494, 1, 0
      %s496 = scvt.s32.f32 %s495
      %p498 = scmp.ne.f32.partialorder %s496, %s496
      %s499 = sshrl.u32 %s496, 16
      %s500 = sand.u32 %s499, 1
      %s501 = sadd.s32 32767, %s500
      %s502 = sadd.s32 %s496, %s501
      %s503 = sand.u32 %s502, 4294901760
      %s504 = scalar_select %p498, 2143289344, %s503
      %s506 = sshrl.u32 %s504, 16
      %p507 = scmp.lt.s32.totalorder %s25, 0
      %s508 = scalar_select %p507, 1, 0
      %s509 = scvt.s32.f32 %s508
      %p511 = scmp.ne.f32.partialorder %s509, %s509
      %s512 = sshrl.u32 %s509, 16
      %s513 = sand.u32 %s512, 1
      %s514 = sadd.s32 32767, %s513
      %s515 = sadd.s32 %s509, %s514
      %s516 = sand.u32 %s515, 4294901760
      %s517 = scalar_select %p511, 2143289344, %s516
      %s519 = sshrl.u32 %s517, 16
      %v520 = vld [vmem:[%s3] sm:$0x1]
      %v521 = vld [vmem:[%s4] sm:$0x1]
      %v522 = vld [vmem:[%s457] sm:$0xf]
      %v523 = vld [vmem:[%s457 + $0x4] sm:$0xf]
      %v524 = vld [vmem:[%s457 + $0x8] sm:$0xf]
      %v525 = vld [vmem:[%s457 + $0xc] sm:$0xf]
      %v526 = vld [vmem:[%s457 + $0x10] sm:$0xf]
      %v527 = vld [vmem:[%s457 + $0x14] sm:$0xf]
      %v528 = vld [vmem:[%s457 + $0x18] sm:$0xf]
      %v529 = vld [vmem:[%s457 + $0x1c] sm:$0xf]
      %v530 = vld [vmem:[%s457 + $0x20] sm:$0xf]
      %v531 = vld [vmem:[%s457 + $0x24] sm:$0xf]
      %v532 = vld [vmem:[%s457 + $0x28] sm:$0xf]
      %v533 = vld [vmem:[%s457 + $0x2c] sm:$0xf]
      %v534 = vld [vmem:[%s457 + $0x30] sm:$0xf]
      %v535 = vld [vmem:[%s457 + $0x34] sm:$0xf]
      %v536 = vld [vmem:[%s457 + $0x38] sm:$0xf]
      %v537 = vld [vmem:[%s457 + $0x3c] sm:$0xf]
      %v538 = vld [vmem:[%s457 + $0x40] sm:$0xf]
      %v539 = vld [vmem:[%s457 + $0x44] sm:$0xf]
      %v540 = vld [vmem:[%s457 + $0x48] sm:$0xf]
      %v541 = vld [vmem:[%s457 + $0x4c] sm:$0xf]
      %v542 = vld [vmem:[%s457 + $0x50] sm:$0xf]
      %v543 = vld [vmem:[%s457 + $0x54] sm:$0xf]
      %v544 = vld [vmem:[%s457 + $0x58] sm:$0xf]
      %v545 = vld [vmem:[%s457 + $0x5c] sm:$0xf]
      %v546 = vld [vmem:[%s457 + $0x60] sm:$0xf]
      %v547 = vld [vmem:[%s457 + $0x64] sm:$0xf]
      %v548 = vld [vmem:[%s457 + $0x68] sm:$0xf]
      %v549 = vld [vmem:[%s457 + $0x6c] sm:$0xf]
      %v550 = vld [vmem:[%s457 + $0x70] sm:$0xf]
      %v551 = vld [vmem:[%s457 + $0x74] sm:$0xf]
      %v552 = vld [vmem:[%s457 + $0x78] sm:$0xf]
      %v553 = vld [vmem:[%s457 + $0x7c] sm:$0xf]
      %v554 = vunpack.c.l.bf16 %v522
      %v555 = vunpack.c.l.bf16 %v523
      %v556 = vunpack.c.l.bf16 %v524
      %v557 = vunpack.c.l.bf16 %v525
      %v558 = vunpack.c.l.bf16 %v526
      %v559 = vunpack.c.l.bf16 %v527
      %v560 = vunpack.c.l.bf16 %v528
      %v561 = vunpack.c.l.bf16 %v529
      %v562 = vunpack.c.l.bf16 %v530
      %v563 = vunpack.c.l.bf16 %v531
      %v564 = vunpack.c.l.bf16 %v532
      %v565 = vunpack.c.l.bf16 %v533
      %v566 = vunpack.c.l.bf16 %v534
      %v567 = vunpack.c.l.bf16 %v535
      %v568 = vunpack.c.l.bf16 %v536
      %v569 = vunpack.c.l.bf16 %v537
      %v570 = vunpack.c.l.bf16 %v538
      %v571 = vunpack.c.l.bf16 %v539
      %v572 = vunpack.c.l.bf16 %v540
      %v573 = vunpack.c.l.bf16 %v541
      %v574 = vunpack.c.l.bf16 %v542
      %v575 = vunpack.c.l.bf16 %v543
      %v576 = vunpack.c.l.bf16 %v544
      %v577 = vunpack.c.l.bf16 %v545
      %v578 = vunpack.c.l.bf16 %v546
      %v579 = vunpack.c.l.bf16 %v547
      %v580 = vunpack.c.l.bf16 %v548
      %v581 = vunpack.c.l.bf16 %v549
      %v582 = vunpack.c.l.bf16 %v550
      %v583 = vunpack.c.l.bf16 %v551
      %v584 = vunpack.c.l.bf16 %v552
      %v585 = vunpack.c.l.bf16 %v553
      %v587 = vlaneseq
      %v588 = vshrl.u32 %v587, 7
      %v589 = vsub.s32 0, %v588
      %v590 = vrot.slane %v520, %v589
      %v592 = vmul.f32 %v554, %v590
      %v593 = vmul.f32 %v555, %v590
      %v594 = vmul.f32 %v556, %v590
      %v595 = vmul.f32 %v557, %v590
      %v596 = vmul.f32 %v558, %v590
      %v597 = vmul.f32 %v559, %v590
      %v598 = vmul.f32 %v560, %v590
      %v599 = vmul.f32 %v561, %v590
      %v600 = vmul.f32 %v562, %v590
      %v601 = vmul.f32 %v563, %v590
      %v602 = vmul.f32 %v564, %v590
      %v603 = vmul.f32 %v565, %v590
      %v604 = vmul.f32 %v566, %v590
      %v605 = vmul.f32 %v567, %v590
      %v606 = vmul.f32 %v568, %v590
      %v607 = vmul.f32 %v569, %v590
      %v608 = vmul.f32 %v570, %v590
      %v609 = vmul.f32 %v571, %v590
      %v610 = vmul.f32 %v572, %v590
      %v611 = vmul.f32 %v573, %v590
      %v612 = vmul.f32 %v574, %v590
      %v613 = vmul.f32 %v575, %v590
      %v614 = vmul.f32 %v576, %v590
      %v615 = vmul.f32 %v577, %v590
      %v616 = vmul.f32 %v578, %v590
      %v617 = vmul.f32 %v579, %v590
      %v618 = vmul.f32 %v580, %v590
      %v619 = vmul.f32 %v581, %v590
      %v620 = vmul.f32 %v582, %v590
      %v621 = vmul.f32 %v583, %v590
      %v622 = vmul.f32 %v584, %v590
      %v623 = vmul.f32 %v585, %v590
      %v625 = vlaneseq
      %v626 = vshrl.u32 %v625, 7
      %v627 = vsub.s32 0, %v626
      %v628 = vrot.slane %v521, %v627
      %v630 = vadd.f32 %v592, %v628
      %v631 = vadd.f32 %v593, %v628
      %v632 = vadd.f32 %v594, %v628
      %v633 = vadd.f32 %v595, %v628
      %v634 = vadd.f32 %v596, %v628
      %v635 = vadd.f32 %v597, %v628
      %v636 = vadd.f32 %v598, %v628
      %v637 = vadd.f32 %v599, %v628
      %v638 = vadd.f32 %v600, %v628
      %v639 = vadd.f32 %v601, %v628
      %v640 = vadd.f32 %v602, %v628
      %v641 = vadd.f32 %v603, %v628
      %v642 = vadd.f32 %v604, %v628
      %v643 = vadd.f32 %v605, %v628
      %v644 = vadd.f32 %v606, %v628
      %v645 = vadd.f32 %v607, %v628
      %v646 = vadd.f32 %v608, %v628
      %v647 = vadd.f32 %v609, %v628
      %v648 = vadd.f32 %v610, %v628
      %v649 = vadd.f32 %v611, %v628
      %v650 = vadd.f32 %v612, %v628
      %v651 = vadd.f32 %v613, %v628
      %v652 = vadd.f32 %v614, %v628
      %v653 = vadd.f32 %v615, %v628
      %v654 = vadd.f32 %v616, %v628
      %v655 = vadd.f32 %v617, %v628
      %v656 = vadd.f32 %v618, %v628
      %v657 = vadd.f32 %v619, %v628
      %v658 = vadd.f32 %v620, %v628
      %v659 = vadd.f32 %v621, %v628
      %v660 = vadd.f32 %v622, %v628
      %v661 = vadd.f32 %v623, %v628
      %v662 = vmax.f32 %v630, 0.0
      %v663 = vmax.f32 %v631, 0.0
      %v664 = vmax.f32 %v632, 0.0
      %v665 = vmax.f32 %v633, 0.0
      %v666 = vmax.f32 %v634, 0.0
      %v667 = vmax.f32 %v635, 0.0
      %v668 = vmax.f32 %v636, 0.0
      %v669 = vmax.f32 %v637, 0.0
      %v670 = vmax.f32 %v638, 0.0
      %v671 = vmax.f32 %v639, 0.0
      %v672 = vmax.f32 %v640, 0.0
      %v673 = vmax.f32 %v641, 0.0
      %v674 = vmax.f32 %v642, 0.0
      %v675 = vmax.f32 %v643, 0.0
      %v676 = vmax.f32 %v644, 0.0
      %v677 = vmax.f32 %v645, 0.0
      %v678 = vmax.f32 %v646, 0.0
      %v679 = vmax.f32 %v647, 0.0
      %v680 = vmax.f32 %v648, 0.0
      %v681 = vmax.f32 %v649, 0.0
      %v682 = vmax.f32 %v650, 0.0
      %v683 = vmax.f32 %v651, 0.0
      %v684 = vmax.f32 %v652, 0.0
      %v685 = vmax.f32 %v653, 0.0
      %v686 = vmax.f32 %v654, 0.0
      %v687 = vmax.f32 %v655, 0.0
      %v688 = vmax.f32 %v656, 0.0
      %v689 = vmax.f32 %v657, 0.0
      %v690 = vmax.f32 %v658, 0.0
      %v691 = vmax.f32 %v659, 0.0
      %v692 = vmax.f32 %v660, 0.0
      %v693 = vmax.f32 %v661, 0.0
      %v694 = vpack.c.bf16 %v663, %v662
      %v695 = vpack.c.bf16 %v665, %v664
      %v696 = vpack.c.bf16 %v667, %v666
      %v697 = vpack.c.bf16 %v669, %v668
      %v698 = vpack.c.bf16 %v671, %v670
      %v699 = vpack.c.bf16 %v673, %v672
      %v700 = vpack.c.bf16 %v675, %v674
      %v701 = vpack.c.bf16 %v677, %v676
      %v702 = vpack.c.bf16 %v679, %v678
      %v703 = vpack.c.bf16 %v681, %v680
      %v704 = vpack.c.bf16 %v683, %v682
      %v705 = vpack.c.bf16 %v685, %v684
      %v706 = vpack.c.bf16 %v687, %v686
      %v707 = vpack.c.bf16 %v689, %v688
      %v708 = vpack.c.bf16 %v691, %v690
      %v709 = vpack.c.bf16 %v693, %v692
      %v710 = vld [vmem:[%s443] sm:$0xf]
      %v711 = vld [vmem:[%s443 + $0x4] sm:$0xf]
      %v712 = vunpack.c.l.bf16 %v710
      %v713 = vunpack.c.l.bf16 %v711
      %v714 = vmul.f32 %v712, %v590
      %v715 = vmul.f32 %v713, %v590
      %v716 = vadd.f32 %v714, %v628
      %v717 = vadd.f32 %v715, %v628
      %v718 = vmax.f32 %v716, 0.0
      %v719 = vmax.f32 %v717, 0.0
      %v720 = vpack.c.bf16 %v719, %v718
      %s721 = sshll.u32 %s506, 16
      %s722 = sor.u32 %s506, %s721
      %v723 = vstv %s722
      %v725 = vmul.bf16 %v720, %v723
      %v726 = vld [vmem:[%s471] sm:$0xf]
      %v727 = vld [vmem:[%s471 + $0x4] sm:$0xf]
      %v728 = vunpack.c.l.bf16 %v726
      %v729 = vunpack.c.l.bf16 %v727
      %v730 = vmul.f32 %v728, %v590
      %v731 = vmul.f32 %v729, %v590
      %v732 = vadd.f32 %v730, %v628
      %v733 = vadd.f32 %v731, %v628
      %v734 = vmax.f32 %v732, 0.0
      %v735 = vmax.f32 %v733, 0.0
      %v736 = vpack.c.bf16 %v735, %v734
      %s737 = sshll.u32 %s519, 16
      %s738 = sor.u32 %s519, %s737
      %v739 = vstv %s738
      %v741 = vmul.bf16 %v736, %v739
      %v743 = vshrl.u32 %v725, 16
      %v745 = vrot.slane %v743, 7
      %v746 = vshll.u32 %v725, 16
      %v748 = vor.u32 %v745, %v746
      %v750 = vshrl.u32 %v694, 16
      %v752 = vrot.slane %v750, 7
      %v753 = vshll.u32 %v694, 16
      %v755 = vor.u32 %v752, %v753
      %v757 = vshrl.u32 %v695, 16
      %v759 = vrot.slane %v757, 7
      %v760 = vshll.u32 %v695, 16
      %v762 = vor.u32 %v759, %v760
      %v764 = vshrl.u32 %v696, 16
      %v766 = vrot.slane %v764, 7
      %v767 = vshll.u32 %v696, 16
      %v769 = vor.u32 %v766, %v767
      %v771 = vshrl.u32 %v697, 16
      %v773 = vrot.slane %v771, 7
      %v774 = vshll.u32 %v697, 16
      %v776 = vor.u32 %v773, %v774
      %v778 = vshrl.u32 %v698, 16
      %v780 = vrot.slane %v778, 7
      %v781 = vshll.u32 %v698, 16
      %v783 = vor.u32 %v780, %v781
      %v785 = vshrl.u32 %v699, 16
      %v787 = vrot.slane %v785, 7
      %v788 = vshll.u32 %v699, 16
      %v790 = vor.u32 %v787, %v788
      %v792 = vshrl.u32 %v700, 16
      %v794 = vrot.slane %v792, 7
      %v795 = vshll.u32 %v700, 16
      %v797 = vor.u32 %v794, %v795
      %v799 = vshrl.u32 %v701, 16
      %v801 = vrot.slane %v799, 7
      %v802 = vshll.u32 %v701, 16
      %v804 = vor.u32 %v801, %v802
      %v806 = vshrl.u32 %v702, 16
      %v808 = vrot.slane %v806, 7
      %v809 = vshll.u32 %v702, 16
      %v811 = vor.u32 %v808, %v809
      %v813 = vshrl.u32 %v703, 16
      %v815 = vrot.slane %v813, 7
      %v816 = vshll.u32 %v703, 16
      %v818 = vor.u32 %v815, %v816
      %v820 = vshrl.u32 %v704, 16
      %v822 = vrot.slane %v820, 7
      %v823 = vshll.u32 %v704, 16
      %v825 = vor.u32 %v822, %v823
      %v827 = vshrl.u32 %v705, 16
      %v829 = vrot.slane %v827, 7
      %v830 = vshll.u32 %v705, 16
      %v832 = vor.u32 %v829, %v830
      %v834 = vshrl.u32 %v706, 16
      %v836 = vrot.slane %v834, 7
      %v837 = vshll.u32 %v706, 16
      %v839 = vor.u32 %v836, %v837
      %v841 = vshrl.u32 %v707, 16
      %v843 = vrot.slane %v841, 7
      %v844 = vshll.u32 %v707, 16
      %v846 = vor.u32 %v843, %v844
      %v848 = vshrl.u32 %v708, 16
      %v850 = vrot.slane %v848, 7
      %v851 = vshll.u32 %v708, 16
      %v853 = vor.u32 %v850, %v851
      %vm870 = vcmask 1040384
      %vm871 = vsmask.f32 256
      %vm872 = vmand %vm870, %vm871
      %v873 = vsel %vm872, 0, %v748
      %v874 = vsel %vm872, 0, %v755
      %v875 = vsel %vm872, 0, %v762
      %v876 = vsel %vm872, 0, %v769
      %v877 = vsel %vm872, 0, %v776
      %v878 = vsel %vm872, 0, %v783
      %v879 = vsel %vm872, 0, %v790
      %v880 = vsel %vm872, 0, %v797
      %v881 = vsel %vm872, 0, %v804
      %v882 = vsel %vm872, 0, %v811
      %v883 = vsel %vm872, 0, %v818
      %v884 = vsel %vm872, 0, %v825
      %v885 = vsel %vm872, 0, %v832
      %v886 = vsel %vm872, 0, %v839
      %v887 = vsel %vm872, 0, %v846
      %v888 = vsel %vm872, 0, %v853
      %v889 = vrot.slane %v746, 1
      %v890 = vor.u32 %v743, %v889
      %v891 = vrot.slane %v753, 1
      %v892 = vor.u32 %v750, %v891
      %v893 = vrot.slane %v760, 1
      %v894 = vor.u32 %v757, %v893
      %v895 = vrot.slane %v767, 1
      %v896 = vor.u32 %v764, %v895
      %v897 = vrot.slane %v774, 1
      %v898 = vor.u32 %v771, %v897
      %v899 = vrot.slane %v781, 1
      %v900 = vor.u32 %v778, %v899
      %v901 = vrot.slane %v788, 1
      %v902 = vor.u32 %v785, %v901
      %v903 = vrot.slane %v795, 1
      %v904 = vor.u32 %v792, %v903
      %v905 = vrot.slane %v802, 1
      %v906 = vor.u32 %v799, %v905
      %v907 = vrot.slane %v809, 1
      %v908 = vor.u32 %v806, %v907
      %v909 = vrot.slane %v816, 1
      %v910 = vor.u32 %v813, %v909
      %v911 = vrot.slane %v823, 1
      %v912 = vor.u32 %v820, %v911
      %v913 = vrot.slane %v830, 1
      %v914 = vor.u32 %v827, %v913
      %v915 = vrot.slane %v837, 1
      %v916 = vor.u32 %v834, %v915
      %v917 = vrot.slane %v844, 1
      %v918 = vor.u32 %v841, %v917
      %v919 = vrot.slane %v851, 1
      %v920 = vor.u32 %v848, %v919
      %vm937 = vcmask 1047552
      %vm938 = vsmask.f32 7424
      %vm939 = vmand %vm937, %vm938
      %v940 = vsel %vm939, %v890, 0
      %v941 = vsel %vm939, %v892, 0
      %v942 = vsel %vm939, %v894, 0
      %v943 = vsel %vm939, %v896, 0
      %v944 = vsel %vm939, %v898, 0
      %v945 = vsel %vm939, %v900, 0
      %v946 = vsel %vm939, %v902, 0
      %v947 = vsel %vm939, %v904, 0
      %v948 = vsel %vm939, %v906, 0
      %v949 = vsel %vm939, %v908, 0
      %v950 = vsel %vm939, %v910, 0
      %v951 = vsel %vm939, %v912, 0
      %v952 = vsel %vm939, %v914, 0
      %v953 = vsel %vm939, %v916, 0
      %v954 = vsel %vm939, %v918, 0
      %v955 = vsel %vm939, %v920, 0
      %vm956 = vcmask 31744
      %957 = vst.msk [vmem:[#allocation2] sm:$0xff] %vm956, %v873
      %958 = vst.msk [vmem:[#allocation2 + $0x8] sm:$0xff] %vm956, %v874
      %959 = vst.msk [vmem:[#allocation2 + $0x10] sm:$0xff] %vm956, %v875
      %960 = vst.msk [vmem:[#allocation2 + $0x18] sm:$0xff] %vm956, %v876
      %961 = vst.msk [vmem:[#allocation2 + $0x20] sm:$0xff] %vm956, %v877
      %962 = vst.msk [vmem:[#allocation2 + $0x28] sm:$0xff] %vm956, %v878
      %963 = vst.msk [vmem:[#allocation2 + $0x30] sm:$0xff] %vm956, %v879
      %964 = vst.msk [vmem:[#allocation2 + $0x38] sm:$0xff] %vm956, %v880
      %965 = vst.msk [vmem:[#allocation2 + $0x40] sm:$0xff] %vm956, %v881
      %966 = vst.msk [vmem:[#allocation2 + $0x48] sm:$0xff] %vm956, %v882
      %967 = vst.msk [vmem:[#allocation2 + $0x50] sm:$0xff] %vm956, %v883
      %968 = vst.msk [vmem:[#allocation2 + $0x58] sm:$0xff] %vm956, %v884
      %969 = vst.msk [vmem:[#allocation2 + $0x60] sm:$0xff] %vm956, %v885
      %970 = vst.msk [vmem:[#allocation2 + $0x68] sm:$0xff] %vm956, %v886
      %971 = vst.msk [vmem:[#allocation2 + $0x70] sm:$0xff] %vm956, %v887
      %972 = vst.msk [vmem:[#allocation2 + $0x78] sm:$0xff] %vm956, %v888
      %989 = vrot.lane.b32.xlu0 %v725, 4
      %v990 = vpop.permute.xlu0 %989
      %991 = vrot.lane.b32.xlu0 %v694, 4
      %v992 = vpop.permute.xlu0 %991
      %993 = vrot.lane.b32.xlu0 %v695, 4
      %v994 = vpop.permute.xlu0 %993
      %995 = vrot.lane.b32.xlu0 %v696, 4
      %v996 = vpop.permute.xlu0 %995
      %997 = vrot.lane.b32.xlu0 %v697, 4
      %v998 = vpop.permute.xlu0 %997
      %999 = vrot.lane.b32.xlu0 %v698, 4
      %v1000 = vpop.permute.xlu0 %999
      %1001 = vrot.lane.b32.xlu0 %v699, 4
      %v1002 = vpop.permute.xlu0 %1001
      %1003 = vrot.lane.b32.xlu0 %v700, 4
      %v1004 = vpop.permute.xlu0 %1003
      %1005 = vrot.lane.b32.xlu0 %v701, 4
      %v1006 = vpop.permute.xlu0 %1005
      %1007 = vrot.lane.b32.xlu0 %v702, 4
      %v1008 = vpop.permute.xlu0 %1007
      %1009 = vrot.lane.b32.xlu0 %v703, 4
      %v1010 = vpop.permute.xlu0 %1009
      %1011 = vrot.lane.b32.xlu0 %v704, 4
      %v1012 = vpop.permute.xlu0 %1011
      %1013 = vrot.lane.b32.xlu0 %v705, 4
      %v1014 = vpop.permute.xlu0 %1013
      %1015 = vrot.lane.b32.xlu0 %v706, 4
      %v1016 = vpop.permute.xlu0 %1015
      %1017 = vrot.lane.b32.xlu0 %v707, 4
      %v1018 = vpop.permute.xlu0 %1017
      %1019 = vrot.lane.b32.xlu0 %v708, 4
      %v1020 = vpop.permute.xlu0 %1019
      %vm1037 = vcmask 64544
      %1038 = vst.msk [vmem:[#allocation2] sm:$0xff] %vm1037, %v990
      %1039 = vst.msk [vmem:[#allocation2 + $0x8] sm:$0xff] %vm1037, %v992
      %1040 = vst.msk [vmem:[#allocation2 + $0x10] sm:$0xff] %vm1037, %v994
      %1041 = vst.msk [vmem:[#allocation2 + $0x18] sm:$0xff] %vm1037, %v996
      %1042 = vst.msk [vmem:[#allocation2 + $0x20] sm:$0xff] %vm1037, %v998
      %1043 = vst.msk [vmem:[#allocation2 + $0x28] sm:$0xff] %vm1037, %v1000
      %1044 = vst.msk [vmem:[#allocation2 + $0x30] sm:$0xff] %vm1037, %v1002
      %1045 = vst.msk [vmem:[#allocation2 + $0x38] sm:$0xff] %vm1037, %v1004
      %1046 = vst.msk [vmem:[#allocation2 + $0x40] sm:$0xff] %vm1037, %v1006
      %1047 = vst.msk [vmem:[#allocation2 + $0x48] sm:$0xff] %vm1037, %v1008
      %1048 = vst.msk [vmem:[#allocation2 + $0x50] sm:$0xff] %vm1037, %v1010
      %1049 = vst.msk [vmem:[#allocation2 + $0x58] sm:$0xff] %vm1037, %v1012
      %1050 = vst.msk [vmem:[#allocation2 + $0x60] sm:$0xff] %vm1037, %v1014
      %1051 = vst.msk [vmem:[#allocation2 + $0x68] sm:$0xff] %vm1037, %v1016
      %1052 = vst.msk [vmem:[#allocation2 + $0x70] sm:$0xff] %vm1037, %v1018
      %1053 = vst.msk [vmem:[#allocation2 + $0x78] sm:$0xff] %vm1037, %v1020
      %1070 = vrot.lane.b32.xlu0 %v940, 8
      %v1071 = vpop.permute.xlu0 %1070
      %1072 = vrot.lane.b32.xlu0 %v941, 8
      %v1073 = vpop.permute.xlu0 %1072
      %1074 = vrot.lane.b32.xlu0 %v942, 8
      %v1075 = vpop.permute.xlu0 %1074
      %1076 = vrot.lane.b32.xlu0 %v943, 8
      %v1077 = vpop.permute.xlu0 %1076
      %1078 = vrot.lane.b32.xlu0 %v944, 8
      %v1079 = vpop.permute.xlu0 %1078
      %1080 = vrot.lane.b32.xlu0 %v945, 8
      %v1081 = vpop.permute.xlu0 %1080
      %1082 = vrot.lane.b32.xlu0 %v946, 8
      %v1083 = vpop.permute.xlu0 %1082
      %1084 = vrot.lane.b32.xlu0 %v947, 8
      %v1085 = vpop.permute.xlu0 %1084
      %1086 = vrot.lane.b32.xlu0 %v948, 8
      %v1087 = vpop.permute.xlu0 %1086
      %1088 = vrot.lane.b32.xlu0 %v949, 8
      %v1089 = vpop.permute.xlu0 %1088
      %1090 = vrot.lane.b32.xlu0 %v950, 8
      %v1091 = vpop.permute.xlu0 %1090
      %1092 = vrot.lane.b32.xlu0 %v951, 8
      %v1093 = vpop.permute.xlu0 %1092
      %1094 = vrot.lane.b32.xlu0 %v952, 8
      %v1095 = vpop.permute.xlu0 %1094
      %1096 = vrot.lane.b32.xlu0 %v953, 8
      %v1097 = vpop.permute.xlu0 %1096
      %1098 = vrot.lane.b32.xlu0 %v954, 8
      %v1099 = vpop.permute.xlu0 %1098
      %1100 = vrot.lane.b32.xlu0 %v955, 8
      %v1101 = vpop.permute.xlu0 %1100
      %vm1118 = vcmask 97344
      %1119 = vst.msk [vmem:[#allocation2] sm:$0xff] %vm1118, %v1071
      %1120 = vst.msk [vmem:[#allocation2 + $0x8] sm:$0xff] %vm1118, %v1073
      %1121 = vst.msk [vmem:[#allocation2 + $0x10] sm:$0xff] %vm1118, %v1075
      %1122 = vst.msk [vmem:[#allocation2 + $0x18] sm:$0xff] %vm1118, %v1077
      %1123 = vst.msk [vmem:[#allocation2 + $0x20] sm:$0xff] %vm1118, %v1079
      %1124 = vst.msk [vmem:[#allocation2 + $0x28] sm:$0xff] %vm1118, %v1081
      %1125 = vst.msk [vmem:[#allocation2 + $0x30] sm:$0xff] %vm1118, %v1083
      %1126 = vst.msk [vmem:[#allocation2 + $0x38] sm:$0xff] %vm1118, %v1085
      %1127 = vst.msk [vmem:[#allocation2 + $0x40] sm:$0xff] %vm1118, %v1087
      %1128 = vst.msk [vmem:[#allocation2 + $0x48] sm:$0xff] %vm1118, %v1089
      %1129 = vst.msk [vmem:[#allocation2 + $0x50] sm:$0xff] %vm1118, %v1091
      %1130 = vst.msk [vmem:[#allocation2 + $0x58] sm:$0xff] %vm1118, %v1093
      %1131 = vst.msk [vmem:[#allocation2 + $0x60] sm:$0xff] %vm1118, %v1095
      %1132 = vst.msk [vmem:[#allocation2 + $0x68] sm:$0xff] %vm1118, %v1097
      %1133 = vst.msk [vmem:[#allocation2 + $0x70] sm:$0xff] %vm1118, %v1099
      %1134 = vst.msk [vmem:[#allocation2 + $0x78] sm:$0xff] %vm1118, %v1101
      %v1136 = vshrl.u32 %v709, 16
      %v1138 = vrot.slane %v1136, 7
      %v1139 = vshll.u32 %v709, 16
      %v1141 = vor.u32 %v1138, %v1139
      %v1143 = vsel %vm872, 0, %v1141
      %v1144 = vrot.slane %v1139, 1
      %v1145 = vor.u32 %v1136, %v1144
      %v1147 = vsel %vm939, %v1145, 0
      %1164 = vrot.lane.b32.xlu0 %v874, 12
      %v1165 = vpop.permute.xlu0 %1164
      %1166 = vrot.lane.b32.xlu0 %v875, 12
      %v1167 = vpop.permute.xlu0 %1166
      %1168 = vrot.lane.b32.xlu0 %v876, 12
      %v1169 = vpop.permute.xlu0 %1168
      %1170 = vrot.lane.b32.xlu0 %v877, 12
      %v1171 = vpop.permute.xlu0 %1170
      %1172 = vrot.lane.b32.xlu0 %v878, 12
      %v1173 = vpop.permute.xlu0 %1172
      %1174 = vrot.lane.b32.xlu0 %v879, 12
      %v1175 = vpop.permute.xlu0 %1174
      %1176 = vrot.lane.b32.xlu0 %v880, 12
      %v1177 = vpop.permute.xlu0 %1176
      %1178 = vrot.lane.b32.xlu0 %v881, 12
      %v1179 = vpop.permute.xlu0 %1178
      %1180 = vrot.lane.b32.xlu0 %v882, 12
      %v1181 = vpop.permute.xlu0 %1180
      %1182 = vrot.lane.b32.xlu0 %v883, 12
      %v1183 = vpop.permute.xlu0 %1182
      %1184 = vrot.lane.b32.xlu0 %v884, 12
      %v1185 = vpop.permute.xlu0 %1184
      %1186 = vrot.lane.b32.xlu0 %v885, 12
      %v1187 = vpop.permute.xlu0 %1186
      %1188 = vrot.lane.b32.xlu0 %v886, 12
      %v1189 = vpop.permute.xlu0 %1188
      %1190 = vrot.lane.b32.xlu0 %v887, 12
      %v1191 = vpop.permute.xlu0 %1190
      %1192 = vrot.lane.b32.xlu0 %v888, 12
      %v1193 = vpop.permute.xlu0 %1192
      %1194 = vrot.lane.b32.xlu0 %v1143, 12
      %v1195 = vpop.permute.xlu0 %1194
      %vm1212 = vcmask 130144
      %1213 = vst.msk [vmem:[#allocation2] sm:$0xff] %vm1212, %v1165
      %1214 = vst.msk [vmem:[#allocation2 + $0x8] sm:$0xff] %vm1212, %v1167
      %1215 = vst.msk [vmem:[#allocation2 + $0x10] sm:$0xff] %vm1212, %v1169
      %1216 = vst.msk [vmem:[#allocation2 + $0x18] sm:$0xff] %vm1212, %v1171
      %1217 = vst.msk [vmem:[#allocation2 + $0x20] sm:$0xff] %vm1212, %v1173
      %1218 = vst.msk [vmem:[#allocation2 + $0x28] sm:$0xff] %vm1212, %v1175
      %1219 = vst.msk [vmem:[#allocation2 + $0x30] sm:$0xff] %vm1212, %v1177
      %1220 = vst.msk [vmem:[#allocation2 + $0x38] sm:$0xff] %vm1212, %v1179
      %1221 = vst.msk [vmem:[#allocation2 + $0x40] sm:$0xff] %vm1212, %v1181
      %1222 = vst.msk [vmem:[#allocation2 + $0x48] sm:$0xff] %vm1212, %v1183
      %1223 = vst.msk [vmem:[#allocation2 + $0x50] sm:$0xff] %vm1212, %v1185
      %1224 = vst.msk [vmem:[#allocation2 + $0x58] sm:$0xff] %vm1212, %v1187
      %1225 = vst.msk [vmem:[#allocation2 + $0x60] sm:$0xff] %vm1212, %v1189
      %1226 = vst.msk [vmem:[#allocation2 + $0x68] sm:$0xff] %vm1212, %v1191
      %1227 = vst.msk [vmem:[#allocation2 + $0x70] sm:$0xff] %vm1212, %v1193
      %1228 = vst.msk [vmem:[#allocation2 + $0x78] sm:$0xff] %vm1212, %v1195
      %1230 = vrot.lane.b32.xlu0 %v694, 16
      %v1231 = vpop.permute.xlu0 %1230
      %1232 = vrot.lane.b32.xlu0 %v695, 16
      %v1233 = vpop.permute.xlu0 %1232
      %1234 = vrot.lane.b32.xlu0 %v696, 16
      %v1235 = vpop.permute.xlu0 %1234
      %1236 = vrot.lane.b32.xlu0 %v697, 16
      %v1237 = vpop.permute.xlu0 %1236
      %1238 = vrot.lane.b32.xlu0 %v698, 16
      %v1239 = vpop.permute.xlu0 %1238
      %1240 = vrot.lane.b32.xlu0 %v699, 16
      %v1241 = vpop.permute.xlu0 %1240
      %1242 = vrot.lane.b32.xlu0 %v700, 16
      %v1243 = vpop.permute.xlu0 %1242
      %1244 = vrot.lane.b32.xlu0 %v701, 16
      %v1245 = vpop.permute.xlu0 %1244
      %1246 = vrot.lane.b32.xlu0 %v702, 16
      %v1247 = vpop.permute.xlu0 %1246
      %1248 = vrot.lane.b32.xlu0 %v703, 16
      %v1249 = vpop.permute.xlu0 %1248
      %1250 = vrot.lane.b32.xlu0 %v704, 16
      %v1251 = vpop.permute.xlu0 %1250
      %1252 = vrot.lane.b32.xlu0 %v705, 16
      %v1253 = vpop.permute.xlu0 %1252
      %1254 = vrot.lane.b32.xlu0 %v706, 16
      %v1255 = vpop.permute.xlu0 %1254
      %1256 = vrot.lane.b32.xlu0 %v707, 16
      %v1257 = vpop.permute.xlu0 %1256
      %1258 = vrot.lane.b32.xlu0 %v708, 16
      %v1259 = vpop.permute.xlu0 %1258
      %1260 = vrot.lane.b32.xlu0 %v709, 16
      %v1261 = vpop.permute.xlu0 %1260
      %vm1278 = vcmask 162944
      %1279 = vst.msk [vmem:[#allocation2] sm:$0xff] %vm1278, %v1231
      %1280 = vst.msk [vmem:[#allocation2 + $0x8] sm:$0xff] %vm1278, %v1233
      %1281 = vst.msk [vmem:[#allocation2 + $0x10] sm:$0xff] %vm1278, %v1235
      %1282 = vst.msk [vmem:[#allocation2 + $0x18] sm:$0xff] %vm1278, %v1237
      %1283 = vst.msk [vmem:[#allocation2 + $0x20] sm:$0xff] %vm1278, %v1239
      %1284 = vst.msk [vmem:[#allocation2 + $0x28] sm:$0xff] %vm1278, %v1241
      %1285 = vst.msk [vmem:[#allocation2 + $0x30] sm:$0xff] %vm1278, %v1243
      %1286 = vst.msk [vmem:[#allocation2 + $0x38] sm:$0xff] %vm1278, %v1245
      %1287 = vst.msk [vmem:[#allocation2 + $0x40] sm:$0xff] %vm1278, %v1247
      %1288 = vst.msk [vmem:[#allocation2 + $0x48] sm:$0xff] %vm1278, %v1249
      %1289 = vst.msk [vmem:[#allocation2 + $0x50] sm:$0xff] %vm1278, %v1251
      %1290 = vst.msk [vmem:[#allocation2 + $0x58] sm:$0xff] %vm1278, %v1253
      %1291 = vst.msk [vmem:[#allocation2 + $0x60] sm:$0xff] %vm1278, %v1255
      %1292 = vst.msk [vmem:[#allocation2 + $0x68] sm:$0xff] %vm1278, %v1257
      %1293 = vst.msk [vmem:[#allocation2 + $0x70] sm:$0xff] %vm1278, %v1259
      %1294 = vst.msk [vmem:[#allocation2 + $0x78] sm:$0xff] %vm1278, %v1261
      %1296 = vrot.lane.b32.xlu0 %v941, 20
      %v1297 = vpop.permute.xlu0 %1296
      %1298 = vrot.lane.b32.xlu0 %v942, 20
      %v1299 = vpop.permute.xlu0 %1298
      %1300 = vrot.lane.b32.xlu0 %v943, 20
      %v1301 = vpop.permute.xlu0 %1300
      %1302 = vrot.lane.b32.xlu0 %v944, 20
      %v1303 = vpop.permute.xlu0 %1302
      %1304 = vrot.lane.b32.xlu0 %v945, 20
      %v1305 = vpop.permute.xlu0 %1304
      %1306 = vrot.lane.b32.xlu0 %v946, 20
      %v1307 = vpop.permute.xlu0 %1306
      %1308 = vrot.lane.b32.xlu0 %v947, 20
      %v1309 = vpop.permute.xlu0 %1308
      %1310 = vrot.lane.b32.xlu0 %v948, 20
      %v1311 = vpop.permute.xlu0 %1310
      %1312 = vrot.lane.b32.xlu0 %v949, 20
      %v1313 = vpop.permute.xlu0 %1312
      %1314 = vrot.lane.b32.xlu0 %v950, 20
      %v1315 = vpop.permute.xlu0 %1314
      %1316 = vrot.lane.b32.xlu0 %v951, 20
      %v1317 = vpop.permute.xlu0 %1316
      %1318 = vrot.lane.b32.xlu0 %v952, 20
      %v1319 = vpop.permute.xlu0 %1318
      %1320 = vrot.lane.b32.xlu0 %v953, 20
      %v1321 = vpop.permute.xlu0 %1320
      %1322 = vrot.lane.b32.xlu0 %v954, 20
      %v1323 = vpop.permute.xlu0 %1322
      %1324 = vrot.lane.b32.xlu0 %v955, 20
      %v1325 = vpop.permute.xlu0 %1324
      %1326 = vrot.lane.b32.xlu0 %v1147, 20
      %v1327 = vpop.permute.xlu0 %1326
      %vm1344 = vcmask 195744
      %1345 = vst.msk [vmem:[#allocation2] sm:$0xff] %vm1344, %v1297
      %1346 = vst.msk [vmem:[#allocation2 + $0x8] sm:$0xff] %vm1344, %v1299
      %1347 = vst.msk [vmem:[#allocation2 + $0x10] sm:$0xff] %vm1344, %v1301
      %1348 = vst.msk [vmem:[#allocation2 + $0x18] sm:$0xff] %vm1344, %v1303
      %1349 = vst.msk [vmem:[#allocation2 + $0x20] sm:$0xff] %vm1344, %v1305
      %1350 = vst.msk [vmem:[#allocation2 + $0x28] sm:$0xff] %vm1344, %v1307
      %1351 = vst.msk [vmem:[#allocation2 + $0x30] sm:$0xff] %vm1344, %v1309
      %1352 = vst.msk [vmem:[#allocation2 + $0x38] sm:$0xff] %vm1344, %v1311
      %1353 = vst.msk [vmem:[#allocation2 + $0x40] sm:$0xff] %vm1344, %v1313
      %1354 = vst.msk [vmem:[#allocation2 + $0x48] sm:$0xff] %vm1344, %v1315
      %1355 = vst.msk [vmem:[#allocation2 + $0x50] sm:$0xff] %vm1344, %v1317
      %1356 = vst.msk [vmem:[#allocation2 + $0x58] sm:$0xff] %vm1344, %v1319
      %1357 = vst.msk [vmem:[#allocation2 + $0x60] sm:$0xff] %vm1344, %v1321
      %1358 = vst.msk [vmem:[#allocation2 + $0x68] sm:$0xff] %vm1344, %v1323
      %1359 = vst.msk [vmem:[#allocation2 + $0x70] sm:$0xff] %vm1344, %v1325
      %1360 = vst.msk [vmem:[#allocation2 + $0x78] sm:$0xff] %vm1344, %v1327
      %v1362 = vshrl.u32 %v741, 16
      %v1364 = vrot.slane %v1362, 7
      %v1365 = vshll.u32 %v741, 16
      %v1367 = vor.u32 %v1364, %v1365
      %v1369 = vsel %vm872, 0, %v1367
      %v1370 = vrot.slane %v1365, 1
      %v1371 = vor.u32 %v1362, %v1370
      %v1373 = vsel %vm939, %v1371, 0
      %1375 = vrot.lane.b32.xlu0 %v875, 24
      %v1376 = vpop.permute.xlu0 %1375
      %1377 = vrot.lane.b32.xlu0 %v876, 24
      %v1378 = vpop.permute.xlu0 %1377
      %1379 = vrot.lane.b32.xlu0 %v877, 24
      %v1380 = vpop.permute.xlu0 %1379
      %1381 = vrot.lane.b32.xlu0 %v878, 24
      %v1382 = vpop.permute.xlu0 %1381
      %1383 = vrot.lane.b32.xlu0 %v879, 24
      %v1384 = vpop.permute.xlu0 %1383
      %1385 = vrot.lane.b32.xlu0 %v880, 24
      %v1386 = vpop.permute.xlu0 %1385
      %1387 = vrot.lane.b32.xlu0 %v881, 24
      %v1388 = vpop.permute.xlu0 %1387
      %1389 = vrot.lane.b32.xlu0 %v882, 24
      %v1390 = vpop.permute.xlu0 %1389
      %1391 = vrot.lane.b32.xlu0 %v883, 24
      %v1392 = vpop.permute.xlu0 %1391
      %1393 = vrot.lane.b32.xlu0 %v884, 24
      %v1394 = vpop.permute.xlu0 %1393
      %1395 = vrot.lane.b32.xlu0 %v885, 24
      %v1396 = vpop.permute.xlu0 %1395
      %1397 = vrot.lane.b32.xlu0 %v886, 24
      %v1398 = vpop.permute.xlu0 %1397
      %1399 = vrot.lane.b32.xlu0 %v887, 24
      %v1400 = vpop.permute.xlu0 %1399
      %1401 = vrot.lane.b32.xlu0 %v888, 24
      %v1402 = vpop.permute.xlu0 %1401
      %1403 = vrot.lane.b32.xlu0 %v1143, 24
      %v1404 = vpop.permute.xlu0 %1403
      %1405 = vrot.lane.b32.xlu0 %v1369, 24
      %v1406 = vpop.permute.xlu0 %1405
      %vm1423 = vcmask 228544
      %1424 = vst.msk [vmem:[#allocation2] sm:$0xff] %vm1423, %v1376
      %1425 = vst.msk [vmem:[#allocation2 + $0x8] sm:$0xff] %vm1423, %v1378
      %1426 = vst.msk [vmem:[#allocation2 + $0x10] sm:$0xff] %vm1423, %v1380
      %1427 = vst.msk [vmem:[#allocation2 + $0x18] sm:$0xff] %vm1423, %v1382
      %1428 = vst.msk [vmem:[#allocation2 + $0x20] sm:$0xff] %vm1423, %v1384
      %1429 = vst.msk [vmem:[#allocation2 + $0x28] sm:$0xff] %vm1423, %v1386
      %1430 = vst.msk [vmem:[#allocation2 + $0x30] sm:$0xff] %vm1423, %v1388
      %1431 = vst.msk [vmem:[#allocation2 + $0x38] sm:$0xff] %vm1423, %v1390
      %1432 = vst.msk [vmem:[#allocation2 + $0x40] sm:$0xff] %vm1423, %v1392
      %1433 = vst.msk [vmem:[#allocation2 + $0x48] sm:$0xff] %vm1423, %v1394
      %1434 = vst.msk [vmem:[#allocation2 + $0x50] sm:$0xff] %vm1423, %v1396
      %1435 = vst.msk [vmem:[#allocation2 + $0x58] sm:$0xff] %vm1423, %v1398
      %1436 = vst.msk [vmem:[#allocation2 + $0x60] sm:$0xff] %vm1423, %v1400
      %1437 = vst.msk [vmem:[#allocation2 + $0x68] sm:$0xff] %vm1423, %v1402
      %1438 = vst.msk [vmem:[#allocation2 + $0x70] sm:$0xff] %vm1423, %v1404
      %1439 = vst.msk [vmem:[#allocation2 + $0x78] sm:$0xff] %vm1423, %v1406
      %1441 = vrot.lane.b32.xlu0 %v695, 28
      %v1442 = vpop.permute.xlu0 %1441
      %1443 = vrot.lane.b32.xlu0 %v696, 28
      %v1444 = vpop.permute.xlu0 %1443
      %1445 = vrot.lane.b32.xlu0 %v697, 28
      %v1446 = vpop.permute.xlu0 %1445
      %1447 = vrot.lane.b32.xlu0 %v698, 28
      %v1448 = vpop.permute.xlu0 %1447
      %1449 = vrot.lane.b32.xlu0 %v699, 28
      %v1450 = vpop.permute.xlu0 %1449
      %1451 = vrot.lane.b32.xlu0 %v700, 28
      %v1452 = vpop.permute.xlu0 %1451
      %1453 = vrot.lane.b32.xlu0 %v701, 28
      %v1454 = vpop.permute.xlu0 %1453
      %1455 = vrot.lane.b32.xlu0 %v702, 28
      %v1456 = vpop.permute.xlu0 %1455
      %1457 = vrot.lane.b32.xlu0 %v703, 28
      %v1458 = vpop.permute.xlu0 %1457
      %1459 = vrot.lane.b32.xlu0 %v704, 28
      %v1460 = vpop.permute.xlu0 %1459
      %1461 = vrot.lane.b32.xlu0 %v705, 28
      %v1462 = vpop.permute.xlu0 %1461
      %1463 = vrot.lane.b32.xlu0 %v706, 28
      %v1464 = vpop.permute.xlu0 %1463
      %1465 = vrot.lane.b32.xlu0 %v707, 28
      %v1466 = vpop.permute.xlu0 %1465
      %1467 = vrot.lane.b32.xlu0 %v708, 28
      %v1468 = vpop.permute.xlu0 %1467
      %1469 = vrot.lane.b32.xlu0 %v709, 28
      %v1470 = vpop.permute.xlu0 %1469
      %1471 = vrot.lane.b32.xlu0 %v741, 28
      %v1472 = vpop.permute.xlu0 %1471
      %vm1489 = vcmask 261344
      %1490 = vst.msk [vmem:[#allocation2] sm:$0xff] %vm1489, %v1442
      %1491 = vst.msk [vmem:[#allocation2 + $0x8] sm:$0xff] %vm1489, %v1444
      %1492 = vst.msk [vmem:[#allocation2 + $0x10] sm:$0xff] %vm1489, %v1446
      %1493 = vst.msk [vmem:[#allocation2 + $0x18] sm:$0xff] %vm1489, %v1448
      %1494 = vst.msk [vmem:[#allocation2 + $0x20] sm:$0xff] %vm1489, %v1450
      %1495 = vst.msk [vmem:[#allocation2 + $0x28] sm:$0xff] %vm1489, %v1452
      %1496 = vst.msk [vmem:[#allocation2 + $0x30] sm:$0xff] %vm1489, %v1454
      %1497 = vst.msk [vmem:[#allocation2 + $0x38] sm:$0xff] %vm1489, %v1456
      %1498 = vst.msk [vmem:[#allocation2 + $0x40] sm:$0xff] %vm1489, %v1458
      %1499 = vst.msk [vmem:[#allocation2 + $0x48] sm:$0xff] %vm1489, %v1460
      %1500 = vst.msk [vmem:[#allocation2 + $0x50] sm:$0xff] %vm1489, %v1462
      %1501 = vst.msk [vmem:[#allocation2 + $0x58] sm:$0xff] %vm1489, %v1464
      %1502 = vst.msk [vmem:[#allocation2 + $0x60] sm:$0xff] %vm1489, %v1466
      %1503 = vst.msk [vmem:[#allocation2 + $0x68] sm:$0xff] %vm1489, %v1468
      %1504 = vst.msk [vmem:[#allocation2 + $0x70] sm:$0xff] %vm1489, %v1470
      %1505 = vst.msk [vmem:[#allocation2 + $0x78] sm:$0xff] %vm1489, %v1472
      %1507 = vrot.lane.b32.xlu0 %v942, 32
      %v1508 = vpop.permute.xlu0 %1507
      %1509 = vrot.lane.b32.xlu0 %v943, 32
      %v1510 = vpop.permute.xlu0 %1509
      %1511 = vrot.lane.b32.xlu0 %v944, 32
      %v1512 = vpop.permute.xlu0 %1511
      %1513 = vrot.lane.b32.xlu0 %v945, 32
      %v1514 = vpop.permute.xlu0 %1513
      %1515 = vrot.lane.b32.xlu0 %v946, 32
      %v1516 = vpop.permute.xlu0 %1515
      %1517 = vrot.lane.b32.xlu0 %v947, 32
      %v1518 = vpop.permute.xlu0 %1517
      %1519 = vrot.lane.b32.xlu0 %v948, 32
      %v1520 = vpop.permute.xlu0 %1519
      %1521 = vrot.lane.b32.xlu0 %v949, 32
      %v1522 = vpop.permute.xlu0 %1521
      %1523 = vrot.lane.b32.xlu0 %v950, 32
      %v1524 = vpop.permute.xlu0 %1523
      %1525 = vrot.lane.b32.xlu0 %v951, 32
      %v1526 = vpop.permute.xlu0 %1525
      %1527 = vrot.lane.b32.xlu0 %v952, 32
      %v1528 = vpop.permute.xlu0 %1527
      %1529 = vrot.lane.b32.xlu0 %v953, 32
      %v1530 = vpop.permute.xlu0 %1529
      %1531 = vrot.lane.b32.xlu0 %v954, 32
      %v1532 = vpop.permute.xlu0 %1531
      %1533 = vrot.lane.b32.xlu0 %v955, 32
      %v1534 = vpop.permute.xlu0 %1533
      %1535 = vrot.lane.b32.xlu0 %v1147, 32
      %v1536 = vpop.permute.xlu0 %1535
      %1537 = vrot.lane.b32.xlu0 %v1373, 32
      %v1538 = vpop.permute.xlu0 %1537
      %vm1555 = vcmask 294144
      %1556 = vst.msk [vmem:[#allocation2] sm:$0xff] %vm1555, %v1508
      %1557 = vst.msk [vmem:[#allocation2 + $0x8] sm:$0xff] %vm1555, %v1510
      %1558 = vst.msk [vmem:[#allocation2 + $0x10] sm:$0xff] %vm1555, %v1512
      %1559 = vst.msk [vmem:[#allocation2 + $0x18] sm:$0xff] %vm1555, %v1514
      %1560 = vst.msk [vmem:[#allocation2 + $0x20] sm:$0xff] %vm1555, %v1516
      %1561 = vst.msk [vmem:[#allocation2 + $0x28] sm:$0xff] %vm1555, %v1518
      %1562 = vst.msk [vmem:[#allocation2 + $0x30] sm:$0xff] %vm1555, %v1520
      %1563 = vst.msk [vmem:[#allocation2 + $0x38] sm:$0xff] %vm1555, %v1522
      %1564 = vst.msk [vmem:[#allocation2 + $0x40] sm:$0xff] %vm1555, %v1524
      %1565 = vst.msk [vmem:[#allocation2 + $0x48] sm:$0xff] %vm1555, %v1526
      %1566 = vst.msk [vmem:[#allocation2 + $0x50] sm:$0xff] %vm1555, %v1528
      %1567 = vst.msk [vmem:[#allocation2 + $0x58] sm:$0xff] %vm1555, %v1530
      %1568 = vst.msk [vmem:[#allocation2 + $0x60] sm:$0xff] %vm1555, %v1532
      %1569 = vst.msk [vmem:[#allocation2 + $0x68] sm:$0xff] %vm1555, %v1534
      %1570 = vst.msk [vmem:[#allocation2 + $0x70] sm:$0xff] %vm1555, %v1536
      %1571 = vst.msk [vmem:[#allocation2 + $0x78] sm:$0xff] %vm1555, %v1538
      %v1572 = vld [vmem:[#allocation2] sm:$0xff]
      %v1573 = vld [vmem:[#allocation2 + $0x8] sm:$0xff]
      %v1574 = vld [vmem:[#allocation2 + $0x10] sm:$0xff]
      %v1575 = vld [vmem:[#allocation2 + $0x18] sm:$0xff]
      %v1576 = vld [vmem:[#allocation2 + $0x20] sm:$0xff]
      %v1577 = vld [vmem:[#allocation2 + $0x28] sm:$0xff]
      %v1578 = vld [vmem:[#allocation2 + $0x30] sm:$0xff]
      %v1579 = vld [vmem:[#allocation2 + $0x38] sm:$0xff]
      %v1580 = vld [vmem:[#allocation2 + $0x40] sm:$0xff]
      %v1581 = vld [vmem:[#allocation2 + $0x48] sm:$0xff]
      %v1582 = vld [vmem:[#allocation2 + $0x50] sm:$0xff]
      %v1583 = vld [vmem:[#allocation2 + $0x58] sm:$0xff]
      %v1584 = vld [vmem:[#allocation2 + $0x60] sm:$0xff]
      %v1585 = vld [vmem:[#allocation2 + $0x68] sm:$0xff]
      %v1586 = vld [vmem:[#allocation2 + $0x70] sm:$0xff]
      %v1587 = vld [vmem:[#allocation2 + $0x78] sm:$0xff]
      %v1588 = vld [vmem:[%s5] sm:$0xf]
      %v1589 = vld [vmem:[%s5 + $0x4] sm:$0xf]
      %v1590 = vld [vmem:[%s5 + $0x8] sm:$0xf]
      %v1591 = vld [vmem:[%s5 + $0xc] sm:$0xf]
      %v1592 = vld [vmem:[%s5 + $0x10] sm:$0x3]
      %v1598 = vunpack.c.l.b16 %v1588
      %v1599 = vunpack.c.l.b16 %v1589
      %v1600 = vunpack.c.l.b16 %v1590
      %v1601 = vunpack.c.l.b16 %v1591
      %v1602 = vunpack.c.l.b16 %v1592
      %v1603 = vpack.c.b16 %v1599, %v1598
      %v1604 = vpack.c.b16 %v1601, %v1600
      %v1605 = vpack.c.b16 %v1602, %v1602
      %vm1608 = vcmask 293888
      %v1610 = vsel %vm1608, %v1572, 0
      %v1613 = vsel %vm1608, %v1573, 0
      %v1616 = vsel %vm1608, %v1574, 0
      %v1619 = vsel %vm1608, %v1575, 0
      %v1622 = vsel %vm1608, %v1576, 0
      %v1625 = vsel %vm1608, %v1577, 0
      %v1628 = vsel %vm1608, %v1578, 0
      %v1631 = vsel %vm1608, %v1579, 0
      %v1634 = vsel %vm1608, %v1580, 0
      %v1637 = vsel %vm1608, %v1581, 0
      %v1640 = vsel %vm1608, %v1582, 0
      %v1643 = vsel %vm1608, %v1583, 0
      %v1646 = vsel %vm1608, %v1584, 0
      %v1649 = vsel %vm1608, %v1585, 0
      %v1652 = vsel %vm1608, %v1586, 0
      %v1655 = vsel %vm1608, %v1587, 0
      %vm1657 = vcmask 1041408
      %v1659 = vsel %vm1657, %v1605, 0
      %1661 = vmatprep.subr.bf16.mxu0 0
      %1662 = vmatpush1.bf16.msra.mxu0 %v1603
      %1663 = vmatprep.subr.bf16.mxu0 0
      %1664 = vmatpush1.bf16.msra.mxu0 %v1604
      %1665 = vmatprep.subr.bf16.mxu0 0
      %1666 = vmatpush1.bf16.msra.mxu0 %v1659
      %1667 = vmatprep.subr.bf16.mxu0 0
      %1668 = vmatpush1.bf16.msra.mxu0 0
      %1669 = vmatprep.subr.bf16.mxu0 0
      %1670 = vmatpush1.bf16.msra.mxu0 0
      %1671 = vmatprep.subr.bf16.mxu0 0
      %1672 = vmatpush1.bf16.msra.mxu0 0
      %1673 = vmatprep.subr.bf16.mxu0 0
      %1674 = vmatpush1.bf16.msra.mxu0 0
      %1675 = vmatprep.subr.bf16.mxu0 0
      %1676 = vmatpush1.bf16.msra.mxu0 0
      %1677 = vmatprep.subr.bf16.mxu0 0
      %1678 = vmatpush1.bf16.msra.mxu0 0
      %1679 = vmatprep.subr.bf16.mxu0 0
      %1680 = vmatpush1.bf16.msra.mxu0 0
      %1681 = vmatprep.subr.bf16.mxu0 0
      %1682 = vmatpush1.bf16.msra.mxu0 0
      %1683 = vmatprep.subr.bf16.mxu0 0
      %1684 = vmatpush1.bf16.msra.mxu0 0
      %1685 = vmatprep.subr.bf16.mxu0 0
      %1686 = vmatpush1.bf16.msra.mxu0 0
      %1687 = vmatprep.subr.bf16.mxu0 0
      %1688 = vmatpush1.bf16.msra.mxu0 0
      %1689 = vmatprep.subr.bf16.mxu0 0
      %1690 = vmatpush1.bf16.msra.mxu0 0
      %1691 = vmatprep.subr.bf16.mxu0 0
      %1692 = vmatpush1.bf16.msra.mxu0 0
      %1693 = vmatprep.mubr.bf16.mxu0 0
      %1694 = vmatmul.mubr.bf16.gmra.mrb[0].mxu0 %v1610
      %v1695 = vpop.f32.mrb[0].mxu0
      %v1696 = vadd.f32 0.0, %v1695
      %v1697 = vpop.f32.mrb[0].mxu0
      %v1698 = vpop.f32.mrb[0].mxu0
      %v1699 = vadd.f32 0.0, %v1698
      %v1700 = vpop.f32.mrb[0].mxu0
      %1701 = vmatprep.mubr.bf16.mxu0 0
      %1702 = vmatmul.mubr.bf16.gmra.mrb[0].mxu0 %v1613
      %v1703 = vpop.f32.mrb[0].mxu0
      %v1704 = vadd.f32 0.0, %v1703
      %v1705 = vpop.f32.mrb[0].mxu0
      %v1706 = vpop.f32.mrb[0].mxu0
      %v1707 = vadd.f32 0.0, %v1706
      %v1708 = vpop.f32.mrb[0].mxu0
      %1709 = vmatprep.mubr.bf16.mxu0 0
      %1710 = vmatmul.mubr.bf16.gmra.mrb[0].mxu0 %v1616
      %v1711 = vpop.f32.mrb[0].mxu0
      %v1712 = vadd.f32 0.0, %v1711
      %v1713 = vpop.f32.mrb[0].mxu0
      %v1714 = vpop.f32.mrb[0].mxu0
      %v1715 = vadd.f32 0.0, %v1714
      %v1716 = vpop.f32.mrb[0].mxu0
      %1717 = vmatprep.mubr.bf16.mxu0 0
      %1718 = vmatmul.mubr.bf16.gmra.mrb[0].mxu0 %v1619
      %v1719 = vpop.f32.mrb[0].mxu0
      %v1720 = vadd.f32 0.0, %v1719
      %v1721 = vpop.f32.mrb[0].mxu0
      %v1722 = vpop.f32.mrb[0].mxu0
      %v1723 = vadd.f32 0.0, %v1722
      %v1724 = vpop.f32.mrb[0].mxu0
      %1725 = vmatprep.mubr.bf16.mxu0 0
      %1726 = vmatmul.mubr.bf16.gmra.mrb[0].mxu0 %v1622
      %v1727 = vpop.f32.mrb[0].mxu0
      %v1728 = vadd.f32 0.0, %v1727
      %v1729 = vpop.f32.mrb[0].mxu0
      %v1730 = vpop.f32.mrb[0].mxu0
      %v1731 = vadd.f32 0.0, %v1730
      %v1732 = vpop.f32.mrb[0].mxu0
      %1733 = vmatprep.mubr.bf16.mxu0 0
      %1734 = vmatmul.mubr.bf16.gmra.mrb[0].mxu0 %v1625
      %v1735 = vpop.f32.mrb[0].mxu0
      %v1736 = vadd.f32 0.0, %v1735
      %v1737 = vpop.f32.mrb[0].mxu0
      %v1738 = vpop.f32.mrb[0].mxu0
      %v1739 = vadd.f32 0.0, %v1738
      %v1740 = vpop.f32.mrb[0].mxu0
      %1741 = vmatprep.mubr.bf16.mxu0 0
      %1742 = vmatmul.mubr.bf16.gmra.mrb[0].mxu0 %v1628
      %v1743 = vpop.f32.mrb[0].mxu0
      %v1744 = vadd.f32 0.0, %v1743
      %v1745 = vpop.f32.mrb[0].mxu0
      %v1746 = vpop.f32.mrb[0].mxu0
      %v1747 = vadd.f32 0.0, %v1746
      %v1748 = vpop.f32.mrb[0].mxu0
      %1749 = vmatprep.mubr.bf16.mxu0 0
      %1750 = vmatmul.mubr.bf16.gmra.mrb[0].mxu0 %v1631
      %v1751 = vpop.f32.mrb[0].mxu0
      %v1752 = vadd.f32 0.0, %v1751
      %v1753 = vpop.f32.mrb[0].mxu0
      %v1754 = vpop.f32.mrb[0].mxu0
      %v1755 = vadd.f32 0.0, %v1754
      %v1756 = vpop.f32.mrb[0].mxu0
      %1757 = vmatprep.mubr.bf16.mxu0 0
      %1758 = vmatmul.mubr.bf16.gmra.mrb[0].mxu0 %v1634
      %v1759 = vpop.f32.mrb[0].mxu0
      %v1760 = vadd.f32 0.0, %v1759
      %v1761 = vpop.f32.mrb[0].mxu0
      %v1762 = vpop.f32.mrb[0].mxu0
      %v1763 = vadd.f32 0.0, %v1762
      %v1764 = vpop.f32.mrb[0].mxu0
      %1765 = vmatprep.mubr.bf16.mxu0 0
      %1766 = vmatmul.mubr.bf16.gmra.mrb[0].mxu0 %v1637
      %v1767 = vpop.f32.mrb[0].mxu0
      %v1768 = vadd.f32 0.0, %v1767
      %v1769 = vpop.f32.mrb[0].mxu0
      %v1770 = vpop.f32.mrb[0].mxu0
      %v1771 = vadd.f32 0.0, %v1770
      %v1772 = vpop.f32.mrb[0].mxu0
      %1773 = vmatprep.mubr.bf16.mxu0 0
      %1774 = vmatmul.mubr.bf16.gmra.mrb[0].mxu0 %v1640
      %v1775 = vpop.f32.mrb[0].mxu0
      %v1776 = vadd.f32 0.0, %v1775
      %v1777 = vpop.f32.mrb[0].mxu0
      %v1778 = vpop.f32.mrb[0].mxu0
      %v1779 = vadd.f32 0.0, %v1778
      %v1780 = vpop.f32.mrb[0].mxu0
      %1781 = vmatprep.mubr.bf16.mxu0 0
      %1782 = vmatmul.mubr.bf16.gmra.mrb[0].mxu0 %v1643
      %v1783 = vpop.f32.mrb[0].mxu0
      %v1784 = vadd.f32 0.0, %v1783
      %v1785 = vpop.f32.mrb[0].mxu0
      %v1786 = vpop.f32.mrb[0].mxu0
      %v1787 = vadd.f32 0.0, %v1786
      %v1788 = vpop.f32.mrb[0].mxu0
      %1789 = vmatprep.mubr.bf16.mxu0 0
      %1790 = vmatmul.mubr.bf16.gmra.mrb[0].mxu0 %v1646
      %v1791 = vpop.f32.mrb[0].mxu0
      %v1792 = vadd.f32 0.0, %v1791
      %v1793 = vpop.f32.mrb[0].mxu0
      %v1794 = vpop.f32.mrb[0].mxu0
      %v1795 = vadd.f32 0.0, %v1794
      %v1796 = vpop.f32.mrb[0].mxu0
      %1797 = vmatprep.mubr.bf16.mxu0 0
      %1798 = vmatmul.mubr.bf16.gmra.mrb[0].mxu0 %v1649
      %v1799 = vpop.f32.mrb[0].mxu0
      %v1800 = vadd.f32 0.0, %v1799
      %v1801 = vpop.f32.mrb[0].mxu0
      %v1802 = vpop.f32.mrb[0].mxu0
      %v1803 = vadd.f32 0.0, %v1802
      %v1804 = vpop.f32.mrb[0].mxu0
      %1805 = vmatprep.mubr.bf16.mxu0 0
      %1806 = vmatmul.mubr.bf16.gmra.mrb[0].mxu0 %v1652
      %v1807 = vpop.f32.mrb[0].mxu0
      %v1808 = vadd.f32 0.0, %v1807
      %v1809 = vpop.f32.mrb[0].mxu0
      %v1810 = vpop.f32.mrb[0].mxu0
      %v1811 = vadd.f32 0.0, %v1810
      %v1812 = vpop.f32.mrb[0].mxu0
      %1813 = vmatprep.mubr.bf16.mxu0 0
      %1814 = vmatmul.mubr.bf16.gmra.mrb[0].mxu0 %v1655
      %v1815 = vpop.f32.mrb[0].mxu0
      %v1816 = vadd.f32 0.0, %v1815
      %v1817 = vpop.f32.mrb[0].mxu0
      %v1818 = vpop.f32.mrb[0].mxu0
      %v1819 = vadd.f32 0.0, %v1818
      %v1820 = vpop.f32.mrb[0].mxu0
      %1821 = vdwg.mxu0
      %v1822 = vpack.c.bf16 %v1699, %v1696
      %v1823 = vpack.c.bf16 %v1707, %v1704
      %v1824 = vpack.c.bf16 %v1715, %v1712
      %v1825 = vpack.c.bf16 %v1723, %v1720
      %v1826 = vpack.c.bf16 %v1731, %v1728
      %v1827 = vpack.c.bf16 %v1739, %v1736
      %v1828 = vpack.c.bf16 %v1747, %v1744
      %v1829 = vpack.c.bf16 %v1755, %v1752
      %v1830 = vpack.c.bf16 %v1763, %v1760
      %v1831 = vpack.c.bf16 %v1771, %v1768
      %v1832 = vpack.c.bf16 %v1779, %v1776
      %v1833 = vpack.c.bf16 %v1787, %v1784
      %v1834 = vpack.c.bf16 %v1795, %v1792
      %v1835 = vpack.c.bf16 %v1803, %v1800
      %v1836 = vpack.c.bf16 %v1811, %v1808
      %v1837 = vpack.c.bf16 %v1819, %v1816
      %v1854 = vunpack.c.l.b16 %v1822
      %v1855 = vunpack.c.h.b16 %v1822
      %v1856 = vunpack.c.l.b16 %v1823
      %v1857 = vunpack.c.h.b16 %v1823
      %v1858 = vunpack.c.l.b16 %v1824
      %v1859 = vunpack.c.h.b16 %v1824
      %v1860 = vunpack.c.l.b16 %v1825
      %v1861 = vunpack.c.h.b16 %v1825
      %v1862 = vunpack.c.l.b16 %v1826
      %v1863 = vunpack.c.h.b16 %v1826
      %v1864 = vunpack.c.l.b16 %v1827
      %v1865 = vunpack.c.h.b16 %v1827
      %v1866 = vunpack.c.l.b16 %v1828
      %v1867 = vunpack.c.h.b16 %v1828
      %v1868 = vunpack.c.l.b16 %v1829
      %v1869 = vunpack.c.h.b16 %v1829
      %v1870 = vunpack.c.l.b16 %v1830
      %v1871 = vunpack.c.h.b16 %v1830
      %v1872 = vunpack.c.l.b16 %v1831
      %v1873 = vunpack.c.h.b16 %v1831
      %v1874 = vunpack.c.l.b16 %v1832
      %v1875 = vunpack.c.h.b16 %v1832
      %v1876 = vunpack.c.l.b16 %v1833
      %v1877 = vunpack.c.h.b16 %v1833
      %v1878 = vunpack.c.l.b16 %v1834
      %v1879 = vunpack.c.h.b16 %v1834
      %v1880 = vunpack.c.l.b16 %v1835
      %v1881 = vunpack.c.h.b16 %v1835
      %v1882 = vunpack.c.l.b16 %v1836
      %v1883 = vunpack.c.h.b16 %v1836
      %v1884 = vunpack.c.l.b16 %v1837
      %v1885 = vunpack.c.h.b16 %v1837
      %v1886 = vpack.c.b16 %v1854, %v1854
      %v1887 = vpack.c.b16 %v1855, %v1855
      %v1888 = vpack.c.b16 %v1856, %v1856
      %v1889 = vpack.c.b16 %v1857, %v1857
      %v1890 = vpack.c.b16 %v1858, %v1858
      %v1891 = vpack.c.b16 %v1859, %v1859
      %v1892 = vpack.c.b16 %v1860, %v1860
      %v1893 = vpack.c.b16 %v1861, %v1861
      %v1894 = vpack.c.b16 %v1862, %v1862
      %v1895 = vpack.c.b16 %v1863, %v1863
      %v1896 = vpack.c.b16 %v1864, %v1864
      %v1897 = vpack.c.b16 %v1865, %v1865
      %v1898 = vpack.c.b16 %v1866, %v1866
      %v1899 = vpack.c.b16 %v1867, %v1867
      %v1900 = vpack.c.b16 %v1868, %v1868
      %v1901 = vpack.c.b16 %v1869, %v1869
      %v1902 = vpack.c.b16 %v1870, %v1870
      %v1903 = vpack.c.b16 %v1871, %v1871
      %v1904 = vpack.c.b16 %v1872, %v1872
      %v1905 = vpack.c.b16 %v1873, %v1873
      %v1906 = vpack.c.b16 %v1874, %v1874
      %v1907 = vpack.c.b16 %v1875, %v1875
      %v1908 = vpack.c.b16 %v1876, %v1876
      %v1909 = vpack.c.b16 %v1877, %v1877
      %v1910 = vpack.c.b16 %v1878, %v1878
      %v1911 = vpack.c.b16 %v1879, %v1879
      %v1912 = vpack.c.b16 %v1880, %v1880
      %v1913 = vpack.c.b16 %v1881, %v1881
      %v1914 = vpack.c.b16 %v1882, %v1882
      %v1915 = vpack.c.b16 %v1883, %v1883
      %v1916 = vpack.c.b16 %v1884, %v1884
      %v1917 = vpack.c.b16 %v1885, %v1885
      %vm1950 = vcmask 27648
      %1951 = vst.msk [vmem:[%s481] sm:$0xf] %vm1950, %v1886
      %1952 = vst.msk [vmem:[%s481 + $0x4] sm:$0xf] %vm1950, %v1887
      %1953 = vst.msk [vmem:[%s481 + $0x8] sm:$0xf] %vm1950, %v1888
      %1954 = vst.msk [vmem:[%s481 + $0xc] sm:$0xf] %vm1950, %v1889
      %1955 = vst.msk [vmem:[%s481 + $0x10] sm:$0xf] %vm1950, %v1890
      %1956 = vst.msk [vmem:[%s481 + $0x14] sm:$0xf] %vm1950, %v1891
      %1957 = vst.msk [vmem:[%s481 + $0x18] sm:$0xf] %vm1950, %v1892
      %1958 = vst.msk [vmem:[%s481 + $0x1c] sm:$0xf] %vm1950, %v1893
      %1959 = vst.msk [vmem:[%s481 + $0x20] sm:$0xf] %vm1950, %v1894
      %1960 = vst.msk [vmem:[%s481 + $0x24] sm:$0xf] %vm1950, %v1895
      %1961 = vst.msk [vmem:[%s481 + $0x28] sm:$0xf] %vm1950, %v1896
      %1962 = vst.msk [vmem:[%s481 + $0x2c] sm:$0xf] %vm1950, %v1897
      %1963 = vst.msk [vmem:[%s481 + $0x30] sm:$0xf] %vm1950, %v1898
      %1964 = vst.msk [vmem:[%s481 + $0x34] sm:$0xf] %vm1950, %v1899
      %1965 = vst.msk [vmem:[%s481 + $0x38] sm:$0xf] %vm1950, %v1900
      %1966 = vst.msk [vmem:[%s481 + $0x3c] sm:$0xf] %vm1950, %v1901
      %1967 = vst.msk [vmem:[%s481 + $0x40] sm:$0xf] %vm1950, %v1902
      %1968 = vst.msk [vmem:[%s481 + $0x44] sm:$0xf] %vm1950, %v1903
      %1969 = vst.msk [vmem:[%s481 + $0x48] sm:$0xf] %vm1950, %v1904
      %1970 = vst.msk [vmem:[%s481 + $0x4c] sm:$0xf] %vm1950, %v1905
      %1971 = vst.msk [vmem:[%s481 + $0x50] sm:$0xf] %vm1950, %v1906
      %1972 = vst.msk [vmem:[%s481 + $0x54] sm:$0xf] %vm1950, %v1907
      %1973 = vst.msk [vmem:[%s481 + $0x58] sm:$0xf] %vm1950, %v1908
      %1974 = vst.msk [vmem:[%s481 + $0x5c] sm:$0xf] %vm1950, %v1909
      %1975 = vst.msk [vmem:[%s481 + $0x60] sm:$0xf] %vm1950, %v1910
      %1976 = vst.msk [vmem:[%s481 + $0x64] sm:$0xf] %vm1950, %v1911
      %1977 = vst.msk [vmem:[%s481 + $0x68] sm:$0xf] %vm1950, %v1912
      %1978 = vst.msk [vmem:[%s481 + $0x6c] sm:$0xf] %vm1950, %v1913
      %1979 = vst.msk [vmem:[%s481 + $0x70] sm:$0xf] %vm1950, %v1914
      %1980 = vst.msk [vmem:[%s481 + $0x74] sm:$0xf] %vm1950, %v1915
      %1981 = vst.msk [vmem:[%s481 + $0x78] sm:$0xf] %vm1950, %v1916
      %1982 = vst.msk [vmem:[%s481 + $0x7c] sm:$0xf] %vm1950, %v1917
      %v1983 = vsel %vm956, %v1696, 0.0
      %v1984 = vsel %vm956, %v1699, 0.0
      %v1985 = vadd.f32 %v1983, %v1984
      %v1986 = vsel %vm956, %v1704, 0.0
      %v1987 = vadd.f32 %v1985, %v1986
      %v1988 = vsel %vm956, %v1707, 0.0
      %v1989 = vadd.f32 %v1987, %v1988
      %v1990 = vsel %vm956, %v1712, 0.0
      %v1991 = vadd.f32 %v1989, %v1990
      %v1992 = vsel %vm956, %v1715, 0.0
      %v1993 = vadd.f32 %v1991, %v1992
      %v1994 = vsel %vm956, %v1720, 0.0
      %v1995 = vadd.f32 %v1993, %v1994
      %v1996 = vsel %vm956, %v1723, 0.0
      %v1997 = vadd.f32 %v1995, %v1996
      %v1998 = vsel %vm956, %v1728, 0.0
      %v1999 = vadd.f32 %v1997, %v1998
      %v2000 = vsel %vm956, %v1731, 0.0
      %v2001 = vadd.f32 %v1999, %v2000
      %v2002 = vsel %vm956, %v1736, 0.0
      %v2003 = vadd.f32 %v2001, %v2002
      %v2004 = vsel %vm956, %v1739, 0.0
      %v2005 = vadd.f32 %v2003, %v2004
      %v2006 = vsel %vm956, %v1744, 0.0
      %v2007 = vadd.f32 %v2005, %v2006
      %v2008 = vsel %vm956, %v1747, 0.0
      %v2009 = vadd.f32 %v2007, %v2008
      %v2010 = vsel %vm956, %v1752, 0.0
      %v2011 = vadd.f32 %v2009, %v2010
      %v2012 = vsel %vm956, %v1755, 0.0
      %v2013 = vadd.f32 %v2011, %v2012
      %v2014 = vsel %vm956, %v1760, 0.0
      %v2015 = vadd.f32 %v2013, %v2014
      %v2016 = vsel %vm956, %v1763, 0.0
      %v2017 = vadd.f32 %v2015, %v2016
      %v2018 = vsel %vm956, %v1768, 0.0
      %v2019 = vadd.f32 %v2017, %v2018
      %v2020 = vsel %vm956, %v1771, 0.0
      %v2021 = vadd.f32 %v2019, %v2020
      %v2022 = vsel %vm956, %v1776, 0.0
      %v2023 = vadd.f32 %v2021, %v2022
      %v2024 = vsel %vm956, %v1779, 0.0
      %v2025 = vadd.f32 %v2023, %v2024
      %v2026 = vsel %vm956, %v1784, 0.0
      %v2027 = vadd.f32 %v2025, %v2026
      %v2028 = vsel %vm956, %v1787, 0.0
      %v2029 = vadd.f32 %v2027, %v2028
      %v2030 = vsel %vm956, %v1792, 0.0
      %v2031 = vadd.f32 %v2029, %v2030
      %v2032 = vsel %vm956, %v1795, 0.0
      %v2033 = vadd.f32 %v2031, %v2032
      %v2034 = vsel %vm956, %v1800, 0.0
      %v2035 = vadd.f32 %v2033, %v2034
      %v2036 = vsel %vm956, %v1803, 0.0
      %v2037 = vadd.f32 %v2035, %v2036
      %v2038 = vsel %vm956, %v1808, 0.0
      %v2039 = vadd.f32 %v2037, %v2038
      %v2040 = vsel %vm956, %v1811, 0.0
      %v2041 = vadd.f32 %v2039, %v2040
      %v2042 = vsel %vm956, %v1816, 0.0
      %v2043 = vadd.f32 %v2041, %v2042
      %v2044 = vsel %vm956, %v1819, 0.0
      %v2045 = vadd.f32 %v2043, %v2044
      %v2046 = vrot.slane %v2045, 4
      %v2047 = vadd.f32 %v2045, %v2046
      %v2048 = vrot.slane %v2047, 2
      %v2049 = vadd.f32 %v2047, %v2048
      %v2050 = vrot.slane %v2049, 1
      %v2051 = vadd.f32 %v2049, %v2050
      %v2052 = vmul.f32 %v2051, 0.00390625
      %v2053 = vsub.f32 %v1696, %v2052
      %v2054 = vsub.f32 %v1699, %v2052
      %v2055 = vsub.f32 %v1704, %v2052
      %v2056 = vsub.f32 %v1707, %v2052
      %v2057 = vsub.f32 %v1712, %v2052
      %v2058 = vsub.f32 %v1715, %v2052
      %v2059 = vsub.f32 %v1720, %v2052
      %v2060 = vsub.f32 %v1723, %v2052
      %v2061 = vsub.f32 %v1728, %v2052
      %v2062 = vsub.f32 %v1731, %v2052
      %v2063 = vsub.f32 %v1736, %v2052
      %v2064 = vsub.f32 %v1739, %v2052
      %v2065 = vsub.f32 %v1744, %v2052
      %v2066 = vsub.f32 %v1747, %v2052
      %v2067 = vsub.f32 %v1752, %v2052
      %v2068 = vsub.f32 %v1755, %v2052
      %v2069 = vsub.f32 %v1760, %v2052
      %v2070 = vsub.f32 %v1763, %v2052
      %v2071 = vsub.f32 %v1768, %v2052
      %v2072 = vsub.f32 %v1771, %v2052
      %v2073 = vsub.f32 %v1776, %v2052
      %v2074 = vsub.f32 %v1779, %v2052
      %v2075 = vsub.f32 %v1784, %v2052
      %v2076 = vsub.f32 %v1787, %v2052
      %v2077 = vsub.f32 %v1792, %v2052
      %v2078 = vsub.f32 %v1795, %v2052
      %v2079 = vsub.f32 %v1800, %v2052
      %v2080 = vsub.f32 %v1803, %v2052
      %v2081 = vsub.f32 %v1808, %v2052
      %v2082 = vsub.f32 %v1811, %v2052
      %v2083 = vsub.f32 %v1816, %v2052
      %v2084 = vsub.f32 %v1819, %v2052
      %v2085 = vmul.f32 %v2053, %v2053
      %v2086 = vmul.f32 %v2054, %v2054
      %v2087 = vmul.f32 %v2055, %v2055
      %v2088 = vmul.f32 %v2056, %v2056
      %v2089 = vmul.f32 %v2057, %v2057
      %v2090 = vmul.f32 %v2058, %v2058
      %v2091 = vmul.f32 %v2059, %v2059
      %v2092 = vmul.f32 %v2060, %v2060
      %v2093 = vmul.f32 %v2061, %v2061
      %v2094 = vmul.f32 %v2062, %v2062
      %v2095 = vmul.f32 %v2063, %v2063
      %v2096 = vmul.f32 %v2064, %v2064
      %v2097 = vmul.f32 %v2065, %v2065
      %v2098 = vmul.f32 %v2066, %v2066
      %v2099 = vmul.f32 %v2067, %v2067
      %v2100 = vmul.f32 %v2068, %v2068
      %v2101 = vmul.f32 %v2069, %v2069
      %v2102 = vmul.f32 %v2070, %v2070
      %v2103 = vmul.f32 %v2071, %v2071
      %v2104 = vmul.f32 %v2072, %v2072
      %v2105 = vmul.f32 %v2073, %v2073
      %v2106 = vmul.f32 %v2074, %v2074
      %v2107 = vmul.f32 %v2075, %v2075
      %v2108 = vmul.f32 %v2076, %v2076
      %v2109 = vmul.f32 %v2077, %v2077
      %v2110 = vmul.f32 %v2078, %v2078
      %v2111 = vmul.f32 %v2079, %v2079
      %v2112 = vmul.f32 %v2080, %v2080
      %v2113 = vmul.f32 %v2081, %v2081
      %v2114 = vmul.f32 %v2082, %v2082
      %v2115 = vmul.f32 %v2083, %v2083
      %v2116 = vmul.f32 %v2084, %v2084
      %v2117 = vsel %vm956, %v2085, 0.0
      %v2118 = vsel %vm956, %v2086, 0.0
      %v2119 = vadd.f32 %v2117, %v2118
      %v2120 = vsel %vm956, %v2087, 0.0
      %v2121 = vadd.f32 %v2119, %v2120
      %v2122 = vsel %vm956, %v2088, 0.0
      %v2123 = vadd.f32 %v2121, %v2122
      %v2124 = vsel %vm956, %v2089, 0.0
      %v2125 = vadd.f32 %v2123, %v2124
      %v2126 = vsel %vm956, %v2090, 0.0
      %v2127 = vadd.f32 %v2125, %v2126
      %v2128 = vsel %vm956, %v2091, 0.0
      %v2129 = vadd.f32 %v2127, %v2128
      %v2130 = vsel %vm956, %v2092, 0.0
      %v2131 = vadd.f32 %v2129, %v2130
      %v2132 = vsel %vm956, %v2093, 0.0
      %v2133 = vadd.f32 %v2131, %v2132
      %v2134 = vsel %vm956, %v2094, 0.0
      %v2135 = vadd.f32 %v2133, %v2134
      %v2136 = vsel %vm956, %v2095, 0.0
      %v2137 = vadd.f32 %v2135, %v2136
      %v2138 = vsel %vm956, %v2096, 0.0
      %v2139 = vadd.f32 %v2137, %v2138
      %v2140 = vsel %vm956, %v2097, 0.0
      %v2141 = vadd.f32 %v2139, %v2140
      %v2142 = vsel %vm956, %v2098, 0.0
      %v2143 = vadd.f32 %v2141, %v2142
      %v2144 = vsel %vm956, %v2099, 0.0
      %v2145 = vadd.f32 %v2143, %v2144
      %v2146 = vsel %vm956, %v2100, 0.0
      %v2147 = vadd.f32 %v2145, %v2146
      %v2148 = vsel %vm956, %v2101, 0.0
      %v2149 = vadd.f32 %v2147, %v2148
      %v2150 = vsel %vm956, %v2102, 0.0
      %v2151 = vadd.f32 %v2149, %v2150
      %v2152 = vsel %vm956, %v2103, 0.0
      %v2153 = vadd.f32 %v2151, %v2152
      %v2154 = vsel %vm956, %v2104, 0.0
      %v2155 = vadd.f32 %v2153, %v2154
      %v2156 = vsel %vm956, %v2105, 0.0
      %v2157 = vadd.f32 %v2155, %v2156
      %v2158 = vsel %vm956, %v2106, 0.0
      %v2159 = vadd.f32 %v2157, %v2158
      %v2160 = vsel %vm956, %v2107, 0.0
      %v2161 = vadd.f32 %v2159, %v2160
      %v2162 = vsel %vm956, %v2108, 0.0
      %v2163 = vadd.f32 %v2161, %v2162
      %v2164 = vsel %vm956, %v2109, 0.0
      %v2165 = vadd.f32 %v2163, %v2164
      %v2166 = vsel %vm956, %v2110, 0.0
      %v2167 = vadd.f32 %v2165, %v2166
      %v2168 = vsel %vm956, %v2111, 0.0
      %v2169 = vadd.f32 %v2167, %v2168
      %v2170 = vsel %vm956, %v2112, 0.0
      %v2171 = vadd.f32 %v2169, %v2170
      %v2172 = vsel %vm956, %v2113, 0.0
      %v2173 = vadd.f32 %v2171, %v2172
      %v2174 = vsel %vm956, %v2114, 0.0
      %v2175 = vadd.f32 %v2173, %v2174
      %v2176 = vsel %vm956, %v2115, 0.0
      %v2177 = vadd.f32 %v2175, %v2176
      %v2178 = vsel %vm956, %v2116, 0.0
      %v2179 = vadd.f32 %v2177, %v2178
      %v2180 = vrot.slane %v2179, 4
      %v2181 = vadd.f32 %v2179, %v2180
      %v2182 = vrot.slane %v2181, 2
      %v2183 = vadd.f32 %v2181, %v2182
      %v2184 = vrot.slane %v2183, 1
      %v2185 = vadd.f32 %v2183, %v2184
      %vm2186 = vcmask 24576
      %2187 = vst.msk [vmem:[%s486] sm:$0x1] %vm2186, %v2052
      %2188 = vst.msk [vmem:[%s491] sm:$0x1] %vm2186, %v2185
      %s2189 = sadd.s32 %s24, %s25
      %p2190 = scmp.lt.s32.totalorder %s2189, 1
      %s2191 = scalar_select %p2190, %s2189, 1
      %s2192 = smul.addr %s2191, 32
      %s2193 = smul.addr %s2192, 4
      %s2194 = scalar_lea.vmem %s6, %s2193
      %s2195 = sadd.s32 %s24, %s25
      %p2196 = scmp.lt.s32.totalorder %s2195, 1
      %s2197 = scalar_select %p2196, %s2195, 1
      %s2198 = scalar_lea.vmem %s7, %s2197
      %s2199 = sadd.s32 %s24, %s25
      %p2200 = scmp.lt.s32.totalorder %s2199, 1
      %s2201 = scalar_select %p2200, %s2199, 1
      %s2202 = scalar_lea.vmem %s8, %s2201
      // Predicated region
      $region45: #{upblock_forward.6} parent=43 // pred_check
        %p2203 = pneg %p215
      $region46: #{upblock_forward.6} parent=43 // pred_check_branch
        %2205 = sbr.rel (%p2203) target = $region48
      $region47: #{upblock_forward.6} parent=43 // pred_region
        %s2206 = sadd.s32 %s24, %s25
      $region48: #{upblock_forward.6} parent=43 // pred_fallthru
        _
      // Predicated region
      $region49: #{upblock_forward.6} parent=43 // pred_check
        %p2207 = pneg %p243
      $region50: #{upblock_forward.6} parent=43 // pred_check_branch
        %2209 = sbr.rel (%p2207) target = $region52
      $region51: #{upblock_forward.6} parent=43 // pred_region
        %s2210 = sadd.s32 %s24, %s25
      $region52: #{upblock_forward.6} parent=43 // pred_fallthru
        _
      // Predicated region
      $region53: #{upblock_forward.6} parent=43 // pred_check
        %p2211 = pneg %p271
      $region54: #{upblock_forward.6} parent=43 // pred_check_branch
        %2213 = sbr.rel (%p2211) target = $region56
      $region55: #{upblock_forward.6} parent=43 // pred_region
        %s2214 = sadd.s32 %s24, %s25
      $region56: #{upblock_forward.6} parent=43 // pred_fallthru
        _
    $region44: #{upblock_forward.6} parent=5 // pred_fallthru
      _
    %p2215 = scmp.le.s32.totalorder 2, %s15
    // Predicated region
    $region57: #{upblock_forward.6} parent=5 // pred_check
      %p2216 = pneg %p2215
    $region58: #{upblock_forward.6} parent=5 // pred_check_branch
      %2218 = sbr.rel (%p2216) target = $region60
    $region59: #{upblock_forward.6} parent=5 // pred_region
      %s2219 = ssub.s32 %s15, 2
      // Predicated region
      $region61: #{upblock_forward.6} parent=59 // pred_check
        %p2220 = pneg %p221
      $region62: #{upblock_forward.6} parent=59 // pred_check_branch
        %2222 = sbr.rel (%p2220) target = $region64
      $region63: #{upblock_forward.6} parent=59 // pred_region
        %s2223 = sadd.s32 %s26, %s27
        %p2224 = scmp.lt.s32.totalorder %s2223, 1
        %s2225 = scalar_select %p2224, %s2223, 1
        %s2226 = smul.addr %s2225, 32
        %s2227 = smul.addr %s2226, 4
        %s2228 = scalar_lea.vmem %s6, %s2227
      $region64: #{upblock_forward.6} parent=59 // pred_fallthru
        _
      // Predicated region
      $region65: #{upblock_forward.6} parent=59 // pred_check
        %p2229 = pneg %p249
      $region66: #{upblock_forward.6} parent=59 // pred_check_branch
        %2231 = sbr.rel (%p2229) target = $region68
      $region67: #{upblock_forward.6} parent=59 // pred_region
        %s2232 = sadd.s32 %s26, %s27
        %p2233 = scmp.lt.s32.totalorder %s2232, 1
        %s2234 = scalar_select %p2233, %s2232, 1
        %s2235 = scalar_lea.vmem %s7, %s2234
      $region68: #{upblock_forward.6} parent=59 // pred_fallthru
        _
      // Predicated region
      $region69: #{upblock_forward.6} parent=59 // pred_check
        %p2236 = pneg %p277
      $region70: #{upblock_forward.6} parent=59 // pred_check_branch
        %2238 = sbr.rel (%p2236) target = $region72
      $region71: #{upblock_forward.6} parent=59 // pred_region
        %s2239 = sadd.s32 %s26, %s27
        %p2240 = scmp.lt.s32.totalorder %s2239, 1
        %s2241 = scalar_select %p2240, %s2239, 1
        %s2242 = scalar_lea.vmem %s8, %s2241
      $region72: #{upblock_forward.6} parent=59 // pred_fallthru
        _
    $region60: #{upblock_forward.6} parent=5 // pred_fallthru
      _
  $region6: #{upblock_forward.6} parent=0 // loop_footer
    %s19 = sadd.s32 1, %s15
  $region7: #{upblock_forward.6} parent=0 // loop_footer_branch
    %14 = sbr.rel target = $region3
  $region8: #{upblock_forward.6} parent=0 // loop_exit
    _

// kernel: upblock_forward.5
$region0: #{upblock_forward.5}
  #allocation0 [shape = 'u32[]', space=smem, size = 0x4, offset = 0x4, fixed_abs, tag = 'smem constant byte address 0x4 - core index']
  #allocation1 [shape = 'u32[144,128]{1,0:T(1,128)}', space=vmem, size = 0x12000, scoped, tag = 'internal scratch']
  #allocation2 [shape = 'bf16[16,16,72]{2,1,0:T(16,128)(2,1)}', space=vmem, size = 0x10000, scoped, tag = 'scratch operand']
  %s0 = inlined_call_operand.vmem [shape: bf16[2,16,16,4], index: 0, kind: input, shape index: {}, may-alias: {0,1,2}]
  %s1 = inlined_call_operand.vmem [shape: bf16[2,16,16,4], index: 1, kind: input, shape index: {}, may-alias: {0,1,2}]
  %s2 = inlined_call_operand.vmem [shape: bf16[2,16,16,4], index: 2, kind: input, shape index: {}, may-alias: {0,1,2}]
  %s3 = inlined_call_operand.vmem [shape: f32[2,16,16,4], index: 3, kind: input, shape index: {}, may-alias: {3,4,5}]
  %s4 = inlined_call_operand.vmem [shape: f32[2,16,16,4], index: 4, kind: input, shape index: {}, may-alias: {3,4,5}]
  %s5 = inlined_call_operand.vmem [shape: f32[2,16,16,4], index: 5, kind: input, shape index: {}, may-alias: {3,4,5}]
  %s6 = inlined_call_operand.vmem [shape: bf16[72,4], index: 6, kind: input, shape index: {}]
  %s7 = inlined_call_operand.vmem [shape: bf16[2,256,4], index: 7, kind: output, shape index: {0}]
  %s8 = inlined_call_operand.vmem [shape: f32[2,1,4], index: 8, kind: output, shape index: {1}]
  %s9 = inlined_call_operand.vmem [shape: f32[2,1,4], index: 9, kind: output, shape index: {2}]
  %10 = xla_tuple %s7, %s8, %s9
  %s11 = sld [smem:[#allocation0]]
  $region77: #{upblock_forward.5} parent=0
    _
  %s13 = ssub.s32 1, %s11
  %s14 = scalar_select 0, %s13, %s11
  loop: start=0, step=1, limit=4
  $region2: #{upblock_forward.5} parent=0 // loop_pre_header
    _
  $region3: #{upblock_forward.5} parent=0 // loop_header
    %s16 = sphi 0, %s20
    %p17 = scmp.ge.s32.totalorder %s16, 4
    %s23 = sphi 0, %s35
    %s24 = sphi 0, %s31
    %s25 = sphi 0, %s23
    %s26 = sphi 0, %s24
    %s27 = sphi 0, %s25
    %s28 = sphi 0, %s26
    %s48 = sphi 0, %s50
    %s51 = sphi 0, %s48
    %s52 = sphi 0, %s51
    %s68 = sphi 0, %s52
    %s76 = sphi 0, %s78
    %s79 = sphi 0, %s76
    %s80 = sphi 0, %s79
    %s96 = sphi 0, %s80
    %s112 = sphi 0, %s114
    %s115 = sphi 0, %s112
    %s116 = sphi 0, %s115
    %s132 = sphi 0, %s116
    %s148 = sphi 0, %s150
    %s151 = sphi 0, %s148
    %s152 = sphi 0, %s151
    %s168 = sphi 0, %s152
    %s176 = sphi 0, %s178
    %s179 = sphi 0, %s176
    %s180 = sphi 0, %s179
    %s196 = sphi 0, %s180
    %s212 = sphi 0, %s214
    %s215 = sphi 0, %s212
    %s216 = sphi 0, %s215
    %s232 = sphi 0, %s216
    %s236 = sphi 0, %s236
    %s238 = sphi 0, %s236
    %s239 = sphi 0, %s238
    %s253 = sphi 0, %s239
    %s261 = sphi 0, %s263
    %s264 = sphi 0, %s261
    %s265 = sphi 0, %s264
    %s281 = sphi 0, %s265
    %s289 = sphi 0, %s291
    %s292 = sphi 0, %s289
    %s293 = sphi 0, %s292
    %s309 = sphi 0, %s293
    %s317 = sphi 0, %s319
    %s320 = sphi 0, %s317
    %s321 = sphi 0, %s320
    %s337 = sphi 0, %s321
  $region4: #{upblock_forward.5} parent=0 // loop_header_branch
    %19 = sbr.rel (%p17) target = $region8
  $region5: #{upblock_forward.5} parent=0 // loop_body
    %s21 = ssub.s32 %s16, 1
    %s22 = ssub.s32 %s16, 2
    %s29 = sadd.s32 1, %s24
    %p30 = scmp.ge.s32.totalorder %s29, 1
    %s31 = scalar_select %p30, 0, %s29
    %s32 = sadd.s32 1, %s23
    %s33 = scalar_select %p30, %s32, %s23
    %p34 = scmp.ge.s32.totalorder %s33, 2
    %s35 = scalar_select %p34, 0, %s33
    %s36 = smul.u32 %s24, 16
    %s37 = ssub.s32 %s36, 1
    %p38 = scmp.gt.s32.totalorder %s37, 0
    %s39 = scalar_select %p38, %s37, 0
    %s40 = smul.u32 %s31, 16
    %s41 = ssub.s32 %s40, 1
    %p42 = scmp.gt.s32.totalorder %s41, 0
    %s43 = scalar_select %p42, %s41, 0
    %s44 = ssub.s32 %s23, %s35
    %s45 = ssub.s32 %s39, %s43
    %s46 = sor.u32 %s44, %s45
    %p47 = scmp.eq.s32.totalorder %s46, 0
    %s49 = sadd.s32 %s48, 1
    %s50 = scalar_select %p47, %s48, %s49
    %p53 = pneg %p47
    %p54 = scmp.eq.s32.totalorder %s16, 1
    %p55 = por %p53, %p54
    %p56 = scmp.ne.s32.totalorder %s48, %s51
    %p57 = scmp.eq.s32.totalorder %s16, 0
    %p58 = por %p56, %p57
    %p59 = scmp.ne.s32.totalorder %s48, %s51
    %p60 = scmp.eq.s32.totalorder %s21, 1
    %p61 = por %p59, %p60
    %p62 = scmp.ne.s32.totalorder %s51, %s52
    %p63 = scmp.eq.s32.totalorder %s21, 0
    %p64 = por %p62, %p63
    %p65 = scmp.ne.s32.totalorder %s51, %s52
    %p66 = scmp.eq.s32.totalorder %s22, 1
    %p67 = por %p65, %p66
    %p69 = scmp.ne.s32.totalorder %s52, %s68
    %p70 = scmp.eq.s32.totalorder %s22, 0
    %p71 = por %p69, %p70
    %s72 = ssub.s32 %s23, %s35
    %s73 = ssub.s32 %s24, %s31
    %s74 = sor.u32 %s72, %s73
    %p75 = scmp.eq.s32.totalorder %s74, 0
    %s77 = sadd.s32 %s76, 1
    %s78 = scalar_select %p75, %s76, %s77
    %p81 = pneg %p75
    %p82 = scmp.eq.s32.totalorder %s16, 1
    %p83 = por %p81, %p82
    %p84 = scmp.ne.s32.totalorder %s76, %s79
    %p85 = scmp.eq.s32.totalorder %s16, 0
    %p86 = por %p84, %p85
    %p87 = scmp.ne.s32.totalorder %s76, %s79
    %p88 = scmp.eq.s32.totalorder %s21, 1
    %p89 = por %p87, %p88
    %p90 = scmp.ne.s32.totalorder %s79, %s80
    %p91 = scmp.eq.s32.totalorder %s21, 0
    %p92 = por %p90, %p91
    %p93 = scmp.ne.s32.totalorder %s79, %s80
    %p94 = scmp.eq.s32.totalorder %s22, 1
    %p95 = por %p93, %p94
    %p97 = scmp.ne.s32.totalorder %s80, %s96
    %p98 = scmp.eq.s32.totalorder %s22, 0
    %p99 = por %p97, %p98
    %s100 = smul.u32 %s24, 16
    %s101 = sadd.s32 %s100, 16
    %p102 = scmp.lt.s32.totalorder %s101, 15
    %s103 = scalar_select %p102, %s101, 15
    %s104 = smul.u32 %s31, 16
    %s105 = sadd.s32 %s104, 16
    %p106 = scmp.lt.s32.totalorder %s105, 15
    %s107 = scalar_select %p106, %s105, 15
    %s108 = ssub.s32 %s23, %s35
    %s109 = ssub.s32 %s103, %s107
    %s110 = sor.u32 %s108, %s109
    %p111 = scmp.eq.s32.totalorder %s110, 0
    %s113 = sadd.s32 %s112, 1
    %s114 = scalar_select %p111, %s112, %s113
    %p117 = pneg %p111
    %p118 = scmp.eq.s32.totalorder %s16, 1
    %p119 = por %p117, %p118
    %p120 = scmp.ne.s32.totalorder %s112, %s115
    %p121 = scmp.eq.s32.totalorder %s16, 0
    %p122 = por %p120, %p121
    %p123 = scmp.ne.s32.totalorder %s112, %s115
    %p124 = scmp.eq.s32.totalorder %s21, 1
    %p125 = por %p123, %p124
    %p126 = scmp.ne.s32.totalorder %s115, %s116
    %p127 = scmp.eq.s32.totalorder %s21, 0
    %p128 = por %p126, %p127
    %p129 = scmp.ne.s32.totalorder %s115, %s116
    %p130 = scmp.eq.s32.totalorder %s22, 1
    %p131 = por %p129, %p130
    %p133 = scmp.ne.s32.totalorder %s116, %s132
    %p134 = scmp.eq.s32.totalorder %s22, 0
    %p135 = por %p133, %p134
    %s136 = smul.u32 %s24, 16
    %s137 = ssub.s32 %s136, 1
    %p138 = scmp.gt.s32.totalorder %s137, 0
    %s139 = scalar_select %p138, %s137, 0
    %s140 = smul.u32 %s31, 16
    %s141 = ssub.s32 %s140, 1
    %p142 = scmp.gt.s32.totalorder %s141, 0
    %s143 = scalar_select %p142, %s141, 0
    %s144 = ssub.s32 %s23, %s35
    %s145 = ssub.s32 %s139, %s143
    %s146 = sor.u32 %s144, %s145
    %p147 = scmp.eq.s32.totalorder %s146, 0
    %s149 = sadd.s32 %s148, 1
    %s150 = scalar_select %p147, %s148, %s149
    %p153 = pneg %p147
    %p154 = scmp.eq.s32.totalorder %s16, 1
    %p155 = por %p153, %p154
    %p156 = scmp.ne.s32.totalorder %s148, %s151
    %p157 = scmp.eq.s32.totalorder %s16, 0
    %p158 = por %p156, %p157
    %p159 = scmp.ne.s32.totalorder %s148, %s151
    %p160 = scmp.eq.s32.totalorder %s21, 1
    %p161 = por %p159, %p160
    %p162 = scmp.ne.s32.totalorder %s151, %s152
    %p163 = scmp.eq.s32.totalorder %s21, 0
    %p164 = por %p162, %p163
    %p165 = scmp.ne.s32.totalorder %s151, %s152
    %p166 = scmp.eq.s32.totalorder %s22, 1
    %p167 = por %p165, %p166
    %p169 = scmp.ne.s32.totalorder %s152, %s168
    %p170 = scmp.eq.s32.totalorder %s22, 0
    %p171 = por %p169, %p170
    %s172 = ssub.s32 %s23, %s35
    %s173 = ssub.s32 %s24, %s31
    %s174 = sor.u32 %s172, %s173
    %p175 = scmp.eq.s32.totalorder %s174, 0
    %s177 = sadd.s32 %s176, 1
    %s178 = scalar_select %p175, %s176, %s177
    %p181 = pneg %p175
    %p182 = scmp.eq.s32.totalorder %s16, 1
    %p183 = por %p181, %p182
    %p184 = scmp.ne.s32.totalorder %s176, %s179
    %p185 = scmp.eq.s32.totalorder %s16, 0
    %p186 = por %p184, %p185
    %p187 = scmp.ne.s32.totalorder %s176, %s179
    %p188 = scmp.eq.s32.totalorder %s21, 1
    %p189 = por %p187, %p188
    %p190 = scmp.ne.s32.totalorder %s179, %s180
    %p191 = scmp.eq.s32.totalorder %s21, 0
    %p192 = por %p190, %p191
    %p193 = scmp.ne.s32.totalorder %s179, %s180
    %p194 = scmp.eq.s32.totalorder %s22, 1
    %p195 = por %p193, %p194
    %p197 = scmp.ne.s32.totalorder %s180, %s196
    %p198 = scmp.eq.s32.totalorder %s22, 0
    %p199 = por %p197, %p198
    %s200 = smul.u32 %s24, 16
    %s201 = sadd.s32 %s200, 16
    %p202 = scmp.lt.s32.totalorder %s201, 15
    %s203 = scalar_select %p202, %s201, 15
    %s204 = smul.u32 %s31, 16
    %s205 = sadd.s32 %s204, 16
    %p206 = scmp.lt.s32.totalorder %s205, 15
    %s207 = scalar_select %p206, %s205, 15
    %s208 = ssub.s32 %s23, %s35
    %s209 = ssub.s32 %s203, %s207
    %s210 = sor.u32 %s208, %s209
    %p211 = scmp.eq.s32.totalorder %s210, 0
    %s213 = sadd.s32 %s212, 1
    %s214 = scalar_select %p211, %s212, %s213
    %p217 = pneg %p211
    %p218 = scmp.eq.s32.totalorder %s16, 1
    %p219 = por %p217, %p218
    %p220 = scmp.ne.s32.totalorder %s212, %s215
    %p221 = scmp.eq.s32.totalorder %s16, 0
    %p222 = por %p220, %p221
    %p223 = scmp.ne.s32.totalorder %s212, %s215
    %p224 = scmp.eq.s32.totalorder %s21, 1
    %p225 = por %p223, %p224
    %p226 = scmp.ne.s32.totalorder %s215, %s216
    %p227 = scmp.eq.s32.totalorder %s21, 0
    %p228 = por %p226, %p227
    %p229 = scmp.ne.s32.totalorder %s215, %s216
    %p230 = scmp.eq.s32.totalorder %s22, 1
    %p231 = por %p229, %p230
    %p233 = scmp.ne.s32.totalorder %s216, %s232
    %p234 = scmp.eq.s32.totalorder %s22, 0
    %p235 = por %p233, %p234
    %s237 = sadd.s32 %s236, 1
    %p240 = scmp.eq.s32.totalorder %s16, 1
    %p241 = scmp.ne.s32.totalorder %s236, %s238
    %p242 = scmp.eq.s32.totalorder %s16, 0
    %p243 = por %p241, %p242
    %p244 = scmp.ne.s32.totalorder %s236, %s238
    %p245 = scmp.eq.s32.totalorder %s21, 1
    %p246 = por %p244, %p245
    %p247 = scmp.ne.s32.totalorder %s238, %s239
    %p248 = scmp.eq.s32.totalorder %s21, 0
    %p249 = por %p247, %p248
    %p250 = scmp.ne.s32.totalorder %s238, %s239
    %p251 = scmp.eq.s32.totalorder %s22, 1
    %p252 = por %p250, %p251
    %p254 = scmp.ne.s32.totalorder %s239, %s253
    %p255 = scmp.eq.s32.totalorder %s22, 0
    %p256 = por %p254, %p255
    %s257 = sadd.s32 %s23, %s24
    %s258 = sadd.s32 %s35, %s31
    %s259 = ssub.s32 %s257, %s258
    %p260 = scmp.eq.s32.totalorder %s259, 0
    %s262 = sadd.s32 %s261, 1
    %s263 = scalar_select %p260, %s261, %s262
    %p266 = pneg %p260
    %p267 = scmp.eq.s32.totalorder %s16, 1
    %p268 = por %p266, %p267
    %p269 = scmp.ne.s32.totalorder %s261, %s264
    %p270 = scmp.eq.s32.totalorder %s16, 0
    %p271 = por %p269, %p270
    %p272 = scmp.ne.s32.totalorder %s261, %s264
    %p273 = scmp.eq.s32.totalorder %s21, 1
    %p274 = por %p272, %p273
    %p275 = scmp.ne.s32.totalorder %s264, %s265
    %p276 = scmp.eq.s32.totalorder %s21, 0
    %p277 = por %p275, %p276
    %p278 = scmp.ne.s32.totalorder %s264, %s265
    %p279 = scmp.eq.s32.totalorder %s22, 1
    %p280 = por %p278, %p279
    %p282 = scmp.ne.s32.totalorder %s265, %s281
    %p283 = scmp.eq.s32.totalorder %s22, 0
    %p284 = por %p282, %p283
    %s285 = sadd.s32 %s23, %s24
    %s286 = sadd.s32 %s35, %s31
    %s287 = ssub.s32 %s285, %s286
    %p288 = scmp.eq.s32.totalorder %s287, 0
    %s290 = sadd.s32 %s289, 1
    %s291 = scalar_select %p288, %s289, %s290
    %p294 = pneg %p288
    %p295 = scmp.eq.s32.totalorder %s16, 1
    %p296 = por %p294, %p295
    %p297 = scmp.ne.s32.totalorder %s289, %s292
    %p298 = scmp.eq.s32.totalorder %s16, 0
    %p299 = por %p297, %p298
    %p300 = scmp.ne.s32.totalorder %s289, %s292
    %p301 = scmp.eq.s32.totalorder %s21, 1
    %p302 = por %p300, %p301
    %p303 = scmp.ne.s32.totalorder %s292, %s293
    %p304 = scmp.eq.s32.totalorder %s21, 0
    %p305 = por %p303, %p304
    %p306 = scmp.ne.s32.totalorder %s292, %s293
    %p307 = scmp.eq.s32.totalorder %s22, 1
    %p308 = por %p306, %p307
    %p310 = scmp.ne.s32.totalorder %s293, %s309
    %p311 = scmp.eq.s32.totalorder %s22, 0
    %p312 = por %p310, %p311
    %s313 = sadd.s32 %s23, %s24
    %s314 = sadd.s32 %s35, %s31
    %s315 = ssub.s32 %s313, %s314
    %p316 = scmp.eq.s32.totalorder %s315, 0
    %s318 = sadd.s32 %s317, 1
    %s319 = scalar_select %p316, %s317, %s318
    %p322 = pneg %p316
    %p323 = scmp.eq.s32.totalorder %s16, 1
    %p324 = por %p322, %p323
    %p325 = scmp.ne.s32.totalorder %s317, %s320
    %p326 = scmp.eq.s32.totalorder %s16, 0
    %p327 = por %p325, %p326
    %p328 = scmp.ne.s32.totalorder %s317, %s320
    %p329 = scmp.eq.s32.totalorder %s21, 1
    %p330 = por %p328, %p329
    %p331 = scmp.ne.s32.totalorder %s320, %s321
    %p332 = scmp.eq.s32.totalorder %s21, 0
    %p333 = por %p331, %p332
    %p334 = scmp.ne.s32.totalorder %s320, %s321
    %p335 = scmp.eq.s32.totalorder %s22, 1
    %p336 = por %p334, %p335
    %p338 = scmp.ne.s32.totalorder %s321, %s337
    %p339 = scmp.eq.s32.totalorder %s22, 0
    %p340 = por %p338, %p339
    %p341 = scmp.le.s32.totalorder 1, %s16
    %p342 = scmp.lt.s32.totalorder %s16, 3
    %p343 = pnand %p341, %p342
    %p344 = pneg %p343
    // Predicated region
    $region9: #{upblock_forward.5} parent=5 // pred_check
      _
    $region10: #{upblock_forward.5} parent=5 // pred_check_branch
      %346 = sbr.rel (%p343) target = $region12
    $region11: #{upblock_forward.5} parent=5 // pred_region
      %s347 = ssub.s32 %s16, 1
      // Predicated region
      $region13: #{upblock_forward.5} parent=11 // pred_check
        %p348 = pneg %p249
      $region14: #{upblock_forward.5} parent=11 // pred_check_branch
        %350 = sbr.rel (%p348) target = $region16
      $region15: #{upblock_forward.5} parent=11 // pred_region
        _
      $region16: #{upblock_forward.5} parent=11 // pred_fallthru
        _
    $region12: #{upblock_forward.5} parent=5 // pred_fallthru
      _
    %p351 = scmp.lt.s32.totalorder %s16, 2
    // Predicated region
    $region17: #{upblock_forward.5} parent=5 // pred_check
      %p352 = pneg %p351
    $region18: #{upblock_forward.5} parent=5 // pred_check_branch
      %354 = sbr.rel (%p352) target = $region20
    $region19: #{upblock_forward.5} parent=5 // pred_region
      // Predicated region
      $region21: #{upblock_forward.5} parent=19 // pred_check
        %p355 = pneg %p58
      $region22: #{upblock_forward.5} parent=19 // pred_check_branch
        %357 = sbr.rel (%p355) target = $region24
      $region23: #{upblock_forward.5} parent=19 // pred_region
        %s358 = smul.u32 %s24, 16
        %s359 = ssub.s32 %s358, 1
        %p360 = scmp.gt.s32.totalorder %s359, 0
        %s361 = scalar_select %p360, %s359, 0
        %p362 = scmp.lt.s32.totalorder %s23, 1
        %s363 = scalar_select %p362, %s23, 1
        %p364 = scmp.lt.s32.totalorder %s361, 15
        %s365 = scalar_select %p364, %s361, 15
        %s366 = smul.addr %s365, 2
        %s367 = smul.addr %s363, 32
        %s368 = sadd.s32 %s366, %s367
        %s369 = smul.addr %s368, 4
        %s370 = scalar_lea.vmem %s0, %s369
        %s371 = smul.u32 %s24, 16
        %s372 = ssub.s32 %s371, 1
        %p373 = scmp.gt.s32.totalorder %s372, 0
        %s374 = scalar_select %p373, %s372, 0
      $region24: #{upblock_forward.5} parent=19 // pred_fallthru
        _
      // Predicated region
      $region25: #{upblock_forward.5} parent=19 // pred_check
        %p375 = pneg %p86
      $region26: #{upblock_forward.5} parent=19 // pred_check_branch
        %377 = sbr.rel (%p375) target = $region28
      $region27: #{upblock_forward.5} parent=19 // pred_region
        %s378 = smul.u32 16, %s24
        %p379 = scmp.lt.s32.totalorder %s23, 1
        %s380 = scalar_select %p379, %s23, 1
        %p381 = scmp.lt.s32.totalorder %s378, 15
        %s382 = scalar_select %p381, %s378, 15
        %s383 = smul.addr %s382, 2
        %s384 = smul.addr %s380, 32
        %s385 = sadd.s32 %s383, %s384
        %s386 = smul.addr %s385, 4
        %s387 = scalar_lea.vmem %s1, %s386
        %s388 = smul.u32 16, %s24
      $region28: #{upblock_forward.5} parent=19 // pred_fallthru
        _
      // Predicated region
      $region29: #{upblock_forward.5} parent=19 // pred_check
        %p389 = pneg %p122
      $region30: #{upblock_forward.5} parent=19 // pred_check_branch
        %391 = sbr.rel (%p389) target = $region32
      $region31: #{upblock_forward.5} parent=19 // pred_region
        %s392 = smul.u32 %s24, 16
        %s393 = sadd.s32 %s392, 16
        %p394 = scmp.lt.s32.totalorder %s393, 15
        %s395 = scalar_select %p394, %s393, 15
        %p396 = scmp.lt.s32.totalorder %s23, 1
        %s397 = scalar_select %p396, %s23, 1
        %p398 = scmp.lt.s32.totalorder %s395, 15
        %s399 = scalar_select %p398, %s395, 15
        %s400 = smul.addr %s399, 2
        %s401 = smul.addr %s397, 32
        %s402 = sadd.s32 %s400, %s401
        %s403 = smul.addr %s402, 4
        %s404 = scalar_lea.vmem %s2, %s403
        %s405 = smul.u32 %s24, 16
        %s406 = sadd.s32 %s405, 16
        %p407 = scmp.lt.s32.totalorder %s406, 15
        %s408 = scalar_select %p407, %s406, 15
      $region32: #{upblock_forward.5} parent=19 // pred_fallthru
        _
      // Predicated region
      $region33: #{upblock_forward.5} parent=19 // pred_check
        %p409 = pneg %p158
      $region34: #{upblock_forward.5} parent=19 // pred_check_branch
        %411 = sbr.rel (%p409) target = $region36
      $region35: #{upblock_forward.5} parent=19 // pred_region
        %s412 = smul.u32 %s24, 16
        %s413 = ssub.s32 %s412, 1
        %p414 = scmp.gt.s32.totalorder %s413, 0
        %s415 = scalar_select %p414, %s413, 0
        %p416 = scmp.lt.s32.totalorder %s23, 1
        %s417 = scalar_select %p416, %s23, 1
        %p418 = scmp.lt.s32.totalorder %s415, 15
        %s419 = scalar_select %p418, %s415, 15
        %s420 = smul.addr %s419, 2
        %s421 = smul.addr %s417, 32
        %s422 = sadd.s32 %s420, %s421
        %s423 = smul.addr %s422, 8
        %s424 = scalar_lea.vmem %s3, %s423
        %s425 = smul.u32 %s24, 16
        %s426 = ssub.s32 %s425, 1
        %p427 = scmp.gt.s32.totalorder %s426, 0
        %s428 = scalar_select %p427, %s426, 0
      $region36: #{upblock_forward.5} parent=19 // pred_fallthru
        _
      // Predicated region
      $region37: #{upblock_forward.5} parent=19 // pred_check
        %p429 = pneg %p186
      $region38: #{upblock_forward.5} parent=19 // pred_check_branch
        %431 = sbr.rel (%p429) target = $region40
      $region39: #{upblock_forward.5} parent=19 // pred_region
        %s432 = smul.u32 16, %s24
        %p433 = scmp.lt.s32.totalorder %s23, 1
        %s434 = scalar_select %p433, %s23, 1
        %p435 = scmp.lt.s32.totalorder %s432, 15
        %s436 = scalar_select %p435, %s432, 15
        %s437 = smul.addr %s436, 2
        %s438 = smul.addr %s434, 32
        %s439 = sadd.s32 %s437, %s438
        %s440 = smul.addr %s439, 8
        %s441 = scalar_lea.vmem %s4, %s440
        %s442 = smul.u32 16, %s24
      $region40: #{upblock_forward.5} parent=19 // pred_fallthru
        _
      // Predicated region
      $region41: #{upblock_forward.5} parent=19 // pred_check
        %p443 = pneg %p222
      $region42: #{upblock_forward.5} parent=19 // pred_check_branch
        %445 = sbr.rel (%p443) target = $region44
      $region43: #{upblock_forward.5} parent=19 // pred_region
        %s446 = smul.u32 %s24, 16
        %s447 = sadd.s32 %s446, 16
        %p448 = scmp.lt.s32.totalorder %s447, 15
        %s449 = scalar_select %p448, %s447, 15
        %p450 = scmp.lt.s32.totalorder %s23, 1
        %s451 = scalar_select %p450, %s23, 1
        %p452 = scmp.lt.s32.totalorder %s449, 15
        %s453 = scalar_select %p452, %s449, 15
        %s454 = smul.addr %s453, 2
        %s455 = smul.addr %s451, 32
        %s456 = sadd.s32 %s454, %s455
        %s457 = smul.addr %s456, 8
        %s458 = scalar_lea.vmem %s5, %s457
        %s459 = smul.u32 %s24, 16
        %s460 = sadd.s32 %s459, 16
        %p461 = scmp.lt.s32.totalorder %s460, 15
        %s462 = scalar_select %p461, %s460, 15
      $region44: #{upblock_forward.5} parent=19 // pred_fallthru
        _
    $region20: #{upblock_forward.5} parent=5 // pred_fallthru
      _
    %p463 = scmp.le.s32.totalorder 1, %s16
    %p464 = scmp.lt.s32.totalorder %s16, 3
    %p465 = pnand %p463, %p464
    %p466 = pneg %p465
    // Predicated region
    $region45: #{upblock_forward.5} parent=5 // pred_check
      _
    $region46: #{upblock_forward.5} parent=5 // pred_check_branch
      %468 = sbr.rel (%p465) target = $region48
    $region47: #{upblock_forward.5} parent=5 // pred_region
      %s469 = ssub.s32 %s16, 1
      %s470 = smul.u32 %s26, 16
      %s471 = ssub.s32 %s470, 1
      %p472 = scmp.gt.s32.totalorder %s471, 0
      %s473 = scalar_select %p472, %s471, 0
      %p474 = scmp.lt.s32.totalorder %s25, 1
      %s475 = scalar_select %p474, %s25, 1
      %p476 = scmp.lt.s32.totalorder %s473, 15
      %s477 = scalar_select %p476, %s473, 15
      %s478 = smul.addr %s477, 2
      %s479 = smul.addr %s475, 32
      %s480 = sadd.s32 %s478, %s479
      %s481 = smul.addr %s480, 4
      %s482 = scalar_lea.vmem %s0, %s481
      %p483 = pneg %p64
      %p484 = pneg %p61
      %s485 = smul.u32 16, %s26
      %p486 = scmp.lt.s32.totalorder %s25, 1
      %s487 = scalar_select %p486, %s25, 1
      %p488 = scmp.lt.s32.totalorder %s485, 15
      %s489 = scalar_select %p488, %s485, 15
      %s490 = smul.addr %s489, 2
      %s491 = smul.addr %s487, 32
      %s492 = sadd.s32 %s490, %s491
      %s493 = smul.addr %s492, 4
      %s494 = scalar_lea.vmem %s1, %s493
      %p495 = pneg %p92
      %p496 = pneg %p89
      %s497 = smul.u32 %s26, 16
      %s498 = sadd.s32 %s497, 16
      %p499 = scmp.lt.s32.totalorder %s498, 15
      %s500 = scalar_select %p499, %s498, 15
      %p501 = scmp.lt.s32.totalorder %s25, 1
      %s502 = scalar_select %p501, %s25, 1
      %p503 = scmp.lt.s32.totalorder %s500, 15
      %s504 = scalar_select %p503, %s500, 15
      %s505 = smul.addr %s504, 2
      %s506 = smul.addr %s502, 32
      %s507 = sadd.s32 %s505, %s506
      %s508 = smul.addr %s507, 4
      %s509 = scalar_lea.vmem %s2, %s508
      %p510 = pneg %p128
      %p511 = pneg %p125
      %s512 = smul.u32 %s26, 16
      %s513 = ssub.s32 %s512, 1
      %p514 = scmp.gt.s32.totalorder %s513, 0
      %s515 = scalar_select %p514, %s513, 0
      %p516 = scmp.lt.s32.totalorder %s25, 1
      %s517 = scalar_select %p516, %s25, 1
      %p518 = scmp.lt.s32.totalorder %s515, 15
      %s519 = scalar_select %p518, %s515, 15
      %s520 = smul.addr %s519, 2
      %s521 = smul.addr %s517, 32
      %s522 = sadd.s32 %s520, %s521
      %s523 = smul.addr %s522, 8
      %s524 = scalar_lea.vmem %s3, %s523
      %p525 = pneg %p164
      %p526 = pneg %p161
      %s527 = smul.u32 16, %s26
      %p528 = scmp.lt.s32.totalorder %s25, 1
      %s529 = scalar_select %p528, %s25, 1
      %p530 = scmp.lt.s32.totalorder %s527, 15
      %s531 = scalar_select %p530, %s527, 15
      %s532 = smul.addr %s531, 2
      %s533 = smul.addr %s529, 32
      %s534 = sadd.s32 %s532, %s533
      %s535 = smul.addr %s534, 8
      %s536 = scalar_lea.vmem %s4, %s535
      %p537 = pneg %p192
      %p538 = pneg %p189
      %s539 = smul.u32 %s26, 16
      %s540 = sadd.s32 %s539, 16
      %p541 = scmp.lt.s32.totalorder %s540, 15
      %s542 = scalar_select %p541, %s540, 15
      %p543 = scmp.lt.s32.totalorder %s25, 1
      %s544 = scalar_select %p543, %s25, 1
      %p545 = scmp.lt.s32.totalorder %s542, 15
      %s546 = scalar_select %p545, %s542, 15
      %s547 = smul.addr %s546, 2
      %s548 = smul.addr %s544, 32
      %s549 = sadd.s32 %s547, %s548
      %s550 = smul.addr %s549, 8
      %s551 = scalar_lea.vmem %s5, %s550
      %p552 = pneg %p228
      %p553 = pneg %p225
      %p554 = pneg %p249
      %p555 = pneg %p246
      %p556 = pneg %p277
      %p557 = pneg %p274
      %s558 = sadd.s32 %s25, %s26
      %p559 = scmp.lt.s32.totalorder %s558, 1
      %s560 = scalar_select %p559, %s558, 1
      %s561 = smul.addr %s560, 32
      %s562 = smul.addr %s561, 4
      %s563 = scalar_lea.vmem %s7, %s562
      %p564 = pneg %p305
      %p565 = pneg %p302
      %s566 = sadd.s32 %s25, %s26
      %p567 = scmp.lt.s32.totalorder %s566, 1
      %s568 = scalar_select %p567, %s566, 1
      %s569 = scalar_lea.vmem %s8, %s568
      %p570 = pneg %p333
      %p571 = pneg %p330
      %s572 = sadd.s32 %s25, %s26
      %p573 = scmp.lt.s32.totalorder %s572, 1
      %s574 = scalar_select %p573, %s572, 1
      %s575 = scalar_lea.vmem %s9, %s574
      %s576 = smul.u32 %s26, 16
      %s577 = ssub.s32 %s576, 1
      %p578 = scmp.gt.s32.totalorder %s577, 0
      %s579 = scalar_select %p578, %s577, 0
      %p580 = scmp.lt.s32.totalorder %s25, 1
      %s581 = scalar_select %p580, %s25, 1
      %p582 = scmp.lt.s32.totalorder %s579, 15
      %s583 = scalar_select %p582, %s579, 15
      %s584 = smul.addr %s583, 2
      %s585 = smul.addr %s581, 32
      %s586 = sadd.s32 %s584, %s585
      %s587 = smul.addr %s586, 4
      %s588 = scalar_lea.vmem %s0, %s587
      %s589 = smul.u32 %s26, 16
      %s590 = ssub.s32 %s589, 1
      %p591 = scmp.gt.s32.totalorder %s590, 0
      %s592 = scalar_select %p591, %s590, 0
      %s593 = smul.u32 16, %s26
      %p594 = scmp.lt.s32.totalorder %s25, 1
      %s595 = scalar_select %p594, %s25, 1
      %p596 = scmp.lt.s32.totalorder %s593, 15
      %s597 = scalar_select %p596, %s593, 15
      %s598 = smul.addr %s597, 2
      %s599 = smul.addr %s595, 32
      %s600 = sadd.s32 %s598, %s599
      %s601 = smul.addr %s600, 4
      %s602 = scalar_lea.vmem %s1, %s601
      %s603 = smul.u32 16, %s26
      %s604 = smul.u32 %s26, 16
      %s605 = sadd.s32 %s604, 16
      %p606 = scmp.lt.s32.totalorder %s605, 15
      %s607 = scalar_select %p606, %s605, 15
      %p608 = scmp.lt.s32.totalorder %s25, 1
      %s609 = scalar_select %p608, %s25, 1
      %p610 = scmp.lt.s32.totalorder %s607, 15
      %s611 = scalar_select %p610, %s607, 15
      %s612 = smul.addr %s611, 2
      %s613 = smul.addr %s609, 32
      %s614 = sadd.s32 %s612, %s613
      %s615 = smul.addr %s614, 4
      %s616 = scalar_lea.vmem %s2, %s615
      %s617 = smul.u32 %s26, 16
      %s618 = sadd.s32 %s617, 16
      %p619 = scmp.lt.s32.totalorder %s618, 15
      %s620 = scalar_select %p619, %s618, 15
      %s621 = smul.u32 %s26, 16
      %s622 = ssub.s32 %s621, 1
      %p623 = scmp.gt.s32.totalorder %s622, 0
      %s624 = scalar_select %p623, %s622, 0
      %p625 = scmp.lt.s32.totalorder %s25, 1
      %s626 = scalar_select %p625, %s25, 1
      %p627 = scmp.lt.s32.totalorder %s624, 15
      %s628 = scalar_select %p627, %s624, 15
      %s629 = smul.addr %s628, 2
      %s630 = smul.addr %s626, 32
      %s631 = sadd.s32 %s629, %s630
      %s632 = smul.addr %s631, 8
      %s633 = scalar_lea.vmem %s3, %s632
      %s634 = smul.u32 %s26, 16
      %s635 = ssub.s32 %s634, 1
      %p636 = scmp.gt.s32.totalorder %s635, 0
      %s637 = scalar_select %p636, %s635, 0
      %s638 = smul.u32 16, %s26
      %p639 = scmp.lt.s32.totalorder %s25, 1
      %s640 = scalar_select %p639, %s25, 1
      %p641 = scmp.lt.s32.totalorder %s638, 15
      %s642 = scalar_select %p641, %s638, 15
      %s643 = smul.addr %s642, 2
      %s644 = smul.addr %s640, 32
      %s645 = sadd.s32 %s643, %s644
      %s646 = smul.addr %s645, 8
      %s647 = scalar_lea.vmem %s4, %s646
      %s648 = smul.u32 16, %s26
      %s649 = smul.u32 %s26, 16
      %s650 = sadd.s32 %s649, 16
      %p651 = scmp.lt.s32.totalorder %s650, 15
      %s652 = scalar_select %p651, %s650, 15
      %p653 = scmp.lt.s32.totalorder %s25, 1
      %s654 = scalar_select %p653, %s25, 1
      %p655 = scmp.lt.s32.totalorder %s652, 15
      %s656 = scalar_select %p655, %s652, 15
      %s657 = smul.addr %s656, 2
      %s658 = smul.addr %s654, 32
      %s659 = sadd.s32 %s657, %s658
      %s660 = smul.addr %s659, 8
      %s661 = scalar_lea.vmem %s5, %s660
      %s662 = smul.u32 %s26, 16
      %s663 = sadd.s32 %s662, 16
      %p664 = scmp.lt.s32.totalorder %s663, 15
      %s665 = scalar_select %p664, %s663, 15
      %s666 = sadd.s32 %s25, %s26
      %p667 = scmp.lt.s32.totalorder %s666, 1
      %s668 = scalar_select %p667, %s666, 1
      %s669 = smul.addr %s668, 32
      %s670 = smul.addr %s669, 4
      %s671 = scalar_lea.vmem %s7, %s670
      %s672 = sadd.s32 %s25, %s26
      %s673 = sadd.s32 %s25, %s26
      %p674 = scmp.lt.s32.totalorder %s673, 1
      %s675 = scalar_select %p674, %s673, 1
      %s676 = scalar_lea.vmem %s8, %s675
      %s677 = sadd.s32 %s25, %s26
      %s678 = sadd.s32 %s25, %s26
      %p679 = scmp.lt.s32.totalorder %s678, 1
      %s680 = scalar_select %p679, %s678, 1
      %s681 = scalar_lea.vmem %s9, %s680
      %s682 = sadd.s32 %s25, %s26
      %p684 = scmp.gt.s32.totalorder %s26, 0
      %s685 = scalar_select %p684, 1, 0
      %s686 = scvt.s32.f32 %s685
      %p688 = scmp.ne.f32.partialorder %s686, %s686
      %s689 = sshrl.u32 %s686, 16
      %s690 = sand.u32 %s689, 1
      %s691 = sadd.s32 32767, %s690
      %s692 = sadd.s32 %s686, %s691
      %s693 = sand.u32 %s692, 4294901760
      %s694 = scalar_select %p688, 2143289344, %s693
      %s696 = sshrl.u32 %s694, 16
      %p697 = scmp.lt.s32.totalorder %s26, 0
      %s698 = scalar_select %p697, 1, 0
      %s699 = scvt.s32.f32 %s698
      %p701 = scmp.ne.f32.partialorder %s699, %s699
      %s702 = sshrl.u32 %s699, 16
      %s703 = sand.u32 %s702, 1
      %s704 = sadd.s32 32767, %s703
      %s705 = sadd.s32 %s699, %s704
      %s706 = sand.u32 %s705, 4294901760
      %s707 = scalar_select %p701, 2143289344, %s706
      %s709 = sshrl.u32 %s707, 16
      %v710 = vld [vmem:[%s602] sm:$0xf]
      %v711 = vld [vmem:[%s602 + $0x4] sm:$0xf]
      %v712 = vld [vmem:[%s602 + $0x8] sm:$0xf]
      %v713 = vld [vmem:[%s602 + $0xc] sm:$0xf]
      %v714 = vld [vmem:[%s602 + $0x10] sm:$0xf]
      %v715 = vld [vmem:[%s602 + $0x14] sm:$0xf]
      %v716 = vld [vmem:[%s602 + $0x18] sm:$0xf]
      %v717 = vld [vmem:[%s602 + $0x1c] sm:$0xf]
      %v718 = vld [vmem:[%s602 + $0x20] sm:$0xf]
      %v719 = vld [vmem:[%s602 + $0x24] sm:$0xf]
      %v720 = vld [vmem:[%s602 + $0x28] sm:$0xf]
      %v721 = vld [vmem:[%s602 + $0x2c] sm:$0xf]
      %v722 = vld [vmem:[%s602 + $0x30] sm:$0xf]
      %v723 = vld [vmem:[%s602 + $0x34] sm:$0xf]
      %v724 = vld [vmem:[%s602 + $0x38] sm:$0xf]
      %v725 = vld [vmem:[%s602 + $0x3c] sm:$0xf]
      %v726 = vld [vmem:[%s602 + $0x40] sm:$0xf]
      %v727 = vld [vmem:[%s602 + $0x44] sm:$0xf]
      %v728 = vld [vmem:[%s602 + $0x48] sm:$0xf]
      %v729 = vld [vmem:[%s602 + $0x4c] sm:$0xf]
      %v730 = vld [vmem:[%s602 + $0x50] sm:$0xf]
      %v731 = vld [vmem:[%s602 + $0x54] sm:$0xf]
      %v732 = vld [vmem:[%s602 + $0x58] sm:$0xf]
      %v733 = vld [vmem:[%s602 + $0x5c] sm:$0xf]
      %v734 = vld [vmem:[%s602 + $0x60] sm:$0xf]
      %v735 = vld [vmem:[%s602 + $0x64] sm:$0xf]
      %v736 = vld [vmem:[%s602 + $0x68] sm:$0xf]
      %v737 = vld [vmem:[%s602 + $0x6c] sm:$0xf]
      %v738 = vld [vmem:[%s602 + $0x70] sm:$0xf]
      %v739 = vld [vmem:[%s602 + $0x74] sm:$0xf]
      %v740 = vld [vmem:[%s602 + $0x78] sm:$0xf]
      %v741 = vld [vmem:[%s602 + $0x7c] sm:$0xf]
      %v742 = vld [vmem:[%s588] sm:$0xf]
      %v743 = vld [vmem:[%s588 + $0x4] sm:$0xf]
      %s744 = sshll.u32 %s696, 16
      %s745 = sor.u32 %s696, %s744
      %v746 = vstv %s745
      %v748 = vmul.bf16 %v742, %v746
      %v749 = vmul.bf16 %v743, %v746
      %v750 = vld [vmem:[%s616] sm:$0xf]
      %v751 = vld [vmem:[%s616 + $0x4] sm:$0xf]
      %s752 = sshll.u32 %s709, 16
      %s753 = sor.u32 %s709, %s752
      %v754 = vstv %s753
      %v756 = vmul.bf16 %v750, %v754
      %v757 = vmul.bf16 %v751, %v754
      %v790 = vunpack.c.l.b16 %v748
      %v791 = vunpack.c.l.b16 %v749
      %v792 = vunpack.c.l.b16 %v710
      %v793 = vunpack.c.l.b16 %v711
      %v794 = vunpack.c.l.b16 %v712
      %v795 = vunpack.c.l.b16 %v713
      %v796 = vunpack.c.l.b16 %v714
      %v797 = vunpack.c.l.b16 %v715
      %v798 = vunpack.c.l.b16 %v716
      %v799 = vunpack.c.l.b16 %v717
      %v800 = vunpack.c.l.b16 %v718
      %v801 = vunpack.c.l.b16 %v719
      %v802 = vunpack.c.l.b16 %v720
      %v803 = vunpack.c.l.b16 %v721
      %v804 = vunpack.c.l.b16 %v722
      %v805 = vunpack.c.l.b16 %v723
      %v806 = vunpack.c.l.b16 %v724
      %v807 = vunpack.c.l.b16 %v725
      %v808 = vunpack.c.l.b16 %v726
      %v809 = vunpack.c.l.b16 %v727
      %v810 = vunpack.c.l.b16 %v728
      %v811 = vunpack.c.l.b16 %v729
      %v812 = vunpack.c.l.b16 %v730
      %v813 = vunpack.c.l.b16 %v731
      %v814 = vunpack.c.l.b16 %v732
      %v815 = vunpack.c.l.b16 %v733
      %v816 = vunpack.c.l.b16 %v734
      %v817 = vunpack.c.l.b16 %v735
      %v818 = vunpack.c.l.b16 %v736
      %v819 = vunpack.c.l.b16 %v737
      %v820 = vunpack.c.l.b16 %v738
      %v821 = vunpack.c.l.b16 %v739
      %v822 = vpack.c.b16 %v791, %v790
      %v823 = vpack.c.b16 %v793, %v792
      %v824 = vpack.c.b16 %v795, %v794
      %v825 = vpack.c.b16 %v797, %v796
      %v826 = vpack.c.b16 %v799, %v798
      %v827 = vpack.c.b16 %v801, %v800
      %v828 = vpack.c.b16 %v803, %v802
      %v829 = vpack.c.b16 %v805, %v804
      %v830 = vpack.c.b16 %v807, %v806
      %v831 = vpack.c.b16 %v809, %v808
      %v832 = vpack.c.b16 %v811, %v810
      %v833 = vpack.c.b16 %v813, %v812
      %v834 = vpack.c.b16 %v815, %v814
      %v835 = vpack.c.b16 %v817, %v816
      %v836 = vpack.c.b16 %v819, %v818
      %v837 = vpack.c.b16 %v821, %v820
      %v839 = vshrl.u32 %v822, 16
      %v841 = vrot.slane %v839, 7
      %v842 = vshll.u32 %v822, 16
      %v844 = vor.u32 %v841, %v842
      %v846 = vshrl.u32 %v823, 16
      %v848 = vrot.slane %v846, 7
      %v849 = vshll.u32 %v823, 16
      %v851 = vor.u32 %v848, %v849
      %v853 = vshrl.u32 %v824, 16
      %v855 = vrot.slane %v853, 7
      %v856 = vshll.u32 %v824, 16
      %v858 = vor.u32 %v855, %v856
      %v860 = vshrl.u32 %v825, 16
      %v862 = vrot.slane %v860, 7
      %v863 = vshll.u32 %v825, 16
      %v865 = vor.u32 %v862, %v863
      %v867 = vshrl.u32 %v826, 16
      %v869 = vrot.slane %v867, 7
      %v870 = vshll.u32 %v826, 16
      %v872 = vor.u32 %v869, %v870
      %v874 = vshrl.u32 %v827, 16
      %v876 = vrot.slane %v874, 7
      %v877 = vshll.u32 %v827, 16
      %v879 = vor.u32 %v876, %v877
      %v881 = vshrl.u32 %v828, 16
      %v883 = vrot.slane %v881, 7
      %v884 = vshll.u32 %v828, 16
      %v886 = vor.u32 %v883, %v884
      %v888 = vshrl.u32 %v829, 16
      %v890 = vrot.slane %v888, 7
      %v891 = vshll.u32 %v829, 16
      %v893 = vor.u32 %v890, %v891
      %v895 = vshrl.u32 %v830, 16
      %v897 = vrot.slane %v895, 7
      %v898 = vshll.u32 %v830, 16
      %v900 = vor.u32 %v897, %v898
      %v902 = vshrl.u32 %v831, 16
      %v904 = vrot.slane %v902, 7
      %v905 = vshll.u32 %v831, 16
      %v907 = vor.u32 %v904, %v905
      %v909 = vshrl.u32 %v832, 16
      %v911 = vrot.slane %v909, 7
      %v912 = vshll.u32 %v832, 16
      %v914 = vor.u32 %v911, %v912
      %v916 = vshrl.u32 %v833, 16
      %v918 = vrot.slane %v916, 7
      %v919 = vshll.u32 %v833, 16
      %v921 = vor.u32 %v918, %v919
      %v923 = vshrl.u32 %v834, 16
      %v925 = vrot.slane %v923, 7
      %v926 = vshll.u32 %v834, 16
      %v928 = vor.u32 %v925, %v926
      %v930 = vshrl.u32 %v835, 16
      %v932 = vrot.slane %v930, 7
      %v933 = vshll.u32 %v835, 16
      %v935 = vor.u32 %v932, %v933
      %v937 = vshrl.u32 %v836, 16
      %v939 = vrot.slane %v937, 7
      %v940 = vshll.u32 %v836, 16
      %v942 = vor.u32 %v939, %v940
      %v944 = vshrl.u32 %v837, 16
      %v946 = vrot.slane %v944, 7
      %v947 = vshll.u32 %v837, 16
      %v949 = vor.u32 %v946, %v947
      %vm966 = vcmask 1040384
      %vm967 = vsmask.f32 256
      %vm968 = vmand %vm966, %vm967
      %v969 = vsel %vm968, 0, %v844
      %v970 = vsel %vm968, 0, %v851
      %v971 = vsel %vm968, 0, %v858
      %v972 = vsel %vm968, 0, %v865
      %v973 = vsel %vm968, 0, %v872
      %v974 = vsel %vm968, 0, %v879
      %v975 = vsel %vm968, 0, %v886
      %v976 = vsel %vm968, 0, %v893
      %v977 = vsel %vm968, 0, %v900
      %v978 = vsel %vm968, 0, %v907
      %v979 = vsel %vm968, 0, %v914
      %v980 = vsel %vm968, 0, %v921
      %v981 = vsel %vm968, 0, %v928
      %v982 = vsel %vm968, 0, %v935
      %v983 = vsel %vm968, 0, %v942
      %v984 = vsel %vm968, 0, %v949
      %v985 = vrot.slane %v842, 1
      %v986 = vor.u32 %v839, %v985
      %v987 = vrot.slane %v849, 1
      %v988 = vor.u32 %v846, %v987
      %v989 = vrot.slane %v856, 1
      %v990 = vor.u32 %v853, %v989
      %v991 = vrot.slane %v863, 1
      %v992 = vor.u32 %v860, %v991
      %v993 = vrot.slane %v870, 1
      %v994 = vor.u32 %v867, %v993
      %v995 = vrot.slane %v877, 1
      %v996 = vor.u32 %v874, %v995
      %v997 = vrot.slane %v884, 1
      %v998 = vor.u32 %v881, %v997
      %v999 = vrot.slane %v891, 1
      %v1000 = vor.u32 %v888, %v999
      %v1001 = vrot.slane %v898, 1
      %v1002 = vor.u32 %v895, %v1001
      %v1003 = vrot.slane %v905, 1
      %v1004 = vor.u32 %v902, %v1003
      %v1005 = vrot.slane %v912, 1
      %v1006 = vor.u32 %v909, %v1005
      %v1007 = vrot.slane %v919, 1
      %v1008 = vor.u32 %v916, %v1007
      %v1009 = vrot.slane %v926, 1
      %v1010 = vor.u32 %v923, %v1009
      %v1011 = vrot.slane %v933, 1
      %v1012 = vor.u32 %v930, %v1011
      %v1013 = vrot.slane %v940, 1
      %v1014 = vor.u32 %v937, %v1013
      %v1015 = vrot.slane %v947, 1
      %v1016 = vor.u32 %v944, %v1015
      %vm1033 = vcmask 1047552
      %vm1034 = vsmask.f32 7424
      %vm1035 = vmand %vm1033, %vm1034
      %v1036 = vsel %vm1035, %v986, 0
      %v1037 = vsel %vm1035, %v988, 0
      %v1038 = vsel %vm1035, %v990, 0
      %v1039 = vsel %vm1035, %v992, 0
      %v1040 = vsel %vm1035, %v994, 0
      %v1041 = vsel %vm1035, %v996, 0
      %v1042 = vsel %vm1035, %v998, 0
      %v1043 = vsel %vm1035, %v1000, 0
      %v1044 = vsel %vm1035, %v1002, 0
      %v1045 = vsel %vm1035, %v1004, 0
      %v1046 = vsel %vm1035, %v1006, 0
      %v1047 = vsel %vm1035, %v1008, 0
      %v1048 = vsel %vm1035, %v1010, 0
      %v1049 = vsel %vm1035, %v1012, 0
      %v1050 = vsel %vm1035, %v1014, 0
      %v1051 = vsel %vm1035, %v1016, 0
      %vm1052 = vcmask 31744
      %1053 = vst.msk [vmem:[#allocation2] sm:$0xff] %vm1052, %v969
      %1054 = vst.msk [vmem:[#allocation2 + $0x8] sm:$0xff] %vm1052, %v970
      %1055 = vst.msk [vmem:[#allocation2 + $0x10] sm:$0xff] %vm1052, %v971
      %1056 = vst.msk [vmem:[#allocation2 + $0x18] sm:$0xff] %vm1052, %v972
      %1057 = vst.msk [vmem:[#allocation2 + $0x20] sm:$0xff] %vm1052, %v973
      %1058 = vst.msk [vmem:[#allocation2 + $0x28] sm:$0xff] %vm1052, %v974
      %1059 = vst.msk [vmem:[#allocation2 + $0x30] sm:$0xff] %vm1052, %v975
      %1060 = vst.msk [vmem:[#allocation2 + $0x38] sm:$0xff] %vm1052, %v976
      %1061 = vst.msk [vmem:[#allocation2 + $0x40] sm:$0xff] %vm1052, %v977
      %1062 = vst.msk [vmem:[#allocation2 + $0x48] sm:$0xff] %vm1052, %v978
      %1063 = vst.msk [vmem:[#allocation2 + $0x50] sm:$0xff] %vm1052, %v979
      %1064 = vst.msk [vmem:[#allocation2 + $0x58] sm:$0xff] %vm1052, %v980
      %1065 = vst.msk [vmem:[#allocation2 + $0x60] sm:$0xff] %vm1052, %v981
      %1066 = vst.msk [vmem:[#allocation2 + $0x68] sm:$0xff] %vm1052, %v982
      %1067 = vst.msk [vmem:[#allocation2 + $0x70] sm:$0xff] %vm1052, %v983
      %1068 = vst.msk [vmem:[#allocation2 + $0x78] sm:$0xff] %vm1052, %v984
      %1069 = vrot.lane.b32.xlu0 %v822, 4
      %v1070 = vpop.permute.xlu0 %1069
      %1071 = vrot.lane.b32.xlu0 %v823, 4
      %v1072 = vpop.permute.xlu0 %1071
      %1073 = vrot.lane.b32.xlu0 %v824, 4
      %v1074 = vpop.permute.xlu0 %1073
      %1075 = vrot.lane.b32.xlu0 %v825, 4
      %v1076 = vpop.permute.xlu0 %1075
      %1077 = vrot.lane.b32.xlu0 %v826, 4
      %v1078 = vpop.permute.xlu0 %1077
      %1079 = vrot.lane.b32.xlu0 %v827, 4
      %v1080 = vpop.permute.xlu0 %1079
      %1081 = vrot.lane.b32.xlu0 %v828, 4
      %v1082 = vpop.permute.xlu0 %1081
      %1083 = vrot.lane.b32.xlu0 %v829, 4
      %v1084 = vpop.permute.xlu0 %1083
      %1085 = vrot.lane.b32.xlu0 %v830, 4
      %v1086 = vpop.permute.xlu0 %1085
      %1087 = vrot.lane.b32.xlu0 %v831, 4
      %v1088 = vpop.permute.xlu0 %1087
      %1089 = vrot.lane.b32.xlu0 %v832, 4
      %v1090 = vpop.permute.xlu0 %1089
      %1091 = vrot.lane.b32.xlu0 %v833, 4
      %v1092 = vpop.permute.xlu0 %1091
      %1093 = vrot.lane.b32.xlu0 %v834, 4
      %v1094 = vpop.permute.xlu0 %1093
      %1095 = vrot.lane.b32.xlu0 %v835, 4
      %v1096 = vpop.permute.xlu0 %1095
      %1097 = vrot.lane.b32.xlu0 %v836, 4
      %v1098 = vpop.permute.xlu0 %1097
      %1099 = vrot.lane.b32.xlu0 %v837, 4
      %v1100 = vpop.permute.xlu0 %1099
      %vm1117 = vcmask 64544
      %1118 = vst.msk [vmem:[#allocation2] sm:$0xff] %vm1117, %v1070
      %1119 = vst.msk [vmem:[#allocation2 + $0x8] sm:$0xff] %vm1117, %v1072
      %1120 = vst.msk [vmem:[#allocation2 + $0x10] sm:$0xff] %vm1117, %v1074
      %1121 = vst.msk [vmem:[#allocation2 + $0x18] sm:$0xff] %vm1117, %v1076
      %1122 = vst.msk [vmem:[#allocation2 + $0x20] sm:$0xff] %vm1117, %v1078
      %1123 = vst.msk [vmem:[#allocation2 + $0x28] sm:$0xff] %vm1117, %v1080
      %1124 = vst.msk [vmem:[#allocation2 + $0x30] sm:$0xff] %vm1117, %v1082
      %1125 = vst.msk [vmem:[#allocation2 + $0x38] sm:$0xff] %vm1117, %v1084
      %1126 = vst.msk [vmem:[#allocation2 + $0x40] sm:$0xff] %vm1117, %v1086
      %1127 = vst.msk [vmem:[#allocation2 + $0x48] sm:$0xff] %vm1117, %v1088
      %1128 = vst.msk [vmem:[#allocation2 + $0x50] sm:$0xff] %vm1117, %v1090
      %1129 = vst.msk [vmem:[#allocation2 + $0x58] sm:$0xff] %vm1117, %v1092
      %1130 = vst.msk [vmem:[#allocation2 + $0x60] sm:$0xff] %vm1117, %v1094
      %1131 = vst.msk [vmem:[#allocation2 + $0x68] sm:$0xff] %vm1117, %v1096
      %1132 = vst.msk [vmem:[#allocation2 + $0x70] sm:$0xff] %vm1117, %v1098
      %1133 = vst.msk [vmem:[#allocation2 + $0x78] sm:$0xff] %vm1117, %v1100
      %1150 = vrot.lane.b32.xlu0 %v1036, 8
      %v1151 = vpop.permute.xlu0 %1150
      %1152 = vrot.lane.b32.xlu0 %v1037, 8
      %v1153 = vpop.permute.xlu0 %1152
      %1154 = vrot.lane.b32.xlu0 %v1038, 8
      %v1155 = vpop.permute.xlu0 %1154
      %1156 = vrot.lane.b32.xlu0 %v1039, 8
      %v1157 = vpop.permute.xlu0 %1156
      %1158 = vrot.lane.b32.xlu0 %v1040, 8
      %v1159 = vpop.permute.xlu0 %1158
      %1160 = vrot.lane.b32.xlu0 %v1041, 8
      %v1161 = vpop.permute.xlu0 %1160
      %1162 = vrot.lane.b32.xlu0 %v1042, 8
      %v1163 = vpop.permute.xlu0 %1162
      %1164 = vrot.lane.b32.xlu0 %v1043, 8
      %v1165 = vpop.permute.xlu0 %1164
      %1166 = vrot.lane.b32.xlu0 %v1044, 8
      %v1167 = vpop.permute.xlu0 %1166
      %1168 = vrot.lane.b32.xlu0 %v1045, 8
      %v1169 = vpop.permute.xlu0 %1168
      %1170 = vrot.lane.b32.xlu0 %v1046, 8
      %v1171 = vpop.permute.xlu0 %1170
      %1172 = vrot.lane.b32.xlu0 %v1047, 8
      %v1173 = vpop.permute.xlu0 %1172
      %1174 = vrot.lane.b32.xlu0 %v1048, 8
      %v1175 = vpop.permute.xlu0 %1174
      %1176 = vrot.lane.b32.xlu0 %v1049, 8
      %v1177 = vpop.permute.xlu0 %1176
      %1178 = vrot.lane.b32.xlu0 %v1050, 8
      %v1179 = vpop.permute.xlu0 %1178
      %1180 = vrot.lane.b32.xlu0 %v1051, 8
      %v1181 = vpop.permute.xlu0 %1180
      %vm1198 = vcmask 97344
      %1199 = vst.msk [vmem:[#allocation2] sm:$0xff] %vm1198, %v1151
      %1200 = vst.msk [vmem:[#allocation2 + $0x8] sm:$0xff] %vm1198, %v1153
      %1201 = vst.msk [vmem:[#allocation2 + $0x10] sm:$0xff] %vm1198, %v1155
      %1202 = vst.msk [vmem:[#allocation2 + $0x18] sm:$0xff] %vm1198, %v1157
      %1203 = vst.msk [vmem:[#allocation2 + $0x20] sm:$0xff] %vm1198, %v1159
      %1204 = vst.msk [vmem:[#allocation2 + $0x28] sm:$0xff] %vm1198, %v1161
      %1205 = vst.msk [vmem:[#allocation2 + $0x30] sm:$0xff] %vm1198, %v1163
      %1206 = vst.msk [vmem:[#allocation2 + $0x38] sm:$0xff] %vm1198, %v1165
      %1207 = vst.msk [vmem:[#allocation2 + $0x40] sm:$0xff] %vm1198, %v1167
      %1208 = vst.msk [vmem:[#allocation2 + $0x48] sm:$0xff] %vm1198, %v1169
      %1209 = vst.msk [vmem:[#allocation2 + $0x50] sm:$0xff] %vm1198, %v1171
      %1210 = vst.msk [vmem:[#allocation2 + $0x58] sm:$0xff] %vm1198, %v1173
      %1211 = vst.msk [vmem:[#allocation2 + $0x60] sm:$0xff] %vm1198, %v1175
      %1212 = vst.msk [vmem:[#allocation2 + $0x68] sm:$0xff] %vm1198, %v1177
      %1213 = vst.msk [vmem:[#allocation2 + $0x70] sm:$0xff] %vm1198, %v1179
      %1214 = vst.msk [vmem:[#allocation2 + $0x78] sm:$0xff] %vm1198, %v1181
      %v1217 = vunpack.c.l.b16 %v740
      %v1218 = vunpack.c.l.b16 %v741
      %v1219 = vpack.c.b16 %v1218, %v1217
      %v1221 = vshrl.u32 %v1219, 16
      %v1223 = vrot.slane %v1221, 7
      %v1224 = vshll.u32 %v1219, 16
      %v1226 = vor.u32 %v1223, %v1224
      %v1228 = vsel %vm968, 0, %v1226
      %v1229 = vrot.slane %v1224, 1
      %v1230 = vor.u32 %v1221, %v1229
      %v1232 = vsel %vm1035, %v1230, 0
      %1249 = vrot.lane.b32.xlu0 %v970, 12
      %v1250 = vpop.permute.xlu0 %1249
      %1251 = vrot.lane.b32.xlu0 %v971, 12
      %v1252 = vpop.permute.xlu0 %1251
      %1253 = vrot.lane.b32.xlu0 %v972, 12
      %v1254 = vpop.permute.xlu0 %1253
      %1255 = vrot.lane.b32.xlu0 %v973, 12
      %v1256 = vpop.permute.xlu0 %1255
      %1257 = vrot.lane.b32.xlu0 %v974, 12
      %v1258 = vpop.permute.xlu0 %1257
      %1259 = vrot.lane.b32.xlu0 %v975, 12
      %v1260 = vpop.permute.xlu0 %1259
      %1261 = vrot.lane.b32.xlu0 %v976, 12
      %v1262 = vpop.permute.xlu0 %1261
      %1263 = vrot.lane.b32.xlu0 %v977, 12
      %v1264 = vpop.permute.xlu0 %1263
      %1265 = vrot.lane.b32.xlu0 %v978, 12
      %v1266 = vpop.permute.xlu0 %1265
      %1267 = vrot.lane.b32.xlu0 %v979, 12
      %v1268 = vpop.permute.xlu0 %1267
      %1269 = vrot.lane.b32.xlu0 %v980, 12
      %v1270 = vpop.permute.xlu0 %1269
      %1271 = vrot.lane.b32.xlu0 %v981, 12
      %v1272 = vpop.permute.xlu0 %1271
      %1273 = vrot.lane.b32.xlu0 %v982, 12
      %v1274 = vpop.permute.xlu0 %1273
      %1275 = vrot.lane.b32.xlu0 %v983, 12
      %v1276 = vpop.permute.xlu0 %1275
      %1277 = vrot.lane.b32.xlu0 %v984, 12
      %v1278 = vpop.permute.xlu0 %1277
      %1279 = vrot.lane.b32.xlu0 %v1228, 12
      %v1280 = vpop.permute.xlu0 %1279
      %vm1297 = vcmask 130144
      %1298 = vst.msk [vmem:[#allocation2] sm:$0xff] %vm1297, %v1250
      %1299 = vst.msk [vmem:[#allocation2 + $0x8] sm:$0xff] %vm1297, %v1252
      %1300 = vst.msk [vmem:[#allocation2 + $0x10] sm:$0xff] %vm1297, %v1254
      %1301 = vst.msk [vmem:[#allocation2 + $0x18] sm:$0xff] %vm1297, %v1256
      %1302 = vst.msk [vmem:[#allocation2 + $0x20] sm:$0xff] %vm1297, %v1258
      %1303 = vst.msk [vmem:[#allocation2 + $0x28] sm:$0xff] %vm1297, %v1260
      %1304 = vst.msk [vmem:[#allocation2 + $0x30] sm:$0xff] %vm1297, %v1262
      %1305 = vst.msk [vmem:[#allocation2 + $0x38] sm:$0xff] %vm1297, %v1264
      %1306 = vst.msk [vmem:[#allocation2 + $0x40] sm:$0xff] %vm1297, %v1266
      %1307 = vst.msk [vmem:[#allocation2 + $0x48] sm:$0xff] %vm1297, %v1268
      %1308 = vst.msk [vmem:[#allocation2 + $0x50] sm:$0xff] %vm1297, %v1270
      %1309 = vst.msk [vmem:[#allocation2 + $0x58] sm:$0xff] %vm1297, %v1272
      %1310 = vst.msk [vmem:[#allocation2 + $0x60] sm:$0xff] %vm1297, %v1274
      %1311 = vst.msk [vmem:[#allocation2 + $0x68] sm:$0xff] %vm1297, %v1276
      %1312 = vst.msk [vmem:[#allocation2 + $0x70] sm:$0xff] %vm1297, %v1278
      %1313 = vst.msk [vmem:[#allocation2 + $0x78] sm:$0xff] %vm1297, %v1280
      %1314 = vrot.lane.b32.xlu0 %v823, 16
      %v1315 = vpop.permute.xlu0 %1314
      %1316 = vrot.lane.b32.xlu0 %v824, 16
      %v1317 = vpop.permute.xlu0 %1316
      %1318 = vrot.lane.b32.xlu0 %v825, 16
      %v1319 = vpop.permute.xlu0 %1318
      %1320 = vrot.lane.b32.xlu0 %v826, 16
      %v1321 = vpop.permute.xlu0 %1320
      %1322 = vrot.lane.b32.xlu0 %v827, 16
      %v1323 = vpop.permute.xlu0 %1322
      %1324 = vrot.lane.b32.xlu0 %v828, 16
      %v1325 = vpop.permute.xlu0 %1324
      %1326 = vrot.lane.b32.xlu0 %v829, 16
      %v1327 = vpop.permute.xlu0 %1326
      %1328 = vrot.lane.b32.xlu0 %v830, 16
      %v1329 = vpop.permute.xlu0 %1328
      %1330 = vrot.lane.b32.xlu0 %v831, 16
      %v1331 = vpop.permute.xlu0 %1330
      %1332 = vrot.lane.b32.xlu0 %v832, 16
      %v1333 = vpop.permute.xlu0 %1332
      %1334 = vrot.lane.b32.xlu0 %v833, 16
      %v1335 = vpop.permute.xlu0 %1334
      %1336 = vrot.lane.b32.xlu0 %v834, 16
      %v1337 = vpop.permute.xlu0 %1336
      %1338 = vrot.lane.b32.xlu0 %v835, 16
      %v1339 = vpop.permute.xlu0 %1338
      %1340 = vrot.lane.b32.xlu0 %v836, 16
      %v1341 = vpop.permute.xlu0 %1340
      %1342 = vrot.lane.b32.xlu0 %v837, 16
      %v1343 = vpop.permute.xlu0 %1342
      %1344 = vrot.lane.b32.xlu0 %v1219, 16
      %v1345 = vpop.permute.xlu0 %1344
      %vm1362 = vcmask 162944
      %1363 = vst.msk [vmem:[#allocation2] sm:$0xff] %vm1362, %v1315
      %1364 = vst.msk [vmem:[#allocation2 + $0x8] sm:$0xff] %vm1362, %v1317
      %1365 = vst.msk [vmem:[#allocation2 + $0x10] sm:$0xff] %vm1362, %v1319
      %1366 = vst.msk [vmem:[#allocation2 + $0x18] sm:$0xff] %vm1362, %v1321
      %1367 = vst.msk [vmem:[#allocation2 + $0x20] sm:$0xff] %vm1362, %v1323
      %1368 = vst.msk [vmem:[#allocation2 + $0x28] sm:$0xff] %vm1362, %v1325
      %1369 = vst.msk [vmem:[#allocation2 + $0x30] sm:$0xff] %vm1362, %v1327
      %1370 = vst.msk [vmem:[#allocation2 + $0x38] sm:$0xff] %vm1362, %v1329
      %1371 = vst.msk [vmem:[#allocation2 + $0x40] sm:$0xff] %vm1362, %v1331
      %1372 = vst.msk [vmem:[#allocation2 + $0x48] sm:$0xff] %vm1362, %v1333
      %1373 = vst.msk [vmem:[#allocation2 + $0x50] sm:$0xff] %vm1362, %v1335
      %1374 = vst.msk [vmem:[#allocation2 + $0x58] sm:$0xff] %vm1362, %v1337
      %1375 = vst.msk [vmem:[#allocation2 + $0x60] sm:$0xff] %vm1362, %v1339
      %1376 = vst.msk [vmem:[#allocation2 + $0x68] sm:$0xff] %vm1362, %v1341
      %1377 = vst.msk [vmem:[#allocation2 + $0x70] sm:$0xff] %vm1362, %v1343
      %1378 = vst.msk [vmem:[#allocation2 + $0x78] sm:$0xff] %vm1362, %v1345
      %1380 = vrot.lane.b32.xlu0 %v1037, 20
      %v1381 = vpop.permute.xlu0 %1380
      %1382 = vrot.lane.b32.xlu0 %v1038, 20
      %v1383 = vpop.permute.xlu0 %1382
      %1384 = vrot.lane.b32.xlu0 %v1039, 20
      %v1385 = vpop.permute.xlu0 %1384
      %1386 = vrot.lane.b32.xlu0 %v1040, 20
      %v1387 = vpop.permute.xlu0 %1386
      %1388 = vrot.lane.b32.xlu0 %v1041, 20
      %v1389 = vpop.permute.xlu0 %1388
      %1390 = vrot.lane.b32.xlu0 %v1042, 20
      %v1391 = vpop.permute.xlu0 %1390
      %1392 = vrot.lane.b32.xlu0 %v1043, 20
      %v1393 = vpop.permute.xlu0 %1392
      %1394 = vrot.lane.b32.xlu0 %v1044, 20
      %v1395 = vpop.permute.xlu0 %1394
      %1396 = vrot.lane.b32.xlu0 %v1045, 20
      %v1397 = vpop.permute.xlu0 %1396
      %1398 = vrot.lane.b32.xlu0 %v1046, 20
      %v1399 = vpop.permute.xlu0 %1398
      %1400 = vrot.lane.b32.xlu0 %v1047, 20
      %v1401 = vpop.permute.xlu0 %1400
      %1402 = vrot.lane.b32.xlu0 %v1048, 20
      %v1403 = vpop.permute.xlu0 %1402
      %1404 = vrot.lane.b32.xlu0 %v1049, 20
      %v1405 = vpop.permute.xlu0 %1404
      %1406 = vrot.lane.b32.xlu0 %v1050, 20
      %v1407 = vpop.permute.xlu0 %1406
      %1408 = vrot.lane.b32.xlu0 %v1051, 20
      %v1409 = vpop.permute.xlu0 %1408
      %1410 = vrot.lane.b32.xlu0 %v1232, 20
      %v1411 = vpop.permute.xlu0 %1410
      %vm1428 = vcmask 195744
      %1429 = vst.msk [vmem:[#allocation2] sm:$0xff] %vm1428, %v1381
      %1430 = vst.msk [vmem:[#allocation2 + $0x8] sm:$0xff] %vm1428, %v1383
      %1431 = vst.msk [vmem:[#allocation2 + $0x10] sm:$0xff] %vm1428, %v1385
      %1432 = vst.msk [vmem:[#allocation2 + $0x18] sm:$0xff] %vm1428, %v1387
      %1433 = vst.msk [vmem:[#allocation2 + $0x20] sm:$0xff] %vm1428, %v1389
      %1434 = vst.msk [vmem:[#allocation2 + $0x28] sm:$0xff] %vm1428, %v1391
      %1435 = vst.msk [vmem:[#allocation2 + $0x30] sm:$0xff] %vm1428, %v1393
      %1436 = vst.msk [vmem:[#allocation2 + $0x38] sm:$0xff] %vm1428, %v1395
      %1437 = vst.msk [vmem:[#allocation2 + $0x40] sm:$0xff] %vm1428, %v1397
      %1438 = vst.msk [vmem:[#allocation2 + $0x48] sm:$0xff] %vm1428, %v1399
      %1439 = vst.msk [vmem:[#allocation2 + $0x50] sm:$0xff] %vm1428, %v1401
      %1440 = vst.msk [vmem:[#allocation2 + $0x58] sm:$0xff] %vm1428, %v1403
      %1441 = vst.msk [vmem:[#allocation2 + $0x60] sm:$0xff] %vm1428, %v1405
      %1442 = vst.msk [vmem:[#allocation2 + $0x68] sm:$0xff] %vm1428, %v1407
      %1443 = vst.msk [vmem:[#allocation2 + $0x70] sm:$0xff] %vm1428, %v1409
      %1444 = vst.msk [vmem:[#allocation2 + $0x78] sm:$0xff] %vm1428, %v1411
      %v1447 = vunpack.c.l.b16 %v756
      %v1448 = vunpack.c.l.b16 %v757
      %v1449 = vpack.c.b16 %v1448, %v1447
      %v1451 = vshrl.u32 %v1449, 16
      %v1453 = vrot.slane %v1451, 7
      %v1454 = vshll.u32 %v1449, 16
      %v1456 = vor.u32 %v1453, %v1454
      %v1458 = vsel %vm968, 0, %v1456
      %v1459 = vrot.slane %v1454, 1
      %v1460 = vor.u32 %v1451, %v1459
      %v1462 = vsel %vm1035, %v1460, 0
      %1464 = vrot.lane.b32.xlu0 %v971, 24
      %v1465 = vpop.permute.xlu0 %1464
      %1466 = vrot.lane.b32.xlu0 %v972, 24
      %v1467 = vpop.permute.xlu0 %1466
      %1468 = vrot.lane.b32.xlu0 %v973, 24
      %v1469 = vpop.permute.xlu0 %1468
      %1470 = vrot.lane.b32.xlu0 %v974, 24
      %v1471 = vpop.permute.xlu0 %1470
      %1472 = vrot.lane.b32.xlu0 %v975, 24
      %v1473 = vpop.permute.xlu0 %1472
      %1474 = vrot.lane.b32.xlu0 %v976, 24
      %v1475 = vpop.permute.xlu0 %1474
      %1476 = vrot.lane.b32.xlu0 %v977, 24
      %v1477 = vpop.permute.xlu0 %1476
      %1478 = vrot.lane.b32.xlu0 %v978, 24
      %v1479 = vpop.permute.xlu0 %1478
      %1480 = vrot.lane.b32.xlu0 %v979, 24
      %v1481 = vpop.permute.xlu0 %1480
      %1482 = vrot.lane.b32.xlu0 %v980, 24
      %v1483 = vpop.permute.xlu0 %1482
      %1484 = vrot.lane.b32.xlu0 %v981, 24
      %v1485 = vpop.permute.xlu0 %1484
      %1486 = vrot.lane.b32.xlu0 %v982, 24
      %v1487 = vpop.permute.xlu0 %1486
      %1488 = vrot.lane.b32.xlu0 %v983, 24
      %v1489 = vpop.permute.xlu0 %1488
      %1490 = vrot.lane.b32.xlu0 %v984, 24
      %v1491 = vpop.permute.xlu0 %1490
      %1492 = vrot.lane.b32.xlu0 %v1228, 24
      %v1493 = vpop.permute.xlu0 %1492
      %1494 = vrot.lane.b32.xlu0 %v1458, 24
      %v1495 = vpop.permute.xlu0 %1494
      %vm1512 = vcmask 228544
      %1513 = vst.msk [vmem:[#allocation2] sm:$0xff] %vm1512, %v1465
      %1514 = vst.msk [vmem:[#allocation2 + $0x8] sm:$0xff] %vm1512, %v1467
      %1515 = vst.msk [vmem:[#allocation2 + $0x10] sm:$0xff] %vm1512, %v1469
      %1516 = vst.msk [vmem:[#allocation2 + $0x18] sm:$0xff] %vm1512, %v1471
      %1517 = vst.msk [vmem:[#allocation2 + $0x20] sm:$0xff] %vm1512, %v1473
      %1518 = vst.msk [vmem:[#allocation2 + $0x28] sm:$0xff] %vm1512, %v1475
      %1519 = vst.msk [vmem:[#allocation2 + $0x30] sm:$0xff] %vm1512, %v1477
      %1520 = vst.msk [vmem:[#allocation2 + $0x38] sm:$0xff] %vm1512, %v1479
      %1521 = vst.msk [vmem:[#allocation2 + $0x40] sm:$0xff] %vm1512, %v1481
      %1522 = vst.msk [vmem:[#allocation2 + $0x48] sm:$0xff] %vm1512, %v1483
      %1523 = vst.msk [vmem:[#allocation2 + $0x50] sm:$0xff] %vm1512, %v1485
      %1524 = vst.msk [vmem:[#allocation2 + $0x58] sm:$0xff] %vm1512, %v1487
      %1525 = vst.msk [vmem:[#allocation2 + $0x60] sm:$0xff] %vm1512, %v1489
      %1526 = vst.msk [vmem:[#allocation2 + $0x68] sm:$0xff] %vm1512, %v1491
      %1527 = vst.msk [vmem:[#allocation2 + $0x70] sm:$0xff] %vm1512, %v1493
      %1528 = vst.msk [vmem:[#allocation2 + $0x78] sm:$0xff] %vm1512, %v1495
      %1529 = vrot.lane.b32.xlu0 %v824, 28
      %v1530 = vpop.permute.xlu0 %1529
      %1531 = vrot.lane.b32.xlu0 %v825, 28
      %v1532 = vpop.permute.xlu0 %1531
      %1533 = vrot.lane.b32.xlu0 %v826, 28
      %v1534 = vpop.permute.xlu0 %1533
      %1535 = vrot.lane.b32.xlu0 %v827, 28
      %v1536 = vpop.permute.xlu0 %1535
      %1537 = vrot.lane.b32.xlu0 %v828, 28
      %v1538 = vpop.permute.xlu0 %1537
      %1539 = vrot.lane.b32.xlu0 %v829, 28
      %v1540 = vpop.permute.xlu0 %1539
      %1541 = vrot.lane.b32.xlu0 %v830, 28
      %v1542 = vpop.permute.xlu0 %1541
      %1543 = vrot.lane.b32.xlu0 %v831, 28
      %v1544 = vpop.permute.xlu0 %1543
      %1545 = vrot.lane.b32.xlu0 %v832, 28
      %v1546 = vpop.permute.xlu0 %1545
      %1547 = vrot.lane.b32.xlu0 %v833, 28
      %v1548 = vpop.permute.xlu0 %1547
      %1549 = vrot.lane.b32.xlu0 %v834, 28
      %v1550 = vpop.permute.xlu0 %1549
      %1551 = vrot.lane.b32.xlu0 %v835, 28
      %v1552 = vpop.permute.xlu0 %1551
      %1553 = vrot.lane.b32.xlu0 %v836, 28
      %v1554 = vpop.permute.xlu0 %1553
      %1555 = vrot.lane.b32.xlu0 %v837, 28
      %v1556 = vpop.permute.xlu0 %1555
      %1557 = vrot.lane.b32.xlu0 %v1219, 28
      %v1558 = vpop.permute.xlu0 %1557
      %1559 = vrot.lane.b32.xlu0 %v1449, 28
      %v1560 = vpop.permute.xlu0 %1559
      %vm1577 = vcmask 261344
      %1578 = vst.msk [vmem:[#allocation2] sm:$0xff] %vm1577, %v1530
      %1579 = vst.msk [vmem:[#allocation2 + $0x8] sm:$0xff] %vm1577, %v1532
      %1580 = vst.msk [vmem:[#allocation2 + $0x10] sm:$0xff] %vm1577, %v1534
      %1581 = vst.msk [vmem:[#allocation2 + $0x18] sm:$0xff] %vm1577, %v1536
      %1582 = vst.msk [vmem:[#allocation2 + $0x20] sm:$0xff] %vm1577, %v1538
      %1583 = vst.msk [vmem:[#allocation2 + $0x28] sm:$0xff] %vm1577, %v1540
      %1584 = vst.msk [vmem:[#allocation2 + $0x30] sm:$0xff] %vm1577, %v1542
      %1585 = vst.msk [vmem:[#allocation2 + $0x38] sm:$0xff] %vm1577, %v1544
      %1586 = vst.msk [vmem:[#allocation2 + $0x40] sm:$0xff] %vm1577, %v1546
      %1587 = vst.msk [vmem:[#allocation2 + $0x48] sm:$0xff] %vm1577, %v1548
      %1588 = vst.msk [vmem:[#allocation2 + $0x50] sm:$0xff] %vm1577, %v1550
      %1589 = vst.msk [vmem:[#allocation2 + $0x58] sm:$0xff] %vm1577, %v1552
      %1590 = vst.msk [vmem:[#allocation2 + $0x60] sm:$0xff] %vm1577, %v1554
      %1591 = vst.msk [vmem:[#allocation2 + $0x68] sm:$0xff] %vm1577, %v1556
      %1592 = vst.msk [vmem:[#allocation2 + $0x70] sm:$0xff] %vm1577, %v1558
      %1593 = vst.msk [vmem:[#allocation2 + $0x78] sm:$0xff] %vm1577, %v1560
      %1595 = vrot.lane.b32.xlu0 %v1038, 32
      %v1596 = vpop.permute.xlu0 %1595
      %1597 = vrot.lane.b32.xlu0 %v1039, 32
      %v1598 = vpop.permute.xlu0 %1597
      %1599 = vrot.lane.b32.xlu0 %v1040, 32
      %v1600 = vpop.permute.xlu0 %1599
      %1601 = vrot.lane.b32.xlu0 %v1041, 32
      %v1602 = vpop.permute.xlu0 %1601
      %1603 = vrot.lane.b32.xlu0 %v1042, 32
      %v1604 = vpop.permute.xlu0 %1603
      %1605 = vrot.lane.b32.xlu0 %v1043, 32
      %v1606 = vpop.permute.xlu0 %1605
      %1607 = vrot.lane.b32.xlu0 %v1044, 32
      %v1608 = vpop.permute.xlu0 %1607
      %1609 = vrot.lane.b32.xlu0 %v1045, 32
      %v1610 = vpop.permute.xlu0 %1609
      %1611 = vrot.lane.b32.xlu0 %v1046, 32
      %v1612 = vpop.permute.xlu0 %1611
      %1613 = vrot.lane.b32.xlu0 %v1047, 32
      %v1614 = vpop.permute.xlu0 %1613
      %1615 = vrot.lane.b32.xlu0 %v1048, 32
      %v1616 = vpop.permute.xlu0 %1615
      %1617 = vrot.lane.b32.xlu0 %v1049, 32
      %v1618 = vpop.permute.xlu0 %1617
      %1619 = vrot.lane.b32.xlu0 %v1050, 32
      %v1620 = vpop.permute.xlu0 %1619
      %1621 = vrot.lane.b32.xlu0 %v1051, 32
      %v1622 = vpop.permute.xlu0 %1621
      %1623 = vrot.lane.b32.xlu0 %v1232, 32
      %v1624 = vpop.permute.xlu0 %1623
      %1625 = vrot.lane.b32.xlu0 %v1462, 32
      %v1626 = vpop.permute.xlu0 %1625
      %vm1643 = vcmask 294144
      %1644 = vst.msk [vmem:[#allocation2] sm:$0xff] %vm1643, %v1596
      %1645 = vst.msk [vmem:[#allocation2 + $0x8] sm:$0xff] %vm1643, %v1598
      %1646 = vst.msk [vmem:[#allocation2 + $0x10] sm:$0xff] %vm1643, %v1600
      %1647 = vst.msk [vmem:[#allocation2 + $0x18] sm:$0xff] %vm1643, %v1602
      %1648 = vst.msk [vmem:[#allocation2 + $0x20] sm:$0xff] %vm1643, %v1604
      %1649 = vst.msk [vmem:[#allocation2 + $0x28] sm:$0xff] %vm1643, %v1606
      %1650 = vst.msk [vmem:[#allocation2 + $0x30] sm:$0xff] %vm1643, %v1608
      %1651 = vst.msk [vmem:[#allocation2 + $0x38] sm:$0xff] %vm1643, %v1610
      %1652 = vst.msk [vmem:[#allocation2 + $0x40] sm:$0xff] %vm1643, %v1612
      %1653 = vst.msk [vmem:[#allocation2 + $0x48] sm:$0xff] %vm1643, %v1614
      %1654 = vst.msk [vmem:[#allocation2 + $0x50] sm:$0xff] %vm1643, %v1616
      %1655 = vst.msk [vmem:[#allocation2 + $0x58] sm:$0xff] %vm1643, %v1618
      %1656 = vst.msk [vmem:[#allocation2 + $0x60] sm:$0xff] %vm1643, %v1620
      %1657 = vst.msk [vmem:[#allocation2 + $0x68] sm:$0xff] %vm1643, %v1622
      %1658 = vst.msk [vmem:[#allocation2 + $0x70] sm:$0xff] %vm1643, %v1624
      %1659 = vst.msk [vmem:[#allocation2 + $0x78] sm:$0xff] %vm1643, %v1626
      %v1660 = vld [vmem:[%s647] sm:$0xff]
      %v1661 = vld [vmem:[%s647 + $0x8] sm:$0xff]
      %v1662 = vld [vmem:[%s647 + $0x10] sm:$0xff]
      %v1663 = vld [vmem:[%s647 + $0x18] sm:$0xff]
      %v1664 = vld [vmem:[%s647 + $0x20] sm:$0xff]
      %v1665 = vld [vmem:[%s647 + $0x28] sm:$0xff]
      %v1666 = vld [vmem:[%s647 + $0x30] sm:$0xff]
      %v1667 = vld [vmem:[%s647 + $0x38] sm:$0xff]
      %v1668 = vld [vmem:[%s647 + $0x40] sm:$0xff]
      %v1669 = vld [vmem:[%s647 + $0x48] sm:$0xff]
      %v1670 = vld [vmem:[%s647 + $0x50] sm:$0xff]
      %v1671 = vld [vmem:[%s647 + $0x58] sm:$0xff]
      %v1672 = vld [vmem:[%s647 + $0x60] sm:$0xff]
      %v1673 = vld [vmem:[%s647 + $0x68] sm:$0xff]
      %v1674 = vld [vmem:[%s647 + $0x70] sm:$0xff]
      %v1675 = vld [vmem:[%s647 + $0x78] sm:$0xff]
      %v1676 = vld [vmem:[%s647 + $0x80] sm:$0xff]
      %v1677 = vld [vmem:[%s647 + $0x88] sm:$0xff]
      %v1678 = vld [vmem:[%s647 + $0x90] sm:$0xff]
      %v1679 = vld [vmem:[%s647 + $0x98] sm:$0xff]
      %v1680 = vld [vmem:[%s647 + $0xa0] sm:$0xff]
      %v1681 = vld [vmem:[%s647 + $0xa8] sm:$0xff]
      %v1682 = vld [vmem:[%s647 + $0xb0] sm:$0xff]
      %v1683 = vld [vmem:[%s647 + $0xb8] sm:$0xff]
      %v1684 = vld [vmem:[%s647 + $0xc0] sm:$0xff]
      %v1685 = vld [vmem:[%s647 + $0xc8] sm:$0xff]
      %v1686 = vld [vmem:[%s647 + $0xd0] sm:$0xff]
      %v1687 = vld [vmem:[%s647 + $0xd8] sm:$0xff]
      %v1688 = vld [vmem:[%s647 + $0xe0] sm:$0xff]
      %v1689 = vld [vmem:[%s647 + $0xe8] sm:$0xff]
      %v1690 = vld [vmem:[%s647 + $0xf0] sm:$0xff]
      %v1691 = vld [vmem:[%s647 + $0xf8] sm:$0xff]
      %v1692 = vpack.c.bf16 %v1661, %v1660
      %v1693 = vpack.c.bf16 %v1663, %v1662
      %v1694 = vpack.c.bf16 %v1665, %v1664
      %v1695 = vpack.c.bf16 %v1667, %v1666
      %v1696 = vpack.c.bf16 %v1669, %v1668
      %v1697 = vpack.c.bf16 %v1671, %v1670
      %v1698 = vpack.c.bf16 %v1673, %v1672
      %v1699 = vpack.c.bf16 %v1675, %v1674
      %v1700 = vpack.c.bf16 %v1677, %v1676
      %v1701 = vpack.c.bf16 %v1679, %v1678
      %v1702 = vpack.c.bf16 %v1681, %v1680
      %v1703 = vpack.c.bf16 %v1683, %v1682
      %v1704 = vpack.c.bf16 %v1685, %v1684
      %v1705 = vpack.c.bf16 %v1687, %v1686
      %v1706 = vpack.c.bf16 %v1689, %v1688
      %v1707 = vpack.c.bf16 %v1691, %v1690
      %v1708 = vld [vmem:[%s633] sm:$0xff]
      %v1709 = vld [vmem:[%s633 + $0x8] sm:$0xff]
      %v1710 = vpack.c.bf16 %v1709, %v1708
      %v1711 = vmul.bf16 %v1710, %v746
      %v1712 = vld [vmem:[%s661] sm:$0xff]
      %v1713 = vld [vmem:[%s661 + $0x8] sm:$0xff]
      %v1714 = vpack.c.bf16 %v1713, %v1712
      %v1715 = vmul.bf16 %v1714, %v754
      %v1717 = vshrl.u32 %v1711, 16
      %v1719 = vrot.slane %v1717, 7
      %v1720 = vshll.u32 %v1711, 16
      %v1722 = vor.u32 %v1719, %v1720
      %v1724 = vshrl.u32 %v1692, 16
      %v1726 = vrot.slane %v1724, 7
      %v1727 = vshll.u32 %v1692, 16
      %v1729 = vor.u32 %v1726, %v1727
      %v1731 = vshrl.u32 %v1693, 16
      %v1733 = vrot.slane %v1731, 7
      %v1734 = vshll.u32 %v1693, 16
      %v1736 = vor.u32 %v1733, %v1734
      %v1738 = vshrl.u32 %v1694, 16
      %v1740 = vrot.slane %v1738, 7
      %v1741 = vshll.u32 %v1694, 16
      %v1743 = vor.u32 %v1740, %v1741
      %v1745 = vshrl.u32 %v1695, 16
      %v1747 = vrot.slane %v1745, 7
      %v1748 = vshll.u32 %v1695, 16
      %v1750 = vor.u32 %v1747, %v1748
      %v1752 = vshrl.u32 %v1696, 16
      %v1754 = vrot.slane %v1752, 7
      %v1755 = vshll.u32 %v1696, 16
      %v1757 = vor.u32 %v1754, %v1755
      %v1759 = vshrl.u32 %v1697, 16
      %v1761 = vrot.slane %v1759, 7
      %v1762 = vshll.u32 %v1697, 16
      %v1764 = vor.u32 %v1761, %v1762
      %v1766 = vshrl.u32 %v1698, 16
      %v1768 = vrot.slane %v1766, 7
      %v1769 = vshll.u32 %v1698, 16
      %v1771 = vor.u32 %v1768, %v1769
      %v1773 = vshrl.u32 %v1699, 16
      %v1775 = vrot.slane %v1773, 7
      %v1776 = vshll.u32 %v1699, 16
      %v1778 = vor.u32 %v1775, %v1776
      %v1780 = vshrl.u32 %v1700, 16
      %v1782 = vrot.slane %v1780, 7
      %v1783 = vshll.u32 %v1700, 16
      %v1785 = vor.u32 %v1782, %v1783
      %v1787 = vshrl.u32 %v1701, 16
      %v1789 = vrot.slane %v1787, 7
      %v1790 = vshll.u32 %v1701, 16
      %v1792 = vor.u32 %v1789, %v1790
      %v1794 = vshrl.u32 %v1702, 16
      %v1796 = vrot.slane %v1794, 7
      %v1797 = vshll.u32 %v1702, 16
      %v1799 = vor.u32 %v1796, %v1797
      %v1801 = vshrl.u32 %v1703, 16
      %v1803 = vrot.slane %v1801, 7
      %v1804 = vshll.u32 %v1703, 16
      %v1806 = vor.u32 %v1803, %v1804
      %v1808 = vshrl.u32 %v1704, 16
      %v1810 = vrot.slane %v1808, 7
      %v1811 = vshll.u32 %v1704, 16
      %v1813 = vor.u32 %v1810, %v1811
      %v1815 = vshrl.u32 %v1705, 16
      %v1817 = vrot.slane %v1815, 7
      %v1818 = vshll.u32 %v1705, 16
      %v1820 = vor.u32 %v1817, %v1818
      %v1822 = vshrl.u32 %v1706, 16
      %v1824 = vrot.slane %v1822, 7
      %v1825 = vshll.u32 %v1706, 16
      %v1827 = vor.u32 %v1824, %v1825
      %v1844 = vsel %vm968, 0, %v1722
      %v1845 = vsel %vm968, 0, %v1729
      %v1846 = vsel %vm968, 0, %v1736
      %v1847 = vsel %vm968, 0, %v1743
      %v1848 = vsel %vm968, 0, %v1750
      %v1849 = vsel %vm968, 0, %v1757
      %v1850 = vsel %vm968, 0, %v1764
      %v1851 = vsel %vm968, 0, %v1771
      %v1852 = vsel %vm968, 0, %v1778
      %v1853 = vsel %vm968, 0, %v1785
      %v1854 = vsel %vm968, 0, %v1792
      %v1855 = vsel %vm968, 0, %v1799
      %v1856 = vsel %vm968, 0, %v1806
      %v1857 = vsel %vm968, 0, %v1813
      %v1858 = vsel %vm968, 0, %v1820
      %v1859 = vsel %vm968, 0, %v1827
      %v1860 = vrot.slane %v1720, 1
      %v1861 = vor.u32 %v1717, %v1860
      %v1862 = vrot.slane %v1727, 1
      %v1863 = vor.u32 %v1724, %v1862
      %v1864 = vrot.slane %v1734, 1
      %v1865 = vor.u32 %v1731, %v1864
      %v1866 = vrot.slane %v1741, 1
      %v1867 = vor.u32 %v1738, %v1866
      %v1868 = vrot.slane %v1748, 1
      %v1869 = vor.u32 %v1745, %v1868
      %v1870 = vrot.slane %v1755, 1
      %v1871 = vor.u32 %v1752, %v1870
      %v1872 = vrot.slane %v1762, 1
      %v1873 = vor.u32 %v1759, %v1872
      %v1874 = vrot.slane %v1769, 1
      %v1875 = vor.u32 %v1766, %v1874
      %v1876 = vrot.slane %v1776, 1
      %v1877 = vor.u32 %v1773, %v1876
      %v1878 = vrot.slane %v1783, 1
      %v1879 = vor.u32 %v1780, %v1878
      %v1880 = vrot.slane %v1790, 1
      %v1881 = vor.u32 %v1787, %v1880
      %v1882 = vrot.slane %v1797, 1
      %v1883 = vor.u32 %v1794, %v1882
      %v1884 = vrot.slane %v1804, 1
      %v1885 = vor.u32 %v1801, %v1884
      %v1886 = vrot.slane %v1811, 1
      %v1887 = vor.u32 %v1808, %v1886
      %v1888 = vrot.slane %v1818, 1
      %v1889 = vor.u32 %v1815, %v1888
      %v1890 = vrot.slane %v1825, 1
      %v1891 = vor.u32 %v1822, %v1890
      %v1908 = vsel %vm1035, %v1861, 0
      %v1909 = vsel %vm1035, %v1863, 0
      %v1910 = vsel %vm1035, %v1865, 0
      %v1911 = vsel %vm1035, %v1867, 0
      %v1912 = vsel %vm1035, %v1869, 0
      %v1913 = vsel %vm1035, %v1871, 0
      %v1914 = vsel %vm1035, %v1873, 0
      %v1915 = vsel %vm1035, %v1875, 0
      %v1916 = vsel %vm1035, %v1877, 0
      %v1917 = vsel %vm1035, %v1879, 0
      %v1918 = vsel %vm1035, %v1881, 0
      %v1919 = vsel %vm1035, %v1883, 0
      %v1920 = vsel %vm1035, %v1885, 0
      %v1921 = vsel %vm1035, %v1887, 0
      %v1922 = vsel %vm1035, %v1889, 0
      %v1923 = vsel %vm1035, %v1891, 0
      %1940 = vrot.lane.b32.xlu0 %v1844, 36
      %v1941 = vpop.permute.xlu0 %1940
      %1942 = vrot.lane.b32.xlu0 %v1845, 36
      %v1943 = vpop.permute.xlu0 %1942
      %1944 = vrot.lane.b32.xlu0 %v1846, 36
      %v1945 = vpop.permute.xlu0 %1944
      %1946 = vrot.lane.b32.xlu0 %v1847, 36
      %v1947 = vpop.permute.xlu0 %1946
      %1948 = vrot.lane.b32.xlu0 %v1848, 36
      %v1949 = vpop.permute.xlu0 %1948
      %1950 = vrot.lane.b32.xlu0 %v1849, 36
      %v1951 = vpop.permute.xlu0 %1950
      %1952 = vrot.lane.b32.xlu0 %v1850, 36
      %v1953 = vpop.permute.xlu0 %1952
      %1954 = vrot.lane.b32.xlu0 %v1851, 36
      %v1955 = vpop.permute.xlu0 %1954
      %1956 = vrot.lane.b32.xlu0 %v1852, 36
      %v1957 = vpop.permute.xlu0 %1956
      %1958 = vrot.lane.b32.xlu0 %v1853, 36
      %v1959 = vpop.permute.xlu0 %1958
      %1960 = vrot.lane.b32.xlu0 %v1854, 36
      %v1961 = vpop.permute.xlu0 %1960
      %1962 = vrot.lane.b32.xlu0 %v1855, 36
      %v1963 = vpop.permute.xlu0 %1962
      %1964 = vrot.lane.b32.xlu0 %v1856, 36
      %v1965 = vpop.permute.xlu0 %1964
      %1966 = vrot.lane.b32.xlu0 %v1857, 36
      %v1967 = vpop.permute.xlu0 %1966
      %1968 = vrot.lane.b32.xlu0 %v1858, 36
      %v1969 = vpop.permute.xlu0 %1968
      %1970 = vrot.lane.b32.xlu0 %v1859, 36
      %v1971 = vpop.permute.xlu0 %1970
      %vm1988 = vcmask 326944
      %1989 = vst.msk [vmem:[#allocation2] sm:$0xff] %vm1988, %v1941
      %1990 = vst.msk [vmem:[#allocation2 + $0x8] sm:$0xff] %vm1988, %v1943
      %1991 = vst.msk [vmem:[#allocation2 + $0x10] sm:$0xff] %vm1988, %v1945
      %1992 = vst.msk [vmem:[#allocation2 + $0x18] sm:$0xff] %vm1988, %v1947
      %1993 = vst.msk [vmem:[#allocation2 + $0x20] sm:$0xff] %vm1988, %v1949
      %1994 = vst.msk [vmem:[#allocation2 + $0x28] sm:$0xff] %vm1988, %v1951
      %1995 = vst.msk [vmem:[#allocation2 + $0x30] sm:$0xff] %vm1988, %v1953
      %1996 = vst.msk [vmem:[#allocation2 + $0x38] sm:$0xff] %vm1988, %v1955
      %1997 = vst.msk [vmem:[#allocation2 + $0x40] sm:$0xff] %vm1988, %v1957
      %1998 = vst.msk [vmem:[#allocation2 + $0x48] sm:$0xff] %vm1988, %v1959
      %1999 = vst.msk [vmem:[#allocation2 + $0x50] sm:$0xff] %vm1988, %v1961
      %2000 = vst.msk [vmem:[#allocation2 + $0x58] sm:$0xff] %vm1988, %v1963
      %2001 = vst.msk [vmem:[#allocation2 + $0x60] sm:$0xff] %vm1988, %v1965
      %2002 = vst.msk [vmem:[#allocation2 + $0x68] sm:$0xff] %vm1988, %v1967
      %2003 = vst.msk [vmem:[#allocation2 + $0x70] sm:$0xff] %vm1988, %v1969
      %2004 = vst.msk [vmem:[#allocation2 + $0x78] sm:$0xff] %vm1988, %v1971
      %2021 = vrot.lane.b32.xlu0 %v1711, 40
      %v2022 = vpop.permute.xlu0 %2021
      %2023 = vrot.lane.b32.xlu0 %v1692, 40
      %v2024 = vpop.permute.xlu0 %2023
      %2025 = vrot.lane.b32.xlu0 %v1693, 40
      %v2026 = vpop.permute.xlu0 %2025
      %2027 = vrot.lane.b32.xlu0 %v1694, 40
      %v2028 = vpop.permute.xlu0 %2027
      %2029 = vrot.lane.b32.xlu0 %v1695, 40
      %v2030 = vpop.permute.xlu0 %2029
      %2031 = vrot.lane.b32.xlu0 %v1696, 40
      %v2032 = vpop.permute.xlu0 %2031
      %2033 = vrot.lane.b32.xlu0 %v1697, 40
      %v2034 = vpop.permute.xlu0 %2033
      %2035 = vrot.lane.b32.xlu0 %v1698, 40
      %v2036 = vpop.permute.xlu0 %2035
      %2037 = vrot.lane.b32.xlu0 %v1699, 40
      %v2038 = vpop.permute.xlu0 %2037
      %2039 = vrot.lane.b32.xlu0 %v1700, 40
      %v2040 = vpop.permute.xlu0 %2039
      %2041 = vrot.lane.b32.xlu0 %v1701, 40
      %v2042 = vpop.permute.xlu0 %2041
      %2043 = vrot.lane.b32.xlu0 %v1702, 40
      %v2044 = vpop.permute.xlu0 %2043
      %2045 = vrot.lane.b32.xlu0 %v1703, 40
      %v2046 = vpop.permute.xlu0 %2045
      %2047 = vrot.lane.b32.xlu0 %v1704, 40
      %v2048 = vpop.permute.xlu0 %2047
      %2049 = vrot.lane.b32.xlu0 %v1705, 40
      %v2050 = vpop.permute.xlu0 %2049
      %2051 = vrot.lane.b32.xlu0 %v1706, 40
      %v2052 = vpop.permute.xlu0 %2051
      %vm2069 = vcmask 359744
      %2070 = vst.msk [vmem:[#allocation2] sm:$0xff] %vm2069, %v2022
      %2071 = vst.msk [vmem:[#allocation2 + $0x8] sm:$0xff] %vm2069, %v2024
      %2072 = vst.msk [vmem:[#allocation2 + $0x10] sm:$0xff] %vm2069, %v2026
      %2073 = vst.msk [vmem:[#allocation2 + $0x18] sm:$0xff] %vm2069, %v2028
      %2074 = vst.msk [vmem:[#allocation2 + $0x20] sm:$0xff] %vm2069, %v2030
      %2075 = vst.msk [vmem:[#allocation2 + $0x28] sm:$0xff] %vm2069, %v2032
      %2076 = vst.msk [vmem:[#allocation2 + $0x30] sm:$0xff] %vm2069, %v2034
      %2077 = vst.msk [vmem:[#allocation2 + $0x38] sm:$0xff] %vm2069, %v2036
      %2078 = vst.msk [vmem:[#allocation2 + $0x40] sm:$0xff] %vm2069, %v2038
      %2079 = vst.msk [vmem:[#allocation2 + $0x48] sm:$0xff] %vm2069, %v2040
      %2080 = vst.msk [vmem:[#allocation2 + $0x50] sm:$0xff] %vm2069, %v2042
      %2081 = vst.msk [vmem:[#allocation2 + $0x58] sm:$0xff] %vm2069, %v2044
      %2082 = vst.msk [vmem:[#allocation2 + $0x60] sm:$0xff] %vm2069, %v2046
      %2083 = vst.msk [vmem:[#allocation2 + $0x68] sm:$0xff] %vm2069, %v2048
      %2084 = vst.msk [vmem:[#allocation2 + $0x70] sm:$0xff] %vm2069, %v2050
      %2085 = vst.msk [vmem:[#allocation2 + $0x78] sm:$0xff] %vm2069, %v2052
      %2102 = vrot.lane.b32.xlu0 %v1908, 44
      %v2103 = vpop.permute.xlu0 %2102
      %2104 = vrot.lane.b32.xlu0 %v1909, 44
      %v2105 = vpop.permute.xlu0 %2104
      %2106 = vrot.lane.b32.xlu0 %v1910, 44
      %v2107 = vpop.permute.xlu0 %2106
      %2108 = vrot.lane.b32.xlu0 %v1911, 44
      %v2109 = vpop.permute.xlu0 %2108
      %2110 = vrot.lane.b32.xlu0 %v1912, 44
      %v2111 = vpop.permute.xlu0 %2110
      %2112 = vrot.lane.b32.xlu0 %v1913, 44
      %v2113 = vpop.permute.xlu0 %2112
      %2114 = vrot.lane.b32.xlu0 %v1914, 44
      %v2115 = vpop.permute.xlu0 %2114
      %2116 = vrot.lane.b32.xlu0 %v1915, 44
      %v2117 = vpop.permute.xlu0 %2116
      %2118 = vrot.lane.b32.xlu0 %v1916, 44
      %v2119 = vpop.permute.xlu0 %2118
      %2120 = vrot.lane.b32.xlu0 %v1917, 44
      %v2121 = vpop.permute.xlu0 %2120
      %2122 = vrot.lane.b32.xlu0 %v1918, 44
      %v2123 = vpop.permute.xlu0 %2122
      %2124 = vrot.lane.b32.xlu0 %v1919, 44
      %v2125 = vpop.permute.xlu0 %2124
      %2126 = vrot.lane.b32.xlu0 %v1920, 44
      %v2127 = vpop.permute.xlu0 %2126
      %2128 = vrot.lane.b32.xlu0 %v1921, 44
      %v2129 = vpop.permute.xlu0 %2128
      %2130 = vrot.lane.b32.xlu0 %v1922, 44
      %v2131 = vpop.permute.xlu0 %2130
      %2132 = vrot.lane.b32.xlu0 %v1923, 44
      %v2133 = vpop.permute.xlu0 %2132
      %vm2150 = vcmask 392544
      %2151 = vst.msk [vmem:[#allocation2] sm:$0xff] %vm2150, %v2103
      %2152 = vst.msk [vmem:[#allocation2 + $0x8] sm:$0xff] %vm2150, %v2105
      %2153 = vst.msk [vmem:[#allocation2 + $0x10] sm:$0xff] %vm2150, %v2107
      %2154 = vst.msk [vmem:[#allocation2 + $0x18] sm:$0xff] %vm2150, %v2109
      %2155 = vst.msk [vmem:[#allocation2 + $0x20] sm:$0xff] %vm2150, %v2111
      %2156 = vst.msk [vmem:[#allocation2 + $0x28] sm:$0xff] %vm2150, %v2113
      %2157 = vst.msk [vmem:[#allocation2 + $0x30] sm:$0xff] %vm2150, %v2115
      %2158 = vst.msk [vmem:[#allocation2 + $0x38] sm:$0xff] %vm2150, %v2117
      %2159 = vst.msk [vmem:[#allocation2 + $0x40] sm:$0xff] %vm2150, %v2119
      %2160 = vst.msk [vmem:[#allocation2 + $0x48] sm:$0xff] %vm2150, %v2121
      %2161 = vst.msk [vmem:[#allocation2 + $0x50] sm:$0xff] %vm2150, %v2123
      %2162 = vst.msk [vmem:[#allocation2 + $0x58] sm:$0xff] %vm2150, %v2125
      %2163 = vst.msk [vmem:[#allocation2 + $0x60] sm:$0xff] %vm2150, %v2127
      %2164 = vst.msk [vmem:[#allocation2 + $0x68] sm:$0xff] %vm2150, %v2129
      %2165 = vst.msk [vmem:[#allocation2 + $0x70] sm:$0xff] %vm2150, %v2131
      %2166 = vst.msk [vmem:[#allocation2 + $0x78] sm:$0xff] %vm2150, %v2133
      %v2168 = vshrl.u32 %v1707, 16
      %v2170 = vrot.slane %v2168, 7
      %v2171 = vshll.u32 %v1707, 16
      %v2173 = vor.u32 %v2170, %v2171
      %v2175 = vsel %vm968, 0, %v2173
      %v2176 = vrot.slane %v2171, 1
      %v2177 = vor.u32 %v2168, %v2176
      %v2179 = vsel %vm1035, %v2177, 0
      %2181 = vrot.lane.b32.xlu0 %v1845, 48
      %v2182 = vpop.permute.xlu0 %2181
      %2183 = vrot.lane.b32.xlu0 %v1846, 48
      %v2184 = vpop.permute.xlu0 %2183
      %2185 = vrot.lane.b32.xlu0 %v1847, 48
      %v2186 = vpop.permute.xlu0 %2185
      %2187 = vrot.lane.b32.xlu0 %v1848, 48
      %v2188 = vpop.permute.xlu0 %2187
      %2189 = vrot.lane.b32.xlu0 %v1849, 48
      %v2190 = vpop.permute.xlu0 %2189
      %2191 = vrot.lane.b32.xlu0 %v1850, 48
      %v2192 = vpop.permute.xlu0 %2191
      %2193 = vrot.lane.b32.xlu0 %v1851, 48
      %v2194 = vpop.permute.xlu0 %2193
      %2195 = vrot.lane.b32.xlu0 %v1852, 48
      %v2196 = vpop.permute.xlu0 %2195
      %2197 = vrot.lane.b32.xlu0 %v1853, 48
      %v2198 = vpop.permute.xlu0 %2197
      %2199 = vrot.lane.b32.xlu0 %v1854, 48
      %v2200 = vpop.permute.xlu0 %2199
      %2201 = vrot.lane.b32.xlu0 %v1855, 48
      %v2202 = vpop.permute.xlu0 %2201
      %2203 = vrot.lane.b32.xlu0 %v1856, 48
      %v2204 = vpop.permute.xlu0 %2203
      %2205 = vrot.lane.b32.xlu0 %v1857, 48
      %v2206 = vpop.permute.xlu0 %2205
      %2207 = vrot.lane.b32.xlu0 %v1858, 48
      %v2208 = vpop.permute.xlu0 %2207
      %2209 = vrot.lane.b32.xlu0 %v1859, 48
      %v2210 = vpop.permute.xlu0 %2209
      %2211 = vrot.lane.b32.xlu0 %v2175, 48
      %v2212 = vpop.permute.xlu0 %2211
      %vm2229 = vcmask 425344
      %2230 = vst.msk [vmem:[#allocation2] sm:$0xff] %vm2229, %v2182
      %2231 = vst.msk [vmem:[#allocation2 + $0x8] sm:$0xff] %vm2229, %v2184
      %2232 = vst.msk [vmem:[#allocation2 + $0x10] sm:$0xff] %vm2229, %v2186
      %2233 = vst.msk [vmem:[#allocation2 + $0x18] sm:$0xff] %vm2229, %v2188
      %2234 = vst.msk [vmem:[#allocation2 + $0x20] sm:$0xff] %vm2229, %v2190
      %2235 = vst.msk [vmem:[#allocation2 + $0x28] sm:$0xff] %vm2229, %v2192
      %2236 = vst.msk [vmem:[#allocation2 + $0x30] sm:$0xff] %vm2229, %v2194
      %2237 = vst.msk [vmem:[#allocation2 + $0x38] sm:$0xff] %vm2229, %v2196
      %2238 = vst.msk [vmem:[#allocation2 + $0x40] sm:$0xff] %vm2229, %v2198
      %2239 = vst.msk [vmem:[#allocation2 + $0x48] sm:$0xff] %vm2229, %v2200
      %2240 = vst.msk [vmem:[#allocation2 + $0x50] sm:$0xff] %vm2229, %v2202
      %2241 = vst.msk [vmem:[#allocation2 + $0x58] sm:$0xff] %vm2229, %v2204
      %2242 = vst.msk [vmem:[#allocation2 + $0x60] sm:$0xff] %vm2229, %v2206
      %2243 = vst.msk [vmem:[#allocation2 + $0x68] sm:$0xff] %vm2229, %v2208
      %2244 = vst.msk [vmem:[#allocation2 + $0x70] sm:$0xff] %vm2229, %v2210
      %2245 = vst.msk [vmem:[#allocation2 + $0x78] sm:$0xff] %vm2229, %v2212
      %2247 = vrot.lane.b32.xlu0 %v1692, 52
      %v2248 = vpop.permute.xlu0 %2247
      %2249 = vrot.lane.b32.xlu0 %v1693, 52
      %v2250 = vpop.permute.xlu0 %2249
      %2251 = vrot.lane.b32.xlu0 %v1694, 52
      %v2252 = vpop.permute.xlu0 %2251
      %2253 = vrot.lane.b32.xlu0 %v1695, 52
      %v2254 = vpop.permute.xlu0 %2253
      %2255 = vrot.lane.b32.xlu0 %v1696, 52
      %v2256 = vpop.permute.xlu0 %2255
      %2257 = vrot.lane.b32.xlu0 %v1697, 52
      %v2258 = vpop.permute.xlu0 %2257
      %2259 = vrot.lane.b32.xlu0 %v1698, 52
      %v2260 = vpop.permute.xlu0 %2259
      %2261 = vrot.lane.b32.xlu0 %v1699, 52
      %v2262 = vpop.permute.xlu0 %2261
      %2263 = vrot.lane.b32.xlu0 %v1700, 52
      %v2264 = vpop.permute.xlu0 %2263
      %2265 = vrot.lane.b32.xlu0 %v1701, 52
      %v2266 = vpop.permute.xlu0 %2265
      %2267 = vrot.lane.b32.xlu0 %v1702, 52
      %v2268 = vpop.permute.xlu0 %2267
      %2269 = vrot.lane.b32.xlu0 %v1703, 52
      %v2270 = vpop.permute.xlu0 %2269
      %2271 = vrot.lane.b32.xlu0 %v1704, 52
      %v2272 = vpop.permute.xlu0 %2271
      %2273 = vrot.lane.b32.xlu0 %v1705, 52
      %v2274 = vpop.permute.xlu0 %2273
      %2275 = vrot.lane.b32.xlu0 %v1706, 52
      %v2276 = vpop.permute.xlu0 %2275
      %2277 = vrot.lane.b32.xlu0 %v1707, 52
      %v2278 = vpop.permute.xlu0 %2277
      %vm2295 = vcmask 458144
      %2296 = vst.msk [vmem:[#allocation2] sm:$0xff] %vm2295, %v2248
      %2297 = vst.msk [vmem:[#allocation2 + $0x8] sm:$0xff] %vm2295, %v2250
      %2298 = vst.msk [vmem:[#allocation2 + $0x10] sm:$0xff] %vm2295, %v2252
      %2299 = vst.msk [vmem:[#allocation2 + $0x18] sm:$0xff] %vm2295, %v2254
      %2300 = vst.msk [vmem:[#allocation2 + $0x20] sm:$0xff] %vm2295, %v2256
      %2301 = vst.msk [vmem:[#allocation2 + $0x28] sm:$0xff] %vm2295, %v2258
      %2302 = vst.msk [vmem:[#allocation2 + $0x30] sm:$0xff] %vm2295, %v2260
      %2303 = vst.msk [vmem:[#allocation2 + $0x38] sm:$0xff] %vm2295, %v2262
      %2304 = vst.msk [vmem:[#allocation2 + $0x40] sm:$0xff] %vm2295, %v2264
      %2305 = vst.msk [vmem:[#allocation2 + $0x48] sm:$0xff] %vm2295, %v2266
      %2306 = vst.msk [vmem:[#allocation2 + $0x50] sm:$0xff] %vm2295, %v2268
      %2307 = vst.msk [vmem:[#allocation2 + $0x58] sm:$0xff] %vm2295, %v2270
      %2308 = vst.msk [vmem:[#allocation2 + $0x60] sm:$0xff] %vm2295, %v2272
      %2309 = vst.msk [vmem:[#allocation2 + $0x68] sm:$0xff] %vm2295, %v2274
      %2310 = vst.msk [vmem:[#allocation2 + $0x70] sm:$0xff] %vm2295, %v2276
      %2311 = vst.msk [vmem:[#allocation2 + $0x78] sm:$0xff] %vm2295, %v2278
      %2313 = vrot.lane.b32.xlu0 %v1909, 56
      %v2314 = vpop.permute.xlu0 %2313
      %2315 = vrot.lane.b32.xlu0 %v1910, 56
      %v2316 = vpop.permute.xlu0 %2315
      %2317 = vrot.lane.b32.xlu0 %v1911, 56
      %v2318 = vpop.permute.xlu0 %2317
      %2319 = vrot.lane.b32.xlu0 %v1912, 56
      %v2320 = vpop.permute.xlu0 %2319
      %2321 = vrot.lane.b32.xlu0 %v1913, 56
      %v2322 = vpop.permute.xlu0 %2321
      %2323 = vrot.lane.b32.xlu0 %v1914, 56
      %v2324 = vpop.permute.xlu0 %2323
      %2325 = vrot.lane.b32.xlu0 %v1915, 56
      %v2326 = vpop.permute.xlu0 %2325
      %2327 = vrot.lane.b32.xlu0 %v1916, 56
      %v2328 = vpop.permute.xlu0 %2327
      %2329 = vrot.lane.b32.xlu0 %v1917, 56
      %v2330 = vpop.permute.xlu0 %2329
      %2331 = vrot.lane.b32.xlu0 %v1918, 56
      %v2332 = vpop.permute.xlu0 %2331
      %2333 = vrot.lane.b32.xlu0 %v1919, 56
      %v2334 = vpop.permute.xlu0 %2333
      %2335 = vrot.lane.b32.xlu0 %v1920, 56
      %v2336 = vpop.permute.xlu0 %2335
      %2337 = vrot.lane.b32.xlu0 %v1921, 56
      %v2338 = vpop.permute.xlu0 %2337
      %2339 = vrot.lane.b32.xlu0 %v1922, 56
      %v2340 = vpop.permute.xlu0 %2339
      %2341 = vrot.lane.b32.xlu0 %v1923, 56
      %v2342 = vpop.permute.xlu0 %2341
      %2343 = vrot.lane.b32.xlu0 %v2179, 56
      %v2344 = vpop.permute.xlu0 %2343
      %vm2361 = vcmask 490944
      %2362 = vst.msk [vmem:[#allocation2] sm:$0xff] %vm2361, %v2314
      %2363 = vst.msk [vmem:[#allocation2 + $0x8] sm:$0xff] %vm2361, %v2316
      %2364 = vst.msk [vmem:[#allocation2 + $0x10] sm:$0xff] %vm2361, %v2318
      %2365 = vst.msk [vmem:[#allocation2 + $0x18] sm:$0xff] %vm2361, %v2320
      %2366 = vst.msk [vmem:[#allocation2 + $0x20] sm:$0xff] %vm2361, %v2322
      %2367 = vst.msk [vmem:[#allocation2 + $0x28] sm:$0xff] %vm2361, %v2324
      %2368 = vst.msk [vmem:[#allocation2 + $0x30] sm:$0xff] %vm2361, %v2326
      %2369 = vst.msk [vmem:[#allocation2 + $0x38] sm:$0xff] %vm2361, %v2328
      %2370 = vst.msk [vmem:[#allocation2 + $0x40] sm:$0xff] %vm2361, %v2330
      %2371 = vst.msk [vmem:[#allocation2 + $0x48] sm:$0xff] %vm2361, %v2332
      %2372 = vst.msk [vmem:[#allocation2 + $0x50] sm:$0xff] %vm2361, %v2334
      %2373 = vst.msk [vmem:[#allocation2 + $0x58] sm:$0xff] %vm2361, %v2336
      %2374 = vst.msk [vmem:[#allocation2 + $0x60] sm:$0xff] %vm2361, %v2338
      %2375 = vst.msk [vmem:[#allocation2 + $0x68] sm:$0xff] %vm2361, %v2340
      %2376 = vst.msk [vmem:[#allocation2 + $0x70] sm:$0xff] %vm2361, %v2342
      %2377 = vst.msk [vmem:[#allocation2 + $0x78] sm:$0xff] %vm2361, %v2344
      %v2379 = vshrl.u32 %v1715, 16
      %v2381 = vrot.slane %v2379, 7
      %v2382 = vshll.u32 %v1715, 16
      %v2384 = vor.u32 %v2381, %v2382
      %v2386 = vsel %vm968, 0, %v2384
      %v2387 = vrot.slane %v2382, 1
      %v2388 = vor.u32 %v2379, %v2387
      %v2390 = vsel %vm1035, %v2388, 0
      %2392 = vrot.lane.b32.xlu0 %v1846, 60
      %v2393 = vpop.permute.xlu0 %2392
      %2394 = vrot.lane.b32.xlu0 %v1847, 60
      %v2395 = vpop.permute.xlu0 %2394
      %2396 = vrot.lane.b32.xlu0 %v1848, 60
      %v2397 = vpop.permute.xlu0 %2396
      %2398 = vrot.lane.b32.xlu0 %v1849, 60
      %v2399 = vpop.permute.xlu0 %2398
      %2400 = vrot.lane.b32.xlu0 %v1850, 60
      %v2401 = vpop.permute.xlu0 %2400
      %2402 = vrot.lane.b32.xlu0 %v1851, 60
      %v2403 = vpop.permute.xlu0 %2402
      %2404 = vrot.lane.b32.xlu0 %v1852, 60
      %v2405 = vpop.permute.xlu0 %2404
      %2406 = vrot.lane.b32.xlu0 %v1853, 60
      %v2407 = vpop.permute.xlu0 %2406
      %2408 = vrot.lane.b32.xlu0 %v1854, 60
      %v2409 = vpop.permute.xlu0 %2408
      %2410 = vrot.lane.b32.xlu0 %v1855, 60
      %v2411 = vpop.permute.xlu0 %2410
      %2412 = vrot.lane.b32.xlu0 %v1856, 60
      %v2413 = vpop.permute.xlu0 %2412
      %2414 = vrot.lane.b32.xlu0 %v1857, 60
      %v2415 = vpop.permute.xlu0 %2414
      %2416 = vrot.lane.b32.xlu0 %v1858, 60
      %v2417 = vpop.permute.xlu0 %2416
      %2418 = vrot.lane.b32.xlu0 %v1859, 60
      %v2419 = vpop.permute.xlu0 %2418
      %2420 = vrot.lane.b32.xlu0 %v2175, 60
      %v2421 = vpop.permute.xlu0 %2420
      %2422 = vrot.lane.b32.xlu0 %v2386, 60
      %v2423 = vpop.permute.xlu0 %2422
      %vm2440 = vcmask 523744
      %2441 = vst.msk [vmem:[#allocation2] sm:$0xff] %vm2440, %v2393
      %2442 = vst.msk [vmem:[#allocation2 + $0x8] sm:$0xff] %vm2440, %v2395
      %2443 = vst.msk [vmem:[#allocation2 + $0x10] sm:$0xff] %vm2440, %v2397
      %2444 = vst.msk [vmem:[#allocation2 + $0x18] sm:$0xff] %vm2440, %v2399
      %2445 = vst.msk [vmem:[#allocation2 + $0x20] sm:$0xff] %vm2440, %v2401
      %2446 = vst.msk [vmem:[#allocation2 + $0x28] sm:$0xff] %vm2440, %v2403
      %2447 = vst.msk [vmem:[#allocation2 + $0x30] sm:$0xff] %vm2440, %v2405
      %2448 = vst.msk [vmem:[#allocation2 + $0x38] sm:$0xff] %vm2440, %v2407
      %2449 = vst.msk [vmem:[#allocation2 + $0x40] sm:$0xff] %vm2440, %v2409
      %2450 = vst.msk [vmem:[#allocation2 + $0x48] sm:$0xff] %vm2440, %v2411
      %2451 = vst.msk [vmem:[#allocation2 + $0x50] sm:$0xff] %vm2440, %v2413
      %2452 = vst.msk [vmem:[#allocation2 + $0x58] sm:$0xff] %vm2440, %v2415
      %2453 = vst.msk [vmem:[#allocation2 + $0x60] sm:$0xff] %vm2440, %v2417
      %2454 = vst.msk [vmem:[#allocation2 + $0x68] sm:$0xff] %vm2440, %v2419
      %2455 = vst.msk [vmem:[#allocation2 + $0x70] sm:$0xff] %vm2440, %v2421
      %2456 = vst.msk [vmem:[#allocation2 + $0x78] sm:$0xff] %vm2440, %v2423
      %2458 = vrot.lane.b32.xlu0 %v1693, 64
      %v2459 = vpop.permute.xlu0 %2458
      %2460 = vrot.lane.b32.xlu0 %v1694, 64
      %v2461 = vpop.permute.xlu0 %2460
      %2462 = vrot.lane.b32.xlu0 %v1695, 64
      %v2463 = vpop.permute.xlu0 %2462
      %2464 = vrot.lane.b32.xlu0 %v1696, 64
      %v2465 = vpop.permute.xlu0 %2464
      %2466 = vrot.lane.b32.xlu0 %v1697, 64
      %v2467 = vpop.permute.xlu0 %2466
      %2468 = vrot.lane.b32.xlu0 %v1698, 64
      %v2469 = vpop.permute.xlu0 %2468
      %2470 = vrot.lane.b32.xlu0 %v1699, 64
      %v2471 = vpop.permute.xlu0 %2470
      %2472 = vrot.lane.b32.xlu0 %v1700, 64
      %v2473 = vpop.permute.xlu0 %2472
      %2474 = vrot.lane.b32.xlu0 %v1701, 64
      %v2475 = vpop.permute.xlu0 %2474
      %2476 = vrot.lane.b32.xlu0 %v1702, 64
      %v2477 = vpop.permute.xlu0 %2476
      %2478 = vrot.lane.b32.xlu0 %v1703, 64
      %v2479 = vpop.permute.xlu0 %2478
      %2480 = vrot.lane.b32.xlu0 %v1704, 64
      %v2481 = vpop.permute.xlu0 %2480
      %2482 = vrot.lane.b32.xlu0 %v1705, 64
      %v2483 = vpop.permute.xlu0 %2482
      %2484 = vrot.lane.b32.xlu0 %v1706, 64
      %v2485 = vpop.permute.xlu0 %2484
      %2486 = vrot.lane.b32.xlu0 %v1707, 64
      %v2487 = vpop.permute.xlu0 %2486
      %2488 = vrot.lane.b32.xlu0 %v1715, 64
      %v2489 = vpop.permute.xlu0 %2488
      %vm2506 = vcmask 556544
      %2507 = vst.msk [vmem:[#allocation2] sm:$0xff] %vm2506, %v2459
      %2508 = vst.msk [vmem:[#allocation2 + $0x8] sm:$0xff] %vm2506, %v2461
      %2509 = vst.msk [vmem:[#allocation2 + $0x10] sm:$0xff] %vm2506, %v2463
      %2510 = vst.msk [vmem:[#allocation2 + $0x18] sm:$0xff] %vm2506, %v2465
      %2511 = vst.msk [vmem:[#allocation2 + $0x20] sm:$0xff] %vm2506, %v2467
      %2512 = vst.msk [vmem:[#allocation2 + $0x28] sm:$0xff] %vm2506, %v2469
      %2513 = vst.msk [vmem:[#allocation2 + $0x30] sm:$0xff] %vm2506, %v2471
      %2514 = vst.msk [vmem:[#allocation2 + $0x38] sm:$0xff] %vm2506, %v2473
      %2515 = vst.msk [vmem:[#allocation2 + $0x40] sm:$0xff] %vm2506, %v2475
      %2516 = vst.msk [vmem:[#allocation2 + $0x48] sm:$0xff] %vm2506, %v2477
      %2517 = vst.msk [vmem:[#allocation2 + $0x50] sm:$0xff] %vm2506, %v2479
      %2518 = vst.msk [vmem:[#allocation2 + $0x58] sm:$0xff] %vm2506, %v2481
      %2519 = vst.msk [vmem:[#allocation2 + $0x60] sm:$0xff] %vm2506, %v2483
      %2520 = vst.msk [vmem:[#allocation2 + $0x68] sm:$0xff] %vm2506, %v2485
      %2521 = vst.msk [vmem:[#allocation2 + $0x70] sm:$0xff] %vm2506, %v2487
      %2522 = vst.msk [vmem:[#allocation2 + $0x78] sm:$0xff] %vm2506, %v2489
      %2524 = vrot.lane.b32.xlu0 %v1910, 68
      %v2525 = vpop.permute.xlu0 %2524
      %2526 = vrot.lane.b32.xlu0 %v1911, 68
      %v2527 = vpop.permute.xlu0 %2526
      %2528 = vrot.lane.b32.xlu0 %v1912, 68
      %v2529 = vpop.permute.xlu0 %2528
      %2530 = vrot.lane.b32.xlu0 %v1913, 68
      %v2531 = vpop.permute.xlu0 %2530
      %2532 = vrot.lane.b32.xlu0 %v1914, 68
      %v2533 = vpop.permute.xlu0 %2532
      %2534 = vrot.lane.b32.xlu0 %v1915, 68
      %v2535 = vpop.permute.xlu0 %2534
      %2536 = vrot.lane.b32.xlu0 %v1916, 68
      %v2537 = vpop.permute.xlu0 %2536
      %2538 = vrot.lane.b32.xlu0 %v1917, 68
      %v2539 = vpop.permute.xlu0 %2538
      %2540 = vrot.lane.b32.xlu0 %v1918, 68
      %v2541 = vpop.permute.xlu0 %2540
      %2542 = vrot.lane.b32.xlu0 %v1919, 68
      %v2543 = vpop.permute.xlu0 %2542
      %2544 = vrot.lane.b32.xlu0 %v1920, 68
      %v2545 = vpop.permute.xlu0 %2544
      %2546 = vrot.lane.b32.xlu0 %v1921, 68
      %v2547 = vpop.permute.xlu0 %2546
      %2548 = vrot.lane.b32.xlu0 %v1922, 68
      %v2549 = vpop.permute.xlu0 %2548
      %2550 = vrot.lane.b32.xlu0 %v1923, 68
      %v2551 = vpop.permute.xlu0 %2550
      %2552 = vrot.lane.b32.xlu0 %v2179, 68
      %v2553 = vpop.permute.xlu0 %2552
      %2554 = vrot.lane.b32.xlu0 %v2390, 68
      %v2555 = vpop.permute.xlu0 %2554
      %vm2572 = vcmask 589344
      %2573 = vst.msk [vmem:[#allocation2] sm:$0xff] %vm2572, %v2525
      %2574 = vst.msk [vmem:[#allocation2 + $0x8] sm:$0xff] %vm2572, %v2527
      %2575 = vst.msk [vmem:[#allocation2 + $0x10] sm:$0xff] %vm2572, %v2529
      %2576 = vst.msk [vmem:[#allocation2 + $0x18] sm:$0xff] %vm2572, %v2531
      %2577 = vst.msk [vmem:[#allocation2 + $0x20] sm:$0xff] %vm2572, %v2533
      %2578 = vst.msk [vmem:[#allocation2 + $0x28] sm:$0xff] %vm2572, %v2535
      %2579 = vst.msk [vmem:[#allocation2 + $0x30] sm:$0xff] %vm2572, %v2537
      %2580 = vst.msk [vmem:[#allocation2 + $0x38] sm:$0xff] %vm2572, %v2539
      %2581 = vst.msk [vmem:[#allocation2 + $0x40] sm:$0xff] %vm2572, %v2541
      %2582 = vst.msk [vmem:[#allocation2 + $0x48] sm:$0xff] %vm2572, %v2543
      %2583 = vst.msk [vmem:[#allocation2 + $0x50] sm:$0xff] %vm2572, %v2545
      %2584 = vst.msk [vmem:[#allocation2 + $0x58] sm:$0xff] %vm2572, %v2547
      %2585 = vst.msk [vmem:[#allocation2 + $0x60] sm:$0xff] %vm2572, %v2549
      %2586 = vst.msk [vmem:[#allocation2 + $0x68] sm:$0xff] %vm2572, %v2551
      %2587 = vst.msk [vmem:[#allocation2 + $0x70] sm:$0xff] %vm2572, %v2553
      %2588 = vst.msk [vmem:[#allocation2 + $0x78] sm:$0xff] %vm2572, %v2555
      %v2589 = vld [vmem:[#allocation2] sm:$0xff]
      %v2590 = vld [vmem:[#allocation2 + $0x8] sm:$0xff]
      %v2591 = vld [vmem:[#allocation2 + $0x10] sm:$0xff]
      %v2592 = vld [vmem:[#allocation2 + $0x18] sm:$0xff]
      %v2593 = vld [vmem:[#allocation2 + $0x20] sm:$0xff]
      %v2594 = vld [vmem:[#allocation2 + $0x28] sm:$0xff]
      %v2595 = vld [vmem:[#allocation2 + $0x30] sm:$0xff]
      %v2596 = vld [vmem:[#allocation2 + $0x38] sm:$0xff]
      %v2597 = vld [vmem:[#allocation2 + $0x40] sm:$0xff]
      %v2598 = vld [vmem:[#allocation2 + $0x48] sm:$0xff]
      %v2599 = vld [vmem:[#allocation2 + $0x50] sm:$0xff]
      %v2600 = vld [vmem:[#allocation2 + $0x58] sm:$0xff]
      %v2601 = vld [vmem:[#allocation2 + $0x60] sm:$0xff]
      %v2602 = vld [vmem:[#allocation2 + $0x68] sm:$0xff]
      %v2603 = vld [vmem:[#allocation2 + $0x70] sm:$0xff]
      %v2604 = vld [vmem:[#allocation2 + $0x78] sm:$0xff]
      %v2605 = vld [vmem:[%s6] sm:$0xf]
      %v2606 = vld [vmem:[%s6 + $0x4] sm:$0xf]
      %v2607 = vld [vmem:[%s6 + $0x8] sm:$0xf]
      %v2608 = vld [vmem:[%s6 + $0xc] sm:$0xf]
      %v2609 = vld [vmem:[%s6 + $0x10] sm:$0xf]
      %v2610 = vld [vmem:[%s6 + $0x14] sm:$0xf]
      %v2611 = vld [vmem:[%s6 + $0x18] sm:$0xf]
      %v2612 = vld [vmem:[%s6 + $0x1c] sm:$0xf]
      %v2613 = vld [vmem:[%s6 + $0x20] sm:$0xf]
      %v2623 = vunpack.c.l.b16 %v2605
      %v2624 = vunpack.c.l.b16 %v2606
      %v2625 = vunpack.c.l.b16 %v2607
      %v2626 = vunpack.c.l.b16 %v2608
      %v2627 = vunpack.c.l.b16 %v2609
      %v2628 = vunpack.c.l.b16 %v2610
      %v2629 = vunpack.c.l.b16 %v2611
      %v2630 = vunpack.c.l.b16 %v2612
      %v2631 = vunpack.c.l.b16 %v2613
      %v2632 = vpack.c.b16 %v2624, %v2623
      %v2633 = vpack.c.b16 %v2626, %v2625
      %v2634 = vpack.c.b16 %v2628, %v2627
      %v2635 = vpack.c.b16 %v2630, %v2629
      %v2636 = vpack.c.b16 %v2631, %v2631
      %vm2641 = vcmask 588800
      %v2643 = vsel %vm2641, %v2589, 0
      %v2646 = vsel %vm2641, %v2590, 0
      %v2649 = vsel %vm2641, %v2591, 0
      %v2652 = vsel %vm2641, %v2592, 0
      %v2655 = vsel %vm2641, %v2593, 0
      %v2658 = vsel %vm2641, %v2594, 0
      %v2661 = vsel %vm2641, %v2595, 0
      %v2664 = vsel %vm2641, %v2596, 0
      %v2667 = vsel %vm2641, %v2597, 0
      %v2670 = vsel %vm2641, %v2598, 0
      %v2673 = vsel %vm2641, %v2599, 0
      %v2676 = vsel %vm2641, %v2600, 0
      %v2679 = vsel %vm2641, %v2601, 0
      %v2682 = vsel %vm2641, %v2602, 0
      %v2685 = vsel %vm2641, %v2603, 0
      %v2688 = vsel %vm2641, %v2604, 0
      %vm2690 = vcmask 1043456
      %v2692 = vsel %vm2690, %v2636, 0
      %2694 = vmatprep.subr.bf16.mxu0 0
      %2695 = vmatpush1.bf16.msra.mxu0 %v2632
      %2696 = vmatprep.subr.bf16.mxu0 0
      %2697 = vmatpush1.bf16.msra.mxu0 %v2633
      %2698 = vmatprep.subr.bf16.mxu0 0
      %2699 = vmatpush1.bf16.msra.mxu0 %v2634
      %2700 = vmatprep.subr.bf16.mxu0 0
      %2701 = vmatpush1.bf16.msra.mxu0 %v2635
      %2702 = vmatprep.subr.bf16.mxu0 0
      %2703 = vmatpush1.bf16.msra.mxu0 %v2692
      %2704 = vmatprep.subr.bf16.mxu0 0
      %2705 = vmatpush1.bf16.msra.mxu0 0
      %2706 = vmatprep.subr.bf16.mxu0 0
      %2707 = vmatpush1.bf16.msra.mxu0 0
      %2708 = vmatprep.subr.bf16.mxu0 0
      %2709 = vmatpush1.bf16.msra.mxu0 0
      %2710 = vmatprep.subr.bf16.mxu0 0
      %2711 = vmatpush1.bf16.msra.mxu0 0
      %2712 = vmatprep.subr.bf16.mxu0 0
      %2713 = vmatpush1.bf16.msra.mxu0 0
      %2714 = vmatprep.subr.bf16.mxu0 0
      %2715 = vmatpush1.bf16.msra.mxu0 0
      %2716 = vmatprep.subr.bf16.mxu0 0
      %2717 = vmatpush1.bf16.msra.mxu0 0
      %2718 = vmatprep.subr.bf16.mxu0 0
      %2719 = vmatpush1.bf16.msra.mxu0 0
      %2720 = vmatprep.subr.bf16.mxu0 0
      %2721 = vmatpush1.bf16.msra.mxu0 0
      %2722 = vmatprep.subr.bf16.mxu0 0
      %2723 = vmatpush1.bf16.msra.mxu0 0
      %2724 = vmatprep.subr.bf16.mxu0 0
      %2725 = vmatpush1.bf16.msra.mxu0 0
      %2726 = vmatprep.mubr.bf16.mxu0 0
      %2727 = vmatmul.mubr.bf16.gmra.mrb[0].mxu0 %v2643
      %v2728 = vpop.f32.mrb[0].mxu0
      %v2729 = vadd.f32 0.0, %v2728
      %v2730 = vpop.f32.mrb[0].mxu0
      %v2731 = vpop.f32.mrb[0].mxu0
      %v2732 = vadd.f32 0.0, %v2731
      %v2733 = vpop.f32.mrb[0].mxu0
      %2734 = vmatprep.mubr.bf16.mxu0 0
      %2735 = vmatmul.mubr.bf16.gmra.mrb[0].mxu0 %v2646
      %v2736 = vpop.f32.mrb[0].mxu0
      %v2737 = vadd.f32 0.0, %v2736
      %v2738 = vpop.f32.mrb[0].mxu0
      %v2739 = vpop.f32.mrb[0].mxu0
      %v2740 = vadd.f32 0.0, %v2739
      %v2741 = vpop.f32.mrb[0].mxu0
      %2742 = vmatprep.mubr.bf16.mxu0 0
      %2743 = vmatmul.mubr.bf16.gmra.mrb[0].mxu0 %v2649
      %v2744 = vpop.f32.mrb[0].mxu0
      %v2745 = vadd.f32 0.0, %v2744
      %v2746 = vpop.f32.mrb[0].mxu0
      %v2747 = vpop.f32.mrb[0].mxu0
      %v2748 = vadd.f32 0.0, %v2747
      %v2749 = vpop.f32.mrb[0].mxu0
      %2750 = vmatprep.mubr.bf16.mxu0 0
      %2751 = vmatmul.mubr.bf16.gmra.mrb[0].mxu0 %v2652
      %v2752 = vpop.f32.mrb[0].mxu0
      %v2753 = vadd.f32 0.0, %v2752
      %v2754 = vpop.f32.mrb[0].mxu0
      %v2755 = vpop.f32.mrb[0].mxu0
      %v2756 = vadd.f32 0.0, %v2755
      %v2757 = vpop.f32.mrb[0].mxu0
      %2758 = vmatprep.mubr.bf16.mxu0 0
      %2759 = vmatmul.mubr.bf16.gmra.mrb[0].mxu0 %v2655
      %v2760 = vpop.f32.mrb[0].mxu0
      %v2761 = vadd.f32 0.0, %v2760
      %v2762 = vpop.f32.mrb[0].mxu0
      %v2763 = vpop.f32.mrb[0].mxu0
      %v2764 = vadd.f32 0.0, %v2763
      %v2765 = vpop.f32.mrb[0].mxu0
      %2766 = vmatprep.mubr.bf16.mxu0 0
      %2767 = vmatmul.mubr.bf16.gmra.mrb[0].mxu0 %v2658
      %v2768 = vpop.f32.mrb[0].mxu0
      %v2769 = vadd.f32 0.0, %v2768
      %v2770 = vpop.f32.mrb[0].mxu0
      %v2771 = vpop.f32.mrb[0].mxu0
      %v2772 = vadd.f32 0.0, %v2771
      %v2773 = vpop.f32.mrb[0].mxu0
      %2774 = vmatprep.mubr.bf16.mxu0 0
      %2775 = vmatmul.mubr.bf16.gmra.mrb[0].mxu0 %v2661
      %v2776 = vpop.f32.mrb[0].mxu0
      %v2777 = vadd.f32 0.0, %v2776
      %v2778 = vpop.f32.mrb[0].mxu0
      %v2779 = vpop.f32.mrb[0].mxu0
      %v2780 = vadd.f32 0.0, %v2779
      %v2781 = vpop.f32.mrb[0].mxu0
      %2782 = vmatprep.mubr.bf16.mxu0 0
      %2783 = vmatmul.mubr.bf16.gmra.mrb[0].mxu0 %v2664
      %v2784 = vpop.f32.mrb[0].mxu0
      %v2785 = vadd.f32 0.0, %v2784
      %v2786 = vpop.f32.mrb[0].mxu0
      %v2787 = vpop.f32.mrb[0].mxu0
      %v2788 = vadd.f32 0.0, %v2787
      %v2789 = vpop.f32.mrb[0].mxu0
      %2790 = vmatprep.mubr.bf16.mxu0 0
      %2791 = vmatmul.mubr.bf16.gmra.mrb[0].mxu0 %v2667
      %v2792 = vpop.f32.mrb[0].mxu0
      %v2793 = vadd.f32 0.0, %v2792
      %v2794 = vpop.f32.mrb[0].mxu0
      %v2795 = vpop.f32.mrb[0].mxu0
      %v2796 = vadd.f32 0.0, %v2795
      %v2797 = vpop.f32.mrb[0].mxu0
      %2798 = vmatprep.mubr.bf16.mxu0 0
      %2799 = vmatmul.mubr.bf16.gmra.mrb[0].mxu0 %v2670
      %v2800 = vpop.f32.mrb[0].mxu0
      %v2801 = vadd.f32 0.0, %v2800
      %v2802 = vpop.f32.mrb[0].mxu0
      %v2803 = vpop.f32.mrb[0].mxu0
      %v2804 = vadd.f32 0.0, %v2803
      %v2805 = vpop.f32.mrb[0].mxu0
      %2806 = vmatprep.mubr.bf16.mxu0 0
      %2807 = vmatmul.mubr.bf16.gmra.mrb[0].mxu0 %v2673
      %v2808 = vpop.f32.mrb[0].mxu0
      %v2809 = vadd.f32 0.0, %v2808
      %v2810 = vpop.f32.mrb[0].mxu0
      %v2811 = vpop.f32.mrb[0].mxu0
      %v2812 = vadd.f32 0.0, %v2811
      %v2813 = vpop.f32.mrb[0].mxu0
      %2814 = vmatprep.mubr.bf16.mxu0 0
      %2815 = vmatmul.mubr.bf16.gmra.mrb[0].mxu0 %v2676
      %v2816 = vpop.f32.mrb[0].mxu0
      %v2817 = vadd.f32 0.0, %v2816
      %v2818 = vpop.f32.mrb[0].mxu0
      %v2819 = vpop.f32.mrb[0].mxu0
      %v2820 = vadd.f32 0.0, %v2819
      %v2821 = vpop.f32.mrb[0].mxu0
      %2822 = vmatprep.mubr.bf16.mxu0 0
      %2823 = vmatmul.mubr.bf16.gmra.mrb[0].mxu0 %v2679
      %v2824 = vpop.f32.mrb[0].mxu0
      %v2825 = vadd.f32 0.0, %v2824
      %v2826 = vpop.f32.mrb[0].mxu0
      %v2827 = vpop.f32.mrb[0].mxu0
      %v2828 = vadd.f32 0.0, %v2827
      %v2829 = vpop.f32.mrb[0].mxu0
      %2830 = vmatprep.mubr.bf16.mxu0 0
      %2831 = vmatmul.mubr.bf16.gmra.mrb[0].mxu0 %v2682
      %v2832 = vpop.f32.mrb[0].mxu0
      %v2833 = vadd.f32 0.0, %v2832
      %v2834 = vpop.f32.mrb[0].mxu0
      %v2835 = vpop.f32.mrb[0].mxu0
      %v2836 = vadd.f32 0.0, %v2835
      %v2837 = vpop.f32.mrb[0].mxu0
      %2838 = vmatprep.mubr.bf16.mxu0 0
      %2839 = vmatmul.mubr.bf16.gmra.mrb[0].mxu0 %v2685
      %v2840 = vpop.f32.mrb[0].mxu0
      %v2841 = vadd.f32 0.0, %v2840
      %v2842 = vpop.f32.mrb[0].mxu0
      %v2843 = vpop.f32.mrb[0].mxu0
      %v2844 = vadd.f32 0.0, %v2843
      %v2845 = vpop.f32.mrb[0].mxu0
      %2846 = vmatprep.mubr.bf16.mxu0 0
      %2847 = vmatmul.mubr.bf16.gmra.mrb[0].mxu0 %v2688
      %v2848 = vpop.f32.mrb[0].mxu0
      %v2849 = vadd.f32 0.0, %v2848
      %v2850 = vpop.f32.mrb[0].mxu0
      %v2851 = vpop.f32.mrb[0].mxu0
      %v2852 = vadd.f32 0.0, %v2851
      %v2853 = vpop.f32.mrb[0].mxu0
      %2854 = vdwg.mxu0
      %v2855 = vpack.c.bf16 %v2732, %v2729
      %v2856 = vpack.c.bf16 %v2740, %v2737
      %v2857 = vpack.c.bf16 %v2748, %v2745
      %v2858 = vpack.c.bf16 %v2756, %v2753
      %v2859 = vpack.c.bf16 %v2764, %v2761
      %v2860 = vpack.c.bf16 %v2772, %v2769
      %v2861 = vpack.c.bf16 %v2780, %v2777
      %v2862 = vpack.c.bf16 %v2788, %v2785
      %v2863 = vpack.c.bf16 %v2796, %v2793
      %v2864 = vpack.c.bf16 %v2804, %v2801
      %v2865 = vpack.c.bf16 %v2812, %v2809
      %v2866 = vpack.c.bf16 %v2820, %v2817
      %v2867 = vpack.c.bf16 %v2828, %v2825
      %v2868 = vpack.c.bf16 %v2836, %v2833
      %v2869 = vpack.c.bf16 %v2844, %v2841
      %v2870 = vpack.c.bf16 %v2852, %v2849
      %v2887 = vunpack.c.l.b16 %v2855
      %v2888 = vunpack.c.h.b16 %v2855
      %v2889 = vunpack.c.l.b16 %v2856
      %v2890 = vunpack.c.h.b16 %v2856
      %v2891 = vunpack.c.l.b16 %v2857
      %v2892 = vunpack.c.h.b16 %v2857
      %v2893 = vunpack.c.l.b16 %v2858
      %v2894 = vunpack.c.h.b16 %v2858
      %v2895 = vunpack.c.l.b16 %v2859
      %v2896 = vunpack.c.h.b16 %v2859
      %v2897 = vunpack.c.l.b16 %v2860
      %v2898 = vunpack.c.h.b16 %v2860
      %v2899 = vunpack.c.l.b16 %v2861
      %v2900 = vunpack.c.h.b16 %v2861
      %v2901 = vunpack.c.l.b16 %v2862
      %v2902 = vunpack.c.h.b16 %v2862
      %v2903 = vunpack.c.l.b16 %v2863
      %v2904 = vunpack.c.h.b16 %v2863
      %v2905 = vunpack.c.l.b16 %v2864
      %v2906 = vunpack.c.h.b16 %v2864
      %v2907 = vunpack.c.l.b16 %v2865
      %v2908 = vunpack.c.h.b16 %v2865
      %v2909 = vunpack.c.l.b16 %v2866
      %v2910 = vunpack.c.h.b16 %v2866
      %v2911 = vunpack.c.l.b16 %v2867
      %v2912 = vunpack.c.h.b16 %v2867
      %v2913 = vunpack.c.l.b16 %v2868
      %v2914 = vunpack.c.h.b16 %v2868
      %v2915 = vunpack.c.l.b16 %v2869
      %v2916 = vunpack.c.h.b16 %v2869
      %v2917 = vunpack.c.l.b16 %v2870
      %v2918 = vunpack.c.h.b16 %v2870
      %v2919 = vpack.c.b16 %v2887, %v2887
      %v2920 = vpack.c.b16 %v2888, %v2888
      %v2921 = vpack.c.b16 %v2889, %v2889
      %v2922 = vpack.c.b16 %v2890, %v2890
      %v2923 = vpack.c.b16 %v2891, %v2891
      %v2924 = vpack.c.b16 %v2892, %v2892
      %v2925 = vpack.c.b16 %v2893, %v2893
      %v2926 = vpack.c.b16 %v2894, %v2894
      %v2927 = vpack.c.b16 %v2895, %v2895
      %v2928 = vpack.c.b16 %v2896, %v2896
      %v2929 = vpack.c.b16 %v2897, %v2897
      %v2930 = vpack.c.b16 %v2898, %v2898
      %v2931 = vpack.c.b16 %v2899, %v2899
      %v2932 = vpack.c.b16 %v2900, %v2900
      %v2933 = vpack.c.b16 %v2901, %v2901
      %v2934 = vpack.c.b16 %v2902, %v2902
      %v2935 = vpack.c.b16 %v2903, %v2903
      %v2936 = vpack.c.b16 %v2904, %v2904
      %v2937 = vpack.c.b16 %v2905, %v2905
      %v2938 = vpack.c.b16 %v2906, %v2906
      %v2939 = vpack.c.b16 %v2907, %v2907
      %v2940 = vpack.c.b16 %v2908, %v2908
      %v2941 = vpack.c.b16 %v2909, %v2909
      %v2942 = vpack.c.b16 %v2910, %v2910
      %v2943 = vpack.c.b16 %v2911, %v2911
      %v2944 = vpack.c.b16 %v2912, %v2912
      %v2945 = vpack.c.b16 %v2913, %v2913
      %v2946 = vpack.c.b16 %v2914, %v2914
      %v2947 = vpack.c.b16 %v2915, %v2915
      %v2948 = vpack.c.b16 %v2916, %v2916
      %v2949 = vpack.c.b16 %v2917, %v2917
      %v2950 = vpack.c.b16 %v2918, %v2918
      %vm2983 = vcmask 27648
      %2984 = vst.msk [vmem:[%s671] sm:$0xf] %vm2983, %v2919
      %2985 = vst.msk [vmem:[%s671 + $0x4] sm:$0xf] %vm2983, %v2920
      %2986 = vst.msk [vmem:[%s671 + $0x8] sm:$0xf] %vm2983, %v2921
      %2987 = vst.msk [vmem:[%s671 + $0xc] sm:$0xf] %vm2983, %v2922
      %2988 = vst.msk [vmem:[%s671 + $0x10] sm:$0xf] %vm2983, %v2923
      %2989 = vst.msk [vmem:[%s671 + $0x14] sm:$0xf] %vm2983, %v2924
      %2990 = vst.msk [vmem:[%s671 + $0x18] sm:$0xf] %vm2983, %v2925
      %2991 = vst.msk [vmem:[%s671 + $0x1c] sm:$0xf] %vm2983, %v2926
      %2992 = vst.msk [vmem:[%s671 + $0x20] sm:$0xf] %vm2983, %v2927
      %2993 = vst.msk [vmem:[%s671 + $0x24] sm:$0xf] %vm2983, %v2928
      %2994 = vst.msk [vmem:[%s671 + $0x28] sm:$0xf] %vm2983, %v2929
      %2995 = vst.msk [vmem:[%s671 + $0x2c] sm:$0xf] %vm2983, %v2930
      %2996 = vst.msk [vmem:[%s671 + $0x30] sm:$0xf] %vm2983, %v2931
      %2997 = vst.msk [vmem:[%s671 + $0x34] sm:$0xf] %vm2983, %v2932
      %2998 = vst.msk [vmem:[%s671 + $0x38] sm:$0xf] %vm2983, %v2933
      %2999 = vst.msk [vmem:[%s671 + $0x3c] sm:$0xf] %vm2983, %v2934
      %3000 = vst.msk [vmem:[%s671 + $0x40] sm:$0xf] %vm2983, %v2935
      %3001 = vst.msk [vmem:[%s671 + $0x44] sm:$0xf] %vm2983, %v2936
      %3002 = vst.msk [vmem:[%s671 + $0x48] sm:$0xf] %vm2983, %v2937
      %3003 = vst.msk [vmem:[%s671 + $0x4c] sm:$0xf] %vm2983, %v2938
      %3004 = vst.msk [vmem:[%s671 + $0x50] sm:$0xf] %vm2983, %v2939
      %3005 = vst.msk [vmem:[%s671 + $0x54] sm:$0xf] %vm2983, %v2940
      %3006 = vst.msk [vmem:[%s671 + $0x58] sm:$0xf] %vm2983, %v2941
      %3007 = vst.msk [vmem:[%s671 + $0x5c] sm:$0xf] %vm2983, %v2942
      %3008 = vst.msk [vmem:[%s671 + $0x60] sm:$0xf] %vm2983, %v2943
      %3009 = vst.msk [vmem:[%s671 + $0x64] sm:$0xf] %vm2983, %v2944
      %3010 = vst.msk [vmem:[%s671 + $0x68] sm:$0xf] %vm2983, %v2945
      %3011 = vst.msk [vmem:[%s671 + $0x6c] sm:$0xf] %vm2983, %v2946
      %3012 = vst.msk [vmem:[%s671 + $0x70] sm:$0xf] %vm2983, %v2947
      %3013 = vst.msk [vmem:[%s671 + $0x74] sm:$0xf] %vm2983, %v2948
      %3014 = vst.msk [vmem:[%s671 + $0x78] sm:$0xf] %vm2983, %v2949
      %3015 = vst.msk [vmem:[%s671 + $0x7c] sm:$0xf] %vm2983, %v2950
      %v3016 = vsel %vm1052, %v2729, 0.0
      %v3017 = vsel %vm1052, %v2732, 0.0
      %v3018 = vadd.f32 %v3016, %v3017
      %v3019 = vsel %vm1052, %v2737, 0.0
      %v3020 = vadd.f32 %v3018, %v3019
      %v3021 = vsel %vm1052, %v2740, 0.0
      %v3022 = vadd.f32 %v3020, %v3021
      %v3023 = vsel %vm1052, %v2745, 0.0
      %v3024 = vadd.f32 %v3022, %v3023
      %v3025 = vsel %vm1052, %v2748, 0.0
      %v3026 = vadd.f32 %v3024, %v3025
      %v3027 = vsel %vm1052, %v2753, 0.0
      %v3028 = vadd.f32 %v3026, %v3027
      %v3029 = vsel %vm1052, %v2756, 0.0
      %v3030 = vadd.f32 %v3028, %v3029
      %v3031 = vsel %vm1052, %v2761, 0.0
      %v3032 = vadd.f32 %v3030, %v3031
      %v3033 = vsel %vm1052, %v2764, 0.0
      %v3034 = vadd.f32 %v3032, %v3033
      %v3035 = vsel %vm1052, %v2769, 0.0
      %v3036 = vadd.f32 %v3034, %v3035
      %v3037 = vsel %vm1052, %v2772, 0.0
      %v3038 = vadd.f32 %v3036, %v3037
      %v3039 = vsel %vm1052, %v2777, 0.0
      %v3040 = vadd.f32 %v3038, %v3039
      %v3041 = vsel %vm1052, %v2780, 0.0
      %v3042 = vadd.f32 %v3040, %v3041
      %v3043 = vsel %vm1052, %v2785, 0.0
      %v3044 = vadd.f32 %v3042, %v3043
      %v3045 = vsel %vm1052, %v2788, 0.0
      %v3046 = vadd.f32 %v3044, %v3045
      %v3047 = vsel %vm1052, %v2793, 0.0
      %v3048 = vadd.f32 %v3046, %v3047
      %v3049 = vsel %vm1052, %v2796, 0.0
      %v3050 = vadd.f32 %v3048, %v3049
      %v3051 = vsel %vm1052, %v2801, 0.0
      %v3052 = vadd.f32 %v3050, %v3051
      %v3053 = vsel %vm1052, %v2804, 0.0
      %v3054 = vadd.f32 %v3052, %v3053
      %v3055 = vsel %vm1052, %v2809, 0.0
      %v3056 = vadd.f32 %v3054, %v3055
      %v3057 = vsel %vm1052, %v2812, 0.0
      %v3058 = vadd.f32 %v3056, %v3057
      %v3059 = vsel %vm1052, %v2817, 0.0
      %v3060 = vadd.f32 %v3058, %v3059
      %v3061 = vsel %vm1052, %v2820, 0.0
      %v3062 = vadd.f32 %v3060, %v3061
      %v3063 = vsel %vm1052, %v2825, 0.0
      %v3064 = vadd.f32 %v3062, %v3063
      %v3065 = vsel %vm1052, %v2828, 0.0
      %v3066 = vadd.f32 %v3064, %v3065
      %v3067 = vsel %vm1052, %v2833, 0.0
      %v3068 = vadd.f32 %v3066, %v3067
      %v3069 = vsel %vm1052, %v2836, 0.0
      %v3070 = vadd.f32 %v3068, %v3069
      %v3071 = vsel %vm1052, %v2841, 0.0
      %v3072 = vadd.f32 %v3070, %v3071
      %v3073 = vsel %vm1052, %v2844, 0.0
      %v3074 = vadd.f32 %v3072, %v3073
      %v3075 = vsel %vm1052, %v2849, 0.0
      %v3076 = vadd.f32 %v3074, %v3075
      %v3077 = vsel %vm1052, %v2852, 0.0
      %v3078 = vadd.f32 %v3076, %v3077
      %v3079 = vrot.slane %v3078, 4
      %v3080 = vadd.f32 %v3078, %v3079
      %v3081 = vrot.slane %v3080, 2
      %v3082 = vadd.f32 %v3080, %v3081
      %v3083 = vrot.slane %v3082, 1
      %v3084 = vadd.f32 %v3082, %v3083
      %v3085 = vmul.f32 %v3084, 0.00390625
      %v3086 = vsub.f32 %v2729, %v3085
      %v3087 = vsub.f32 %v2732, %v3085
      %v3088 = vsub.f32 %v2737, %v3085
      %v3089 = vsub.f32 %v2740, %v3085
      %v3090 = vsub.f32 %v2745, %v3085
      %v3091 = vsub.f32 %v2748, %v3085
      %v3092 = vsub.f32 %v2753, %v3085
      %v3093 = vsub.f32 %v2756, %v3085
      %v3094 = vsub.f32 %v2761, %v3085
      %v3095 = vsub.f32 %v2764, %v3085
      %v3096 = vsub.f32 %v2769, %v3085
      %v3097 = vsub.f32 %v2772, %v3085
      %v3098 = vsub.f32 %v2777, %v3085
      %v3099 = vsub.f32 %v2780, %v3085
      %v3100 = vsub.f32 %v2785, %v3085
      %v3101 = vsub.f32 %v2788, %v3085
      %v3102 = vsub.f32 %v2793, %v3085
      %v3103 = vsub.f32 %v2796, %v3085
      %v3104 = vsub.f32 %v2801, %v3085
      %v3105 = vsub.f32 %v2804, %v3085
      %v3106 = vsub.f32 %v2809, %v3085
      %v3107 = vsub.f32 %v2812, %v3085
      %v3108 = vsub.f32 %v2817, %v3085
      %v3109 = vsub.f32 %v2820, %v3085
      %v3110 = vsub.f32 %v2825, %v3085
      %v3111 = vsub.f32 %v2828, %v3085
      %v3112 = vsub.f32 %v2833, %v3085
      %v3113 = vsub.f32 %v2836, %v3085
      %v3114 = vsub.f32 %v2841, %v3085
      %v3115 = vsub.f32 %v2844, %v3085
      %v3116 = vsub.f32 %v2849, %v3085
      %v3117 = vsub.f32 %v2852, %v3085
      %v3118 = vmul.f32 %v3086, %v3086
      %v3119 = vmul.f32 %v3087, %v3087
      %v3120 = vmul.f32 %v3088, %v3088
      %v3121 = vmul.f32 %v3089, %v3089
      %v3122 = vmul.f32 %v3090, %v3090
      %v3123 = vmul.f32 %v3091, %v3091
      %v3124 = vmul.f32 %v3092, %v3092
      %v3125 = vmul.f32 %v3093, %v3093
      %v3126 = vmul.f32 %v3094, %v3094
      %v3127 = vmul.f32 %v3095, %v3095
      %v3128 = vmul.f32 %v3096, %v3096
      %v3129 = vmul.f32 %v3097, %v3097
      %v3130 = vmul.f32 %v3098, %v3098
      %v3131 = vmul.f32 %v3099, %v3099
      %v3132 = vmul.f32 %v3100, %v3100
      %v3133 = vmul.f32 %v3101, %v3101
      %v3134 = vmul.f32 %v3102, %v3102
      %v3135 = vmul.f32 %v3103, %v3103
      %v3136 = vmul.f32 %v3104, %v3104
      %v3137 = vmul.f32 %v3105, %v3105
      %v3138 = vmul.f32 %v3106, %v3106
      %v3139 = vmul.f32 %v3107, %v3107
      %v3140 = vmul.f32 %v3108, %v3108
      %v3141 = vmul.f32 %v3109, %v3109
      %v3142 = vmul.f32 %v3110, %v3110
      %v3143 = vmul.f32 %v3111, %v3111
      %v3144 = vmul.f32 %v3112, %v3112
      %v3145 = vmul.f32 %v3113, %v3113
      %v3146 = vmul.f32 %v3114, %v3114
      %v3147 = vmul.f32 %v3115, %v3115
      %v3148 = vmul.f32 %v3116, %v3116
      %v3149 = vmul.f32 %v3117, %v3117
      %v3150 = vsel %vm1052, %v3118, 0.0
      %v3151 = vsel %vm1052, %v3119, 0.0
      %v3152 = vadd.f32 %v3150, %v3151
      %v3153 = vsel %vm1052, %v3120, 0.0
      %v3154 = vadd.f32 %v3152, %v3153
      %v3155 = vsel %vm1052, %v3121, 0.0
      %v3156 = vadd.f32 %v3154, %v3155
      %v3157 = vsel %vm1052, %v3122, 0.0
      %v3158 = vadd.f32 %v3156, %v3157
      %v3159 = vsel %vm1052, %v3123, 0.0
      %v3160 = vadd.f32 %v3158, %v3159
      %v3161 = vsel %vm1052, %v3124, 0.0
      %v3162 = vadd.f32 %v3160, %v3161
      %v3163 = vsel %vm1052, %v3125, 0.0
      %v3164 = vadd.f32 %v3162, %v3163
      %v3165 = vsel %vm1052, %v3126, 0.0
      %v3166 = vadd.f32 %v3164, %v3165
      %v3167 = vsel %vm1052, %v3127, 0.0
      %v3168 = vadd.f32 %v3166, %v3167
      %v3169 = vsel %vm1052, %v3128, 0.0
      %v3170 = vadd.f32 %v3168, %v3169
      %v3171 = vsel %vm1052, %v3129, 0.0
      %v3172 = vadd.f32 %v3170, %v3171
      %v3173 = vsel %vm1052, %v3130, 0.0
      %v3174 = vadd.f32 %v3172, %v3173
      %v3175 = vsel %vm1052, %v3131, 0.0
      %v3176 = vadd.f32 %v3174, %v3175
      %v3177 = vsel %vm1052, %v3132, 0.0
      %v3178 = vadd.f32 %v3176, %v3177
      %v3179 = vsel %vm1052, %v3133, 0.0
      %v3180 = vadd.f32 %v3178, %v3179
      %v3181 = vsel %vm1052, %v3134, 0.0
      %v3182 = vadd.f32 %v3180, %v3181
      %v3183 = vsel %vm1052, %v3135, 0.0
      %v3184 = vadd.f32 %v3182, %v3183
      %v3185 = vsel %vm1052, %v3136, 0.0
      %v3186 = vadd.f32 %v3184, %v3185
      %v3187 = vsel %vm1052, %v3137, 0.0
      %v3188 = vadd.f32 %v3186, %v3187
      %v3189 = vsel %vm1052, %v3138, 0.0
      %v3190 = vadd.f32 %v3188, %v3189
      %v3191 = vsel %vm1052, %v3139, 0.0
      %v3192 = vadd.f32 %v3190, %v3191
      %v3193 = vsel %vm1052, %v3140, 0.0
      %v3194 = vadd.f32 %v3192, %v3193
      %v3195 = vsel %vm1052, %v3141, 0.0
      %v3196 = vadd.f32 %v3194, %v3195
      %v3197 = vsel %vm1052, %v3142, 0.0
      %v3198 = vadd.f32 %v3196, %v3197
      %v3199 = vsel %vm1052, %v3143, 0.0
      %v3200 = vadd.f32 %v3198, %v3199
      %v3201 = vsel %vm1052, %v3144, 0.0
      %v3202 = vadd.f32 %v3200, %v3201
      %v3203 = vsel %vm1052, %v3145, 0.0
      %v3204 = vadd.f32 %v3202, %v3203
      %v3205 = vsel %vm1052, %v3146, 0.0
      %v3206 = vadd.f32 %v3204, %v3205
      %v3207 = vsel %vm1052, %v3147, 0.0
      %v3208 = vadd.f32 %v3206, %v3207
      %v3209 = vsel %vm1052, %v3148, 0.0
      %v3210 = vadd.f32 %v3208, %v3209
      %v3211 = vsel %vm1052, %v3149, 0.0
      %v3212 = vadd.f32 %v3210, %v3211
      %v3213 = vrot.slane %v3212, 4
      %v3214 = vadd.f32 %v3212, %v3213
      %v3215 = vrot.slane %v3214, 2
      %v3216 = vadd.f32 %v3214, %v3215
      %v3217 = vrot.slane %v3216, 1
      %v3218 = vadd.f32 %v3216, %v3217
      %vm3219 = vcmask 24576
      %3220 = vst.msk [vmem:[%s676] sm:$0x1] %vm3219, %v3085
      %3221 = vst.msk [vmem:[%s681] sm:$0x1] %vm3219, %v3218
      %s3222 = sadd.s32 %s25, %s26
      %p3223 = scmp.lt.s32.totalorder %s3222, 1
      %s3224 = scalar_select %p3223, %s3222, 1
      %s3225 = smul.addr %s3224, 32
      %s3226 = smul.addr %s3225, 4
      %s3227 = scalar_lea.vmem %s7, %s3226
      %s3228 = sadd.s32 %s25, %s26
      %p3229 = scmp.lt.s32.totalorder %s3228, 1
      %s3230 = scalar_select %p3229, %s3228, 1
      %s3231 = scalar_lea.vmem %s8, %s3230
      %s3232 = sadd.s32 %s25, %s26
      %p3233 = scmp.lt.s32.totalorder %s3232, 1
      %s3234 = scalar_select %p3233, %s3232, 1
      %s3235 = scalar_lea.vmem %s9, %s3234
      // Predicated region
      $region49: #{upblock_forward.5} parent=47 // pred_check
        %p3236 = pneg %p274
      $region50: #{upblock_forward.5} parent=47 // pred_check_branch
        %3238 = sbr.rel (%p3236) target = $region52
      $region51: #{upblock_forward.5} parent=47 // pred_region
        %s3239 = sadd.s32 %s25, %s26
      $region52: #{upblock_forward.5} parent=47 // pred_fallthru
        _
      // Predicated region
      $region53: #{upblock_forward.5} parent=47 // pred_check
        %p3240 = pneg %p302
      $region54: #{upblock_forward.5} parent=47 // pred_check_branch
        %3242 = sbr.rel (%p3240) target = $region56
      $region55: #{upblock_forward.5} parent=47 // pred_region
        %s3243 = sadd.s32 %s25, %s26
      $region56: #{upblock_forward.5} parent=47 // pred_fallthru
        _
      // Predicated region
      $region57: #{upblock_forward.5} parent=47 // pred_check
        %p3244 = pneg %p330
      $region58: #{upblock_forward.5} parent=47 // pred_check_branch
        %3246 = sbr.rel (%p3244) target = $region60
      $region59: #{upblock_forward.5} parent=47 // pred_region
        %s3247 = sadd.s32 %s25, %s26
      $region60: #{upblock_forward.5} parent=47 // pred_fallthru
        _
    $region48: #{upblock_forward.5} parent=5 // pred_fallthru
      _
    %p3248 = scmp.le.s32.totalorder 2, %s16
    // Predicated region
    $region61: #{upblock_forward.5} parent=5 // pred_check
      %p3249 = pneg %p3248
    $region62: #{upblock_forward.5} parent=5 // pred_check_branch
      %3251 = sbr.rel (%p3249) target = $region64
    $region63: #{upblock_forward.5} parent=5 // pred_region
      %s3252 = ssub.s32 %s16, 2
      // Predicated region
      $region65: #{upblock_forward.5} parent=63 // pred_check
        %p3253 = pneg %p280
      $region66: #{upblock_forward.5} parent=63 // pred_check_branch
        %3255 = sbr.rel (%p3253) target = $region68
      $region67: #{upblock_forward.5} parent=63 // pred_region
        %s3256 = sadd.s32 %s27, %s28
        %p3257 = scmp.lt.s32.totalorder %s3256, 1
        %s3258 = scalar_select %p3257, %s3256, 1
        %s3259 = smul.addr %s3258, 32
        %s3260 = smul.addr %s3259, 4
        %s3261 = scalar_lea.vmem %s7, %s3260
      $region68: #{upblock_forward.5} parent=63 // pred_fallthru
        _
      // Predicated region
      $region69: #{upblock_forward.5} parent=63 // pred_check
        %p3262 = pneg %p308
      $region70: #{upblock_forward.5} parent=63 // pred_check_branch
        %3264 = sbr.rel (%p3262) target = $region72
      $region71: #{upblock_forward.5} parent=63 // pred_region
        %s3265 = sadd.s32 %s27, %s28
        %p3266 = scmp.lt.s32.totalorder %s3265, 1
        %s3267 = scalar_select %p3266, %s3265, 1
        %s3268 = scalar_lea.vmem %s8, %s3267
      $region72: #{upblock_forward.5} parent=63 // pred_fallthru
        _
      // Predicated region
      $region73: #{upblock_forward.5} parent=63 // pred_check
        %p3269 = pneg %p336
      $region74: #{upblock_forward.5} parent=63 // pred_check_branch
        %3271 = sbr.rel (%p3269) target = $region76
      $region75: #{upblock_forward.5} parent=63 // pred_region
        %s3272 = sadd.s32 %s27, %s28
        %p3273 = scmp.lt.s32.totalorder %s3272, 1
        %s3274 = scalar_select %p3273, %s3272, 1
        %s3275 = scalar_lea.vmem %s9, %s3274
      $region76: #{upblock_forward.5} parent=63 // pred_fallthru
        _
    $region64: #{upblock_forward.5} parent=5 // pred_fallthru
      _
  $region6: #{upblock_forward.5} parent=0 // loop_footer
    %s20 = sadd.s32 1, %s16
  $region7: #{upblock_forward.5} parent=0 // loop_footer_branch
    %15 = sbr.rel target = $region3
  $region8: #{upblock_forward.5} parent=0 // loop_exit
    _

</llo_original>
